<compile_context>
chip_gen: v7x
topology: tpu7x:2x2x1
jax: 0.10.0
libtpu: 0.0.40
codegen_flags: <defaults>
</compile_context>

<pallas_src>
import functools

import jax
import jax.numpy as jnp
from jax import lax
from jax.experimental import pallas as pl
from jax.experimental.pallas import tpu as pltpu


# ----------------------------- kernel helpers ------------------------------

def _leaky_relu(x, slope=0.01):  # torch nn.LeakyReLU default slope
    return jnp.where(x >= 0, x, slope * x)


def _encode_fm(x, L):
    # TODO(synk): `encode` is not defined in model.py; assuming the standard
    # NeRF sin/cos positional encoding (no identity term), which matches the
    # declared MLP input width (P+3)*L*2.  Feature-major: concat along axis 0.
    # Only the l=0 band uses the EUP; higher bands use double-angle identities
    # (sin2t = 2 sc, cos2t = 1 - 2 s^2) on the VPU.
    s = jnp.sin(jnp.pi * x)
    c = jnp.cos(jnp.pi * x)
    parts = [s, c]
    for _ in range(1, L):
        s, c = 2.0 * s * c, 1.0 - 2.0 * s * s
        parts.append(s)
        parts.append(c)
    return jnp.concatenate(parts, axis=0)


# --------------------------------- kernel ----------------------------------

def tensorf_kernel(xyz_ref, dir_ref, fac_ref, facn_ref, Bt_ref,
                   w1f_ref, w1d_ref, b1_ref, w2_ref, b2_ref, w3_ref, b3_ref,
                   out_ref, *, N, R_s, L, lo, inv_step, sigma_bias):
    TM = xyz_ref.shape[1]
    xyz = xyz_ref[...]                                        # (3, TM)
    n_iota = lax.broadcasted_iota(jnp.int32, (N, TM), 0)

    s_prod = None
    f_prod = None
    for axis in range(3):
        x_row = xyz[axis:axis + 1, :]                         # (1, TM)

        # Uniform (linspace) grid -> analytic indexing.  Floor-based left index
        # plus clamped lerp weight reproduces the torch searchsorted/clamp
        # semantics exactly (continuity at knots, clamp at both ends).
        t = (x_row - lo[axis]) * inv_step[axis]
        i_f = jnp.clip(jnp.floor(t), 0.0, float(N - 2))
        i_left = i_f.astype(jnp.int32)                        # in [0, N-2]
        w = jnp.clip(t - i_f, 0.0, 1.0)                       # (1, TM)

        # Single one-hot selector per axis (exact in bf16).
        oh = (n_iota == i_left).astype(jnp.bfloat16)          # (N, TM)

        # Fused sigma+feature gather; the "right" neighbor uses factors that
        # were pre-shifted by one along N in the wrapper.
        left = jnp.dot(fac_ref[axis], oh,
                       preferred_element_type=jnp.float32)    # (R_s+R_c, TM)
        right = jnp.dot(facn_ref[axis], oh,
                        preferred_element_type=jnp.float32)
        lerped = left + (right - left) * w

        s_l = lerped[:R_s]
        f_l = lerped[R_s:]
        if axis == 0:
            s_prod, f_prod = s_l, f_l
        else:
            s_prod = s_prod * s_l
            f_prod = f_prod * f_l

    # density: product over the 3 axes, sum over R_s, softplus
    sigmas = jnp.sum(s_prod, axis=0, keepdims=True) + sigma_bias   # (1, TM)
    sigma_out = jax.nn.softplus(sigmas)

    # appearance features: B^T @ f_prod  (feature-major)
    feats = jnp.dot(Bt_ref[...], f_prod.astype(jnp.bfloat16),
                    preferred_element_type=jnp.float32)            # (P, TM)

    enc_f = _encode_fm(feats, L).astype(jnp.bfloat16)              # (2LP, TM)
    enc_d = _encode_fm(dir_ref[...], L).astype(jnp.bfloat16)       # (6L,  TM)

    # w1 split in the wrapper -> no concat of enc_f/enc_d needed
    h = jnp.dot(w1f_ref[...], enc_f, preferred_element_type=jnp.float32)
    h = h + jnp.dot(w1d_ref[...], enc_d, preferred_element_type=jnp.float32)
    h = _leaky_relu(h + b1_ref[...])
    h = _leaky_relu(jnp.dot(w2_ref[...], h.astype(jnp.bfloat16),
                            preferred_element_type=jnp.float32) + b2_ref[...])
    rgb = jax.nn.sigmoid(jnp.dot(w3_ref[...], h.astype(jnp.bfloat16),
                                 preferred_element_type=jnp.float32) + b3_ref[...])

    out_ref[...] = jnp.concatenate([sigma_out, rgb], axis=0)       # (4, TM)


# --------------------------------- wrapper ----------------------------------

def tensorf_forward(xyz, directions, params, *, bbox, L=2, sigma_bias=-5.0,
                    TM=1024):
    xyz_t = xyz.reshape(-1, 3).T.astype(jnp.float32)          # (3, M)
    dirs_t = directions.reshape(-1, 3).T.astype(jnp.float32)  # (3, M)
    M = xyz_t.shape[1]

    # Tile size: multiple of 128, never larger than needed for this M.
    TM = max(128, min(TM, pl.next_power_of_2(M)))
    pad = (-M) % TM
    if pad:
        xyz_t = jnp.pad(xyz_t, ((0, 0), (0, pad)))
        dirs_t = jnp.pad(dirs_t, ((0, 0), (0, pad)))
    Mp = M + pad
    n_tiles = Mp // TM

    N = params["voxel"].shape[1]
    R_s = params["sigma"].shape[1]
    R_c = params["feature"].shape[1]
    P = params["B"].shape[1]
    C = params["w1"].shape[0]
    d_f = P * 2 * L

    # Uniform grid parameters (voxel is always linspace(bbox) in the module).
    lo = tuple(float(bbox[i][0]) for i in range(3))
    step = tuple((float(bbox[i][1]) - float(bbox[i][0])) / (N - 1)
                 for i in range(3))
    inv_step = tuple(1.0 / s for s in step)

    # Fuse sigma+feature along the rank axis; pre-shift by one along N for the
    # "right" neighbor (edge value duplicated, never selected since i_left<=N-2).
    fac = jnp.concatenate([params["sigma"], params["feature"]], axis=1)
    fac_next = jnp.concatenate([fac[:, :, 1:], fac[:, :, -1:]], axis=2)
    fac = fac.astype(jnp.bfloat16)                 # (3, R_s+R_c, N)
    fac_next = fac_next.astype(jnp.bfloat16)

    B_t = params["B"].T.astype(jnp.bfloat16)       # (P, R_c)
    w1f = params["w1"][:, :d_f].astype(jnp.bfloat16)
    w1d = params["w1"][:, d_f:].astype(jnp.bfloat16)
    w2 = params["w2"].astype(jnp.bfloat16)
    w3 = params["w3"].astype(jnp.bfloat16)
    b1 = params["b1"].astype(jnp.float32)
    b2 = params["b2"].astype(jnp.float32)
    b3 = params["b3"].astype(jnp.float32)

    kernel = functools.partial(tensorf_kernel, N=N, R_s=R_s, L=L, lo=lo,
                               inv_step=inv_step, sigma_bias=sigma_bias)

    def full(shape):
        nd = len(shape)
        return pl.BlockSpec(shape, lambda *_, _nd=nd: (0,) * _nd)

    out = pl.pallas_call(
        kernel,
        out_shape=jax.ShapeDtypeStruct((4, Mp), jnp.float32),
        grid=(n_tiles,),
        in_specs=[
            pl.BlockSpec((3, TM), lambda i: (0, i)),    # xyz (transposed)
            pl.BlockSpec((3, TM), lambda i: (0, i)),    # directions (transposed)
            full((3, R_s + R_c, N)),                    # CP factors (sigma|feature)
            full((3, R_s + R_c, N)),                    # CP factors shifted by 1
            full((P, R_c)),                             # B^T
            full((C, d_f)), full((C, 6 * L)),           # w1 split (feat / dirs)
            full((C, 1)),                               # b1
            full((C, C)), full((C, 1)),                 # w2, b2
            full((3, C)), full((3, 1)),                 # w3, b3
        ],
        out_specs=pl.BlockSpec((4, TM), lambda i: (0, i)),
        compiler_params=pltpu.CompilerParams(
            dimension_semantics=("parallel",),
            vmem_limit_bytes=32 * 1024 * 1024),
    )(xyz_t, dirs_t, fac, fac_next, B_t, w1f, w1d, b1, w2, b2, w3, b3)

    return out[0, :M], out[1:4, :M].T   # (M,), (M, 3)


# ------------------------- pure-JAX reference (check) -----------------------

def _encode_ref(x, L):
    parts = []
    for l in range(L):
        f = (2.0 ** l) * jnp.pi * x
        parts.append(jnp.sin(f))
        parts.append(jnp.cos(f))
    return jnp.concatenate(parts, axis=1)


def tensorf_ref(xyz, directions, params, *, L=2, sigma_bias=-5.0):
    voxel = params["voxel"]; sigma = params["sigma"]; feature = params["feature"]
    B = params["B"]
    xyz_t = xyz.reshape(-1, 3).T
    dirs = directions.reshape(-1, 3)
    N = voxel.shape[1]
    inds = jax.vmap(lambda a, v: jnp.searchsorted(a, v, side="left"))(voxel, xyz_t)
    inds_left = jnp.clip(inds - 1, 0, N - 1)
    inds_right = jnp.clip(inds, 0, N - 1)
    vox_left = jnp.take_along_axis(voxel, inds_left, axis=1)
    vox_right = jnp.take_along_axis(voxel, inds_right, axis=1)
    w = (xyz_t - vox_left) / (vox_right - vox_left + 1e-6)

    def lerp(par):
        left = jnp.take_along_axis(par, inds_left[:, None, :], axis=2)
        right = jnp.take_along_axis(par, inds_right[:, None, :], axis=2)
        return left + (right - left) * w[:, None, :]

    s_lerp = jnp.transpose(lerp(sigma), (2, 1, 0))     # (M, R_s, 3)
    sigmas = jax.nn.softplus(jnp.sum(jnp.prod(s_lerp, axis=2), axis=1) + sigma_bias)

    f_lerp = jnp.transpose(lerp(feature), (2, 1, 0))   # (M, R_c, 3)
    feats = jnp.prod(f_lerp, axis=2) @ B               # (M, P)

    x = jnp.concatenate([_encode_ref(feats, L), _encode_ref(dirs, L)], axis=1)
    h = _leaky_relu(x @ params["w1"].T + params["b1"].reshape(1, -1))
    h = _leaky_relu(h @ params["w2"].T + params["b2"].reshape(1, -1))
    rgb = jax.nn.sigmoid(h @ params["w3"].T + params["b3"].reshape(1, -1))
    return sigmas, rgb


# ----------------------------------- main ------------------------------------

if __name__ == "__main__":
    # Small, deterministic instantiation (constructor args scaled down).
    N = 32          # voxel resolution (N_init)
    R_s = 8         # density rank
    R_c = 16        # appearance rank
    P = 27          # appearance feature dim
    L = 2           # positional-encoding bands
    channels = 32   # MLP width
    M = 2048        # number of query points
    bbox = ((-1.0, 1.0),) * 3
    D_in = (P + 3) * L * 2

    key = jax.random.PRNGKey(0)
    ks = jax.random.split(key, 11)

    params = {
        "voxel": jnp.stack([jnp.linspace(lo_, hi_, N) for lo_, hi_ in bbox], axis=0),
        "sigma": 0.1 * jax.random.normal(ks[0], (3, R_s, N), jnp.float32),
        "feature": 0.1 * jax.random.normal(ks[1], (3, R_c, N), jnp.float32),
        "B": jax.random.normal(ks[2], (R_c, P), jnp.float32),
        "w1": 0.1 * jax.random.normal(ks[3], (channels, D_in), jnp.float32),
        "b1": 0.01 * jax.random.normal(ks[4], (channels, 1), jnp.float32),
        "w2": 0.1 * jax.random.normal(ks[5], (channels, channels), jnp.float32),
        "b2": 0.01 * jax.random.normal(ks[6], (channels, 1), jnp.float32),
        "w3": 0.1 * jax.random.normal(ks[7], (3, channels), jnp.float32),
        "b3": 0.01 * jax.random.normal(ks[8], (3, 1), jnp.float32),
    }

    xyz = jax.random.uniform(ks[9], (M, 3), jnp.float32, minval=-0.95, maxval=0.95)
    directions = jax.random.normal(ks[10], (M, 3), jnp.float32)
    directions = directions / jnp.linalg.norm(directions, axis=1, keepdims=True)

    fwd = jax.jit(functools.partial(tensorf_forward, params=params, bbox=bbox,
                                    L=L, sigma_bias=-5.0, TM=512))
    sigmas, rgb = fwd(xyz, directions)
    jax.block_until_ready((sigmas, rgb))

    sig_ref, rgb_ref = tensorf_ref(xyz, directions, params, L=L, sigma_bias=-5.0)
    assert sigmas.shape == (M,) and rgb.shape == (M, 3)
    assert jnp.allclose(sigmas, sig_ref, atol=1e-2, rtol=1e-2)
    assert jnp.allclose(rgb, rgb_ref, atol=1e-2, rtol=1e-2)

    print("KERNEL_OK")
</pallas_src>

<mosaic_0001>
module attributes {stable_mosaic.version = 11 : i64} {
  func.func @tensorf_kernel(%arg0: i32, %arg1: memref<3x512xf32, #tpu.memory_space<vmem>>, %arg2: memref<3x512xf32, #tpu.memory_space<vmem>>, %arg3: memref<3x24x32xbf16, #tpu.memory_space<vmem>>, %arg4: memref<3x24x32xbf16, #tpu.memory_space<vmem>>, %arg5: memref<27x16xbf16, #tpu.memory_space<vmem>>, %arg6: memref<32x108xbf16, #tpu.memory_space<vmem>>, %arg7: memref<32x12xbf16, #tpu.memory_space<vmem>>, %arg8: memref<32x1xf32, #tpu.memory_space<vmem>>, %arg9: memref<32x32xbf16, #tpu.memory_space<vmem>>, %arg10: memref<32x1xf32, #tpu.memory_space<vmem>>, %arg11: memref<3x32xbf16, #tpu.memory_space<vmem>>, %arg12: memref<3x1xf32, #tpu.memory_space<vmem>>, %arg13: memref<4x512xf32, #tpu.memory_space<vmem>>) attributes {dimension_semantics = [#tpu.dimension_semantics<parallel>], iteration_bounds = array<i64: 4>, scalar_prefetch = 0 : i64, scratch_operands = 0 : i64, tpu.core_type = #tpu.core_type<tc>, window_params = [{transform_indices = @transform_0, window_bounds = array<i64: 3, 512>}, {transform_indices = @transform_1, window_bounds = array<i64: 3, 512>}, {pipeline_mode = #tpu.pipeline_mode<synchronous>, transform_indices = @transform_2, window_bounds = array<i64: 3, 24, 32>}, {pipeline_mode = #tpu.pipeline_mode<synchronous>, transform_indices = @transform_3, window_bounds = array<i64: 3, 24, 32>}, {pipeline_mode = #tpu.pipeline_mode<synchronous>, transform_indices = @transform_4, window_bounds = array<i64: 27, 16>}, {pipeline_mode = #tpu.pipeline_mode<synchronous>, transform_indices = @transform_5, window_bounds = array<i64: 32, 108>}, {pipeline_mode = #tpu.pipeline_mode<synchronous>, transform_indices = @transform_6, window_bounds = array<i64: 32, 12>}, {pipeline_mode = #tpu.pipeline_mode<synchronous>, transform_indices = @transform_7, window_bounds = array<i64: 32, 1>}, {pipeline_mode = #tpu.pipeline_mode<synchronous>, transform_indices = @transform_8, window_bounds = array<i64: 32, 32>}, {pipeline_mode = #tpu.pipeline_mode<synchronous>, transform_indices = @transform_9, window_bounds = array<i64: 32, 1>}, {pipeline_mode = #tpu.pipeline_mode<synchronous>, transform_indices = @transform_10, window_bounds = array<i64: 3, 32>}, {pipeline_mode = #tpu.pipeline_mode<synchronous>, transform_indices = @transform_11, window_bounds = array<i64: 3, 1>}, {transform_indices = @transform_12, window_bounds = array<i64: 4, 512>}]} {
    %c0 = arith.constant 0 : index
    %c0_0 = arith.constant 0 : index
    %0 = vector.load %arg1[%c0, %c0_0] : memref<3x512xf32, #tpu.memory_space<vmem>>, vector<3x512xf32>
    %1 = tpu.iota {dimensions = array<i32: 0>} : vector<32x512xi32>
    %2 = vector.extract_strided_slice %0 {offsets = [0, 0], sizes = [1, 512], strides = [1, 1]} : vector<3x512xf32> to vector<1x512xf32>
    %cst = arith.constant -1.000000e+00 : f32
    %3 = vector.broadcast %cst : f32 to vector<1x512xf32>
    %4 = arith.subf %2, %3 : vector<1x512xf32>
    %cst_1 = arith.constant 1.550000e+01 : f32
    %5 = vector.broadcast %cst_1 : f32 to vector<1x512xf32>
    %6 = arith.mulf %4, %5 : vector<1x512xf32>
    %7 = math.floor %6 : vector<1x512xf32>
    %cst_2 = arith.constant 0.000000e+00 : f32
    %cst_3 = arith.constant 3.000000e+01 : f32
    %8 = vector.broadcast %cst_2 : f32 to vector<1x512xf32>
    %9 = arith.maximumf %8, %7 : vector<1x512xf32>
    %10 = vector.broadcast %cst_3 : f32 to vector<1x512xf32>
    %11 = arith.minimumf %10, %9 : vector<1x512xf32>
    %12 = arith.fptosi %11 : vector<1x512xf32> to vector<1x512xi32>
    %13 = arith.subf %6, %11 : vector<1x512xf32>
    %cst_4 = arith.constant 0.000000e+00 : f32
    %cst_5 = arith.constant 1.000000e+00 : f32
    %14 = vector.broadcast %cst_4 : f32 to vector<1x512xf32>
    %15 = arith.maximumf %14, %13 : vector<1x512xf32>
    %16 = vector.broadcast %cst_5 : f32 to vector<1x512xf32>
    %17 = arith.minimumf %16, %15 : vector<1x512xf32>
    %18 = vector.broadcast %12 : vector<1x512xi32> to vector<32x512xi32>
    %19 = arith.cmpi eq, %1, %18 : vector<32x512xi32>
    %20 = arith.extui %19 : vector<32x512xi1> to vector<32x512xi32>
    %21 = arith.sitofp %20 : vector<32x512xi32> to vector<32x512xf32>
    %22 = arith.truncf %21 : vector<32x512xf32> to vector<32x512xbf16>
    %c0_6 = arith.constant 0 : index
    %c0_7 = arith.constant 0 : index
    %c0_8 = arith.constant 0 : index
    %23 = vector.load %arg3[%c0_6, %c0_7, %c0_8] : memref<3x24x32xbf16, #tpu.memory_space<vmem>>, vector<1x24x32xbf16>
    %24 = vector.shape_cast %23 : vector<1x24x32xbf16> to vector<24x32xbf16>
    %cst_9 = arith.constant dense<0.000000e+00> : vector<24x512xf32>
    %25 = tpu.matmul %24, %22, %cst_9 {dimension_numbers = #tpu.dot_dimension_numbers<[1], [0], [0], [1], [0, 0, 1, 1], [], []>} : vector<24x32xbf16>, vector<32x512xbf16>, vector<24x512xf32> -> vector<24x512xf32>
    %c0_10 = arith.constant 0 : index
    %c0_11 = arith.constant 0 : index
    %c0_12 = arith.constant 0 : index
    %26 = vector.load %arg4[%c0_10, %c0_11, %c0_12] : memref<3x24x32xbf16, #tpu.memory_space<vmem>>, vector<1x24x32xbf16>
    %27 = vector.shape_cast %26 : vector<1x24x32xbf16> to vector<24x32xbf16>
    %cst_13 = arith.constant dense<0.000000e+00> : vector<24x512xf32>
    %28 = tpu.matmul %27, %22, %cst_13 {dimension_numbers = #tpu.dot_dimension_numbers<[1], [0], [0], [1], [0, 0, 1, 1], [], []>} : vector<24x32xbf16>, vector<32x512xbf16>, vector<24x512xf32> -> vector<24x512xf32>
    %29 = arith.subf %28, %25 : vector<24x512xf32>
    %30 = vector.broadcast %17 : vector<1x512xf32> to vector<24x512xf32>
    %31 = arith.mulf %29, %30 : vector<24x512xf32>
    %32 = arith.addf %25, %31 : vector<24x512xf32>
    %33 = vector.extract_strided_slice %32 {offsets = [0, 0], sizes = [8, 512], strides = [1, 1]} : vector<24x512xf32> to vector<8x512xf32>
    %34 = vector.extract_strided_slice %32 {offsets = [8, 0], sizes = [16, 512], strides = [1, 1]} : vector<24x512xf32> to vector<16x512xf32>
    %35 = vector.extract_strided_slice %0 {offsets = [1, 0], sizes = [1, 512], strides = [1, 1]} : vector<3x512xf32> to vector<1x512xf32>
    %cst_14 = arith.constant -1.000000e+00 : f32
    %36 = vector.broadcast %cst_14 : f32 to vector<1x512xf32>
    %37 = arith.subf %35, %36 : vector<1x512xf32>
    %cst_15 = arith.constant 1.550000e+01 : f32
    %38 = vector.broadcast %cst_15 : f32 to vector<1x512xf32>
    %39 = arith.mulf %37, %38 : vector<1x512xf32>
    %40 = math.floor %39 : vector<1x512xf32>
    %cst_16 = arith.constant 0.000000e+00 : f32
    %cst_17 = arith.constant 3.000000e+01 : f32
    %41 = vector.broadcast %cst_16 : f32 to vector<1x512xf32>
    %42 = arith.maximumf %41, %40 : vector<1x512xf32>
    %43 = vector.broadcast %cst_17 : f32 to vector<1x512xf32>
    %44 = arith.minimumf %43, %42 : vector<1x512xf32>
    %45 = arith.fptosi %44 : vector<1x512xf32> to vector<1x512xi32>
    %46 = arith.subf %39, %44 : vector<1x512xf32>
    %cst_18 = arith.constant 0.000000e+00 : f32
    %cst_19 = arith.constant 1.000000e+00 : f32
    %47 = vector.broadcast %cst_18 : f32 to vector<1x512xf32>
    %48 = arith.maximumf %47, %46 : vector<1x512xf32>
    %49 = vector.broadcast %cst_19 : f32 to vector<1x512xf32>
    %50 = arith.minimumf %49, %48 : vector<1x512xf32>
    %51 = vector.broadcast %45 : vector<1x512xi32> to vector<32x512xi32>
    %52 = arith.cmpi eq, %1, %51 : vector<32x512xi32>
    %53 = arith.extui %52 : vector<32x512xi1> to vector<32x512xi32>
    %54 = arith.sitofp %53 : vector<32x512xi32> to vector<32x512xf32>
    %55 = arith.truncf %54 : vector<32x512xf32> to vector<32x512xbf16>
    %c1 = arith.constant 1 : index
    %c0_20 = arith.constant 0 : index
    %c0_21 = arith.constant 0 : index
    %56 = vector.load %arg3[%c1, %c0_20, %c0_21] : memref<3x24x32xbf16, #tpu.memory_space<vmem>>, vector<1x24x32xbf16>
    %57 = vector.shape_cast %56 : vector<1x24x32xbf16> to vector<24x32xbf16>
    %cst_22 = arith.constant dense<0.000000e+00> : vector<24x512xf32>
    %58 = tpu.matmul %57, %55, %cst_22 {dimension_numbers = #tpu.dot_dimension_numbers<[1], [0], [0], [1], [0, 0, 1, 1], [], []>} : vector<24x32xbf16>, vector<32x512xbf16>, vector<24x512xf32> -> vector<24x512xf32>
    %c1_23 = arith.constant 1 : index
    %c0_24 = arith.constant 0 : index
    %c0_25 = arith.constant 0 : index
    %59 = vector.load %arg4[%c1_23, %c0_24, %c0_25] : memref<3x24x32xbf16, #tpu.memory_space<vmem>>, vector<1x24x32xbf16>
    %60 = vector.shape_cast %59 : vector<1x24x32xbf16> to vector<24x32xbf16>
    %cst_26 = arith.constant dense<0.000000e+00> : vector<24x512xf32>
    %61 = tpu.matmul %60, %55, %cst_26 {dimension_numbers = #tpu.dot_dimension_numbers<[1], [0], [0], [1], [0, 0, 1, 1], [], []>} : vector<24x32xbf16>, vector<32x512xbf16>, vector<24x512xf32> -> vector<24x512xf32>
    %62 = arith.subf %61, %58 : vector<24x512xf32>
    %63 = vector.broadcast %50 : vector<1x512xf32> to vector<24x512xf32>
    %64 = arith.mulf %62, %63 : vector<24x512xf32>
    %65 = arith.addf %58, %64 : vector<24x512xf32>
    %66 = vector.extract_strided_slice %65 {offsets = [0, 0], sizes = [8, 512], strides = [1, 1]} : vector<24x512xf32> to vector<8x512xf32>
    %67 = vector.extract_strided_slice %65 {offsets = [8, 0], sizes = [16, 512], strides = [1, 1]} : vector<24x512xf32> to vector<16x512xf32>
    %68 = arith.mulf %33, %66 : vector<8x512xf32>
    %69 = arith.mulf %34, %67 : vector<16x512xf32>
    %70 = vector.extract_strided_slice %0 {offsets = [2, 0], sizes = [1, 512], strides = [1, 1]} : vector<3x512xf32> to vector<1x512xf32>
    %cst_27 = arith.constant -1.000000e+00 : f32
    %71 = vector.broadcast %cst_27 : f32 to vector<1x512xf32>
    %72 = arith.subf %70, %71 : vector<1x512xf32>
    %cst_28 = arith.constant 1.550000e+01 : f32
    %73 = vector.broadcast %cst_28 : f32 to vector<1x512xf32>
    %74 = arith.mulf %72, %73 : vector<1x512xf32>
    %75 = math.floor %74 : vector<1x512xf32>
    %cst_29 = arith.constant 0.000000e+00 : f32
    %cst_30 = arith.constant 3.000000e+01 : f32
    %76 = vector.broadcast %cst_29 : f32 to vector<1x512xf32>
    %77 = arith.maximumf %76, %75 : vector<1x512xf32>
    %78 = vector.broadcast %cst_30 : f32 to vector<1x512xf32>
    %79 = arith.minimumf %78, %77 : vector<1x512xf32>
    %80 = arith.fptosi %79 : vector<1x512xf32> to vector<1x512xi32>
    %81 = arith.subf %74, %79 : vector<1x512xf32>
    %cst_31 = arith.constant 0.000000e+00 : f32
    %cst_32 = arith.constant 1.000000e+00 : f32
    %82 = vector.broadcast %cst_31 : f32 to vector<1x512xf32>
    %83 = arith.maximumf %82, %81 : vector<1x512xf32>
    %84 = vector.broadcast %cst_32 : f32 to vector<1x512xf32>
    %85 = arith.minimumf %84, %83 : vector<1x512xf32>
    %86 = vector.broadcast %80 : vector<1x512xi32> to vector<32x512xi32>
    %87 = arith.cmpi eq, %1, %86 : vector<32x512xi32>
    %88 = arith.extui %87 : vector<32x512xi1> to vector<32x512xi32>
    %89 = arith.sitofp %88 : vector<32x512xi32> to vector<32x512xf32>
    %90 = arith.truncf %89 : vector<32x512xf32> to vector<32x512xbf16>
    %c2 = arith.constant 2 : index
    %c0_33 = arith.constant 0 : index
    %c0_34 = arith.constant 0 : index
    %91 = vector.load %arg3[%c2, %c0_33, %c0_34] : memref<3x24x32xbf16, #tpu.memory_space<vmem>>, vector<1x24x32xbf16>
    %92 = vector.shape_cast %91 : vector<1x24x32xbf16> to vector<24x32xbf16>
    %cst_35 = arith.constant dense<0.000000e+00> : vector<24x512xf32>
    %93 = tpu.matmul %92, %90, %cst_35 {dimension_numbers = #tpu.dot_dimension_numbers<[1], [0], [0], [1], [0, 0, 1, 1], [], []>} : vector<24x32xbf16>, vector<32x512xbf16>, vector<24x512xf32> -> vector<24x512xf32>
    %c2_36 = arith.constant 2 : index
    %c0_37 = arith.constant 0 : index
    %c0_38 = arith.constant 0 : index
    %94 = vector.load %arg4[%c2_36, %c0_37, %c0_38] : memref<3x24x32xbf16, #tpu.memory_space<vmem>>, vector<1x24x32xbf16>
    %95 = vector.shape_cast %94 : vector<1x24x32xbf16> to vector<24x32xbf16>
    %cst_39 = arith.constant dense<0.000000e+00> : vector<24x512xf32>
    %96 = tpu.matmul %95, %90, %cst_39 {dimension_numbers = #tpu.dot_dimension_numbers<[1], [0], [0], [1], [0, 0, 1, 1], [], []>} : vector<24x32xbf16>, vector<32x512xbf16>, vector<24x512xf32> -> vector<24x512xf32>
    %97 = arith.subf %96, %93 : vector<24x512xf32>
    %98 = vector.broadcast %85 : vector<1x512xf32> to vector<24x512xf32>
    %99 = arith.mulf %97, %98 : vector<24x512xf32>
    %100 = arith.addf %93, %99 : vector<24x512xf32>
    %101 = vector.extract_strided_slice %100 {offsets = [0, 0], sizes = [8, 512], strides = [1, 1]} : vector<24x512xf32> to vector<8x512xf32>
    %102 = vector.extract_strided_slice %100 {offsets = [8, 0], sizes = [16, 512], strides = [1, 1]} : vector<24x512xf32> to vector<16x512xf32>
    %103 = arith.mulf %68, %101 : vector<8x512xf32>
    %104 = arith.mulf %69, %102 : vector<16x512xf32>
    %cst_40 = arith.constant dense<0.000000e+00> : vector<512xf32>
    %105 = vector.multi_reduction <add>, %103, %cst_40 [0] : vector<8x512xf32> to vector<512xf32>
    %106 = vector.shape_cast %105 : vector<512xf32> to vector<1x512xf32>
    %cst_41 = arith.constant -5.000000e+00 : f32
    %107 = vector.broadcast %cst_41 : f32 to vector<1x512xf32>
    %108 = arith.addf %106, %107 : vector<1x512xf32>
    %cst_42 = arith.constant 0.000000e+00 : f32
    %109 = vector.broadcast %cst_42 : f32 to vector<1x512xf32>
    %110 = arith.maximumf %108, %109 : vector<1x512xf32>
    %111 = vector.broadcast %cst_42 : f32 to vector<1x512xf32>
    %112 = arith.subf %108, %111 : vector<1x512xf32>
    %113 = arith.cmpf one, %112, %112 : vector<1x512xf32>
    %114 = vector.broadcast %cst_42 : f32 to vector<1x512xf32>
    %115 = arith.addf %108, %114 : vector<1x512xf32>
    %116 = math.absf %112 : vector<1x512xf32>
    %cst_43 = arith.constant 0.000000e+00 : f32
    %117 = vector.broadcast %cst_43 : f32 to vector<1x512xf32>
    %118 = arith.subf %117, %116 : vector<1x512xf32>
    %119 = math.exp %118 : vector<1x512xf32>
    %120 = math.log1p %119 : vector<1x512xf32>
    %121 = arith.addf %110, %120 : vector<1x512xf32>
    %122 = arith.select %113, %115, %121 : vector<1x512xi1>, vector<1x512xf32>
    %c0_44 = arith.constant 0 : index
    %c0_45 = arith.constant 0 : index
    %123 = vector.load %arg5[%c0_44, %c0_45] : memref<27x16xbf16, #tpu.memory_space<vmem>>, vector<27x16xbf16>
    %124 = arith.truncf %104 : vector<16x512xf32> to vector<16x512xbf16>
    %cst_46 = arith.constant dense<0.000000e+00> : vector<27x512xf32>
    %125 = tpu.matmul %123, %124, %cst_46 {dimension_numbers = #tpu.dot_dimension_numbers<[1], [0], [0], [1], [0, 0, 1, 1], [], []>} : vector<27x16xbf16>, vector<16x512xbf16>, vector<27x512xf32> -> vector<27x512xf32>
    %cst_47 = arith.constant 3.14159274 : f32
    %126 = vector.broadcast %cst_47 : f32 to vector<27x512xf32>
    %127 = arith.mulf %126, %125 : vector<27x512xf32>
    %128 = math.sin %127 : vector<27x512xf32>
    %cst_48 = arith.constant 3.14159274 : f32
    %129 = vector.broadcast %cst_48 : f32 to vector<27x512xf32>
    %130 = arith.mulf %129, %125 : vector<27x512xf32>
    %131 = math.cos %130 : vector<27x512xf32>
    %cst_49 = arith.constant 2.000000e+00 : f32
    %132 = vector.broadcast %cst_49 : f32 to vector<27x512xf32>
    %133 = arith.mulf %132, %128 : vector<27x512xf32>
    %134 = arith.mulf %133, %131 : vector<27x512xf32>
    %cst_50 = arith.constant 2.000000e+00 : f32
    %135 = vector.broadcast %cst_50 : f32 to vector<27x512xf32>
    %136 = arith.mulf %135, %128 : vector<27x512xf32>
    %137 = arith.mulf %136, %128 : vector<27x512xf32>
    %cst_51 = arith.constant 1.000000e+00 : f32
    %138 = vector.broadcast %cst_51 : f32 to vector<27x512xf32>
    %139 = arith.subf %138, %137 : vector<27x512xf32>
    %140 = tpu.concatenate %128, %131, %134, %139 in 0 : vector<27x512xf32>, vector<27x512xf32>, vector<27x512xf32>, vector<27x512xf32> -> vector<108x512xf32>
    %141 = arith.truncf %140 : vector<108x512xf32> to vector<108x512xbf16>
    %c0_52 = arith.constant 0 : index
    %c0_53 = arith.constant 0 : index
    %142 = vector.load %arg2[%c0_52, %c0_53] : memref<3x512xf32, #tpu.memory_space<vmem>>, vector<3x512xf32>
    %cst_54 = arith.constant 3.14159274 : f32
    %143 = vector.broadcast %cst_54 : f32 to vector<3x512xf32>
    %144 = arith.mulf %143, %142 : vector<3x512xf32>
    %145 = math.sin %144 : vector<3x512xf32>
    %cst_55 = arith.constant 3.14159274 : f32
    %146 = vector.broadcast %cst_55 : f32 to vector<3x512xf32>
    %147 = arith.mulf %146, %142 : vector<3x512xf32>
    %148 = math.cos %147 : vector<3x512xf32>
    %cst_56 = arith.constant 2.000000e+00 : f32
    %149 = vector.broadcast %cst_56 : f32 to vector<3x512xf32>
    %150 = arith.mulf %149, %145 : vector<3x512xf32>
    %151 = arith.mulf %150, %148 : vector<3x512xf32>
    %cst_57 = arith.constant 2.000000e+00 : f32
    %152 = vector.broadcast %cst_57 : f32 to vector<3x512xf32>
    %153 = arith.mulf %152, %145 : vector<3x512xf32>
    %154 = arith.mulf %153, %145 : vector<3x512xf32>
    %cst_58 = arith.constant 1.000000e+00 : f32
    %155 = vector.broadcast %cst_58 : f32 to vector<3x512xf32>
    %156 = arith.subf %155, %154 : vector<3x512xf32>
    %157 = tpu.concatenate %145, %148, %151, %156 in 0 : vector<3x512xf32>, vector<3x512xf32>, vector<3x512xf32>, vector<3x512xf32> -> vector<12x512xf32>
    %158 = arith.truncf %157 : vector<12x512xf32> to vector<12x512xbf16>
    %c0_59 = arith.constant 0 : index
    %c0_60 = arith.constant 0 : index
    %159 = vector.load %arg6[%c0_59, %c0_60] : memref<32x108xbf16, #tpu.memory_space<vmem>>, vector<32x108xbf16>
    %cst_61 = arith.constant dense<0.000000e+00> : vector<32x512xf32>
    %160 = tpu.matmul %159, %141, %cst_61 {dimension_numbers = #tpu.dot_dimension_numbers<[1], [0], [0], [1], [0, 0, 1, 1], [], []>} : vector<32x108xbf16>, vector<108x512xbf16>, vector<32x512xf32> -> vector<32x512xf32>
    %c0_62 = arith.constant 0 : index
    %c0_63 = arith.constant 0 : index
    %161 = vector.load %arg7[%c0_62, %c0_63] : memref<32x12xbf16, #tpu.memory_space<vmem>>, vector<32x12xbf16>
    %cst_64 = arith.constant dense<0.000000e+00> : vector<32x512xf32>
    %162 = tpu.matmul %161, %158, %cst_64 {dimension_numbers = #tpu.dot_dimension_numbers<[1], [0], [0], [1], [0, 0, 1, 1], [], []>} : vector<32x12xbf16>, vector<12x512xbf16>, vector<32x512xf32> -> vector<32x512xf32>
    %163 = arith.addf %160, %162 : vector<32x512xf32>
    %c0_65 = arith.constant 0 : index
    %c0_66 = arith.constant 0 : index
    %164 = vector.load %arg8[%c0_65, %c0_66] : memref<32x1xf32, #tpu.memory_space<vmem>>, vector<32x1xf32>
    %165 = vector.broadcast %164 : vector<32x1xf32> to vector<32x512xf32>
    %166 = arith.addf %163, %165 : vector<32x512xf32>
    %cst_67 = arith.constant 0.000000e+00 : f32
    %167 = vector.broadcast %cst_67 : f32 to vector<32x512xf32>
    %168 = arith.cmpf oge, %166, %167 : vector<32x512xf32>
    %cst_68 = arith.constant 0.00999999977 : f32
    %169 = vector.broadcast %cst_68 : f32 to vector<32x512xf32>
    %170 = arith.mulf %169, %166 : vector<32x512xf32>
    %171 = arith.select %168, %166, %170 : vector<32x512xi1>, vector<32x512xf32>
    %c0_69 = arith.constant 0 : index
    %c0_70 = arith.constant 0 : index
    %172 = vector.load %arg9[%c0_69, %c0_70] : memref<32x32xbf16, #tpu.memory_space<vmem>>, vector<32x32xbf16>
    %173 = arith.truncf %171 : vector<32x512xf32> to vector<32x512xbf16>
    %cst_71 = arith.constant dense<0.000000e+00> : vector<32x512xf32>
    %174 = tpu.matmul %172, %173, %cst_71 {dimension_numbers = #tpu.dot_dimension_numbers<[1], [0], [0], [1], [0, 0, 1, 1], [], []>} : vector<32x32xbf16>, vector<32x512xbf16>, vector<32x512xf32> -> vector<32x512xf32>
    %c0_72 = arith.constant 0 : index
    %c0_73 = arith.constant 0 : index
    %175 = vector.load %arg10[%c0_72, %c0_73] : memref<32x1xf32, #tpu.memory_space<vmem>>, vector<32x1xf32>
    %176 = vector.broadcast %175 : vector<32x1xf32> to vector<32x512xf32>
    %177 = arith.addf %174, %176 : vector<32x512xf32>
    %cst_74 = arith.constant 0.000000e+00 : f32
    %178 = vector.broadcast %cst_74 : f32 to vector<32x512xf32>
    %179 = arith.cmpf oge, %177, %178 : vector<32x512xf32>
    %cst_75 = arith.constant 0.00999999977 : f32
    %180 = vector.broadcast %cst_75 : f32 to vector<32x512xf32>
    %181 = arith.mulf %180, %177 : vector<32x512xf32>
    %182 = arith.select %179, %177, %181 : vector<32x512xi1>, vector<32x512xf32>
    %c0_76 = arith.constant 0 : index
    %c0_77 = arith.constant 0 : index
    %183 = vector.load %arg11[%c0_76, %c0_77] : memref<3x32xbf16, #tpu.memory_space<vmem>>, vector<3x32xbf16>
    %184 = arith.truncf %182 : vector<32x512xf32> to vector<32x512xbf16>
    %cst_78 = arith.constant dense<0.000000e+00> : vector<3x512xf32>
    %185 = tpu.matmul %183, %184, %cst_78 {dimension_numbers = #tpu.dot_dimension_numbers<[1], [0], [0], [1], [0, 0, 1, 1], [], []>} : vector<3x32xbf16>, vector<32x512xbf16>, vector<3x512xf32> -> vector<3x512xf32>
    %c0_79 = arith.constant 0 : index
    %c0_80 = arith.constant 0 : index
    %186 = vector.load %arg12[%c0_79, %c0_80] : memref<3x1xf32, #tpu.memory_space<vmem>>, vector<3x1xf32>
    %187 = vector.broadcast %186 : vector<3x1xf32> to vector<3x512xf32>
    %188 = arith.addf %185, %187 : vector<3x512xf32>
    %189 = arith.negf %188 : vector<3x512xf32>
    %190 = math.exp %189 : vector<3x512xf32>
    %cst_81 = arith.constant 1.000000e+00 : f32
    %191 = vector.broadcast %cst_81 : f32 to vector<3x512xf32>
    %192 = arith.addf %191, %190 : vector<3x512xf32>
    %193 = arith.divf %191, %192 : vector<3x512xf32>
    %194 = tpu.concatenate %122, %193 in 0 : vector<1x512xf32>, vector<3x512xf32> -> vector<4x512xf32>
    %c0_82 = arith.constant 0 : index
    %c0_83 = arith.constant 0 : index
    %195 = vector.load %arg13[%c0_82, %c0_83] : memref<4x512xf32, #tpu.memory_space<vmem>>, vector<4x512xf32>
    tpu.vector_store %arg13[%c0_82, %c0_83], %194 {strides = array<i32>} : memref<4x512xf32, #tpu.memory_space<vmem>>, vector<4x512xf32>,
    return
  }
  func.func @transform_0(%arg0: i32) -> (i32, i32) {
    %c0_i32 = arith.constant 0 : i32
    %c0_i32_0 = arith.constant 0 : i32
    return %c0_i32, %arg0 : i32, i32
  }
  func.func @transform_1(%arg0: i32) -> (i32, i32) {
    %c0_i32 = arith.constant 0 : i32
    %c0_i32_0 = arith.constant 0 : i32
    return %c0_i32, %arg0 : i32, i32
  }
  func.func @transform_2(%arg0: i32) -> (i32, i32, i32) {
    %c0_i32 = arith.constant 0 : i32
    %c0_i32_0 = arith.constant 0 : i32
    %c0_i32_1 = arith.constant 0 : i32
    %c0_i32_2 = arith.constant 0 : i32
    return %c0_i32, %c0_i32_0, %c0_i32_1 : i32, i32, i32
  }
  func.func @transform_3(%arg0: i32) -> (i32, i32, i32) {
    %c0_i32 = arith.constant 0 : i32
    %c0_i32_0 = arith.constant 0 : i32
    %c0_i32_1 = arith.constant 0 : i32
    %c0_i32_2 = arith.constant 0 : i32
    return %c0_i32, %c0_i32_0, %c0_i32_1 : i32, i32, i32
  }
  func.func @transform_4(%arg0: i32) -> (i32, i32) {
    %c0_i32 = arith.constant 0 : i32
    %c0_i32_0 = arith.constant 0 : i32
    %c0_i32_1 = arith.constant 0 : i32
    return %c0_i32, %c0_i32_0 : i32, i32
  }
  func.func @transform_5(%arg0: i32) -> (i32, i32) {
    %c0_i32 = arith.constant 0 : i32
    %c0_i32_0 = arith.constant 0 : i32
    %c0_i32_1 = arith.constant 0 : i32
    return %c0_i32, %c0_i32_0 : i32, i32
  }
  func.func @transform_6(%arg0: i32) -> (i32, i32) {
    %c0_i32 = arith.constant 0 : i32
    %c0_i32_0 = arith.constant 0 : i32
    %c0_i32_1 = arith.constant 0 : i32
    return %c0_i32, %c0_i32_0 : i32, i32
  }
  func.func @transform_7(%arg0: i32) -> (i32, i32) {
    %c0_i32 = arith.constant 0 : i32
    %c0_i32_0 = arith.constant 0 : i32
    %c0_i32_1 = arith.constant 0 : i32
    return %c0_i32, %c0_i32_0 : i32, i32
  }
  func.func @transform_8(%arg0: i32) -> (i32, i32) {
    %c0_i32 = arith.constant 0 : i32
    %c0_i32_0 = arith.constant 0 : i32
    %c0_i32_1 = arith.constant 0 : i32
    return %c0_i32, %c0_i32_0 : i32, i32
  }
  func.func @transform_9(%arg0: i32) -> (i32, i32) {
    %c0_i32 = arith.constant 0 : i32
    %c0_i32_0 = arith.constant 0 : i32
    %c0_i32_1 = arith.constant 0 : i32
    return %c0_i32, %c0_i32_0 : i32, i32
  }
  func.func @transform_10(%arg0: i32) -> (i32, i32) {
    %c0_i32 = arith.constant 0 : i32
    %c0_i32_0 = arith.constant 0 : i32
    %c0_i32_1 = arith.constant 0 : i32
    return %c0_i32, %c0_i32_0 : i32, i32
  }
  func.func @transform_11(%arg0: i32) -> (i32, i32) {
    %c0_i32 = arith.constant 0 : i32
    %c0_i32_0 = arith.constant 0 : i32
    %c0_i32_1 = arith.constant 0 : i32
    return %c0_i32, %c0_i32_0 : i32, i32
  }
  func.func @transform_12(%arg0: i32) -> (i32, i32) {
    %c0_i32 = arith.constant 0 : i32
    %c0_i32_0 = arith.constant 0 : i32
    return %c0_i32, %arg0 : i32, i32
  }
}

</mosaic_0001>

<llo_original>
// kernel: tensorf_forward.1
$region0: #{tensorf_forward.1}
  #allocation0 [shape = 'u32[]', space=smem, size = 0x4, offset = 0x4, fixed_abs, tag = 'smem constant byte address 0x4 - core index']
  #allocation1 [shape = 'u32[144,128]{1,0:T(1,128)}', space=vmem, size = 0x12000, scoped, tag = 'internal scratch']
  %s0 = inlined_call_operand.hbm [shape: f32[3,2048], index: 0, kind: input, shape index: {}]
  %s1 = inlined_call_operand.hbm [shape: f32[3,2048], index: 1, kind: input, shape index: {}]
  %s2 = inlined_call_operand.vmem [shape: bf16[3,24,32], index: 2, kind: input, shape index: {}]
  %s3 = inlined_call_operand.hbm [shape: bf16[3,24,32], index: 3, kind: input, shape index: {}]
  %s4 = inlined_call_operand.hbm [shape: bf16[27,16], index: 4, kind: input, shape index: {}]
  %s5 = inlined_call_operand.vmem [shape: bf16[32,108], index: 5, kind: input, shape index: {}]
  %s6 = inlined_call_operand.hbm [shape: bf16[32,12], index: 6, kind: input, shape index: {}]
  %s7 = inlined_call_operand.hbm [shape: f32[32,1], index: 7, kind: input, shape index: {}]
  %s8 = inlined_call_operand.hbm [shape: bf16[32,32], index: 8, kind: input, shape index: {}]
  %s9 = inlined_call_operand.hbm [shape: f32[32,1], index: 9, kind: input, shape index: {}]
  %s10 = inlined_call_operand.hbm [shape: bf16[3,32], index: 10, kind: input, shape index: {}]
  %s11 = inlined_call_operand.hbm [shape: f32[3,1], index: 11, kind: input, shape index: {}]
  %s12 = inlined_call_operand.vmem [shape: f32[4,2048], index: 12, kind: output, shape index: {}]
  %s13 = sld [smem:[#allocation0]]
  $region121: #{tensorf_forward.1} parent=0
    _
  %s15 = ssub.s32 1, %s13
  %s16 = scalar_select 0, %s15, %s13
  $region1: #{tensorf_forward.1} parent=0
    #allocation2 [shape = 'u8[16384]{0}', space=vmem, size = 0x4000, scoped, tag = 'input window, operand 0']
    #allocation3 [shape = 's32[2]{0}', space=sflag, size = 0x8, scoped, tag = 'scoped memory for tensorf_forward.1']
    #allocation4 [shape = 'u8[16384]{0}', space=vmem, size = 0x4000, scoped, tag = 'input window, operand 1']
    #allocation5 [shape = 's32[2]{0}', space=sflag, size = 0x8, scoped, tag = 'scoped memory for tensorf_forward.1']
    #allocation6 [shape = 'u8[18432]{0}', space=vmem, size = 0x4800, scoped, tag = 'input window, operand 3, single buffered']
    #allocation7 [shape = 'u8[8192]{0}', space=vmem, size = 0x2000, scoped, tag = 'input window, operand 4, single buffered']
    #allocation8 [shape = 's32[1]{0}', space=sflag, size = 0x4, scoped, tag = 'scoped memory for tensorf_forward.1']
    #allocation9 [shape = 'u8[8192]{0}', space=vmem, size = 0x2000, scoped, tag = 'input window, operand 6, single buffered']
    #allocation10 [shape = 'u8[16384]{0}', space=vmem, size = 0x4000, scoped, tag = 'input window, operand 7, single buffered']
    #allocation11 [shape = 's32[1]{0}', space=sflag, size = 0x4, scoped, tag = 'scoped memory for tensorf_forward.1']
    #allocation12 [shape = 'u8[8192]{0}', space=vmem, size = 0x2000, scoped, tag = 'input window, operand 8, single buffered']
    #allocation13 [shape = 'u8[16384]{0}', space=vmem, size = 0x4000, scoped, tag = 'input window, operand 9, single buffered']
    #allocation14 [shape = 's32[1]{0}', space=sflag, size = 0x4, scoped, tag = 'scoped memory for tensorf_forward.1']
    #allocation15 [shape = 'u8[1024]{0}', space=vmem, size = 0x400, scoped, tag = 'input window, operand 10, single buffered']
    #allocation16 [shape = 'u8[2048]{0}', space=vmem, size = 0x800, scoped, tag = 'input window, operand 11, single buffered']
    #allocation17 [shape = 's32[1]{0}', space=sflag, size = 0x4, scoped, tag = 'scoped memory for tensorf_forward.1']
    %17 = vsyncpa [#allocation3], 0
    %s18 = scalar_lea.sflag [#allocation3], 1
    %19 = vsyncpa %s18, 0
    %20 = vsyncpa [#allocation5], 0
    %s21 = scalar_lea.sflag [#allocation5], 1
    %22 = vsyncpa %s21, 0
    %23 = vsyncpa [#allocation8], 0
    %24 = vsyncpa [#allocation11], 0
    %25 = vsyncpa [#allocation14], 0
    %26 = vsyncpa [#allocation17], 0
    loop: start=0, step=1, limit=6
    $region2: #{tensorf_forward.1} parent=1 // loop_pre_header
      _
    $region3: #{tensorf_forward.1} parent=1 // loop_header
      %s28 = sphi 0, %s32
      %p29 = scmp.ge.s32.totalorder %s28, 6
      %s38 = sphi 0, %s40
      %s41 = sphi 0, %s38
      %s42 = sphi 0, %s41
      %s58 = sphi 0, %s42
      %s64 = sphi 0, %s66
      %s67 = sphi 0, %s64
      %s68 = sphi 0, %s67
      %s84 = sphi 0, %s68
      %s88 = sphi 0, %s88
      %s90 = sphi 0, %s88
      %s91 = sphi 0, %s90
      %s105 = sphi 0, %s91
      %s109 = sphi 0, %s109
      %s111 = sphi 0, %s109
      %s112 = sphi 0, %s111
      %s126 = sphi 0, %s112
      %s130 = sphi 0, %s130
      %s132 = sphi 0, %s130
      %s133 = sphi 0, %s132
      %s147 = sphi 0, %s133
      %s151 = sphi 0, %s151
      %s153 = sphi 0, %s151
      %s154 = sphi 0, %s153
      %s168 = sphi 0, %s154
      %s172 = sphi 0, %s172
      %s174 = sphi 0, %s172
      %s175 = sphi 0, %s174
      %s189 = sphi 0, %s175
      %s193 = sphi 0, %s193
      %s195 = sphi 0, %s193
      %s196 = sphi 0, %s195
      %s210 = sphi 0, %s196
      %s214 = sphi 0, %s214
      %s216 = sphi 0, %s214
      %s217 = sphi 0, %s216
      %s231 = sphi 0, %s217
      %s235 = sphi 0, %s235
      %s237 = sphi 0, %s235
      %s238 = sphi 0, %s237
      %s252 = sphi 0, %s238
      %s256 = sphi 0, %s256
      %s258 = sphi 0, %s256
      %s259 = sphi 0, %s258
      %s273 = sphi 0, %s259
      %s277 = sphi 0, %s277
      %s279 = sphi 0, %s277
      %s280 = sphi 0, %s279
      %s294 = sphi 0, %s280
      %s300 = sphi 0, %s302
      %s303 = sphi 0, %s300
      %s304 = sphi 0, %s303
      %s320 = sphi 0, %s304
    $region4: #{tensorf_forward.1} parent=1 // loop_header_branch
      %31 = sbr.rel (%p29) target = $region8
    $region5: #{tensorf_forward.1} parent=1 // loop_body
      %s33 = ssub.s32 %s28, 1
      %s34 = ssub.s32 %s28, 2
      %s35 = sadd.s32 %s28, 1
      %s36 = ssub.s32 %s28, %s35
      %p37 = scmp.eq.s32.totalorder %s36, 0
      %s39 = sadd.s32 %s38, 1
      %s40 = scalar_select %p37, %s38, %s39
      %p43 = pneg %p37
      %p44 = scmp.eq.s32.totalorder %s28, 3
      %p45 = por %p43, %p44
      %p46 = scmp.ne.s32.totalorder %s38, %s41
      %p47 = scmp.eq.s32.totalorder %s28, 0
      %p48 = por %p46, %p47
      %p49 = scmp.ne.s32.totalorder %s38, %s41
      %p50 = scmp.eq.s32.totalorder %s33, 3
      %p51 = por %p49, %p50
      %p52 = scmp.ne.s32.totalorder %s41, %s42
      %p53 = scmp.eq.s32.totalorder %s33, 0
      %p54 = por %p52, %p53
      %p55 = scmp.ne.s32.totalorder %s41, %s42
      %p56 = scmp.eq.s32.totalorder %s34, 3
      %p57 = por %p55, %p56
      %p59 = scmp.ne.s32.totalorder %s42, %s58
      %p60 = scmp.eq.s32.totalorder %s34, 0
      %p61 = por %p59, %p60
      %s62 = ssub.s32 %s28, %s35
      %p63 = scmp.eq.s32.totalorder %s62, 0
      %s65 = sadd.s32 %s64, 1
      %s66 = scalar_select %p63, %s64, %s65
      %p69 = pneg %p63
      %p70 = scmp.eq.s32.totalorder %s28, 3
      %p71 = por %p69, %p70
      %p72 = scmp.ne.s32.totalorder %s64, %s67
      %p73 = scmp.eq.s32.totalorder %s28, 0
      %p74 = por %p72, %p73
      %p75 = scmp.ne.s32.totalorder %s64, %s67
      %p76 = scmp.eq.s32.totalorder %s33, 3
      %p77 = por %p75, %p76
      %p78 = scmp.ne.s32.totalorder %s67, %s68
      %p79 = scmp.eq.s32.totalorder %s33, 0
      %p80 = por %p78, %p79
      %p81 = scmp.ne.s32.totalorder %s67, %s68
      %p82 = scmp.eq.s32.totalorder %s34, 3
      %p83 = por %p81, %p82
      %p85 = scmp.ne.s32.totalorder %s68, %s84
      %p86 = scmp.eq.s32.totalorder %s34, 0
      %p87 = por %p85, %p86
      %s89 = sadd.s32 %s88, 1
      %p92 = scmp.eq.s32.totalorder %s28, 3
      %p93 = scmp.ne.s32.totalorder %s88, %s90
      %p94 = scmp.eq.s32.totalorder %s28, 0
      %p95 = por %p93, %p94
      %p96 = scmp.ne.s32.totalorder %s88, %s90
      %p97 = scmp.eq.s32.totalorder %s33, 3
      %p98 = por %p96, %p97
      %p99 = scmp.ne.s32.totalorder %s90, %s91
      %p100 = scmp.eq.s32.totalorder %s33, 0
      %p101 = por %p99, %p100
      %p102 = scmp.ne.s32.totalorder %s90, %s91
      %p103 = scmp.eq.s32.totalorder %s34, 3
      %p104 = por %p102, %p103
      %p106 = scmp.ne.s32.totalorder %s91, %s105
      %p107 = scmp.eq.s32.totalorder %s34, 0
      %p108 = por %p106, %p107
      %s110 = sadd.s32 %s109, 1
      %p113 = scmp.eq.s32.totalorder %s28, 3
      %p114 = scmp.ne.s32.totalorder %s109, %s111
      %p115 = scmp.eq.s32.totalorder %s28, 0
      %p116 = por %p114, %p115
      %p117 = scmp.ne.s32.totalorder %s109, %s111
      %p118 = scmp.eq.s32.totalorder %s33, 3
      %p119 = por %p117, %p118
      %p120 = scmp.ne.s32.totalorder %s111, %s112
      %p121 = scmp.eq.s32.totalorder %s33, 0
      %p122 = por %p120, %p121
      %p123 = scmp.ne.s32.totalorder %s111, %s112
      %p124 = scmp.eq.s32.totalorder %s34, 3
      %p125 = por %p123, %p124
      %p127 = scmp.ne.s32.totalorder %s112, %s126
      %p128 = scmp.eq.s32.totalorder %s34, 0
      %p129 = por %p127, %p128
      %s131 = sadd.s32 %s130, 1
      %p134 = scmp.eq.s32.totalorder %s28, 3
      %p135 = scmp.ne.s32.totalorder %s130, %s132
      %p136 = scmp.eq.s32.totalorder %s28, 0
      %p137 = por %p135, %p136
      %p138 = scmp.ne.s32.totalorder %s130, %s132
      %p139 = scmp.eq.s32.totalorder %s33, 3
      %p140 = por %p138, %p139
      %p141 = scmp.ne.s32.totalorder %s132, %s133
      %p142 = scmp.eq.s32.totalorder %s33, 0
      %p143 = por %p141, %p142
      %p144 = scmp.ne.s32.totalorder %s132, %s133
      %p145 = scmp.eq.s32.totalorder %s34, 3
      %p146 = por %p144, %p145
      %p148 = scmp.ne.s32.totalorder %s133, %s147
      %p149 = scmp.eq.s32.totalorder %s34, 0
      %p150 = por %p148, %p149
      %s152 = sadd.s32 %s151, 1
      %p155 = scmp.eq.s32.totalorder %s28, 3
      %p156 = scmp.ne.s32.totalorder %s151, %s153
      %p157 = scmp.eq.s32.totalorder %s28, 0
      %p158 = por %p156, %p157
      %p159 = scmp.ne.s32.totalorder %s151, %s153
      %p160 = scmp.eq.s32.totalorder %s33, 3
      %p161 = por %p159, %p160
      %p162 = scmp.ne.s32.totalorder %s153, %s154
      %p163 = scmp.eq.s32.totalorder %s33, 0
      %p164 = por %p162, %p163
      %p165 = scmp.ne.s32.totalorder %s153, %s154
      %p166 = scmp.eq.s32.totalorder %s34, 3
      %p167 = por %p165, %p166
      %p169 = scmp.ne.s32.totalorder %s154, %s168
      %p170 = scmp.eq.s32.totalorder %s34, 0
      %p171 = por %p169, %p170
      %s173 = sadd.s32 %s172, 1
      %p176 = scmp.eq.s32.totalorder %s28, 3
      %p177 = scmp.ne.s32.totalorder %s172, %s174
      %p178 = scmp.eq.s32.totalorder %s28, 0
      %p179 = por %p177, %p178
      %p180 = scmp.ne.s32.totalorder %s172, %s174
      %p181 = scmp.eq.s32.totalorder %s33, 3
      %p182 = por %p180, %p181
      %p183 = scmp.ne.s32.totalorder %s174, %s175
      %p184 = scmp.eq.s32.totalorder %s33, 0
      %p185 = por %p183, %p184
      %p186 = scmp.ne.s32.totalorder %s174, %s175
      %p187 = scmp.eq.s32.totalorder %s34, 3
      %p188 = por %p186, %p187
      %p190 = scmp.ne.s32.totalorder %s175, %s189
      %p191 = scmp.eq.s32.totalorder %s34, 0
      %p192 = por %p190, %p191
      %s194 = sadd.s32 %s193, 1
      %p197 = scmp.eq.s32.totalorder %s28, 3
      %p198 = scmp.ne.s32.totalorder %s193, %s195
      %p199 = scmp.eq.s32.totalorder %s28, 0
      %p200 = por %p198, %p199
      %p201 = scmp.ne.s32.totalorder %s193, %s195
      %p202 = scmp.eq.s32.totalorder %s33, 3
      %p203 = por %p201, %p202
      %p204 = scmp.ne.s32.totalorder %s195, %s196
      %p205 = scmp.eq.s32.totalorder %s33, 0
      %p206 = por %p204, %p205
      %p207 = scmp.ne.s32.totalorder %s195, %s196
      %p208 = scmp.eq.s32.totalorder %s34, 3
      %p209 = por %p207, %p208
      %p211 = scmp.ne.s32.totalorder %s196, %s210
      %p212 = scmp.eq.s32.totalorder %s34, 0
      %p213 = por %p211, %p212
      %s215 = sadd.s32 %s214, 1
      %p218 = scmp.eq.s32.totalorder %s28, 3
      %p219 = scmp.ne.s32.totalorder %s214, %s216
      %p220 = scmp.eq.s32.totalorder %s28, 0
      %p221 = por %p219, %p220
      %p222 = scmp.ne.s32.totalorder %s214, %s216
      %p223 = scmp.eq.s32.totalorder %s33, 3
      %p224 = por %p222, %p223
      %p225 = scmp.ne.s32.totalorder %s216, %s217
      %p226 = scmp.eq.s32.totalorder %s33, 0
      %p227 = por %p225, %p226
      %p228 = scmp.ne.s32.totalorder %s216, %s217
      %p229 = scmp.eq.s32.totalorder %s34, 3
      %p230 = por %p228, %p229
      %p232 = scmp.ne.s32.totalorder %s217, %s231
      %p233 = scmp.eq.s32.totalorder %s34, 0
      %p234 = por %p232, %p233
      %s236 = sadd.s32 %s235, 1
      %p239 = scmp.eq.s32.totalorder %s28, 3
      %p240 = scmp.ne.s32.totalorder %s235, %s237
      %p241 = scmp.eq.s32.totalorder %s28, 0
      %p242 = por %p240, %p241
      %p243 = scmp.ne.s32.totalorder %s235, %s237
      %p244 = scmp.eq.s32.totalorder %s33, 3
      %p245 = por %p243, %p244
      %p246 = scmp.ne.s32.totalorder %s237, %s238
      %p247 = scmp.eq.s32.totalorder %s33, 0
      %p248 = por %p246, %p247
      %p249 = scmp.ne.s32.totalorder %s237, %s238
      %p250 = scmp.eq.s32.totalorder %s34, 3
      %p251 = por %p249, %p250
      %p253 = scmp.ne.s32.totalorder %s238, %s252
      %p254 = scmp.eq.s32.totalorder %s34, 0
      %p255 = por %p253, %p254
      %s257 = sadd.s32 %s256, 1
      %p260 = scmp.eq.s32.totalorder %s28, 3
      %p261 = scmp.ne.s32.totalorder %s256, %s258
      %p262 = scmp.eq.s32.totalorder %s28, 0
      %p263 = por %p261, %p262
      %p264 = scmp.ne.s32.totalorder %s256, %s258
      %p265 = scmp.eq.s32.totalorder %s33, 3
      %p266 = por %p264, %p265
      %p267 = scmp.ne.s32.totalorder %s258, %s259
      %p268 = scmp.eq.s32.totalorder %s33, 0
      %p269 = por %p267, %p268
      %p270 = scmp.ne.s32.totalorder %s258, %s259
      %p271 = scmp.eq.s32.totalorder %s34, 3
      %p272 = por %p270, %p271
      %p274 = scmp.ne.s32.totalorder %s259, %s273
      %p275 = scmp.eq.s32.totalorder %s34, 0
      %p276 = por %p274, %p275
      %s278 = sadd.s32 %s277, 1
      %p281 = scmp.eq.s32.totalorder %s28, 3
      %p282 = scmp.ne.s32.totalorder %s277, %s279
      %p283 = scmp.eq.s32.totalorder %s28, 0
      %p284 = por %p282, %p283
      %p285 = scmp.ne.s32.totalorder %s277, %s279
      %p286 = scmp.eq.s32.totalorder %s33, 3
      %p287 = por %p285, %p286
      %p288 = scmp.ne.s32.totalorder %s279, %s280
      %p289 = scmp.eq.s32.totalorder %s33, 0
      %p290 = por %p288, %p289
      %p291 = scmp.ne.s32.totalorder %s279, %s280
      %p292 = scmp.eq.s32.totalorder %s34, 3
      %p293 = por %p291, %p292
      %p295 = scmp.ne.s32.totalorder %s280, %s294
      %p296 = scmp.eq.s32.totalorder %s34, 0
      %p297 = por %p295, %p296
      %s298 = ssub.s32 %s28, %s35
      %p299 = scmp.eq.s32.totalorder %s298, 0
      %s301 = sadd.s32 %s300, 1
      %s302 = scalar_select %p299, %s300, %s301
      %p305 = pneg %p299
      %p306 = scmp.eq.s32.totalorder %s28, 3
      %p307 = por %p305, %p306
      %p308 = scmp.ne.s32.totalorder %s300, %s303
      %p309 = scmp.eq.s32.totalorder %s28, 0
      %p310 = por %p308, %p309
      %p311 = scmp.ne.s32.totalorder %s300, %s303
      %p312 = scmp.eq.s32.totalorder %s33, 3
      %p313 = por %p311, %p312
      %p314 = scmp.ne.s32.totalorder %s303, %s304
      %p315 = scmp.eq.s32.totalorder %s33, 0
      %p316 = por %p314, %p315
      %p317 = scmp.ne.s32.totalorder %s303, %s304
      %p318 = scmp.eq.s32.totalorder %s34, 3
      %p319 = por %p317, %p318
      %p321 = scmp.ne.s32.totalorder %s304, %s320
      %p322 = scmp.eq.s32.totalorder %s34, 0
      %p323 = por %p321, %p322
      %p324 = scmp.le.s32.totalorder 1, %s28
      %p325 = scmp.lt.s32.totalorder %s28, 5
      %p326 = pnand %p324, %p325
      %p327 = pneg %p326
      // Predicated region
      $region9: #{tensorf_forward.1} parent=5 // pred_check
        _
      $region10: #{tensorf_forward.1} parent=5 // pred_check_branch
        %329 = sbr.rel (%p326) target = $region12
      $region11: #{tensorf_forward.1} parent=5 // pred_region
        %s330 = ssub.s32 %s28, 1
        // Predicated region
        $region13: #{tensorf_forward.1} parent=11 // pred_check
          %p331 = pneg %p101
        $region14: #{tensorf_forward.1} parent=11 // pred_check_branch
          %333 = sbr.rel (%p331) target = $region16
        $region15: #{tensorf_forward.1} parent=11 // pred_region
          _
        $region16: #{tensorf_forward.1} parent=11 // pred_fallthru
          _
        // Predicated region
        $region17: #{tensorf_forward.1} parent=11 // pred_check
          %p334 = pneg %p122
        $region18: #{tensorf_forward.1} parent=11 // pred_check_branch
          %336 = sbr.rel (%p334) target = $region20
        $region19: #{tensorf_forward.1} parent=11 // pred_region
          %s338 = ssub.s32 576, 576
          %339 = vsyncadd [#allocation5], %s338
          %s340 = sshll.u32 [#allocation6], 4
          %s341 = int_to_ptr.vmem [resolvable:$true] %s340
          %346 = dma.hbm_to_vmem [thread:$0]  %s3, 576, %s341, [#allocation5], 64, 64, 4
        $region20: #{tensorf_forward.1} parent=11 // pred_fallthru
          _
        // Predicated region
        $region21: #{tensorf_forward.1} parent=11 // pred_check
          %p347 = pneg %p143
        $region22: #{tensorf_forward.1} parent=11 // pred_check_branch
          %349 = sbr.rel (%p347) target = $region24
        $region23: #{tensorf_forward.1} parent=11 // pred_region
          %s351 = ssub.s32 256, 256
          %352 = vsyncadd [#allocation8], %s351
          %s353 = sshll.u32 [#allocation7], 4
          %s354 = int_to_ptr.vmem [resolvable:$true] %s353
          %359 = dma.hbm_to_vmem [thread:$0]  %s4, 256, %s354, [#allocation8], 64, 64, 4
        $region24: #{tensorf_forward.1} parent=11 // pred_fallthru
          _
        // Predicated region
        $region25: #{tensorf_forward.1} parent=11 // pred_check
          %p360 = pneg %p164
        $region26: #{tensorf_forward.1} parent=11 // pred_check_branch
          %362 = sbr.rel (%p360) target = $region28
        $region27: #{tensorf_forward.1} parent=11 // pred_region
          _
        $region28: #{tensorf_forward.1} parent=11 // pred_fallthru
          _
        // Predicated region
        $region29: #{tensorf_forward.1} parent=11 // pred_check
          %p363 = pneg %p185
        $region30: #{tensorf_forward.1} parent=11 // pred_check_branch
          %365 = sbr.rel (%p363) target = $region32
        $region31: #{tensorf_forward.1} parent=11 // pred_region
          %s367 = ssub.s32 256, 256
          %368 = vsyncadd [#allocation8], %s367
          %s369 = sshll.u32 [#allocation9], 4
          %s370 = int_to_ptr.vmem [resolvable:$true] %s369
          %375 = dma.hbm_to_vmem [thread:$0]  %s6, 256, %s370, [#allocation8], 64, 64, 4
        $region32: #{tensorf_forward.1} parent=11 // pred_fallthru
          _
        // Predicated region
        $region33: #{tensorf_forward.1} parent=11 // pred_check
          %p376 = pneg %p206
        $region34: #{tensorf_forward.1} parent=11 // pred_check_branch
          %378 = sbr.rel (%p376) target = $region36
        $region35: #{tensorf_forward.1} parent=11 // pred_region
          %s380 = ssub.s32 512, 512
          %381 = vsyncadd [#allocation11], %s380
          %s382 = sshll.u32 [#allocation10], 4
          %s383 = int_to_ptr.vmem [resolvable:$true] %s382
          %388 = dma.hbm_to_vmem [thread:$0]  %s7, 512, %s383, [#allocation11], 128, 128, 8
        $region36: #{tensorf_forward.1} parent=11 // pred_fallthru
          _
        // Predicated region
        $region37: #{tensorf_forward.1} parent=11 // pred_check
          %p389 = pneg %p227
        $region38: #{tensorf_forward.1} parent=11 // pred_check_branch
          %391 = sbr.rel (%p389) target = $region40
        $region39: #{tensorf_forward.1} parent=11 // pred_region
          %s393 = ssub.s32 256, 256
          %394 = vsyncadd [#allocation11], %s393
          %s395 = sshll.u32 [#allocation12], 4
          %s396 = int_to_ptr.vmem [resolvable:$true] %s395
          %401 = dma.hbm_to_vmem [thread:$0]  %s8, 256, %s396, [#allocation11], 64, 64, 4
        $region40: #{tensorf_forward.1} parent=11 // pred_fallthru
          _
        // Predicated region
        $region41: #{tensorf_forward.1} parent=11 // pred_check
          %p402 = pneg %p248
        $region42: #{tensorf_forward.1} parent=11 // pred_check_branch
          %404 = sbr.rel (%p402) target = $region44
        $region43: #{tensorf_forward.1} parent=11 // pred_region
          %s406 = ssub.s32 512, 512
          %407 = vsyncadd [#allocation14], %s406
          %s408 = sshll.u32 [#allocation13], 4
          %s409 = int_to_ptr.vmem [resolvable:$true] %s408
          %414 = dma.hbm_to_vmem [thread:$0]  %s9, 512, %s409, [#allocation14], 128, 128, 8
        $region44: #{tensorf_forward.1} parent=11 // pred_fallthru
          _
        // Predicated region
        $region45: #{tensorf_forward.1} parent=11 // pred_check
          %p415 = pneg %p269
        $region46: #{tensorf_forward.1} parent=11 // pred_check_branch
          %417 = sbr.rel (%p415) target = $region48
        $region47: #{tensorf_forward.1} parent=11 // pred_region
          %s419 = ssub.s32 32, 32
          %420 = vsyncadd [#allocation14], %s419
          %s422 = sshll.u32 [#allocation15], 4
          %s423 = int_to_ptr.vmem [resolvable:$true] %s422
          %425 = dma.hbm_to_vmem [thread:$0]  %s10, 32, %s423, [#allocation14]
        $region48: #{tensorf_forward.1} parent=11 // pred_fallthru
          _
        // Predicated region
        $region49: #{tensorf_forward.1} parent=11 // pred_check
          %p426 = pneg %p290
        $region50: #{tensorf_forward.1} parent=11 // pred_check_branch
          %428 = sbr.rel (%p426) target = $region52
        $region51: #{tensorf_forward.1} parent=11 // pred_region
          %s430 = ssub.s32 64, 64
          %431 = vsyncadd [#allocation17], %s430
          %s433 = sshll.u32 [#allocation16], 4
          %s434 = int_to_ptr.vmem [resolvable:$true] %s433
          %436 = dma.hbm_to_vmem [thread:$0]  %s11, 64, %s434, [#allocation17]
        $region52: #{tensorf_forward.1} parent=11 // pred_fallthru
          _
      $region12: #{tensorf_forward.1} parent=5 // pred_fallthru
        _
      %p437 = scmp.lt.s32.totalorder %s28, 4
      // Predicated region
      $region53: #{tensorf_forward.1} parent=5 // pred_check
        %p438 = pneg %p437
      $region54: #{tensorf_forward.1} parent=5 // pred_check_branch
        %440 = sbr.rel (%p438) target = $region56
      $region55: #{tensorf_forward.1} parent=5 // pred_region
        // Predicated region
        $region57: #{tensorf_forward.1} parent=55 // pred_check
          %p441 = pneg %p48
        $region58: #{tensorf_forward.1} parent=55 // pred_check_branch
          %443 = sbr.rel (%p441) target = $region60
        $region59: #{tensorf_forward.1} parent=55 // pred_region
          %s444 = sand.u32 %s38, 1
          %s445 = scalar_lea.sflag [#allocation3], %s444
          %s446 = sand.u32 %s38, 1
          %s447 = smul.addr %s446, 16
          %s448 = scalar_lea.vmem [#allocation2], %s447
          %s449 = smul.u32 4, %s28
          %s451 = ssub.s32 256, 256
          %452 = vsyncadd %s445, %s451
          %s453 = smul.addr %s449, 64
          %s454 = scalar_lea.hbm %s0, %s453
          %s456 = sshll.u32 %s448, 4
          %s457 = int_to_ptr.vmem [resolvable:$true] %s456
          %459 = dma.hbm_to_vmem [thread:$0]  %s454, 256, %s457, %s445
        $region60: #{tensorf_forward.1} parent=55 // pred_fallthru
          _
        // Predicated region
        $region61: #{tensorf_forward.1} parent=55 // pred_check
          %p460 = pneg %p74
        $region62: #{tensorf_forward.1} parent=55 // pred_check_branch
          %462 = sbr.rel (%p460) target = $region64
        $region63: #{tensorf_forward.1} parent=55 // pred_region
          %s463 = sand.u32 %s28, 1
          %s464 = scalar_lea.sflag [#allocation5], %s463
          %s465 = sand.u32 %s64, 1
          %s466 = smul.addr %s465, 16
          %s467 = scalar_lea.vmem [#allocation4], %s466
          %s468 = smul.u32 4, %s28
          %s470 = ssub.s32 256, 256
          %471 = vsyncadd %s464, %s470
          %s472 = smul.addr %s468, 64
          %s473 = scalar_lea.hbm %s1, %s472
          %s475 = sshll.u32 %s467, 4
          %s476 = int_to_ptr.vmem [resolvable:$true] %s475
          %478 = dma.hbm_to_vmem [thread:$0]  %s473, 256, %s476, %s464
        $region64: #{tensorf_forward.1} parent=55 // pred_fallthru
          _
      $region56: #{tensorf_forward.1} parent=5 // pred_fallthru
        _
      %p479 = scmp.le.s32.totalorder 1, %s28
      %p480 = scmp.lt.s32.totalorder %s28, 5
      %p481 = pnand %p479, %p480
      %p482 = pneg %p481
      // Predicated region
      $region65: #{tensorf_forward.1} parent=5 // pred_check
        _
      $region66: #{tensorf_forward.1} parent=5 // pred_check_branch
        %484 = sbr.rel (%p481) target = $region68
      $region67: #{tensorf_forward.1} parent=5 // pred_region
        %s485 = ssub.s32 %s28, 1
        %s486 = sand.u32 %s41, 1
        %s487 = scalar_lea.sflag [#allocation3], %s486
        %s488 = sand.u32 %s41, 1
        %s489 = smul.addr %s488, 16
        %s490 = scalar_lea.vmem [#allocation2], %s489
        // Predicated region
        $region69: #{tensorf_forward.1} parent=67 // pred_check
          %p491 = pneg %p54
        $region70: #{tensorf_forward.1} parent=67 // pred_check_branch
          %493 = sbr.rel (%p491) target = $region72
        $region71: #{tensorf_forward.1} parent=67 // pred_region
          %494 = dma.done %s487, 256
        $region72: #{tensorf_forward.1} parent=67 // pred_fallthru
          _
        %s495 = sand.u32 %s33, 1
        %s496 = scalar_lea.sflag [#allocation5], %s495
        %s497 = sand.u32 %s67, 1
        %s498 = smul.addr %s497, 16
        %s499 = scalar_lea.vmem [#allocation4], %s498
        // Predicated region
        $region73: #{tensorf_forward.1} parent=67 // pred_check
          %p500 = pneg %p80
        $region74: #{tensorf_forward.1} parent=67 // pred_check_branch
          %502 = sbr.rel (%p500) target = $region76
        $region75: #{tensorf_forward.1} parent=67 // pred_region
          %503 = dma.done %s496, 256
        $region76: #{tensorf_forward.1} parent=67 // pred_fallthru
          _
        // Predicated region
        $region77: #{tensorf_forward.1} parent=67 // pred_check
          %p504 = pneg %p122
        $region78: #{tensorf_forward.1} parent=67 // pred_check_branch
          %506 = sbr.rel (%p504) target = $region80
        $region79: #{tensorf_forward.1} parent=67 // pred_region
          %507 = dma.done [#allocation5], 576
        $region80: #{tensorf_forward.1} parent=67 // pred_fallthru
          _
        // Predicated region
        $region81: #{tensorf_forward.1} parent=67 // pred_check
          %p508 = pneg %p143
        $region82: #{tensorf_forward.1} parent=67 // pred_check_branch
          %510 = sbr.rel (%p508) target = $region84
        $region83: #{tensorf_forward.1} parent=67 // pred_region
          %511 = dma.done [#allocation8], 256
        $region84: #{tensorf_forward.1} parent=67 // pred_fallthru
          _
        // Predicated region
        $region85: #{tensorf_forward.1} parent=67 // pred_check
          %p512 = pneg %p185
        $region86: #{tensorf_forward.1} parent=67 // pred_check_branch
          %514 = sbr.rel (%p512) target = $region88
        $region87: #{tensorf_forward.1} parent=67 // pred_region
          %515 = dma.done [#allocation8], 256
        $region88: #{tensorf_forward.1} parent=67 // pred_fallthru
          _
        // Predicated region
        $region89: #{tensorf_forward.1} parent=67 // pred_check
          %p516 = pneg %p206
        $region90: #{tensorf_forward.1} parent=67 // pred_check_branch
          %518 = sbr.rel (%p516) target = $region92
        $region91: #{tensorf_forward.1} parent=67 // pred_region
          %519 = dma.done [#allocation11], 512
        $region92: #{tensorf_forward.1} parent=67 // pred_fallthru
          _
        // Predicated region
        $region93: #{tensorf_forward.1} parent=67 // pred_check
          %p520 = pneg %p227
        $region94: #{tensorf_forward.1} parent=67 // pred_check_branch
          %522 = sbr.rel (%p520) target = $region96
        $region95: #{tensorf_forward.1} parent=67 // pred_region
          %523 = dma.done [#allocation11], 256
        $region96: #{tensorf_forward.1} parent=67 // pred_fallthru
          _
        // Predicated region
        $region97: #{tensorf_forward.1} parent=67 // pred_check
          %p524 = pneg %p248
        $region98: #{tensorf_forward.1} parent=67 // pred_check_branch
          %526 = sbr.rel (%p524) target = $region100
        $region99: #{tensorf_forward.1} parent=67 // pred_region
          %527 = dma.done [#allocation14], 512
        $region100: #{tensorf_forward.1} parent=67 // pred_fallthru
          _
        // Predicated region
        $region101: #{tensorf_forward.1} parent=67 // pred_check
          %p528 = pneg %p269
        $region102: #{tensorf_forward.1} parent=67 // pred_check_branch
          %530 = sbr.rel (%p528) target = $region104
        $region103: #{tensorf_forward.1} parent=67 // pred_region
          %531 = dma.done [#allocation14], 32
        $region104: #{tensorf_forward.1} parent=67 // pred_fallthru
          _
        // Predicated region
        $region105: #{tensorf_forward.1} parent=67 // pred_check
          %p532 = pneg %p290
        $region106: #{tensorf_forward.1} parent=67 // pred_check_branch
          %534 = sbr.rel (%p532) target = $region108
        $region107: #{tensorf_forward.1} parent=67 // pred_region
          %535 = dma.done [#allocation17], 64
        $region108: #{tensorf_forward.1} parent=67 // pred_fallthru
          _
        %s536 = sand.u32 %s41, 1
        %s537 = scalar_lea.sflag [#allocation3], %s536
        %s538 = sand.u32 %s41, 1
        %s539 = smul.addr %s538, 16
        %s540 = scalar_lea.vmem [#allocation2], %s539
        %p541 = pneg %p54
        %p542 = pneg %p51
        %s543 = sand.u32 %s33, 1
        %s544 = scalar_lea.sflag [#allocation5], %s543
        %s545 = sand.u32 %s67, 1
        %s546 = smul.addr %s545, 16
        %s547 = scalar_lea.vmem [#allocation4], %s546
        %p548 = pneg %p80
        %p549 = pneg %p77
        %p550 = pneg %p101
        %p551 = pneg %p98
        %p552 = pneg %p122
        %p553 = pneg %p119
        %p554 = pneg %p143
        %p555 = pneg %p140
        %p556 = pneg %p164
        %p557 = pneg %p161
        %p558 = pneg %p185
        %p559 = pneg %p182
        %p560 = pneg %p206
        %p561 = pneg %p203
        %p562 = pneg %p227
        %p563 = pneg %p224
        %p564 = pneg %p248
        %p565 = pneg %p245
        %p566 = pneg %p269
        %p567 = pneg %p266
        %p568 = pneg %p290
        %p569 = pneg %p287
        %p570 = pneg %p316
        %p571 = pneg %p313
        %s572 = smul.u32 4, %s33
        %p573 = scmp.lt.s32.totalorder %s572, 15
        %s574 = scalar_select %p573, %s572, 15
        %s575 = smul.addr %s574, 4
        %s576 = scalar_lea.vmem %s12, %s575
        %s577 = smul.u32 4, %s33
        %s578 = smul.u32 4, %s33
        %s579 = smul.u32 4, %s33
        %p580 = scmp.lt.s32.totalorder %s579, 15
        %s581 = scalar_select %p580, %s579, 15
        %s582 = smul.addr %s581, 4
        %s583 = scalar_lea.vmem %s12, %s582
        %s584 = smul.u32 4, %s33
        %v586 = vld [vmem:[%s490] sm:$0x77]
        %v587 = vld [vmem:[%s490 + $0x8] sm:$0x77]
        %v588 = vlaneseq
        %v589 = vshrl.u32 %v588, 7
        %v590 = vadd.s32 %v589, 8
        %v591 = vadd.s32 %v589, 16
        %v592 = vadd.s32 %v589, 24
        %v593 = vsub.f32 %v586, -1.0
        %v594 = vsub.f32 %v587, -1.0
        %v595 = vmul.f32 %v593, 15.5
        %v596 = vmul.f32 %v594, 15.5
        %v597 = vfloor.f32 %v595
        %v598 = vfloor.f32 %v596
        %v599 = vmax.f32 %v597, 0.0
        %v600 = vmax.f32 %v598, 0.0
        %v601 = vmin.f32 %v599, 30.0
        %v602 = vmin.f32 %v600, 30.0
        %v603 = vcvt.f32.s32.to.zero.pseudo %v601
        %v604 = vcvt.f32.s32.to.zero.pseudo %v602
        %v605 = vsub.f32 %v595, %v601
        %v606 = vsub.f32 %v596, %v602
        %v607 = vmax.f32 %v605, 0.0
        %v608 = vmax.f32 %v606, 0.0
        %v609 = vmin.f32 %v607, 1.0
        %v610 = vmin.f32 %v608, 1.0
        %v611 = vlaneseq
        %v612 = vshrl.u32 %v611, 7
        %v613 = vsub.s32 0, %v612
        %v614 = vrot.slane %v603, %v613
        %v615 = vlaneseq
        %v616 = vshrl.u32 %v615, 7
        %v617 = vsub.s32 4, %v616
        %v618 = vrot.slane %v603, %v617
        %v619 = vlaneseq
        %v620 = vshrl.u32 %v619, 7
        %v621 = vsub.s32 0, %v620
        %v622 = vrot.slane %v604, %v621
        %v623 = vlaneseq
        %v624 = vshrl.u32 %v623, 7
        %v625 = vsub.s32 4, %v624
        %v626 = vrot.slane %v604, %v625
        %v627 = vlaneseq
        %v628 = vshrl.u32 %v627, 7
        %v629 = vsub.s32 0, %v628
        %v630 = vrot.slane %v614, %v629
        %v631 = vlaneseq
        %v632 = vshrl.u32 %v631, 7
        %v633 = vsub.s32 0, %v632
        %v634 = vrot.slane %v618, %v633
        %v635 = vlaneseq
        %v636 = vshrl.u32 %v635, 7
        %v637 = vsub.s32 0, %v636
        %v638 = vrot.slane %v622, %v637
        %v639 = vlaneseq
        %v640 = vshrl.u32 %v639, 7
        %v641 = vsub.s32 0, %v640
        %v642 = vrot.slane %v626, %v641
        %vm643 = vcmp.eq.s32.totalorder %v589, %v630
        %vm644 = vcmp.eq.s32.totalorder %v589, %v634
        %vm645 = vcmp.eq.s32.totalorder %v589, %v638
        %vm646 = vcmp.eq.s32.totalorder %v589, %v642
        %vm647 = vcmp.eq.s32.totalorder %v590, %v630
        %vm648 = vcmp.eq.s32.totalorder %v590, %v634
        %vm649 = vcmp.eq.s32.totalorder %v590, %v638
        %vm650 = vcmp.eq.s32.totalorder %v590, %v642
        %vm651 = vcmp.eq.s32.totalorder %v591, %v630
        %vm652 = vcmp.eq.s32.totalorder %v591, %v634
        %vm653 = vcmp.eq.s32.totalorder %v591, %v638
        %vm654 = vcmp.eq.s32.totalorder %v591, %v642
        %vm655 = vcmp.eq.s32.totalorder %v592, %v630
        %vm656 = vcmp.eq.s32.totalorder %v592, %v634
        %vm657 = vcmp.eq.s32.totalorder %v592, %v638
        %vm658 = vcmp.eq.s32.totalorder %v592, %v642
        %v659 = vsel %vm643, 1, 0
        %v660 = vsel %vm644, 1, 0
        %v661 = vsel %vm645, 1, 0
        %v662 = vsel %vm646, 1, 0
        %v663 = vsel %vm647, 1, 0
        %v664 = vsel %vm648, 1, 0
        %v665 = vsel %vm649, 1, 0
        %v666 = vsel %vm650, 1, 0
        %v667 = vsel %vm651, 1, 0
        %v668 = vsel %vm652, 1, 0
        %v669 = vsel %vm653, 1, 0
        %v670 = vsel %vm654, 1, 0
        %v671 = vsel %vm655, 1, 0
        %v672 = vsel %vm656, 1, 0
        %v673 = vsel %vm657, 1, 0
        %v674 = vsel %vm658, 1, 0
        %v675 = vcvt.s32.f32 %v659
        %v676 = vcvt.s32.f32 %v660
        %v677 = vcvt.s32.f32 %v661
        %v678 = vcvt.s32.f32 %v662
        %v679 = vcvt.s32.f32 %v663
        %v680 = vcvt.s32.f32 %v664
        %v681 = vcvt.s32.f32 %v665
        %v682 = vcvt.s32.f32 %v666
        %v683 = vcvt.s32.f32 %v667
        %v684 = vcvt.s32.f32 %v668
        %v685 = vcvt.s32.f32 %v669
        %v686 = vcvt.s32.f32 %v670
        %v687 = vcvt.s32.f32 %v671
        %v688 = vcvt.s32.f32 %v672
        %v689 = vcvt.s32.f32 %v673
        %v690 = vcvt.s32.f32 %v674
        %v691 = vpack.c.bf16 %v679, %v675
        %v692 = vpack.c.bf16 %v680, %v676
        %v693 = vpack.c.bf16 %v681, %v677
        %v694 = vpack.c.bf16 %v682, %v678
        %v695 = vpack.c.bf16 %v687, %v683
        %v696 = vpack.c.bf16 %v688, %v684
        %v697 = vpack.c.bf16 %v689, %v685
        %v698 = vpack.c.bf16 %v690, %v686
        %v699 = vld [vmem:[%s2] sm:$0xf]
        %v700 = vld [vmem:[%s2 + $0x4] sm:$0xf]
        %v701 = vld [vmem:[%s2 + $0x8] sm:$0xf]
        %v705 = vunpack.c.l.b16 %v699
        %v706 = vunpack.c.l.b16 %v700
        %v707 = vunpack.c.l.b16 %v701
        %v708 = vpack.c.b16 %v706, %v705
        %v709 = vpack.c.b16 %v707, %v707
        %vm710 = vcmask 261120
        %v712 = vsel %vm710, %v708, 0
        %v715 = vsel %vm710, %v709, 0
        %717 = vmatprep.subr.bf16.mxu0 %v692
        %718 = vmatpush1.bf16.msra.mxu0 %v691
        %719 = vmatprep.subr.bf16.mxu0 %v696
        %720 = vmatpush1.bf16.msra.mxu0 %v695
        %721 = vmatprep.subr.bf16.mxu0 0
        %722 = vmatpush1.bf16.msra.mxu0 0
        %723 = vmatprep.subr.bf16.mxu0 0
        %724 = vmatpush1.bf16.msra.mxu0 0
        %725 = vmatprep.subr.bf16.mxu0 0
        %726 = vmatpush1.bf16.msra.mxu0 0
        %727 = vmatprep.subr.bf16.mxu0 0
        %728 = vmatpush1.bf16.msra.mxu0 0
        %729 = vmatprep.subr.bf16.mxu0 0
        %730 = vmatpush1.bf16.msra.mxu0 0
        %731 = vmatprep.subr.bf16.mxu0 0
        %732 = vmatpush1.bf16.msra.mxu0 0
        %733 = vmatprep.subr.bf16.mxu0 0
        %734 = vmatpush1.bf16.msra.mxu0 0
        %735 = vmatprep.subr.bf16.mxu0 0
        %736 = vmatpush1.bf16.msra.mxu0 0
        %737 = vmatprep.subr.bf16.mxu0 0
        %738 = vmatpush1.bf16.msra.mxu0 0
        %739 = vmatprep.subr.bf16.mxu0 0
        %740 = vmatpush1.bf16.msra.mxu0 0
        %741 = vmatprep.subr.bf16.mxu0 0
        %742 = vmatpush1.bf16.msra.mxu0 0
        %743 = vmatprep.subr.bf16.mxu0 0
        %744 = vmatpush1.bf16.msra.mxu0 0
        %745 = vmatprep.subr.bf16.mxu0 0
        %746 = vmatpush1.bf16.msra.mxu0 0
        %747 = vmatprep.subr.bf16.mxu0 0
        %748 = vmatpush1.bf16.msra.mxu0 0
        %749 = vmatprep.mubr.bf16.mxu0 0
        %750 = vmatmul.mubr.bf16.gmra.mrb[0].mxu0 %v712
        %v751 = vpop.f32.mrb[0].mxu0
        %v752 = vadd.f32 0.0, %v751
        %v753 = vpop.f32.mrb[0].mxu0
        %v754 = vadd.f32 0.0, %v753
        %v755 = vpop.f32.mrb[0].mxu0
        %v756 = vadd.f32 0.0, %v755
        %v757 = vpop.f32.mrb[0].mxu0
        %v758 = vadd.f32 0.0, %v757
        %759 = vmatprep.mubr.bf16.mxu0 0
        %760 = vmatmul.mubr.bf16.gmra.mrb[0].mxu0 %v715
        %v761 = vpop.f32.mrb[0].mxu0
        %v762 = vadd.f32 0.0, %v761
        %v763 = vpop.f32.mrb[0].mxu0
        %v764 = vadd.f32 0.0, %v763
        %v765 = vpop.f32.mrb[0].mxu0
        %v766 = vpop.f32.mrb[0].mxu0
        %767 = vdwg.mxu0
        %768 = vmatprep.subr.bf16.mxu0 %v694
        %769 = vmatpush1.bf16.msra.mxu0 %v693
        %770 = vmatprep.subr.bf16.mxu0 %v698
        %771 = vmatpush1.bf16.msra.mxu0 %v697
        %772 = vmatprep.subr.bf16.mxu0 0
        %773 = vmatpush1.bf16.msra.mxu0 0
        %774 = vmatprep.subr.bf16.mxu0 0
        %775 = vmatpush1.bf16.msra.mxu0 0
        %776 = vmatprep.subr.bf16.mxu0 0
        %777 = vmatpush1.bf16.msra.mxu0 0
        %778 = vmatprep.subr.bf16.mxu0 0
        %779 = vmatpush1.bf16.msra.mxu0 0
        %780 = vmatprep.subr.bf16.mxu0 0
        %781 = vmatpush1.bf16.msra.mxu0 0
        %782 = vmatprep.subr.bf16.mxu0 0
        %783 = vmatpush1.bf16.msra.mxu0 0
        %784 = vmatprep.subr.bf16.mxu0 0
        %785 = vmatpush1.bf16.msra.mxu0 0
        %786 = vmatprep.subr.bf16.mxu0 0
        %787 = vmatpush1.bf16.msra.mxu0 0
        %788 = vmatprep.subr.bf16.mxu0 0
        %789 = vmatpush1.bf16.msra.mxu0 0
        %790 = vmatprep.subr.bf16.mxu0 0
        %791 = vmatpush1.bf16.msra.mxu0 0
        %792 = vmatprep.subr.bf16.mxu0 0
        %793 = vmatpush1.bf16.msra.mxu0 0
        %794 = vmatprep.subr.bf16.mxu0 0
        %795 = vmatpush1.bf16.msra.mxu0 0
        %796 = vmatprep.subr.bf16.mxu0 0
        %797 = vmatpush1.bf16.msra.mxu0 0
        %798 = vmatprep.subr.bf16.mxu0 0
        %799 = vmatpush1.bf16.msra.mxu0 0
        %800 = vmatprep.mubr.bf16.mxu0 0
        %801 = vmatmul.mubr.bf16.gmra.mrb[0].mxu0 %v712
        %v802 = vpop.f32.mrb[0].mxu0
        %v803 = vadd.f32 0.0, %v802
        %v804 = vpop.f32.mrb[0].mxu0
        %v805 = vadd.f32 0.0, %v804
        %v806 = vpop.f32.mrb[0].mxu0
        %v807 = vadd.f32 0.0, %v806
        %v808 = vpop.f32.mrb[0].mxu0
        %v809 = vadd.f32 0.0, %v808
        %810 = vmatprep.mubr.bf16.mxu0 0
        %811 = vmatmul.mubr.bf16.gmra.mrb[0].mxu0 %v715
        %v812 = vpop.f32.mrb[0].mxu0
        %v813 = vadd.f32 0.0, %v812
        %v814 = vpop.f32.mrb[0].mxu0
        %v815 = vadd.f32 0.0, %v814
        %v816 = vpop.f32.mrb[0].mxu0
        %v817 = vpop.f32.mrb[0].mxu0
        %818 = vdwg.mxu0
        %v819 = vld [vmem:[#allocation6] sm:$0xf]
        %v820 = vld [vmem:[#allocation6 + $0x4] sm:$0xf]
        %v821 = vld [vmem:[#allocation6 + $0x8] sm:$0xf]
        %v825 = vunpack.c.l.b16 %v819
        %v826 = vunpack.c.l.b16 %v820
        %v827 = vunpack.c.l.b16 %v821
        %v828 = vpack.c.b16 %v826, %v825
        %v829 = vpack.c.b16 %v827, %v827
        %v831 = vsel %vm710, %v828, 0
        %v834 = vsel %vm710, %v829, 0
        %836 = vmatprep.subr.bf16.mxu0 %v692
        %837 = vmatpush1.bf16.msra.mxu0 %v691
        %838 = vmatprep.subr.bf16.mxu0 %v696
        %839 = vmatpush1.bf16.msra.mxu0 %v695
        %840 = vmatprep.subr.bf16.mxu0 0
        %841 = vmatpush1.bf16.msra.mxu0 0
        %842 = vmatprep.subr.bf16.mxu0 0
        %843 = vmatpush1.bf16.msra.mxu0 0
        %844 = vmatprep.subr.bf16.mxu0 0
        %845 = vmatpush1.bf16.msra.mxu0 0
        %846 = vmatprep.subr.bf16.mxu0 0
        %847 = vmatpush1.bf16.msra.mxu0 0
        %848 = vmatprep.subr.bf16.mxu0 0
        %849 = vmatpush1.bf16.msra.mxu0 0
        %850 = vmatprep.subr.bf16.mxu0 0
        %851 = vmatpush1.bf16.msra.mxu0 0
        %852 = vmatprep.subr.bf16.mxu0 0
        %853 = vmatpush1.bf16.msra.mxu0 0
        %854 = vmatprep.subr.bf16.mxu0 0
        %855 = vmatpush1.bf16.msra.mxu0 0
        %856 = vmatprep.subr.bf16.mxu0 0
        %857 = vmatpush1.bf16.msra.mxu0 0
        %858 = vmatprep.subr.bf16.mxu0 0
        %859 = vmatpush1.bf16.msra.mxu0 0
        %860 = vmatprep.subr.bf16.mxu0 0
        %861 = vmatpush1.bf16.msra.mxu0 0
        %862 = vmatprep.subr.bf16.mxu0 0
        %863 = vmatpush1.bf16.msra.mxu0 0
        %864 = vmatprep.subr.bf16.mxu0 0
        %865 = vmatpush1.bf16.msra.mxu0 0
        %866 = vmatprep.subr.bf16.mxu0 0
        %867 = vmatpush1.bf16.msra.mxu0 0
        %868 = vmatprep.mubr.bf16.mxu0 0
        %869 = vmatmul.mubr.bf16.gmra.mrb[0].mxu0 %v831
        %v870 = vpop.f32.mrb[0].mxu0
        %v871 = vadd.f32 0.0, %v870
        %v872 = vpop.f32.mrb[0].mxu0
        %v873 = vadd.f32 0.0, %v872
        %v874 = vpop.f32.mrb[0].mxu0
        %v875 = vadd.f32 0.0, %v874
        %v876 = vpop.f32.mrb[0].mxu0
        %v877 = vadd.f32 0.0, %v876
        %878 = vmatprep.mubr.bf16.mxu0 0
        %879 = vmatmul.mubr.bf16.gmra.mrb[0].mxu0 %v834
        %v880 = vpop.f32.mrb[0].mxu0
        %v881 = vadd.f32 0.0, %v880
        %v882 = vpop.f32.mrb[0].mxu0
        %v883 = vadd.f32 0.0, %v882
        %v884 = vpop.f32.mrb[0].mxu0
        %v885 = vpop.f32.mrb[0].mxu0
        %886 = vdwg.mxu0
        %887 = vmatprep.subr.bf16.mxu0 %v694
        %888 = vmatpush1.bf16.msra.mxu0 %v693
        %889 = vmatprep.subr.bf16.mxu0 %v698
        %890 = vmatpush1.bf16.msra.mxu0 %v697
        %891 = vmatprep.subr.bf16.mxu0 0
        %892 = vmatpush1.bf16.msra.mxu0 0
        %893 = vmatprep.subr.bf16.mxu0 0
        %894 = vmatpush1.bf16.msra.mxu0 0
        %895 = vmatprep.subr.bf16.mxu0 0
        %896 = vmatpush1.bf16.msra.mxu0 0
        %897 = vmatprep.subr.bf16.mxu0 0
        %898 = vmatpush1.bf16.msra.mxu0 0
        %899 = vmatprep.subr.bf16.mxu0 0
        %900 = vmatpush1.bf16.msra.mxu0 0
        %901 = vmatprep.subr.bf16.mxu0 0
        %902 = vmatpush1.bf16.msra.mxu0 0
        %903 = vmatprep.subr.bf16.mxu0 0
        %904 = vmatpush1.bf16.msra.mxu0 0
        %905 = vmatprep.subr.bf16.mxu0 0
        %906 = vmatpush1.bf16.msra.mxu0 0
        %907 = vmatprep.subr.bf16.mxu0 0
        %908 = vmatpush1.bf16.msra.mxu0 0
        %909 = vmatprep.subr.bf16.mxu0 0
        %910 = vmatpush1.bf16.msra.mxu0 0
        %911 = vmatprep.subr.bf16.mxu0 0
        %912 = vmatpush1.bf16.msra.mxu0 0
        %913 = vmatprep.subr.bf16.mxu0 0
        %914 = vmatpush1.bf16.msra.mxu0 0
        %915 = vmatprep.subr.bf16.mxu0 0
        %916 = vmatpush1.bf16.msra.mxu0 0
        %917 = vmatprep.subr.bf16.mxu0 0
        %918 = vmatpush1.bf16.msra.mxu0 0
        %919 = vmatprep.mubr.bf16.mxu0 0
        %920 = vmatmul.mubr.bf16.gmra.mrb[0].mxu0 %v831
        %v921 = vpop.f32.mrb[0].mxu0
        %v922 = vadd.f32 0.0, %v921
        %v923 = vpop.f32.mrb[0].mxu0
        %v924 = vadd.f32 0.0, %v923
        %v925 = vpop.f32.mrb[0].mxu0
        %v926 = vadd.f32 0.0, %v925
        %v927 = vpop.f32.mrb[0].mxu0
        %v928 = vadd.f32 0.0, %v927
        %929 = vmatprep.mubr.bf16.mxu0 0
        %930 = vmatmul.mubr.bf16.gmra.mrb[0].mxu0 %v834
        %v931 = vpop.f32.mrb[0].mxu0
        %v932 = vadd.f32 0.0, %v931
        %v933 = vpop.f32.mrb[0].mxu0
        %v934 = vadd.f32 0.0, %v933
        %v935 = vpop.f32.mrb[0].mxu0
        %v936 = vpop.f32.mrb[0].mxu0
        %937 = vdwg.mxu0
        %v938 = vsub.f32 %v871, %v752
        %v939 = vsub.f32 %v873, %v754
        %v940 = vsub.f32 %v922, %v803
        %v941 = vsub.f32 %v924, %v805
        %v942 = vsub.f32 %v875, %v756
        %v943 = vsub.f32 %v877, %v758
        %v944 = vsub.f32 %v926, %v807
        %v945 = vsub.f32 %v928, %v809
        %v946 = vsub.f32 %v881, %v762
        %v947 = vsub.f32 %v883, %v764
        %v948 = vsub.f32 %v932, %v813
        %v949 = vsub.f32 %v934, %v815
        %v952 = vlaneseq
        %v953 = vshrl.u32 %v952, 7
        %v954 = vsub.s32 0, %v953
        %v955 = vrot.slane %v609, %v954
        %v956 = vlaneseq
        %v957 = vshrl.u32 %v956, 7
        %v958 = vsub.s32 4, %v957
        %v959 = vrot.slane %v609, %v958
        %v960 = vlaneseq
        %v961 = vshrl.u32 %v960, 7
        %v962 = vsub.s32 0, %v961
        %v963 = vrot.slane %v610, %v962
        %v964 = vlaneseq
        %v965 = vshrl.u32 %v964, 7
        %v966 = vsub.s32 4, %v965
        %v967 = vrot.slane %v610, %v966
        %v972 = vlaneseq
        %v973 = vshrl.u32 %v972, 7
        %v974 = vsub.s32 0, %v973
        %v975 = vrot.slane %v955, %v974
        %v976 = vlaneseq
        %v977 = vshrl.u32 %v976, 7
        %v978 = vsub.s32 0, %v977
        %v979 = vrot.slane %v959, %v978
        %v980 = vlaneseq
        %v981 = vshrl.u32 %v980, 7
        %v982 = vsub.s32 0, %v981
        %v983 = vrot.slane %v963, %v982
        %v984 = vlaneseq
        %v985 = vshrl.u32 %v984, 7
        %v986 = vsub.s32 0, %v985
        %v987 = vrot.slane %v967, %v986
        %v988 = vmul.f32 %v938, %v975
        %v989 = vmul.f32 %v939, %v979
        %v990 = vmul.f32 %v940, %v983
        %v991 = vmul.f32 %v941, %v987
        %v992 = vmul.f32 %v942, %v975
        %v993 = vmul.f32 %v943, %v979
        %v994 = vmul.f32 %v944, %v983
        %v995 = vmul.f32 %v945, %v987
        %v996 = vmul.f32 %v946, %v975
        %v997 = vmul.f32 %v947, %v979
        %v998 = vmul.f32 %v948, %v983
        %v999 = vmul.f32 %v949, %v987
        %v1000 = vadd.f32 %v752, %v988
        %v1001 = vadd.f32 %v754, %v989
        %v1002 = vadd.f32 %v803, %v990
        %v1003 = vadd.f32 %v805, %v991
        %v1004 = vadd.f32 %v756, %v992
        %v1005 = vadd.f32 %v758, %v993
        %v1006 = vadd.f32 %v807, %v994
        %v1007 = vadd.f32 %v809, %v995
        %v1008 = vadd.f32 %v762, %v996
        %v1009 = vadd.f32 %v764, %v997
        %v1010 = vadd.f32 %v813, %v998
        %v1011 = vadd.f32 %v815, %v999
        %v1012 = vlaneseq
        %v1013 = vshrl.u32 %v1012, 7
        %v1014 = vsub.s32 1, %v1013
        %v1015 = vrot.slane %v603, %v1014
        %v1016 = vlaneseq
        %v1017 = vshrl.u32 %v1016, 7
        %v1018 = vsub.s32 5, %v1017
        %v1019 = vrot.slane %v603, %v1018
        %v1020 = vlaneseq
        %v1021 = vshrl.u32 %v1020, 7
        %v1022 = vsub.s32 1, %v1021
        %v1023 = vrot.slane %v604, %v1022
        %v1024 = vlaneseq
        %v1025 = vshrl.u32 %v1024, 7
        %v1026 = vsub.s32 5, %v1025
        %v1027 = vrot.slane %v604, %v1026
        %v1028 = vlaneseq
        %v1029 = vshrl.u32 %v1028, 7
        %v1030 = vsub.s32 1, %v1029
        %v1031 = vrot.slane %v1015, %v1030
        %v1032 = vlaneseq
        %v1033 = vshrl.u32 %v1032, 7
        %v1034 = vsub.s32 1, %v1033
        %v1035 = vrot.slane %v1019, %v1034
        %v1036 = vlaneseq
        %v1037 = vshrl.u32 %v1036, 7
        %v1038 = vsub.s32 1, %v1037
        %v1039 = vrot.slane %v1023, %v1038
        %v1040 = vlaneseq
        %v1041 = vshrl.u32 %v1040, 7
        %v1042 = vsub.s32 1, %v1041
        %v1043 = vrot.slane %v1027, %v1042
        %vm1044 = vcmp.eq.s32.totalorder %v589, %v1031
        %vm1045 = vcmp.eq.s32.totalorder %v589, %v1035
        %vm1046 = vcmp.eq.s32.totalorder %v589, %v1039
        %vm1047 = vcmp.eq.s32.totalorder %v589, %v1043
        %vm1048 = vcmp.eq.s32.totalorder %v590, %v1031
        %vm1049 = vcmp.eq.s32.totalorder %v590, %v1035
        %vm1050 = vcmp.eq.s32.totalorder %v590, %v1039
        %vm1051 = vcmp.eq.s32.totalorder %v590, %v1043
        %vm1052 = vcmp.eq.s32.totalorder %v591, %v1031
        %vm1053 = vcmp.eq.s32.totalorder %v591, %v1035
        %vm1054 = vcmp.eq.s32.totalorder %v591, %v1039
        %vm1055 = vcmp.eq.s32.totalorder %v591, %v1043
        %vm1056 = vcmp.eq.s32.totalorder %v592, %v1031
        %vm1057 = vcmp.eq.s32.totalorder %v592, %v1035
        %vm1058 = vcmp.eq.s32.totalorder %v592, %v1039
        %vm1059 = vcmp.eq.s32.totalorder %v592, %v1043
        %v1060 = vsel %vm1044, 1, 0
        %v1061 = vsel %vm1045, 1, 0
        %v1062 = vsel %vm1046, 1, 0
        %v1063 = vsel %vm1047, 1, 0
        %v1064 = vsel %vm1048, 1, 0
        %v1065 = vsel %vm1049, 1, 0
        %v1066 = vsel %vm1050, 1, 0
        %v1067 = vsel %vm1051, 1, 0
        %v1068 = vsel %vm1052, 1, 0
        %v1069 = vsel %vm1053, 1, 0
        %v1070 = vsel %vm1054, 1, 0
        %v1071 = vsel %vm1055, 1, 0
        %v1072 = vsel %vm1056, 1, 0
        %v1073 = vsel %vm1057, 1, 0
        %v1074 = vsel %vm1058, 1, 0
        %v1075 = vsel %vm1059, 1, 0
        %v1076 = vcvt.s32.f32 %v1060
        %v1077 = vcvt.s32.f32 %v1061
        %v1078 = vcvt.s32.f32 %v1062
        %v1079 = vcvt.s32.f32 %v1063
        %v1080 = vcvt.s32.f32 %v1064
        %v1081 = vcvt.s32.f32 %v1065
        %v1082 = vcvt.s32.f32 %v1066
        %v1083 = vcvt.s32.f32 %v1067
        %v1084 = vcvt.s32.f32 %v1068
        %v1085 = vcvt.s32.f32 %v1069
        %v1086 = vcvt.s32.f32 %v1070
        %v1087 = vcvt.s32.f32 %v1071
        %v1088 = vcvt.s32.f32 %v1072
        %v1089 = vcvt.s32.f32 %v1073
        %v1090 = vcvt.s32.f32 %v1074
        %v1091 = vcvt.s32.f32 %v1075
        %v1092 = vpack.c.bf16 %v1080, %v1076
        %v1093 = vpack.c.bf16 %v1081, %v1077
        %v1094 = vpack.c.bf16 %v1082, %v1078
        %v1095 = vpack.c.bf16 %v1083, %v1079
        %v1096 = vpack.c.bf16 %v1088, %v1084
        %v1097 = vpack.c.bf16 %v1089, %v1085
        %v1098 = vpack.c.bf16 %v1090, %v1086
        %v1099 = vpack.c.bf16 %v1091, %v1087
        %s1100 = scalar_lea.vmem %s2, 12
        %v1101 = vld [vmem:[%s1100] sm:$0xf]
        %v1102 = vld [vmem:[%s1100 + $0x4] sm:$0xf]
        %v1103 = vld [vmem:[%s1100 + $0x8] sm:$0xf]
        %v1107 = vunpack.c.l.b16 %v1101
        %v1108 = vunpack.c.l.b16 %v1102
        %v1109 = vunpack.c.l.b16 %v1103
        %v1110 = vpack.c.b16 %v1108, %v1107
        %v1111 = vpack.c.b16 %v1109, %v1109
        %v1113 = vsel %vm710, %v1110, 0
        %v1116 = vsel %vm710, %v1111, 0
        %1118 = vmatprep.subr.bf16.mxu0 %v1093
        %1119 = vmatpush1.bf16.msra.mxu0 %v1092
        %1120 = vmatprep.subr.bf16.mxu0 %v1097
        %1121 = vmatpush1.bf16.msra.mxu0 %v1096
        %1122 = vmatprep.subr.bf16.mxu0 0
        %1123 = vmatpush1.bf16.msra.mxu0 0
        %1124 = vmatprep.subr.bf16.mxu0 0
        %1125 = vmatpush1.bf16.msra.mxu0 0
        %1126 = vmatprep.subr.bf16.mxu0 0
        %1127 = vmatpush1.bf16.msra.mxu0 0
        %1128 = vmatprep.subr.bf16.mxu0 0
        %1129 = vmatpush1.bf16.msra.mxu0 0
        %1130 = vmatprep.subr.bf16.mxu0 0
        %1131 = vmatpush1.bf16.msra.mxu0 0
        %1132 = vmatprep.subr.bf16.mxu0 0
        %1133 = vmatpush1.bf16.msra.mxu0 0
        %1134 = vmatprep.subr.bf16.mxu0 0
        %1135 = vmatpush1.bf16.msra.mxu0 0
        %1136 = vmatprep.subr.bf16.mxu0 0
        %1137 = vmatpush1.bf16.msra.mxu0 0
        %1138 = vmatprep.subr.bf16.mxu0 0
        %1139 = vmatpush1.bf16.msra.mxu0 0
        %1140 = vmatprep.subr.bf16.mxu0 0
        %1141 = vmatpush1.bf16.msra.mxu0 0
        %1142 = vmatprep.subr.bf16.mxu0 0
        %1143 = vmatpush1.bf16.msra.mxu0 0
        %1144 = vmatprep.subr.bf16.mxu0 0
        %1145 = vmatpush1.bf16.msra.mxu0 0
        %1146 = vmatprep.subr.bf16.mxu0 0
        %1147 = vmatpush1.bf16.msra.mxu0 0
        %1148 = vmatprep.subr.bf16.mxu0 0
        %1149 = vmatpush1.bf16.msra.mxu0 0
        %1150 = vmatprep.mubr.bf16.mxu0 0
        %1151 = vmatmul.mubr.bf16.gmra.mrb[0].mxu0 %v1113
        %v1152 = vpop.f32.mrb[0].mxu0
        %v1153 = vadd.f32 0.0, %v1152
        %v1154 = vpop.f32.mrb[0].mxu0
        %v1155 = vadd.f32 0.0, %v1154
        %v1156 = vpop.f32.mrb[0].mxu0
        %v1157 = vadd.f32 0.0, %v1156
        %v1158 = vpop.f32.mrb[0].mxu0
        %v1159 = vadd.f32 0.0, %v1158
        %1160 = vmatprep.mubr.bf16.mxu0 0
        %1161 = vmatmul.mubr.bf16.gmra.mrb[0].mxu0 %v1116
        %v1162 = vpop.f32.mrb[0].mxu0
        %v1163 = vadd.f32 0.0, %v1162
        %v1164 = vpop.f32.mrb[0].mxu0
        %v1165 = vadd.f32 0.0, %v1164
        %v1166 = vpop.f32.mrb[0].mxu0
        %v1167 = vpop.f32.mrb[0].mxu0
        %1168 = vdwg.mxu0
        %1169 = vmatprep.subr.bf16.mxu0 %v1095
        %1170 = vmatpush1.bf16.msra.mxu0 %v1094
        %1171 = vmatprep.subr.bf16.mxu0 %v1099
        %1172 = vmatpush1.bf16.msra.mxu0 %v1098
        %1173 = vmatprep.subr.bf16.mxu0 0
        %1174 = vmatpush1.bf16.msra.mxu0 0
        %1175 = vmatprep.subr.bf16.mxu0 0
        %1176 = vmatpush1.bf16.msra.mxu0 0
        %1177 = vmatprep.subr.bf16.mxu0 0
        %1178 = vmatpush1.bf16.msra.mxu0 0
        %1179 = vmatprep.subr.bf16.mxu0 0
        %1180 = vmatpush1.bf16.msra.mxu0 0
        %1181 = vmatprep.subr.bf16.mxu0 0
        %1182 = vmatpush1.bf16.msra.mxu0 0
        %1183 = vmatprep.subr.bf16.mxu0 0
        %1184 = vmatpush1.bf16.msra.mxu0 0
        %1185 = vmatprep.subr.bf16.mxu0 0
        %1186 = vmatpush1.bf16.msra.mxu0 0
        %1187 = vmatprep.subr.bf16.mxu0 0
        %1188 = vmatpush1.bf16.msra.mxu0 0
        %1189 = vmatprep.subr.bf16.mxu0 0
        %1190 = vmatpush1.bf16.msra.mxu0 0
        %1191 = vmatprep.subr.bf16.mxu0 0
        %1192 = vmatpush1.bf16.msra.mxu0 0
        %1193 = vmatprep.subr.bf16.mxu0 0
        %1194 = vmatpush1.bf16.msra.mxu0 0
        %1195 = vmatprep.subr.bf16.mxu0 0
        %1196 = vmatpush1.bf16.msra.mxu0 0
        %1197 = vmatprep.subr.bf16.mxu0 0
        %1198 = vmatpush1.bf16.msra.mxu0 0
        %1199 = vmatprep.subr.bf16.mxu0 0
        %1200 = vmatpush1.bf16.msra.mxu0 0
        %1201 = vmatprep.mubr.bf16.mxu0 0
        %1202 = vmatmul.mubr.bf16.gmra.mrb[0].mxu0 %v1113
        %v1203 = vpop.f32.mrb[0].mxu0
        %v1204 = vadd.f32 0.0, %v1203
        %v1205 = vpop.f32.mrb[0].mxu0
        %v1206 = vadd.f32 0.0, %v1205
        %v1207 = vpop.f32.mrb[0].mxu0
        %v1208 = vadd.f32 0.0, %v1207
        %v1209 = vpop.f32.mrb[0].mxu0
        %v1210 = vadd.f32 0.0, %v1209
        %1211 = vmatprep.mubr.bf16.mxu0 0
        %1212 = vmatmul.mubr.bf16.gmra.mrb[0].mxu0 %v1116
        %v1213 = vpop.f32.mrb[0].mxu0
        %v1214 = vadd.f32 0.0, %v1213
        %v1215 = vpop.f32.mrb[0].mxu0
        %v1216 = vadd.f32 0.0, %v1215
        %v1217 = vpop.f32.mrb[0].mxu0
        %v1218 = vpop.f32.mrb[0].mxu0
        %1219 = vdwg.mxu0
        %s1220 = scalar_lea.vmem [#allocation6], 12
        %v1221 = vld [vmem:[%s1220] sm:$0xf]
        %v1222 = vld [vmem:[%s1220 + $0x4] sm:$0xf]
        %v1223 = vld [vmem:[%s1220 + $0x8] sm:$0xf]
        %v1227 = vunpack.c.l.b16 %v1221
        %v1228 = vunpack.c.l.b16 %v1222
        %v1229 = vunpack.c.l.b16 %v1223
        %v1230 = vpack.c.b16 %v1228, %v1227
        %v1231 = vpack.c.b16 %v1229, %v1229
        %v1233 = vsel %vm710, %v1230, 0
        %v1236 = vsel %vm710, %v1231, 0
        %1238 = vmatprep.subr.bf16.mxu0 %v1093
        %1239 = vmatpush1.bf16.msra.mxu0 %v1092
        %1240 = vmatprep.subr.bf16.mxu0 %v1097
        %1241 = vmatpush1.bf16.msra.mxu0 %v1096
        %1242 = vmatprep.subr.bf16.mxu0 0
        %1243 = vmatpush1.bf16.msra.mxu0 0
        %1244 = vmatprep.subr.bf16.mxu0 0
        %1245 = vmatpush1.bf16.msra.mxu0 0
        %1246 = vmatprep.subr.bf16.mxu0 0
        %1247 = vmatpush1.bf16.msra.mxu0 0
        %1248 = vmatprep.subr.bf16.mxu0 0
        %1249 = vmatpush1.bf16.msra.mxu0 0
        %1250 = vmatprep.subr.bf16.mxu0 0
        %1251 = vmatpush1.bf16.msra.mxu0 0
        %1252 = vmatprep.subr.bf16.mxu0 0
        %1253 = vmatpush1.bf16.msra.mxu0 0
        %1254 = vmatprep.subr.bf16.mxu0 0
        %1255 = vmatpush1.bf16.msra.mxu0 0
        %1256 = vmatprep.subr.bf16.mxu0 0
        %1257 = vmatpush1.bf16.msra.mxu0 0
        %1258 = vmatprep.subr.bf16.mxu0 0
        %1259 = vmatpush1.bf16.msra.mxu0 0
        %1260 = vmatprep.subr.bf16.mxu0 0
        %1261 = vmatpush1.bf16.msra.mxu0 0
        %1262 = vmatprep.subr.bf16.mxu0 0
        %1263 = vmatpush1.bf16.msra.mxu0 0
        %1264 = vmatprep.subr.bf16.mxu0 0
        %1265 = vmatpush1.bf16.msra.mxu0 0
        %1266 = vmatprep.subr.bf16.mxu0 0
        %1267 = vmatpush1.bf16.msra.mxu0 0
        %1268 = vmatprep.subr.bf16.mxu0 0
        %1269 = vmatpush1.bf16.msra.mxu0 0
        %1270 = vmatprep.mubr.bf16.mxu0 0
        %1271 = vmatmul.mubr.bf16.gmra.mrb[0].mxu0 %v1233
        %v1272 = vpop.f32.mrb[0].mxu0
        %v1273 = vadd.f32 0.0, %v1272
        %v1274 = vpop.f32.mrb[0].mxu0
        %v1275 = vadd.f32 0.0, %v1274
        %v1276 = vpop.f32.mrb[0].mxu0
        %v1277 = vadd.f32 0.0, %v1276
        %v1278 = vpop.f32.mrb[0].mxu0
        %v1279 = vadd.f32 0.0, %v1278
        %1280 = vmatprep.mubr.bf16.mxu0 0
        %1281 = vmatmul.mubr.bf16.gmra.mrb[0].mxu0 %v1236
        %v1282 = vpop.f32.mrb[0].mxu0
        %v1283 = vadd.f32 0.0, %v1282
        %v1284 = vpop.f32.mrb[0].mxu0
        %v1285 = vadd.f32 0.0, %v1284
        %v1286 = vpop.f32.mrb[0].mxu0
        %v1287 = vpop.f32.mrb[0].mxu0
        %1288 = vdwg.mxu0
        %1289 = vmatprep.subr.bf16.mxu0 %v1095
        %1290 = vmatpush1.bf16.msra.mxu0 %v1094
        %1291 = vmatprep.subr.bf16.mxu0 %v1099
        %1292 = vmatpush1.bf16.msra.mxu0 %v1098
        %1293 = vmatprep.subr.bf16.mxu0 0
        %1294 = vmatpush1.bf16.msra.mxu0 0
        %1295 = vmatprep.subr.bf16.mxu0 0
        %1296 = vmatpush1.bf16.msra.mxu0 0
        %1297 = vmatprep.subr.bf16.mxu0 0
        %1298 = vmatpush1.bf16.msra.mxu0 0
        %1299 = vmatprep.subr.bf16.mxu0 0
        %1300 = vmatpush1.bf16.msra.mxu0 0
        %1301 = vmatprep.subr.bf16.mxu0 0
        %1302 = vmatpush1.bf16.msra.mxu0 0
        %1303 = vmatprep.subr.bf16.mxu0 0
        %1304 = vmatpush1.bf16.msra.mxu0 0
        %1305 = vmatprep.subr.bf16.mxu0 0
        %1306 = vmatpush1.bf16.msra.mxu0 0
        %1307 = vmatprep.subr.bf16.mxu0 0
        %1308 = vmatpush1.bf16.msra.mxu0 0
        %1309 = vmatprep.subr.bf16.mxu0 0
        %1310 = vmatpush1.bf16.msra.mxu0 0
        %1311 = vmatprep.subr.bf16.mxu0 0
        %1312 = vmatpush1.bf16.msra.mxu0 0
        %1313 = vmatprep.subr.bf16.mxu0 0
        %1314 = vmatpush1.bf16.msra.mxu0 0
        %1315 = vmatprep.subr.bf16.mxu0 0
        %1316 = vmatpush1.bf16.msra.mxu0 0
        %1317 = vmatprep.subr.bf16.mxu0 0
        %1318 = vmatpush1.bf16.msra.mxu0 0
        %1319 = vmatprep.subr.bf16.mxu0 0
        %1320 = vmatpush1.bf16.msra.mxu0 0
        %1321 = vmatprep.mubr.bf16.mxu0 0
        %1322 = vmatmul.mubr.bf16.gmra.mrb[0].mxu0 %v1233
        %v1323 = vpop.f32.mrb[0].mxu0
        %v1324 = vadd.f32 0.0, %v1323
        %v1325 = vpop.f32.mrb[0].mxu0
        %v1326 = vadd.f32 0.0, %v1325
        %v1327 = vpop.f32.mrb[0].mxu0
        %v1328 = vadd.f32 0.0, %v1327
        %v1329 = vpop.f32.mrb[0].mxu0
        %v1330 = vadd.f32 0.0, %v1329
        %1331 = vmatprep.mubr.bf16.mxu0 0
        %1332 = vmatmul.mubr.bf16.gmra.mrb[0].mxu0 %v1236
        %v1333 = vpop.f32.mrb[0].mxu0
        %v1334 = vadd.f32 0.0, %v1333
        %v1335 = vpop.f32.mrb[0].mxu0
        %v1336 = vadd.f32 0.0, %v1335
        %v1337 = vpop.f32.mrb[0].mxu0
        %v1338 = vpop.f32.mrb[0].mxu0
        %1339 = vdwg.mxu0
        %v1340 = vsub.f32 %v1273, %v1153
        %v1341 = vsub.f32 %v1275, %v1155
        %v1342 = vsub.f32 %v1324, %v1204
        %v1343 = vsub.f32 %v1326, %v1206
        %v1344 = vsub.f32 %v1277, %v1157
        %v1345 = vsub.f32 %v1279, %v1159
        %v1346 = vsub.f32 %v1328, %v1208
        %v1347 = vsub.f32 %v1330, %v1210
        %v1348 = vsub.f32 %v1283, %v1163
        %v1349 = vsub.f32 %v1285, %v1165
        %v1350 = vsub.f32 %v1334, %v1214
        %v1351 = vsub.f32 %v1336, %v1216
        %v1352 = vlaneseq
        %v1353 = vshrl.u32 %v1352, 7
        %v1354 = vsub.s32 1, %v1353
        %v1355 = vrot.slane %v609, %v1354
        %v1356 = vlaneseq
        %v1357 = vshrl.u32 %v1356, 7
        %v1358 = vsub.s32 5, %v1357
        %v1359 = vrot.slane %v609, %v1358
        %v1360 = vlaneseq
        %v1361 = vshrl.u32 %v1360, 7
        %v1362 = vsub.s32 1, %v1361
        %v1363 = vrot.slane %v610, %v1362
        %v1364 = vlaneseq
        %v1365 = vshrl.u32 %v1364, 7
        %v1366 = vsub.s32 5, %v1365
        %v1367 = vrot.slane %v610, %v1366
        %v1372 = vlaneseq
        %v1373 = vshrl.u32 %v1372, 7
        %v1374 = vsub.s32 1, %v1373
        %v1375 = vrot.slane %v1355, %v1374
        %v1376 = vlaneseq
        %v1377 = vshrl.u32 %v1376, 7
        %v1378 = vsub.s32 1, %v1377
        %v1379 = vrot.slane %v1359, %v1378
        %v1380 = vlaneseq
        %v1381 = vshrl.u32 %v1380, 7
        %v1382 = vsub.s32 1, %v1381
        %v1383 = vrot.slane %v1363, %v1382
        %v1384 = vlaneseq
        %v1385 = vshrl.u32 %v1384, 7
        %v1386 = vsub.s32 1, %v1385
        %v1387 = vrot.slane %v1367, %v1386
        %v1388 = vmul.f32 %v1340, %v1375
        %v1389 = vmul.f32 %v1341, %v1379
        %v1390 = vmul.f32 %v1342, %v1383
        %v1391 = vmul.f32 %v1343, %v1387
        %v1392 = vmul.f32 %v1344, %v1375
        %v1393 = vmul.f32 %v1345, %v1379
        %v1394 = vmul.f32 %v1346, %v1383
        %v1395 = vmul.f32 %v1347, %v1387
        %v1396 = vmul.f32 %v1348, %v1375
        %v1397 = vmul.f32 %v1349, %v1379
        %v1398 = vmul.f32 %v1350, %v1383
        %v1399 = vmul.f32 %v1351, %v1387
        %v1400 = vadd.f32 %v1153, %v1388
        %v1401 = vadd.f32 %v1155, %v1389
        %v1402 = vadd.f32 %v1204, %v1390
        %v1403 = vadd.f32 %v1206, %v1391
        %v1404 = vadd.f32 %v1157, %v1392
        %v1405 = vadd.f32 %v1159, %v1393
        %v1406 = vadd.f32 %v1208, %v1394
        %v1407 = vadd.f32 %v1210, %v1395
        %v1408 = vadd.f32 %v1163, %v1396
        %v1409 = vadd.f32 %v1165, %v1397
        %v1410 = vadd.f32 %v1214, %v1398
        %v1411 = vadd.f32 %v1216, %v1399
        %v1412 = vmul.f32 %v1000, %v1400
        %v1413 = vmul.f32 %v1001, %v1401
        %v1414 = vmul.f32 %v1002, %v1402
        %v1415 = vmul.f32 %v1003, %v1403
        %v1416 = vmul.f32 %v1004, %v1404
        %v1417 = vmul.f32 %v1005, %v1405
        %v1418 = vmul.f32 %v1006, %v1406
        %v1419 = vmul.f32 %v1007, %v1407
        %v1420 = vmul.f32 %v1008, %v1408
        %v1421 = vmul.f32 %v1009, %v1409
        %v1422 = vmul.f32 %v1010, %v1410
        %v1423 = vmul.f32 %v1011, %v1411
        %v1424 = vlaneseq
        %v1425 = vshrl.u32 %v1424, 7
        %v1426 = vsub.s32 2, %v1425
        %v1427 = vrot.slane %v603, %v1426
        %v1428 = vlaneseq
        %v1429 = vshrl.u32 %v1428, 7
        %v1430 = vsub.s32 6, %v1429
        %v1431 = vrot.slane %v603, %v1430
        %v1432 = vlaneseq
        %v1433 = vshrl.u32 %v1432, 7
        %v1434 = vsub.s32 2, %v1433
        %v1435 = vrot.slane %v604, %v1434
        %v1436 = vlaneseq
        %v1437 = vshrl.u32 %v1436, 7
        %v1438 = vsub.s32 6, %v1437
        %v1439 = vrot.slane %v604, %v1438
        %v1440 = vlaneseq
        %v1441 = vshrl.u32 %v1440, 7
        %v1442 = vsub.s32 2, %v1441
        %v1443 = vrot.slane %v1427, %v1442
        %v1444 = vlaneseq
        %v1445 = vshrl.u32 %v1444, 7
        %v1446 = vsub.s32 2, %v1445
        %v1447 = vrot.slane %v1431, %v1446
        %v1448 = vlaneseq
        %v1449 = vshrl.u32 %v1448, 7
        %v1450 = vsub.s32 2, %v1449
        %v1451 = vrot.slane %v1435, %v1450
        %v1452 = vlaneseq
        %v1453 = vshrl.u32 %v1452, 7
        %v1454 = vsub.s32 2, %v1453
        %v1455 = vrot.slane %v1439, %v1454
        %vm1456 = vcmp.eq.s32.totalorder %v589, %v1443
        %vm1457 = vcmp.eq.s32.totalorder %v589, %v1447
        %vm1458 = vcmp.eq.s32.totalorder %v589, %v1451
        %vm1459 = vcmp.eq.s32.totalorder %v589, %v1455
        %vm1460 = vcmp.eq.s32.totalorder %v590, %v1443
        %vm1461 = vcmp.eq.s32.totalorder %v590, %v1447
        %vm1462 = vcmp.eq.s32.totalorder %v590, %v1451
        %vm1463 = vcmp.eq.s32.totalorder %v590, %v1455
        %vm1464 = vcmp.eq.s32.totalorder %v591, %v1443
        %vm1465 = vcmp.eq.s32.totalorder %v591, %v1447
        %vm1466 = vcmp.eq.s32.totalorder %v591, %v1451
        %vm1467 = vcmp.eq.s32.totalorder %v591, %v1455
        %vm1468 = vcmp.eq.s32.totalorder %v592, %v1443
        %vm1469 = vcmp.eq.s32.totalorder %v592, %v1447
        %vm1470 = vcmp.eq.s32.totalorder %v592, %v1451
        %vm1471 = vcmp.eq.s32.totalorder %v592, %v1455
        %v1472 = vsel %vm1456, 1, 0
        %v1473 = vsel %vm1457, 1, 0
        %v1474 = vsel %vm1458, 1, 0
        %v1475 = vsel %vm1459, 1, 0
        %v1476 = vsel %vm1460, 1, 0
        %v1477 = vsel %vm1461, 1, 0
        %v1478 = vsel %vm1462, 1, 0
        %v1479 = vsel %vm1463, 1, 0
        %v1480 = vsel %vm1464, 1, 0
        %v1481 = vsel %vm1465, 1, 0
        %v1482 = vsel %vm1466, 1, 0
        %v1483 = vsel %vm1467, 1, 0
        %v1484 = vsel %vm1468, 1, 0
        %v1485 = vsel %vm1469, 1, 0
        %v1486 = vsel %vm1470, 1, 0
        %v1487 = vsel %vm1471, 1, 0
        %v1488 = vcvt.s32.f32 %v1472
        %v1489 = vcvt.s32.f32 %v1473
        %v1490 = vcvt.s32.f32 %v1474
        %v1491 = vcvt.s32.f32 %v1475
        %v1492 = vcvt.s32.f32 %v1476
        %v1493 = vcvt.s32.f32 %v1477
        %v1494 = vcvt.s32.f32 %v1478
        %v1495 = vcvt.s32.f32 %v1479
        %v1496 = vcvt.s32.f32 %v1480
        %v1497 = vcvt.s32.f32 %v1481
        %v1498 = vcvt.s32.f32 %v1482
        %v1499 = vcvt.s32.f32 %v1483
        %v1500 = vcvt.s32.f32 %v1484
        %v1501 = vcvt.s32.f32 %v1485
        %v1502 = vcvt.s32.f32 %v1486
        %v1503 = vcvt.s32.f32 %v1487
        %v1504 = vpack.c.bf16 %v1492, %v1488
        %v1505 = vpack.c.bf16 %v1493, %v1489
        %v1506 = vpack.c.bf16 %v1494, %v1490
        %v1507 = vpack.c.bf16 %v1495, %v1491
        %v1508 = vpack.c.bf16 %v1500, %v1496
        %v1509 = vpack.c.bf16 %v1501, %v1497
        %v1510 = vpack.c.bf16 %v1502, %v1498
        %v1511 = vpack.c.bf16 %v1503, %v1499
        %s1512 = scalar_lea.vmem %s2, 24
        %v1513 = vld [vmem:[%s1512] sm:$0xf]
        %v1514 = vld [vmem:[%s1512 + $0x4] sm:$0xf]
        %v1515 = vld [vmem:[%s1512 + $0x8] sm:$0xf]
        %v1519 = vunpack.c.l.b16 %v1513
        %v1520 = vunpack.c.l.b16 %v1514
        %v1521 = vunpack.c.l.b16 %v1515
        %v1522 = vpack.c.b16 %v1520, %v1519
        %v1523 = vpack.c.b16 %v1521, %v1521
        %v1525 = vsel %vm710, %v1522, 0
        %v1528 = vsel %vm710, %v1523, 0
        %1530 = vmatprep.subr.bf16.mxu0 %v1505
        %1531 = vmatpush1.bf16.msra.mxu0 %v1504
        %1532 = vmatprep.subr.bf16.mxu0 %v1509
        %1533 = vmatpush1.bf16.msra.mxu0 %v1508
        %1534 = vmatprep.subr.bf16.mxu0 0
        %1535 = vmatpush1.bf16.msra.mxu0 0
        %1536 = vmatprep.subr.bf16.mxu0 0
        %1537 = vmatpush1.bf16.msra.mxu0 0
        %1538 = vmatprep.subr.bf16.mxu0 0
        %1539 = vmatpush1.bf16.msra.mxu0 0
        %1540 = vmatprep.subr.bf16.mxu0 0
        %1541 = vmatpush1.bf16.msra.mxu0 0
        %1542 = vmatprep.subr.bf16.mxu0 0
        %1543 = vmatpush1.bf16.msra.mxu0 0
        %1544 = vmatprep.subr.bf16.mxu0 0
        %1545 = vmatpush1.bf16.msra.mxu0 0
        %1546 = vmatprep.subr.bf16.mxu0 0
        %1547 = vmatpush1.bf16.msra.mxu0 0
        %1548 = vmatprep.subr.bf16.mxu0 0
        %1549 = vmatpush1.bf16.msra.mxu0 0
        %1550 = vmatprep.subr.bf16.mxu0 0
        %1551 = vmatpush1.bf16.msra.mxu0 0
        %1552 = vmatprep.subr.bf16.mxu0 0
        %1553 = vmatpush1.bf16.msra.mxu0 0
        %1554 = vmatprep.subr.bf16.mxu0 0
        %1555 = vmatpush1.bf16.msra.mxu0 0
        %1556 = vmatprep.subr.bf16.mxu0 0
        %1557 = vmatpush1.bf16.msra.mxu0 0
        %1558 = vmatprep.subr.bf16.mxu0 0
        %1559 = vmatpush1.bf16.msra.mxu0 0
        %1560 = vmatprep.subr.bf16.mxu0 0
        %1561 = vmatpush1.bf16.msra.mxu0 0
        %1562 = vmatprep.mubr.bf16.mxu0 0
        %1563 = vmatmul.mubr.bf16.gmra.mrb[0].mxu0 %v1525
        %v1564 = vpop.f32.mrb[0].mxu0
        %v1565 = vadd.f32 0.0, %v1564
        %v1566 = vpop.f32.mrb[0].mxu0
        %v1567 = vadd.f32 0.0, %v1566
        %v1568 = vpop.f32.mrb[0].mxu0
        %v1569 = vadd.f32 0.0, %v1568
        %v1570 = vpop.f32.mrb[0].mxu0
        %v1571 = vadd.f32 0.0, %v1570
        %1572 = vmatprep.mubr.bf16.mxu0 0
        %1573 = vmatmul.mubr.bf16.gmra.mrb[0].mxu0 %v1528
        %v1574 = vpop.f32.mrb[0].mxu0
        %v1575 = vadd.f32 0.0, %v1574
        %v1576 = vpop.f32.mrb[0].mxu0
        %v1577 = vadd.f32 0.0, %v1576
        %v1578 = vpop.f32.mrb[0].mxu0
        %v1579 = vpop.f32.mrb[0].mxu0
        %1580 = vdwg.mxu0
        %1581 = vmatprep.subr.bf16.mxu0 %v1507
        %1582 = vmatpush1.bf16.msra.mxu0 %v1506
        %1583 = vmatprep.subr.bf16.mxu0 %v1511
        %1584 = vmatpush1.bf16.msra.mxu0 %v1510
        %1585 = vmatprep.subr.bf16.mxu0 0
        %1586 = vmatpush1.bf16.msra.mxu0 0
        %1587 = vmatprep.subr.bf16.mxu0 0
        %1588 = vmatpush1.bf16.msra.mxu0 0
        %1589 = vmatprep.subr.bf16.mxu0 0
        %1590 = vmatpush1.bf16.msra.mxu0 0
        %1591 = vmatprep.subr.bf16.mxu0 0
        %1592 = vmatpush1.bf16.msra.mxu0 0
        %1593 = vmatprep.subr.bf16.mxu0 0
        %1594 = vmatpush1.bf16.msra.mxu0 0
        %1595 = vmatprep.subr.bf16.mxu0 0
        %1596 = vmatpush1.bf16.msra.mxu0 0
        %1597 = vmatprep.subr.bf16.mxu0 0
        %1598 = vmatpush1.bf16.msra.mxu0 0
        %1599 = vmatprep.subr.bf16.mxu0 0
        %1600 = vmatpush1.bf16.msra.mxu0 0
        %1601 = vmatprep.subr.bf16.mxu0 0
        %1602 = vmatpush1.bf16.msra.mxu0 0
        %1603 = vmatprep.subr.bf16.mxu0 0
        %1604 = vmatpush1.bf16.msra.mxu0 0
        %1605 = vmatprep.subr.bf16.mxu0 0
        %1606 = vmatpush1.bf16.msra.mxu0 0
        %1607 = vmatprep.subr.bf16.mxu0 0
        %1608 = vmatpush1.bf16.msra.mxu0 0
        %1609 = vmatprep.subr.bf16.mxu0 0
        %1610 = vmatpush1.bf16.msra.mxu0 0
        %1611 = vmatprep.subr.bf16.mxu0 0
        %1612 = vmatpush1.bf16.msra.mxu0 0
        %1613 = vmatprep.mubr.bf16.mxu0 0
        %1614 = vmatmul.mubr.bf16.gmra.mrb[0].mxu0 %v1525
        %v1615 = vpop.f32.mrb[0].mxu0
        %v1616 = vadd.f32 0.0, %v1615
        %v1617 = vpop.f32.mrb[0].mxu0
        %v1618 = vadd.f32 0.0, %v1617
        %v1619 = vpop.f32.mrb[0].mxu0
        %v1620 = vadd.f32 0.0, %v1619
        %v1621 = vpop.f32.mrb[0].mxu0
        %v1622 = vadd.f32 0.0, %v1621
        %1623 = vmatprep.mubr.bf16.mxu0 0
        %1624 = vmatmul.mubr.bf16.gmra.mrb[0].mxu0 %v1528
        %v1625 = vpop.f32.mrb[0].mxu0
        %v1626 = vadd.f32 0.0, %v1625
        %v1627 = vpop.f32.mrb[0].mxu0
        %v1628 = vadd.f32 0.0, %v1627
        %v1629 = vpop.f32.mrb[0].mxu0
        %v1630 = vpop.f32.mrb[0].mxu0
        %1631 = vdwg.mxu0
        %s1632 = scalar_lea.vmem [#allocation6], 24
        %v1633 = vld [vmem:[%s1632] sm:$0xf]
        %v1634 = vld [vmem:[%s1632 + $0x4] sm:$0xf]
        %v1635 = vld [vmem:[%s1632 + $0x8] sm:$0xf]
        %v1639 = vunpack.c.l.b16 %v1633
        %v1640 = vunpack.c.l.b16 %v1634
        %v1641 = vunpack.c.l.b16 %v1635
        %v1642 = vpack.c.b16 %v1640, %v1639
        %v1643 = vpack.c.b16 %v1641, %v1641
        %v1645 = vsel %vm710, %v1642, 0
        %v1648 = vsel %vm710, %v1643, 0
        %1650 = vmatprep.subr.bf16.mxu0 %v1505
        %1651 = vmatpush1.bf16.msra.mxu0 %v1504
        %1652 = vmatprep.subr.bf16.mxu0 %v1509
        %1653 = vmatpush1.bf16.msra.mxu0 %v1508
        %1654 = vmatprep.subr.bf16.mxu0 0
        %1655 = vmatpush1.bf16.msra.mxu0 0
        %1656 = vmatprep.subr.bf16.mxu0 0
        %1657 = vmatpush1.bf16.msra.mxu0 0
        %1658 = vmatprep.subr.bf16.mxu0 0
        %1659 = vmatpush1.bf16.msra.mxu0 0
        %1660 = vmatprep.subr.bf16.mxu0 0
        %1661 = vmatpush1.bf16.msra.mxu0 0
        %1662 = vmatprep.subr.bf16.mxu0 0
        %1663 = vmatpush1.bf16.msra.mxu0 0
        %1664 = vmatprep.subr.bf16.mxu0 0
        %1665 = vmatpush1.bf16.msra.mxu0 0
        %1666 = vmatprep.subr.bf16.mxu0 0
        %1667 = vmatpush1.bf16.msra.mxu0 0
        %1668 = vmatprep.subr.bf16.mxu0 0
        %1669 = vmatpush1.bf16.msra.mxu0 0
        %1670 = vmatprep.subr.bf16.mxu0 0
        %1671 = vmatpush1.bf16.msra.mxu0 0
        %1672 = vmatprep.subr.bf16.mxu0 0
        %1673 = vmatpush1.bf16.msra.mxu0 0
        %1674 = vmatprep.subr.bf16.mxu0 0
        %1675 = vmatpush1.bf16.msra.mxu0 0
        %1676 = vmatprep.subr.bf16.mxu0 0
        %1677 = vmatpush1.bf16.msra.mxu0 0
        %1678 = vmatprep.subr.bf16.mxu0 0
        %1679 = vmatpush1.bf16.msra.mxu0 0
        %1680 = vmatprep.subr.bf16.mxu0 0
        %1681 = vmatpush1.bf16.msra.mxu0 0
        %1682 = vmatprep.mubr.bf16.mxu0 0
        %1683 = vmatmul.mubr.bf16.gmra.mrb[0].mxu0 %v1645
        %v1684 = vpop.f32.mrb[0].mxu0
        %v1685 = vadd.f32 0.0, %v1684
        %v1686 = vpop.f32.mrb[0].mxu0
        %v1687 = vadd.f32 0.0, %v1686
        %v1688 = vpop.f32.mrb[0].mxu0
        %v1689 = vadd.f32 0.0, %v1688
        %v1690 = vpop.f32.mrb[0].mxu0
        %v1691 = vadd.f32 0.0, %v1690
        %1692 = vmatprep.mubr.bf16.mxu0 0
        %1693 = vmatmul.mubr.bf16.gmra.mrb[0].mxu0 %v1648
        %v1694 = vpop.f32.mrb[0].mxu0
        %v1695 = vadd.f32 0.0, %v1694
        %v1696 = vpop.f32.mrb[0].mxu0
        %v1697 = vadd.f32 0.0, %v1696
        %v1698 = vpop.f32.mrb[0].mxu0
        %v1699 = vpop.f32.mrb[0].mxu0
        %1700 = vdwg.mxu0
        %1701 = vmatprep.subr.bf16.mxu0 %v1507
        %1702 = vmatpush1.bf16.msra.mxu0 %v1506
        %1703 = vmatprep.subr.bf16.mxu0 %v1511
        %1704 = vmatpush1.bf16.msra.mxu0 %v1510
        %1705 = vmatprep.subr.bf16.mxu0 0
        %1706 = vmatpush1.bf16.msra.mxu0 0
        %1707 = vmatprep.subr.bf16.mxu0 0
        %1708 = vmatpush1.bf16.msra.mxu0 0
        %1709 = vmatprep.subr.bf16.mxu0 0
        %1710 = vmatpush1.bf16.msra.mxu0 0
        %1711 = vmatprep.subr.bf16.mxu0 0
        %1712 = vmatpush1.bf16.msra.mxu0 0
        %1713 = vmatprep.subr.bf16.mxu0 0
        %1714 = vmatpush1.bf16.msra.mxu0 0
        %1715 = vmatprep.subr.bf16.mxu0 0
        %1716 = vmatpush1.bf16.msra.mxu0 0
        %1717 = vmatprep.subr.bf16.mxu0 0
        %1718 = vmatpush1.bf16.msra.mxu0 0
        %1719 = vmatprep.subr.bf16.mxu0 0
        %1720 = vmatpush1.bf16.msra.mxu0 0
        %1721 = vmatprep.subr.bf16.mxu0 0
        %1722 = vmatpush1.bf16.msra.mxu0 0
        %1723 = vmatprep.subr.bf16.mxu0 0
        %1724 = vmatpush1.bf16.msra.mxu0 0
        %1725 = vmatprep.subr.bf16.mxu0 0
        %1726 = vmatpush1.bf16.msra.mxu0 0
        %1727 = vmatprep.subr.bf16.mxu0 0
        %1728 = vmatpush1.bf16.msra.mxu0 0
        %1729 = vmatprep.subr.bf16.mxu0 0
        %1730 = vmatpush1.bf16.msra.mxu0 0
        %1731 = vmatprep.subr.bf16.mxu0 0
        %1732 = vmatpush1.bf16.msra.mxu0 0
        %1733 = vmatprep.mubr.bf16.mxu0 0
        %1734 = vmatmul.mubr.bf16.gmra.mrb[0].mxu0 %v1645
        %v1735 = vpop.f32.mrb[0].mxu0
        %v1736 = vadd.f32 0.0, %v1735
        %v1737 = vpop.f32.mrb[0].mxu0
        %v1738 = vadd.f32 0.0, %v1737
        %v1739 = vpop.f32.mrb[0].mxu0
        %v1740 = vadd.f32 0.0, %v1739
        %v1741 = vpop.f32.mrb[0].mxu0
        %v1742 = vadd.f32 0.0, %v1741
        %1743 = vmatprep.mubr.bf16.mxu0 0
        %1744 = vmatmul.mubr.bf16.gmra.mrb[0].mxu0 %v1648
        %v1745 = vpop.f32.mrb[0].mxu0
        %v1746 = vadd.f32 0.0, %v1745
        %v1747 = vpop.f32.mrb[0].mxu0
        %v1748 = vadd.f32 0.0, %v1747
        %v1749 = vpop.f32.mrb[0].mxu0
        %v1750 = vpop.f32.mrb[0].mxu0
        %1751 = vdwg.mxu0
        %v1752 = vsub.f32 %v1685, %v1565
        %v1753 = vsub.f32 %v1687, %v1567
        %v1754 = vsub.f32 %v1736, %v1616
        %v1755 = vsub.f32 %v1738, %v1618
        %v1756 = vsub.f32 %v1689, %v1569
        %v1757 = vsub.f32 %v1691, %v1571
        %v1758 = vsub.f32 %v1740, %v1620
        %v1759 = vsub.f32 %v1742, %v1622
        %v1760 = vsub.f32 %v1695, %v1575
        %v1761 = vsub.f32 %v1697, %v1577
        %v1762 = vsub.f32 %v1746, %v1626
        %v1763 = vsub.f32 %v1748, %v1628
        %v1764 = vlaneseq
        %v1765 = vshrl.u32 %v1764, 7
        %v1766 = vsub.s32 2, %v1765
        %v1767 = vrot.slane %v609, %v1766
        %v1768 = vlaneseq
        %v1769 = vshrl.u32 %v1768, 7
        %v1770 = vsub.s32 6, %v1769
        %v1771 = vrot.slane %v609, %v1770
        %v1772 = vlaneseq
        %v1773 = vshrl.u32 %v1772, 7
        %v1774 = vsub.s32 2, %v1773
        %v1775 = vrot.slane %v610, %v1774
        %v1776 = vlaneseq
        %v1777 = vshrl.u32 %v1776, 7
        %v1778 = vsub.s32 6, %v1777
        %v1779 = vrot.slane %v610, %v1778
        %v1784 = vlaneseq
        %v1785 = vshrl.u32 %v1784, 7
        %v1786 = vsub.s32 2, %v1785
        %v1787 = vrot.slane %v1767, %v1786
        %v1788 = vlaneseq
        %v1789 = vshrl.u32 %v1788, 7
        %v1790 = vsub.s32 2, %v1789
        %v1791 = vrot.slane %v1771, %v1790
        %v1792 = vlaneseq
        %v1793 = vshrl.u32 %v1792, 7
        %v1794 = vsub.s32 2, %v1793
        %v1795 = vrot.slane %v1775, %v1794
        %v1796 = vlaneseq
        %v1797 = vshrl.u32 %v1796, 7
        %v1798 = vsub.s32 2, %v1797
        %v1799 = vrot.slane %v1779, %v1798
        %v1800 = vmul.f32 %v1752, %v1787
        %v1801 = vmul.f32 %v1753, %v1791
        %v1802 = vmul.f32 %v1754, %v1795
        %v1803 = vmul.f32 %v1755, %v1799
        %v1804 = vmul.f32 %v1756, %v1787
        %v1805 = vmul.f32 %v1757, %v1791
        %v1806 = vmul.f32 %v1758, %v1795
        %v1807 = vmul.f32 %v1759, %v1799
        %v1808 = vmul.f32 %v1760, %v1787
        %v1809 = vmul.f32 %v1761, %v1791
        %v1810 = vmul.f32 %v1762, %v1795
        %v1811 = vmul.f32 %v1763, %v1799
        %v1812 = vadd.f32 %v1565, %v1800
        %v1813 = vadd.f32 %v1567, %v1801
        %v1814 = vadd.f32 %v1616, %v1802
        %v1815 = vadd.f32 %v1618, %v1803
        %v1816 = vadd.f32 %v1569, %v1804
        %v1817 = vadd.f32 %v1571, %v1805
        %v1818 = vadd.f32 %v1620, %v1806
        %v1819 = vadd.f32 %v1622, %v1807
        %v1820 = vadd.f32 %v1575, %v1808
        %v1821 = vadd.f32 %v1577, %v1809
        %v1822 = vadd.f32 %v1626, %v1810
        %v1823 = vadd.f32 %v1628, %v1811
        %v1824 = vmul.f32 %v1412, %v1812
        %v1825 = vmul.f32 %v1413, %v1813
        %v1826 = vmul.f32 %v1414, %v1814
        %v1827 = vmul.f32 %v1415, %v1815
        %v1828 = vmul.f32 %v1416, %v1816
        %v1829 = vmul.f32 %v1417, %v1817
        %v1830 = vmul.f32 %v1418, %v1818
        %v1831 = vmul.f32 %v1419, %v1819
        %v1832 = vmul.f32 %v1420, %v1820
        %v1833 = vmul.f32 %v1421, %v1821
        %v1834 = vmul.f32 %v1422, %v1822
        %v1835 = vmul.f32 %v1423, %v1823
        %v1836 = vrot.slane %v1824, 4
        %v1837 = vadd.f32 %v1824, %v1836
        %v1838 = vrot.slane %v1837, 2
        %v1839 = vadd.f32 %v1837, %v1838
        %v1840 = vrot.slane %v1839, 1
        %v1841 = vadd.f32 %v1839, %v1840
        %v1842 = vrot.slane %v1825, 4
        %v1843 = vadd.f32 %v1825, %v1842
        %v1844 = vrot.slane %v1843, 2
        %v1845 = vadd.f32 %v1843, %v1844
        %v1846 = vrot.slane %v1845, 1
        %v1847 = vadd.f32 %v1845, %v1846
        %v1848 = vrot.slane %v1826, 4
        %v1849 = vadd.f32 %v1826, %v1848
        %v1850 = vrot.slane %v1849, 2
        %v1851 = vadd.f32 %v1849, %v1850
        %v1852 = vrot.slane %v1851, 1
        %v1853 = vadd.f32 %v1851, %v1852
        %v1854 = vrot.slane %v1827, 4
        %v1855 = vadd.f32 %v1827, %v1854
        %v1856 = vrot.slane %v1855, 2
        %v1857 = vadd.f32 %v1855, %v1856
        %v1858 = vrot.slane %v1857, 1
        %v1859 = vadd.f32 %v1857, %v1858
        %v1860 = vadd.f32 %v1841, -5.0
        %v1861 = vadd.f32 %v1847, -5.0
        %v1862 = vadd.f32 %v1853, -5.0
        %v1863 = vadd.f32 %v1859, -5.0
        %v1864 = vmax.f32 %v1860, 0.0
        %v1865 = vmax.f32 %v1861, 0.0
        %v1866 = vmax.f32 %v1862, 0.0
        %v1867 = vmax.f32 %v1863, 0.0
        %vm1868 = vcmp.ne.f32.partialorder %v1860, %v1860
        %vm1869 = vcmp.ne.f32.partialorder %v1861, %v1861
        %vm1870 = vcmp.ne.f32.partialorder %v1862, %v1862
        %vm1871 = vcmp.ne.f32.partialorder %v1863, %v1863
        %v1872 = vadd.f32 %v1860, 0.0
        %v1873 = vadd.f32 %v1861, 0.0
        %v1874 = vadd.f32 %v1862, 0.0
        %v1875 = vadd.f32 %v1863, 0.0
        %v1876 = vand.u32 2147483647, %v1860
        %v1877 = vand.u32 2147483647, %v1861
        %v1878 = vand.u32 2147483647, %v1862
        %v1879 = vand.u32 2147483647, %v1863
        %v1880 = vsub.f32 0.0, %v1876
        %v1881 = vsub.f32 0.0, %v1877
        %v1882 = vsub.f32 0.0, %v1878
        %v1883 = vsub.f32 0.0, %v1879
        %v1884 = vmul.f32 %v1880, 1.442695
        %v1885 = vpow.pop %v1884
        %v1886 = vmul.f32 %v1881, 1.442695
        %v1887 = vpow.pop %v1886
        %v1888 = vmul.f32 %v1882, 1.442695
        %v1889 = vpow.pop %v1888
        %v1890 = vmul.f32 %v1883, 1.442695
        %v1891 = vpow.pop %v1890
        %v1892 = vadd.f32 %v1885, 1.0
        %v1893 = vlog2.pop %v1892
        %v1894 = vmul.f32 %v1893, 0.6931472
        %v1895 = vmul.f32 -0.5, %v1885
        %v1896 = vadd.f32 %v1895, 1.0
        %v1897 = vmul.f32 %v1896, %v1885
        %v1898 = vand.u32 2147483647, %v1885
        %vm1899 = vcmp.lt.f32.partialorder %v1898, 0.0004427343
        %v1900 = vsel %vm1899, %v1897, %v1894
        %v1901 = vadd.f32 %v1887, 1.0
        %v1902 = vlog2.pop %v1901
        %v1903 = vmul.f32 %v1902, 0.6931472
        %v1904 = vmul.f32 -0.5, %v1887
        %v1905 = vadd.f32 %v1904, 1.0
        %v1906 = vmul.f32 %v1905, %v1887
        %v1907 = vand.u32 2147483647, %v1887
        %vm1908 = vcmp.lt.f32.partialorder %v1907, 0.0004427343
        %v1909 = vsel %vm1908, %v1906, %v1903
        %v1910 = vadd.f32 %v1889, 1.0
        %v1911 = vlog2.pop %v1910
        %v1912 = vmul.f32 %v1911, 0.6931472
        %v1913 = vmul.f32 -0.5, %v1889
        %v1914 = vadd.f32 %v1913, 1.0
        %v1915 = vmul.f32 %v1914, %v1889
        %v1916 = vand.u32 2147483647, %v1889
        %vm1917 = vcmp.lt.f32.partialorder %v1916, 0.0004427343
        %v1918 = vsel %vm1917, %v1915, %v1912
        %v1919 = vadd.f32 %v1891, 1.0
        %v1920 = vlog2.pop %v1919
        %v1921 = vmul.f32 %v1920, 0.6931472
        %v1922 = vmul.f32 -0.5, %v1891
        %v1923 = vadd.f32 %v1922, 1.0
        %v1924 = vmul.f32 %v1923, %v1891
        %v1925 = vand.u32 2147483647, %v1891
        %vm1926 = vcmp.lt.f32.partialorder %v1925, 0.0004427343
        %v1927 = vsel %vm1926, %v1924, %v1921
        %v1928 = vadd.f32 %v1864, %v1900
        %v1929 = vadd.f32 %v1865, %v1909
        %v1930 = vadd.f32 %v1866, %v1918
        %v1931 = vadd.f32 %v1867, %v1927
        %v1932 = vsel %vm1868, %v1872, %v1928
        %v1933 = vsel %vm1869, %v1873, %v1929
        %v1934 = vsel %vm1870, %v1874, %v1930
        %v1935 = vsel %vm1871, %v1875, %v1931
        %v1936 = vld [vmem:[#allocation7] sm:$0xf]
        %v1937 = vld [vmem:[#allocation7 + $0x4] sm:$0xf]
        %v1938 = vld [vmem:[#allocation7 + $0x8] sm:$0xf]
        %v1939 = vld [vmem:[#allocation7 + $0xc] sm:$0x3]
        %v1940 = vpack.c.bf16 %v1832, %v1828
        %v1941 = vpack.c.bf16 %v1833, %v1829
        %v1942 = vpack.c.bf16 %v1834, %v1830
        %v1943 = vpack.c.bf16 %v1835, %v1831
        %v1948 = vunpack.c.l.b16 %v1936
        %v1949 = vunpack.c.l.b16 %v1937
        %v1950 = vunpack.c.l.b16 %v1938
        %v1951 = vunpack.c.l.b16 %v1939
        %v1952 = vpack.c.b16 %v1949, %v1948
        %v1953 = vpack.c.b16 %v1951, %v1950
        %vm1954 = vcmask 130048
        %v1956 = vsel %vm1954, %v1952, 0
        %v1959 = vsel %vm1954, %v1953, 0
        %1961 = vmatprep.subr.bf16.mxu0 %v1941
        %1962 = vmatpush1.bf16.msra.mxu0 %v1940
        %1963 = vmatprep.subr.bf16.mxu0 0
        %1964 = vmatpush1.bf16.msra.mxu0 0
        %1965 = vmatprep.subr.bf16.mxu0 0
        %1966 = vmatpush1.bf16.msra.mxu0 0
        %1967 = vmatprep.subr.bf16.mxu0 0
        %1968 = vmatpush1.bf16.msra.mxu0 0
        %1969 = vmatprep.subr.bf16.mxu0 0
        %1970 = vmatpush1.bf16.msra.mxu0 0
        %1971 = vmatprep.subr.bf16.mxu0 0
        %1972 = vmatpush1.bf16.msra.mxu0 0
        %1973 = vmatprep.subr.bf16.mxu0 0
        %1974 = vmatpush1.bf16.msra.mxu0 0
        %1975 = vmatprep.subr.bf16.mxu0 0
        %1976 = vmatpush1.bf16.msra.mxu0 0
        %1977 = vmatprep.subr.bf16.mxu0 0
        %1978 = vmatpush1.bf16.msra.mxu0 0
        %1979 = vmatprep.subr.bf16.mxu0 0
        %1980 = vmatpush1.bf16.msra.mxu0 0
        %1981 = vmatprep.subr.bf16.mxu0 0
        %1982 = vmatpush1.bf16.msra.mxu0 0
        %1983 = vmatprep.subr.bf16.mxu0 0
        %1984 = vmatpush1.bf16.msra.mxu0 0
        %1985 = vmatprep.subr.bf16.mxu0 0
        %1986 = vmatpush1.bf16.msra.mxu0 0
        %1987 = vmatprep.subr.bf16.mxu0 0
        %1988 = vmatpush1.bf16.msra.mxu0 0
        %1989 = vmatprep.subr.bf16.mxu0 0
        %1990 = vmatpush1.bf16.msra.mxu0 0
        %1991 = vmatprep.subr.bf16.mxu0 0
        %1992 = vmatpush1.bf16.msra.mxu0 0
        %1993 = vmatprep.mubr.bf16.mxu0 0
        %1994 = vmatmul.mubr.bf16.gmra.mrb[0].mxu0 %v1956
        %v1995 = vpop.f32.mrb[0].mxu0
        %v1996 = vadd.f32 0.0, %v1995
        %v1997 = vpop.f32.mrb[0].mxu0
        %v1998 = vadd.f32 0.0, %v1997
        %v1999 = vpop.f32.mrb[0].mxu0
        %v2000 = vadd.f32 0.0, %v1999
        %v2001 = vpop.f32.mrb[0].mxu0
        %v2002 = vadd.f32 0.0, %v2001
        %2003 = vmatprep.mubr.bf16.mxu0 0
        %2004 = vmatmul.mubr.bf16.gmra.mrb[0].mxu0 %v1959
        %v2005 = vpop.f32.mrb[0].mxu0
        %v2006 = vadd.f32 0.0, %v2005
        %v2007 = vpop.f32.mrb[0].mxu0
        %v2008 = vadd.f32 0.0, %v2007
        %v2009 = vpop.f32.mrb[0].mxu0
        %v2010 = vadd.f32 0.0, %v2009
        %v2011 = vpop.f32.mrb[0].mxu0
        %v2012 = vadd.f32 0.0, %v2011
        %2013 = vdwg.mxu0
        %2014 = vmatprep.subr.bf16.mxu0 %v1943
        %2015 = vmatpush1.bf16.msra.mxu0 %v1942
        %2016 = vmatprep.subr.bf16.mxu0 0
        %2017 = vmatpush1.bf16.msra.mxu0 0
        %2018 = vmatprep.subr.bf16.mxu0 0
        %2019 = vmatpush1.bf16.msra.mxu0 0
        %2020 = vmatprep.subr.bf16.mxu0 0
        %2021 = vmatpush1.bf16.msra.mxu0 0
        %2022 = vmatprep.subr.bf16.mxu0 0
        %2023 = vmatpush1.bf16.msra.mxu0 0
        %2024 = vmatprep.subr.bf16.mxu0 0
        %2025 = vmatpush1.bf16.msra.mxu0 0
        %2026 = vmatprep.subr.bf16.mxu0 0
        %2027 = vmatpush1.bf16.msra.mxu0 0
        %2028 = vmatprep.subr.bf16.mxu0 0
        %2029 = vmatpush1.bf16.msra.mxu0 0
        %2030 = vmatprep.subr.bf16.mxu0 0
        %2031 = vmatpush1.bf16.msra.mxu0 0
        %2032 = vmatprep.subr.bf16.mxu0 0
        %2033 = vmatpush1.bf16.msra.mxu0 0
        %2034 = vmatprep.subr.bf16.mxu0 0
        %2035 = vmatpush1.bf16.msra.mxu0 0
        %2036 = vmatprep.subr.bf16.mxu0 0
        %2037 = vmatpush1.bf16.msra.mxu0 0
        %2038 = vmatprep.subr.bf16.mxu0 0
        %2039 = vmatpush1.bf16.msra.mxu0 0
        %2040 = vmatprep.subr.bf16.mxu0 0
        %2041 = vmatpush1.bf16.msra.mxu0 0
        %2042 = vmatprep.subr.bf16.mxu0 0
        %2043 = vmatpush1.bf16.msra.mxu0 0
        %2044 = vmatprep.subr.bf16.mxu0 0
        %2045 = vmatpush1.bf16.msra.mxu0 0
        %2046 = vmatprep.mubr.bf16.mxu0 0
        %2047 = vmatmul.mubr.bf16.gmra.mrb[0].mxu0 %v1956
        %v2048 = vpop.f32.mrb[0].mxu0
        %v2049 = vadd.f32 0.0, %v2048
        %v2050 = vpop.f32.mrb[0].mxu0
        %v2051 = vadd.f32 0.0, %v2050
        %v2052 = vpop.f32.mrb[0].mxu0
        %v2053 = vadd.f32 0.0, %v2052
        %v2054 = vpop.f32.mrb[0].mxu0
        %v2055 = vadd.f32 0.0, %v2054
        %2056 = vmatprep.mubr.bf16.mxu0 0
        %2057 = vmatmul.mubr.bf16.gmra.mrb[0].mxu0 %v1959
        %v2058 = vpop.f32.mrb[0].mxu0
        %v2059 = vadd.f32 0.0, %v2058
        %v2060 = vpop.f32.mrb[0].mxu0
        %v2061 = vadd.f32 0.0, %v2060
        %v2062 = vpop.f32.mrb[0].mxu0
        %v2063 = vadd.f32 0.0, %v2062
        %v2064 = vpop.f32.mrb[0].mxu0
        %v2065 = vadd.f32 0.0, %v2064
        %2066 = vdwg.mxu0
        %v2067 = vmul.f32 %v1996, 3.1415927
        %v2068 = vmul.f32 %v1998, 3.1415927
        %v2069 = vmul.f32 %v2049, 3.1415927
        %v2070 = vmul.f32 %v2051, 3.1415927
        %v2071 = vmul.f32 %v2000, 3.1415927
        %v2072 = vmul.f32 %v2002, 3.1415927
        %v2073 = vmul.f32 %v2053, 3.1415927
        %v2074 = vmul.f32 %v2055, 3.1415927
        %v2075 = vmul.f32 %v2006, 3.1415927
        %v2076 = vmul.f32 %v2008, 3.1415927
        %v2077 = vmul.f32 %v2059, 3.1415927
        %v2078 = vmul.f32 %v2061, 3.1415927
        %v2079 = vmul.f32 %v2010, 3.1415927
        %v2080 = vmul.f32 %v2012, 3.1415927
        %v2081 = vmul.f32 %v2063, 3.1415927
        %v2082 = vmul.f32 %v2065, 3.1415927
        %v2083 = vand.u32 2147483647, %v2067
        %vm2084 = vcmp.le.f32.partialorder %v2083, 0.7853982
        %vm2085 = vcmp.lt.s32.totalorder %v2067, 0
        %v2086 = vand.u32 %v2067, 2139095040
        %v2087 = vshrl.u32 %v2086, 23
        %v2088 = vsub.s32 %v2087, 127
        %v2089 = vand.u32 2147483647, %v2067
        %v2090 = vand.u32 %v2089, 8388607
        %v2091 = vor.u32 %v2090, 8388608
        %v2092 = vsub.s32 0, %v2091
        %v2093 = vadd.s32 %v2088, 1
        %vm2094 = vcmp.gt.s32.totalorder %v2093, 0
        %v2095 = vsel %vm2094, %v2093, 0
        %v2096 = vshrl.u32 %v2095, 5
        %v2097 = vand.u32 %v2095, 31
        %v2098 = vsub.s32 32, %v2097
        %v2099 = vshrl.u32 683565275, %v2098
        %v2100 = vshll.u32 683565275, %v2097
        %v2101 = vshrl.u32 2475754826, %v2098
        %v2102 = vor.u32 %v2100, %v2101
        %v2103 = vshll.u32 2475754826, %v2097
        %v2104 = vshrl.u32 2131351028, %v2098
        %v2105 = vor.u32 %v2103, %v2104
        %v2106 = vshll.u32 2131351028, %v2097
        %v2107 = vshrl.u32 2102212464, %v2098
        %v2108 = vor.u32 %v2106, %v2107
        %v2109 = vshll.u32 2102212464, %v2097
        %v2110 = vshrl.u32 920167782, %v2098
        %v2111 = vor.u32 %v2109, %v2110
        %v2112 = vshll.u32 920167782, %v2097
        %v2113 = vshrl.u32 1326507024, %v2098
        %v2114 = vor.u32 %v2112, %v2113
        %vm2115 = vcmp.lt.s32.totalorder %v2096, 1
        %vm2116 = vcmp.lt.s32.totalorder %v2096, 2
        %vm2117 = vcmp.lt.s32.totalorder %v2096, 3
        %vm2118 = vcmp.lt.s32.totalorder %v2096, 4
        %v2119 = vsel %vm2115, %v2099, %v2102
        %v2120 = vsel %vm2118, %v2108, 2102212464
        %v2121 = vsel %vm2117, %v2105, %v2120
        %v2122 = vsel %vm2116, %v2119, %v2121
        %v2123 = vsel %vm2115, %v2102, %v2105
        %v2124 = vsel %vm2118, %v2111, 920167782
        %v2125 = vsel %vm2117, %v2108, %v2124
        %v2126 = vsel %vm2116, %v2123, %v2125
        %v2127 = vsel %vm2115, %v2105, %v2108
        %v2128 = vsel %vm2118, %v2114, 1326507024
        %v2129 = vsel %vm2117, %v2111, %v2128
        %v2130 = vsel %vm2116, %v2127, %v2129
        %v2131 = vshll.u32 %v2091, 8
        %v2132 = vmul.u32.u64.compose %v2131, %v2130
        %v2133 = vextract.low.u32 %v2132
        %v2134 = vextract.high.u32 %v2132
        %v2135 = vmul.u32.u64.compose %v2131, %v2126
        %v2136 = vextract.low.u32 %v2135
        %v2137 = vextract.high.u32 %v2135
        %v2138 = vmul.u32 %v2131, %v2122
        %v2139 = vadd.s32 %v2134, %v2136
        %vm2140 = vc.u32 %v2134, %v2136
        %v2141 = vadd.s32 %v2137, 1
        %v2142 = vsel %vm2140, %v2141, %v2137
        %v2143 = vadd.s32 %v2138, %v2142
        %v2144 = vadd.s32 %v2143, 536870912
        %v2145 = vshrl.u32 %v2144, 30
        %v2146 = vshll.u32 %v2145, 30
        %v2147 = vsub.s32 %v2143, %v2146
        %vm2148 = vcmp.lt.s32.totalorder %v2147, 0
        %v2149 = vsub.s32 0, %v2147
        %v2150 = vsel %vm2148, %v2149, %v2147
        %v2151 = vclz %v2150
        %v2152 = vsub.s32 %v2151, 2
        %vm2153 = vcmp.gt.s32.totalorder 0, %v2152
        %v2154 = vsel %vm2153, 0, %v2152
        %v2155 = vsub.s32 32, %v2154
        %v2156 = vshll.u32 %v2147, %v2154
        %v2157 = vshrl.u32 %v2139, %v2155
        %v2158 = vor.u32 %v2156, %v2157
        %v2159 = vsub.s32 4294967266, %v2154
        %v2160 = vadd.s32 %v2159, 127
        %v2161 = vshll.u32 %v2160, 23
        %v2162 = vor.u32 4788187, %v2161
        %v2163 = vand.u32 2147483647, %v2162
        %v2165 = vcvt.s32.f32 %v2158
        %v2166 = vmul.f32 %v2165, %v2163
        %v2167 = vxor.u32 %v2166, 2147483648
        %v2168 = vsel %vm2085, %v2167, %v2166
        %v2169 = vsub.s32 4, %v2145
        %v2170 = vsel %vm2085, %v2169, %v2145
        %v2171 = vsel %vm2084, %v2067, %v2168
        %v2172 = vsel %vm2084, 0, %v2170
        %v2173 = vcosq.f32.pop %v2171
        %v2174 = vsinq.f32.pop %v2171
        %vm2175 = vweird.f32 %v2067
        %v2176 = vadd.s32 %v2172, 3
        %v2177 = vand.u32 %v2176, 3
        %vm2178 = vcmp.lt.s32.totalorder %v2177, 2
        %vm2179 = vcmp.eq.s32.totalorder %v2177, 0
        %v2180 = vxor.u32 %v2174, 2147483648
        %v2181 = vsel %vm2179, %v2173, %v2180
        %vm2182 = vcmp.eq.s32.totalorder %v2177, 2
        %v2183 = vxor.u32 %v2173, 2147483648
        %v2184 = vsel %vm2182, %v2183, %v2174
        %v2185 = vsel %vm2178, %v2181, %v2184
        %v2186 = vsel %vm2175, nan, %v2185
        %v2187 = vand.u32 2147483647, %v2068
        %vm2188 = vcmp.le.f32.partialorder %v2187, 0.7853982
        %vm2189 = vcmp.lt.s32.totalorder %v2068, 0
        %v2190 = vand.u32 %v2068, 2139095040
        %v2191 = vshrl.u32 %v2190, 23
        %v2192 = vsub.s32 %v2191, 127
        %v2193 = vand.u32 2147483647, %v2068
        %v2194 = vand.u32 %v2193, 8388607
        %v2195 = vor.u32 %v2194, 8388608
        %v2196 = vsub.s32 0, %v2195
        %v2197 = vadd.s32 %v2192, 1
        %vm2198 = vcmp.gt.s32.totalorder %v2197, 0
        %v2199 = vsel %vm2198, %v2197, 0
        %v2200 = vshrl.u32 %v2199, 5
        %v2201 = vand.u32 %v2199, 31
        %v2202 = vsub.s32 32, %v2201
        %v2203 = vshrl.u32 683565275, %v2202
        %v2204 = vshll.u32 683565275, %v2201
        %v2205 = vshrl.u32 2475754826, %v2202
        %v2206 = vor.u32 %v2204, %v2205
        %v2207 = vshll.u32 2475754826, %v2201
        %v2208 = vshrl.u32 2131351028, %v2202
        %v2209 = vor.u32 %v2207, %v2208
        %v2210 = vshll.u32 2131351028, %v2201
        %v2211 = vshrl.u32 2102212464, %v2202
        %v2212 = vor.u32 %v2210, %v2211
        %v2213 = vshll.u32 2102212464, %v2201
        %v2214 = vshrl.u32 920167782, %v2202
        %v2215 = vor.u32 %v2213, %v2214
        %v2216 = vshll.u32 920167782, %v2201
        %v2217 = vshrl.u32 1326507024, %v2202
        %v2218 = vor.u32 %v2216, %v2217
        %vm2219 = vcmp.lt.s32.totalorder %v2200, 1
        %vm2220 = vcmp.lt.s32.totalorder %v2200, 2
        %vm2221 = vcmp.lt.s32.totalorder %v2200, 3
        %vm2222 = vcmp.lt.s32.totalorder %v2200, 4
        %v2223 = vsel %vm2219, %v2203, %v2206
        %v2224 = vsel %vm2222, %v2212, 2102212464
        %v2225 = vsel %vm2221, %v2209, %v2224
        %v2226 = vsel %vm2220, %v2223, %v2225
        %v2227 = vsel %vm2219, %v2206, %v2209
        %v2228 = vsel %vm2222, %v2215, 920167782
        %v2229 = vsel %vm2221, %v2212, %v2228
        %v2230 = vsel %vm2220, %v2227, %v2229
        %v2231 = vsel %vm2219, %v2209, %v2212
        %v2232 = vsel %vm2222, %v2218, 1326507024
        %v2233 = vsel %vm2221, %v2215, %v2232
        %v2234 = vsel %vm2220, %v2231, %v2233
        %v2235 = vshll.u32 %v2195, 8
        %v2236 = vmul.u32.u64.compose %v2235, %v2234
        %v2237 = vextract.low.u32 %v2236
        %v2238 = vextract.high.u32 %v2236
        %v2239 = vmul.u32.u64.compose %v2235, %v2230
        %v2240 = vextract.low.u32 %v2239
        %v2241 = vextract.high.u32 %v2239
        %v2242 = vmul.u32 %v2235, %v2226
        %v2243 = vadd.s32 %v2238, %v2240
        %vm2244 = vc.u32 %v2238, %v2240
        %v2245 = vadd.s32 %v2241, 1
        %v2246 = vsel %vm2244, %v2245, %v2241
        %v2247 = vadd.s32 %v2242, %v2246
        %v2248 = vadd.s32 %v2247, 536870912
        %v2249 = vshrl.u32 %v2248, 30
        %v2250 = vshll.u32 %v2249, 30
        %v2251 = vsub.s32 %v2247, %v2250
        %vm2252 = vcmp.lt.s32.totalorder %v2251, 0
        %v2253 = vsub.s32 0, %v2251
        %v2254 = vsel %vm2252, %v2253, %v2251
        %v2255 = vclz %v2254
        %v2256 = vsub.s32 %v2255, 2
        %vm2257 = vcmp.gt.s32.totalorder 0, %v2256
        %v2258 = vsel %vm2257, 0, %v2256
        %v2259 = vsub.s32 32, %v2258
        %v2260 = vshll.u32 %v2251, %v2258
        %v2261 = vshrl.u32 %v2243, %v2259
        %v2262 = vor.u32 %v2260, %v2261
        %v2263 = vsub.s32 4294967266, %v2258
        %v2264 = vadd.s32 %v2263, 127
        %v2265 = vshll.u32 %v2264, 23
        %v2266 = vor.u32 4788187, %v2265
        %v2267 = vand.u32 2147483647, %v2266
        %v2269 = vcvt.s32.f32 %v2262
        %v2270 = vmul.f32 %v2269, %v2267
        %v2271 = vxor.u32 %v2270, 2147483648
        %v2272 = vsel %vm2189, %v2271, %v2270
        %v2273 = vsub.s32 4, %v2249
        %v2274 = vsel %vm2189, %v2273, %v2249
        %v2275 = vsel %vm2188, %v2068, %v2272
        %v2276 = vsel %vm2188, 0, %v2274
        %v2277 = vcosq.f32.pop %v2275
        %v2278 = vsinq.f32.pop %v2275
        %vm2279 = vweird.f32 %v2068
        %v2280 = vadd.s32 %v2276, 3
        %v2281 = vand.u32 %v2280, 3
        %vm2282 = vcmp.lt.s32.totalorder %v2281, 2
        %vm2283 = vcmp.eq.s32.totalorder %v2281, 0
        %v2284 = vxor.u32 %v2278, 2147483648
        %v2285 = vsel %vm2283, %v2277, %v2284
        %vm2286 = vcmp.eq.s32.totalorder %v2281, 2
        %v2287 = vxor.u32 %v2277, 2147483648
        %v2288 = vsel %vm2286, %v2287, %v2278
        %v2289 = vsel %vm2282, %v2285, %v2288
        %v2290 = vsel %vm2279, nan, %v2289
        %v2291 = vand.u32 2147483647, %v2069
        %vm2292 = vcmp.le.f32.partialorder %v2291, 0.7853982
        %vm2293 = vcmp.lt.s32.totalorder %v2069, 0
        %v2294 = vand.u32 %v2069, 2139095040
        %v2295 = vshrl.u32 %v2294, 23
        %v2296 = vsub.s32 %v2295, 127
        %v2297 = vand.u32 2147483647, %v2069
        %v2298 = vand.u32 %v2297, 8388607
        %v2299 = vor.u32 %v2298, 8388608
        %v2300 = vsub.s32 0, %v2299
        %v2301 = vadd.s32 %v2296, 1
        %vm2302 = vcmp.gt.s32.totalorder %v2301, 0
        %v2303 = vsel %vm2302, %v2301, 0
        %v2304 = vshrl.u32 %v2303, 5
        %v2305 = vand.u32 %v2303, 31
        %v2306 = vsub.s32 32, %v2305
        %v2307 = vshrl.u32 683565275, %v2306
        %v2308 = vshll.u32 683565275, %v2305
        %v2309 = vshrl.u32 2475754826, %v2306
        %v2310 = vor.u32 %v2308, %v2309
        %v2311 = vshll.u32 2475754826, %v2305
        %v2312 = vshrl.u32 2131351028, %v2306
        %v2313 = vor.u32 %v2311, %v2312
        %v2314 = vshll.u32 2131351028, %v2305
        %v2315 = vshrl.u32 2102212464, %v2306
        %v2316 = vor.u32 %v2314, %v2315
        %v2317 = vshll.u32 2102212464, %v2305
        %v2318 = vshrl.u32 920167782, %v2306
        %v2319 = vor.u32 %v2317, %v2318
        %v2320 = vshll.u32 920167782, %v2305
        %v2321 = vshrl.u32 1326507024, %v2306
        %v2322 = vor.u32 %v2320, %v2321
        %vm2323 = vcmp.lt.s32.totalorder %v2304, 1
        %vm2324 = vcmp.lt.s32.totalorder %v2304, 2
        %vm2325 = vcmp.lt.s32.totalorder %v2304, 3
        %vm2326 = vcmp.lt.s32.totalorder %v2304, 4
        %v2327 = vsel %vm2323, %v2307, %v2310
        %v2328 = vsel %vm2326, %v2316, 2102212464
        %v2329 = vsel %vm2325, %v2313, %v2328
        %v2330 = vsel %vm2324, %v2327, %v2329
        %v2331 = vsel %vm2323, %v2310, %v2313
        %v2332 = vsel %vm2326, %v2319, 920167782
        %v2333 = vsel %vm2325, %v2316, %v2332
        %v2334 = vsel %vm2324, %v2331, %v2333
        %v2335 = vsel %vm2323, %v2313, %v2316
        %v2336 = vsel %vm2326, %v2322, 1326507024
        %v2337 = vsel %vm2325, %v2319, %v2336
        %v2338 = vsel %vm2324, %v2335, %v2337
        %v2339 = vshll.u32 %v2299, 8
        %v2340 = vmul.u32.u64.compose %v2339, %v2338
        %v2341 = vextract.low.u32 %v2340
        %v2342 = vextract.high.u32 %v2340
        %v2343 = vmul.u32.u64.compose %v2339, %v2334
        %v2344 = vextract.low.u32 %v2343
        %v2345 = vextract.high.u32 %v2343
        %v2346 = vmul.u32 %v2339, %v2330
        %v2347 = vadd.s32 %v2342, %v2344
        %vm2348 = vc.u32 %v2342, %v2344
        %v2349 = vadd.s32 %v2345, 1
        %v2350 = vsel %vm2348, %v2349, %v2345
        %v2351 = vadd.s32 %v2346, %v2350
        %v2352 = vadd.s32 %v2351, 536870912
        %v2353 = vshrl.u32 %v2352, 30
        %v2354 = vshll.u32 %v2353, 30
        %v2355 = vsub.s32 %v2351, %v2354
        %vm2356 = vcmp.lt.s32.totalorder %v2355, 0
        %v2357 = vsub.s32 0, %v2355
        %v2358 = vsel %vm2356, %v2357, %v2355
        %v2359 = vclz %v2358
        %v2360 = vsub.s32 %v2359, 2
        %vm2361 = vcmp.gt.s32.totalorder 0, %v2360
        %v2362 = vsel %vm2361, 0, %v2360
        %v2363 = vsub.s32 32, %v2362
        %v2364 = vshll.u32 %v2355, %v2362
        %v2365 = vshrl.u32 %v2347, %v2363
        %v2366 = vor.u32 %v2364, %v2365
        %v2367 = vsub.s32 4294967266, %v2362
        %v2368 = vadd.s32 %v2367, 127
        %v2369 = vshll.u32 %v2368, 23
        %v2370 = vor.u32 4788187, %v2369
        %v2371 = vand.u32 2147483647, %v2370
        %v2373 = vcvt.s32.f32 %v2366
        %v2374 = vmul.f32 %v2373, %v2371
        %v2375 = vxor.u32 %v2374, 2147483648
        %v2376 = vsel %vm2293, %v2375, %v2374
        %v2377 = vsub.s32 4, %v2353
        %v2378 = vsel %vm2293, %v2377, %v2353
        %v2379 = vsel %vm2292, %v2069, %v2376
        %v2380 = vsel %vm2292, 0, %v2378
        %v2381 = vcosq.f32.pop %v2379
        %v2382 = vsinq.f32.pop %v2379
        %vm2383 = vweird.f32 %v2069
        %v2384 = vadd.s32 %v2380, 3
        %v2385 = vand.u32 %v2384, 3
        %vm2386 = vcmp.lt.s32.totalorder %v2385, 2
        %vm2387 = vcmp.eq.s32.totalorder %v2385, 0
        %v2388 = vxor.u32 %v2382, 2147483648
        %v2389 = vsel %vm2387, %v2381, %v2388
        %vm2390 = vcmp.eq.s32.totalorder %v2385, 2
        %v2391 = vxor.u32 %v2381, 2147483648
        %v2392 = vsel %vm2390, %v2391, %v2382
        %v2393 = vsel %vm2386, %v2389, %v2392
        %v2394 = vsel %vm2383, nan, %v2393
        %v2395 = vand.u32 2147483647, %v2070
        %vm2396 = vcmp.le.f32.partialorder %v2395, 0.7853982
        %vm2397 = vcmp.lt.s32.totalorder %v2070, 0
        %v2398 = vand.u32 %v2070, 2139095040
        %v2399 = vshrl.u32 %v2398, 23
        %v2400 = vsub.s32 %v2399, 127
        %v2401 = vand.u32 2147483647, %v2070
        %v2402 = vand.u32 %v2401, 8388607
        %v2403 = vor.u32 %v2402, 8388608
        %v2404 = vsub.s32 0, %v2403
        %v2405 = vadd.s32 %v2400, 1
        %vm2406 = vcmp.gt.s32.totalorder %v2405, 0
        %v2407 = vsel %vm2406, %v2405, 0
        %v2408 = vshrl.u32 %v2407, 5
        %v2409 = vand.u32 %v2407, 31
        %v2410 = vsub.s32 32, %v2409
        %v2411 = vshrl.u32 683565275, %v2410
        %v2412 = vshll.u32 683565275, %v2409
        %v2413 = vshrl.u32 2475754826, %v2410
        %v2414 = vor.u32 %v2412, %v2413
        %v2415 = vshll.u32 2475754826, %v2409
        %v2416 = vshrl.u32 2131351028, %v2410
        %v2417 = vor.u32 %v2415, %v2416
        %v2418 = vshll.u32 2131351028, %v2409
        %v2419 = vshrl.u32 2102212464, %v2410
        %v2420 = vor.u32 %v2418, %v2419
        %v2421 = vshll.u32 2102212464, %v2409
        %v2422 = vshrl.u32 920167782, %v2410
        %v2423 = vor.u32 %v2421, %v2422
        %v2424 = vshll.u32 920167782, %v2409
        %v2425 = vshrl.u32 1326507024, %v2410
        %v2426 = vor.u32 %v2424, %v2425
        %vm2427 = vcmp.lt.s32.totalorder %v2408, 1
        %vm2428 = vcmp.lt.s32.totalorder %v2408, 2
        %vm2429 = vcmp.lt.s32.totalorder %v2408, 3
        %vm2430 = vcmp.lt.s32.totalorder %v2408, 4
        %v2431 = vsel %vm2427, %v2411, %v2414
        %v2432 = vsel %vm2430, %v2420, 2102212464
        %v2433 = vsel %vm2429, %v2417, %v2432
        %v2434 = vsel %vm2428, %v2431, %v2433
        %v2435 = vsel %vm2427, %v2414, %v2417
        %v2436 = vsel %vm2430, %v2423, 920167782
        %v2437 = vsel %vm2429, %v2420, %v2436
        %v2438 = vsel %vm2428, %v2435, %v2437
        %v2439 = vsel %vm2427, %v2417, %v2420
        %v2440 = vsel %vm2430, %v2426, 1326507024
        %v2441 = vsel %vm2429, %v2423, %v2440
        %v2442 = vsel %vm2428, %v2439, %v2441
        %v2443 = vshll.u32 %v2403, 8
        %v2444 = vmul.u32.u64.compose %v2443, %v2442
        %v2445 = vextract.low.u32 %v2444
        %v2446 = vextract.high.u32 %v2444
        %v2447 = vmul.u32.u64.compose %v2443, %v2438
        %v2448 = vextract.low.u32 %v2447
        %v2449 = vextract.high.u32 %v2447
        %v2450 = vmul.u32 %v2443, %v2434
        %v2451 = vadd.s32 %v2446, %v2448
        %vm2452 = vc.u32 %v2446, %v2448
        %v2453 = vadd.s32 %v2449, 1
        %v2454 = vsel %vm2452, %v2453, %v2449
        %v2455 = vadd.s32 %v2450, %v2454
        %v2456 = vadd.s32 %v2455, 536870912
        %v2457 = vshrl.u32 %v2456, 30
        %v2458 = vshll.u32 %v2457, 30
        %v2459 = vsub.s32 %v2455, %v2458
        %vm2460 = vcmp.lt.s32.totalorder %v2459, 0
        %v2461 = vsub.s32 0, %v2459
        %v2462 = vsel %vm2460, %v2461, %v2459
        %v2463 = vclz %v2462
        %v2464 = vsub.s32 %v2463, 2
        %vm2465 = vcmp.gt.s32.totalorder 0, %v2464
        %v2466 = vsel %vm2465, 0, %v2464
        %v2467 = vsub.s32 32, %v2466
        %v2468 = vshll.u32 %v2459, %v2466
        %v2469 = vshrl.u32 %v2451, %v2467
        %v2470 = vor.u32 %v2468, %v2469
        %v2471 = vsub.s32 4294967266, %v2466
        %v2472 = vadd.s32 %v2471, 127
        %v2473 = vshll.u32 %v2472, 23
        %v2474 = vor.u32 4788187, %v2473
        %v2475 = vand.u32 2147483647, %v2474
        %v2477 = vcvt.s32.f32 %v2470
        %v2478 = vmul.f32 %v2477, %v2475
        %v2479 = vxor.u32 %v2478, 2147483648
        %v2480 = vsel %vm2397, %v2479, %v2478
        %v2481 = vsub.s32 4, %v2457
        %v2482 = vsel %vm2397, %v2481, %v2457
        %v2483 = vsel %vm2396, %v2070, %v2480
        %v2484 = vsel %vm2396, 0, %v2482
        %v2485 = vcosq.f32.pop %v2483
        %v2486 = vsinq.f32.pop %v2483
        %vm2487 = vweird.f32 %v2070
        %v2488 = vadd.s32 %v2484, 3
        %v2489 = vand.u32 %v2488, 3
        %vm2490 = vcmp.lt.s32.totalorder %v2489, 2
        %vm2491 = vcmp.eq.s32.totalorder %v2489, 0
        %v2492 = vxor.u32 %v2486, 2147483648
        %v2493 = vsel %vm2491, %v2485, %v2492
        %vm2494 = vcmp.eq.s32.totalorder %v2489, 2
        %v2495 = vxor.u32 %v2485, 2147483648
        %v2496 = vsel %vm2494, %v2495, %v2486
        %v2497 = vsel %vm2490, %v2493, %v2496
        %v2498 = vsel %vm2487, nan, %v2497
        %v2499 = vand.u32 2147483647, %v2071
        %vm2500 = vcmp.le.f32.partialorder %v2499, 0.7853982
        %vm2501 = vcmp.lt.s32.totalorder %v2071, 0
        %v2502 = vand.u32 %v2071, 2139095040
        %v2503 = vshrl.u32 %v2502, 23
        %v2504 = vsub.s32 %v2503, 127
        %v2505 = vand.u32 2147483647, %v2071
        %v2506 = vand.u32 %v2505, 8388607
        %v2507 = vor.u32 %v2506, 8388608
        %v2508 = vsub.s32 0, %v2507
        %v2509 = vadd.s32 %v2504, 1
        %vm2510 = vcmp.gt.s32.totalorder %v2509, 0
        %v2511 = vsel %vm2510, %v2509, 0
        %v2512 = vshrl.u32 %v2511, 5
        %v2513 = vand.u32 %v2511, 31
        %v2514 = vsub.s32 32, %v2513
        %v2515 = vshrl.u32 683565275, %v2514
        %v2516 = vshll.u32 683565275, %v2513
        %v2517 = vshrl.u32 2475754826, %v2514
        %v2518 = vor.u32 %v2516, %v2517
        %v2519 = vshll.u32 2475754826, %v2513
        %v2520 = vshrl.u32 2131351028, %v2514
        %v2521 = vor.u32 %v2519, %v2520
        %v2522 = vshll.u32 2131351028, %v2513
        %v2523 = vshrl.u32 2102212464, %v2514
        %v2524 = vor.u32 %v2522, %v2523
        %v2525 = vshll.u32 2102212464, %v2513
        %v2526 = vshrl.u32 920167782, %v2514
        %v2527 = vor.u32 %v2525, %v2526
        %v2528 = vshll.u32 920167782, %v2513
        %v2529 = vshrl.u32 1326507024, %v2514
        %v2530 = vor.u32 %v2528, %v2529
        %vm2531 = vcmp.lt.s32.totalorder %v2512, 1
        %vm2532 = vcmp.lt.s32.totalorder %v2512, 2
        %vm2533 = vcmp.lt.s32.totalorder %v2512, 3
        %vm2534 = vcmp.lt.s32.totalorder %v2512, 4
        %v2535 = vsel %vm2531, %v2515, %v2518
        %v2536 = vsel %vm2534, %v2524, 2102212464
        %v2537 = vsel %vm2533, %v2521, %v2536
        %v2538 = vsel %vm2532, %v2535, %v2537
        %v2539 = vsel %vm2531, %v2518, %v2521
        %v2540 = vsel %vm2534, %v2527, 920167782
        %v2541 = vsel %vm2533, %v2524, %v2540
        %v2542 = vsel %vm2532, %v2539, %v2541
        %v2543 = vsel %vm2531, %v2521, %v2524
        %v2544 = vsel %vm2534, %v2530, 1326507024
        %v2545 = vsel %vm2533, %v2527, %v2544
        %v2546 = vsel %vm2532, %v2543, %v2545
        %v2547 = vshll.u32 %v2507, 8
        %v2548 = vmul.u32.u64.compose %v2547, %v2546
        %v2549 = vextract.low.u32 %v2548
        %v2550 = vextract.high.u32 %v2548
        %v2551 = vmul.u32.u64.compose %v2547, %v2542
        %v2552 = vextract.low.u32 %v2551
        %v2553 = vextract.high.u32 %v2551
        %v2554 = vmul.u32 %v2547, %v2538
        %v2555 = vadd.s32 %v2550, %v2552
        %vm2556 = vc.u32 %v2550, %v2552
        %v2557 = vadd.s32 %v2553, 1
        %v2558 = vsel %vm2556, %v2557, %v2553
        %v2559 = vadd.s32 %v2554, %v2558
        %v2560 = vadd.s32 %v2559, 536870912
        %v2561 = vshrl.u32 %v2560, 30
        %v2562 = vshll.u32 %v2561, 30
        %v2563 = vsub.s32 %v2559, %v2562
        %vm2564 = vcmp.lt.s32.totalorder %v2563, 0
        %v2565 = vsub.s32 0, %v2563
        %v2566 = vsel %vm2564, %v2565, %v2563
        %v2567 = vclz %v2566
        %v2568 = vsub.s32 %v2567, 2
        %vm2569 = vcmp.gt.s32.totalorder 0, %v2568
        %v2570 = vsel %vm2569, 0, %v2568
        %v2571 = vsub.s32 32, %v2570
        %v2572 = vshll.u32 %v2563, %v2570
        %v2573 = vshrl.u32 %v2555, %v2571
        %v2574 = vor.u32 %v2572, %v2573
        %v2575 = vsub.s32 4294967266, %v2570
        %v2576 = vadd.s32 %v2575, 127
        %v2577 = vshll.u32 %v2576, 23
        %v2578 = vor.u32 4788187, %v2577
        %v2579 = vand.u32 2147483647, %v2578
        %v2581 = vcvt.s32.f32 %v2574
        %v2582 = vmul.f32 %v2581, %v2579
        %v2583 = vxor.u32 %v2582, 2147483648
        %v2584 = vsel %vm2501, %v2583, %v2582
        %v2585 = vsub.s32 4, %v2561
        %v2586 = vsel %vm2501, %v2585, %v2561
        %v2587 = vsel %vm2500, %v2071, %v2584
        %v2588 = vsel %vm2500, 0, %v2586
        %v2589 = vcosq.f32.pop %v2587
        %v2590 = vsinq.f32.pop %v2587
        %vm2591 = vweird.f32 %v2071
        %v2592 = vadd.s32 %v2588, 3
        %v2593 = vand.u32 %v2592, 3
        %vm2594 = vcmp.lt.s32.totalorder %v2593, 2
        %vm2595 = vcmp.eq.s32.totalorder %v2593, 0
        %v2596 = vxor.u32 %v2590, 2147483648
        %v2597 = vsel %vm2595, %v2589, %v2596
        %vm2598 = vcmp.eq.s32.totalorder %v2593, 2
        %v2599 = vxor.u32 %v2589, 2147483648
        %v2600 = vsel %vm2598, %v2599, %v2590
        %v2601 = vsel %vm2594, %v2597, %v2600
        %v2602 = vsel %vm2591, nan, %v2601
        %v2603 = vand.u32 2147483647, %v2072
        %vm2604 = vcmp.le.f32.partialorder %v2603, 0.7853982
        %vm2605 = vcmp.lt.s32.totalorder %v2072, 0
        %v2606 = vand.u32 %v2072, 2139095040
        %v2607 = vshrl.u32 %v2606, 23
        %v2608 = vsub.s32 %v2607, 127
        %v2609 = vand.u32 2147483647, %v2072
        %v2610 = vand.u32 %v2609, 8388607
        %v2611 = vor.u32 %v2610, 8388608
        %v2612 = vsub.s32 0, %v2611
        %v2613 = vadd.s32 %v2608, 1
        %vm2614 = vcmp.gt.s32.totalorder %v2613, 0
        %v2615 = vsel %vm2614, %v2613, 0
        %v2616 = vshrl.u32 %v2615, 5
        %v2617 = vand.u32 %v2615, 31
        %v2618 = vsub.s32 32, %v2617
        %v2619 = vshrl.u32 683565275, %v2618
        %v2620 = vshll.u32 683565275, %v2617
        %v2621 = vshrl.u32 2475754826, %v2618
        %v2622 = vor.u32 %v2620, %v2621
        %v2623 = vshll.u32 2475754826, %v2617
        %v2624 = vshrl.u32 2131351028, %v2618
        %v2625 = vor.u32 %v2623, %v2624
        %v2626 = vshll.u32 2131351028, %v2617
        %v2627 = vshrl.u32 2102212464, %v2618
        %v2628 = vor.u32 %v2626, %v2627
        %v2629 = vshll.u32 2102212464, %v2617
        %v2630 = vshrl.u32 920167782, %v2618
        %v2631 = vor.u32 %v2629, %v2630
        %v2632 = vshll.u32 920167782, %v2617
        %v2633 = vshrl.u32 1326507024, %v2618
        %v2634 = vor.u32 %v2632, %v2633
        %vm2635 = vcmp.lt.s32.totalorder %v2616, 1
        %vm2636 = vcmp.lt.s32.totalorder %v2616, 2
        %vm2637 = vcmp.lt.s32.totalorder %v2616, 3
        %vm2638 = vcmp.lt.s32.totalorder %v2616, 4
        %v2639 = vsel %vm2635, %v2619, %v2622
        %v2640 = vsel %vm2638, %v2628, 2102212464
        %v2641 = vsel %vm2637, %v2625, %v2640
        %v2642 = vsel %vm2636, %v2639, %v2641
        %v2643 = vsel %vm2635, %v2622, %v2625
        %v2644 = vsel %vm2638, %v2631, 920167782
        %v2645 = vsel %vm2637, %v2628, %v2644
        %v2646 = vsel %vm2636, %v2643, %v2645
        %v2647 = vsel %vm2635, %v2625, %v2628
        %v2648 = vsel %vm2638, %v2634, 1326507024
        %v2649 = vsel %vm2637, %v2631, %v2648
        %v2650 = vsel %vm2636, %v2647, %v2649
        %v2651 = vshll.u32 %v2611, 8
        %v2652 = vmul.u32.u64.compose %v2651, %v2650
        %v2653 = vextract.low.u32 %v2652
        %v2654 = vextract.high.u32 %v2652
        %v2655 = vmul.u32.u64.compose %v2651, %v2646
        %v2656 = vextract.low.u32 %v2655
        %v2657 = vextract.high.u32 %v2655
        %v2658 = vmul.u32 %v2651, %v2642
        %v2659 = vadd.s32 %v2654, %v2656
        %vm2660 = vc.u32 %v2654, %v2656
        %v2661 = vadd.s32 %v2657, 1
        %v2662 = vsel %vm2660, %v2661, %v2657
        %v2663 = vadd.s32 %v2658, %v2662
        %v2664 = vadd.s32 %v2663, 536870912
        %v2665 = vshrl.u32 %v2664, 30
        %v2666 = vshll.u32 %v2665, 30
        %v2667 = vsub.s32 %v2663, %v2666
        %vm2668 = vcmp.lt.s32.totalorder %v2667, 0
        %v2669 = vsub.s32 0, %v2667
        %v2670 = vsel %vm2668, %v2669, %v2667
        %v2671 = vclz %v2670
        %v2672 = vsub.s32 %v2671, 2
        %vm2673 = vcmp.gt.s32.totalorder 0, %v2672
        %v2674 = vsel %vm2673, 0, %v2672
        %v2675 = vsub.s32 32, %v2674
        %v2676 = vshll.u32 %v2667, %v2674
        %v2677 = vshrl.u32 %v2659, %v2675
        %v2678 = vor.u32 %v2676, %v2677
        %v2679 = vsub.s32 4294967266, %v2674
        %v2680 = vadd.s32 %v2679, 127
        %v2681 = vshll.u32 %v2680, 23
        %v2682 = vor.u32 4788187, %v2681
        %v2683 = vand.u32 2147483647, %v2682
        %v2685 = vcvt.s32.f32 %v2678
        %v2686 = vmul.f32 %v2685, %v2683
        %v2687 = vxor.u32 %v2686, 2147483648
        %v2688 = vsel %vm2605, %v2687, %v2686
        %v2689 = vsub.s32 4, %v2665
        %v2690 = vsel %vm2605, %v2689, %v2665
        %v2691 = vsel %vm2604, %v2072, %v2688
        %v2692 = vsel %vm2604, 0, %v2690
        %v2693 = vcosq.f32.pop %v2691
        %v2694 = vsinq.f32.pop %v2691
        %vm2695 = vweird.f32 %v2072
        %v2696 = vadd.s32 %v2692, 3
        %v2697 = vand.u32 %v2696, 3
        %vm2698 = vcmp.lt.s32.totalorder %v2697, 2
        %vm2699 = vcmp.eq.s32.totalorder %v2697, 0
        %v2700 = vxor.u32 %v2694, 2147483648
        %v2701 = vsel %vm2699, %v2693, %v2700
        %vm2702 = vcmp.eq.s32.totalorder %v2697, 2
        %v2703 = vxor.u32 %v2693, 2147483648
        %v2704 = vsel %vm2702, %v2703, %v2694
        %v2705 = vsel %vm2698, %v2701, %v2704
        %v2706 = vsel %vm2695, nan, %v2705
        %v2707 = vand.u32 2147483647, %v2073
        %vm2708 = vcmp.le.f32.partialorder %v2707, 0.7853982
        %vm2709 = vcmp.lt.s32.totalorder %v2073, 0
        %v2710 = vand.u32 %v2073, 2139095040
        %v2711 = vshrl.u32 %v2710, 23
        %v2712 = vsub.s32 %v2711, 127
        %v2713 = vand.u32 2147483647, %v2073
        %v2714 = vand.u32 %v2713, 8388607
        %v2715 = vor.u32 %v2714, 8388608
        %v2716 = vsub.s32 0, %v2715
        %v2717 = vadd.s32 %v2712, 1
        %vm2718 = vcmp.gt.s32.totalorder %v2717, 0
        %v2719 = vsel %vm2718, %v2717, 0
        %v2720 = vshrl.u32 %v2719, 5
        %v2721 = vand.u32 %v2719, 31
        %v2722 = vsub.s32 32, %v2721
        %v2723 = vshrl.u32 683565275, %v2722
        %v2724 = vshll.u32 683565275, %v2721
        %v2725 = vshrl.u32 2475754826, %v2722
        %v2726 = vor.u32 %v2724, %v2725
        %v2727 = vshll.u32 2475754826, %v2721
        %v2728 = vshrl.u32 2131351028, %v2722
        %v2729 = vor.u32 %v2727, %v2728
        %v2730 = vshll.u32 2131351028, %v2721
        %v2731 = vshrl.u32 2102212464, %v2722
        %v2732 = vor.u32 %v2730, %v2731
        %v2733 = vshll.u32 2102212464, %v2721
        %v2734 = vshrl.u32 920167782, %v2722
        %v2735 = vor.u32 %v2733, %v2734
        %v2736 = vshll.u32 920167782, %v2721
        %v2737 = vshrl.u32 1326507024, %v2722
        %v2738 = vor.u32 %v2736, %v2737
        %vm2739 = vcmp.lt.s32.totalorder %v2720, 1
        %vm2740 = vcmp.lt.s32.totalorder %v2720, 2
        %vm2741 = vcmp.lt.s32.totalorder %v2720, 3
        %vm2742 = vcmp.lt.s32.totalorder %v2720, 4
        %v2743 = vsel %vm2739, %v2723, %v2726
        %v2744 = vsel %vm2742, %v2732, 2102212464
        %v2745 = vsel %vm2741, %v2729, %v2744
        %v2746 = vsel %vm2740, %v2743, %v2745
        %v2747 = vsel %vm2739, %v2726, %v2729
        %v2748 = vsel %vm2742, %v2735, 920167782
        %v2749 = vsel %vm2741, %v2732, %v2748
        %v2750 = vsel %vm2740, %v2747, %v2749
        %v2751 = vsel %vm2739, %v2729, %v2732
        %v2752 = vsel %vm2742, %v2738, 1326507024
        %v2753 = vsel %vm2741, %v2735, %v2752
        %v2754 = vsel %vm2740, %v2751, %v2753
        %v2755 = vshll.u32 %v2715, 8
        %v2756 = vmul.u32.u64.compose %v2755, %v2754
        %v2757 = vextract.low.u32 %v2756
        %v2758 = vextract.high.u32 %v2756
        %v2759 = vmul.u32.u64.compose %v2755, %v2750
        %v2760 = vextract.low.u32 %v2759
        %v2761 = vextract.high.u32 %v2759
        %v2762 = vmul.u32 %v2755, %v2746
        %v2763 = vadd.s32 %v2758, %v2760
        %vm2764 = vc.u32 %v2758, %v2760
        %v2765 = vadd.s32 %v2761, 1
        %v2766 = vsel %vm2764, %v2765, %v2761
        %v2767 = vadd.s32 %v2762, %v2766
        %v2768 = vadd.s32 %v2767, 536870912
        %v2769 = vshrl.u32 %v2768, 30
        %v2770 = vshll.u32 %v2769, 30
        %v2771 = vsub.s32 %v2767, %v2770
        %vm2772 = vcmp.lt.s32.totalorder %v2771, 0
        %v2773 = vsub.s32 0, %v2771
        %v2774 = vsel %vm2772, %v2773, %v2771
        %v2775 = vclz %v2774
        %v2776 = vsub.s32 %v2775, 2
        %vm2777 = vcmp.gt.s32.totalorder 0, %v2776
        %v2778 = vsel %vm2777, 0, %v2776
        %v2779 = vsub.s32 32, %v2778
        %v2780 = vshll.u32 %v2771, %v2778
        %v2781 = vshrl.u32 %v2763, %v2779
        %v2782 = vor.u32 %v2780, %v2781
        %v2783 = vsub.s32 4294967266, %v2778
        %v2784 = vadd.s32 %v2783, 127
        %v2785 = vshll.u32 %v2784, 23
        %v2786 = vor.u32 4788187, %v2785
        %v2787 = vand.u32 2147483647, %v2786
        %v2789 = vcvt.s32.f32 %v2782
        %v2790 = vmul.f32 %v2789, %v2787
        %v2791 = vxor.u32 %v2790, 2147483648
        %v2792 = vsel %vm2709, %v2791, %v2790
        %v2793 = vsub.s32 4, %v2769
        %v2794 = vsel %vm2709, %v2793, %v2769
        %v2795 = vsel %vm2708, %v2073, %v2792
        %v2796 = vsel %vm2708, 0, %v2794
        %v2797 = vcosq.f32.pop %v2795
        %v2798 = vsinq.f32.pop %v2795
        %vm2799 = vweird.f32 %v2073
        %v2800 = vadd.s32 %v2796, 3
        %v2801 = vand.u32 %v2800, 3
        %vm2802 = vcmp.lt.s32.totalorder %v2801, 2
        %vm2803 = vcmp.eq.s32.totalorder %v2801, 0
        %v2804 = vxor.u32 %v2798, 2147483648
        %v2805 = vsel %vm2803, %v2797, %v2804
        %vm2806 = vcmp.eq.s32.totalorder %v2801, 2
        %v2807 = vxor.u32 %v2797, 2147483648
        %v2808 = vsel %vm2806, %v2807, %v2798
        %v2809 = vsel %vm2802, %v2805, %v2808
        %v2810 = vsel %vm2799, nan, %v2809
        %v2811 = vand.u32 2147483647, %v2074
        %vm2812 = vcmp.le.f32.partialorder %v2811, 0.7853982
        %vm2813 = vcmp.lt.s32.totalorder %v2074, 0
        %v2814 = vand.u32 %v2074, 2139095040
        %v2815 = vshrl.u32 %v2814, 23
        %v2816 = vsub.s32 %v2815, 127
        %v2817 = vand.u32 2147483647, %v2074
        %v2818 = vand.u32 %v2817, 8388607
        %v2819 = vor.u32 %v2818, 8388608
        %v2820 = vsub.s32 0, %v2819
        %v2821 = vadd.s32 %v2816, 1
        %vm2822 = vcmp.gt.s32.totalorder %v2821, 0
        %v2823 = vsel %vm2822, %v2821, 0
        %v2824 = vshrl.u32 %v2823, 5
        %v2825 = vand.u32 %v2823, 31
        %v2826 = vsub.s32 32, %v2825
        %v2827 = vshrl.u32 683565275, %v2826
        %v2828 = vshll.u32 683565275, %v2825
        %v2829 = vshrl.u32 2475754826, %v2826
        %v2830 = vor.u32 %v2828, %v2829
        %v2831 = vshll.u32 2475754826, %v2825
        %v2832 = vshrl.u32 2131351028, %v2826
        %v2833 = vor.u32 %v2831, %v2832
        %v2834 = vshll.u32 2131351028, %v2825
        %v2835 = vshrl.u32 2102212464, %v2826
        %v2836 = vor.u32 %v2834, %v2835
        %v2837 = vshll.u32 2102212464, %v2825
        %v2838 = vshrl.u32 920167782, %v2826
        %v2839 = vor.u32 %v2837, %v2838
        %v2840 = vshll.u32 920167782, %v2825
        %v2841 = vshrl.u32 1326507024, %v2826
        %v2842 = vor.u32 %v2840, %v2841
        %vm2843 = vcmp.lt.s32.totalorder %v2824, 1
        %vm2844 = vcmp.lt.s32.totalorder %v2824, 2
        %vm2845 = vcmp.lt.s32.totalorder %v2824, 3
        %vm2846 = vcmp.lt.s32.totalorder %v2824, 4
        %v2847 = vsel %vm2843, %v2827, %v2830
        %v2848 = vsel %vm2846, %v2836, 2102212464
        %v2849 = vsel %vm2845, %v2833, %v2848
        %v2850 = vsel %vm2844, %v2847, %v2849
        %v2851 = vsel %vm2843, %v2830, %v2833
        %v2852 = vsel %vm2846, %v2839, 920167782
        %v2853 = vsel %vm2845, %v2836, %v2852
        %v2854 = vsel %vm2844, %v2851, %v2853
        %v2855 = vsel %vm2843, %v2833, %v2836
        %v2856 = vsel %vm2846, %v2842, 1326507024
        %v2857 = vsel %vm2845, %v2839, %v2856
        %v2858 = vsel %vm2844, %v2855, %v2857
        %v2859 = vshll.u32 %v2819, 8
        %v2860 = vmul.u32.u64.compose %v2859, %v2858
        %v2861 = vextract.low.u32 %v2860
        %v2862 = vextract.high.u32 %v2860
        %v2863 = vmul.u32.u64.compose %v2859, %v2854
        %v2864 = vextract.low.u32 %v2863
        %v2865 = vextract.high.u32 %v2863
        %v2866 = vmul.u32 %v2859, %v2850
        %v2867 = vadd.s32 %v2862, %v2864
        %vm2868 = vc.u32 %v2862, %v2864
        %v2869 = vadd.s32 %v2865, 1
        %v2870 = vsel %vm2868, %v2869, %v2865
        %v2871 = vadd.s32 %v2866, %v2870
        %v2872 = vadd.s32 %v2871, 536870912
        %v2873 = vshrl.u32 %v2872, 30
        %v2874 = vshll.u32 %v2873, 30
        %v2875 = vsub.s32 %v2871, %v2874
        %vm2876 = vcmp.lt.s32.totalorder %v2875, 0
        %v2877 = vsub.s32 0, %v2875
        %v2878 = vsel %vm2876, %v2877, %v2875
        %v2879 = vclz %v2878
        %v2880 = vsub.s32 %v2879, 2
        %vm2881 = vcmp.gt.s32.totalorder 0, %v2880
        %v2882 = vsel %vm2881, 0, %v2880
        %v2883 = vsub.s32 32, %v2882
        %v2884 = vshll.u32 %v2875, %v2882
        %v2885 = vshrl.u32 %v2867, %v2883
        %v2886 = vor.u32 %v2884, %v2885
        %v2887 = vsub.s32 4294967266, %v2882
        %v2888 = vadd.s32 %v2887, 127
        %v2889 = vshll.u32 %v2888, 23
        %v2890 = vor.u32 4788187, %v2889
        %v2891 = vand.u32 2147483647, %v2890
        %v2893 = vcvt.s32.f32 %v2886
        %v2894 = vmul.f32 %v2893, %v2891
        %v2895 = vxor.u32 %v2894, 2147483648
        %v2896 = vsel %vm2813, %v2895, %v2894
        %v2897 = vsub.s32 4, %v2873
        %v2898 = vsel %vm2813, %v2897, %v2873
        %v2899 = vsel %vm2812, %v2074, %v2896
        %v2900 = vsel %vm2812, 0, %v2898
        %v2901 = vcosq.f32.pop %v2899
        %v2902 = vsinq.f32.pop %v2899
        %vm2903 = vweird.f32 %v2074
        %v2904 = vadd.s32 %v2900, 3
        %v2905 = vand.u32 %v2904, 3
        %vm2906 = vcmp.lt.s32.totalorder %v2905, 2
        %vm2907 = vcmp.eq.s32.totalorder %v2905, 0
        %v2908 = vxor.u32 %v2902, 2147483648
        %v2909 = vsel %vm2907, %v2901, %v2908
        %vm2910 = vcmp.eq.s32.totalorder %v2905, 2
        %v2911 = vxor.u32 %v2901, 2147483648
        %v2912 = vsel %vm2910, %v2911, %v2902
        %v2913 = vsel %vm2906, %v2909, %v2912
        %v2914 = vsel %vm2903, nan, %v2913
        %v2915 = vand.u32 2147483647, %v2075
        %vm2916 = vcmp.le.f32.partialorder %v2915, 0.7853982
        %vm2917 = vcmp.lt.s32.totalorder %v2075, 0
        %v2918 = vand.u32 %v2075, 2139095040
        %v2919 = vshrl.u32 %v2918, 23
        %v2920 = vsub.s32 %v2919, 127
        %v2921 = vand.u32 2147483647, %v2075
        %v2922 = vand.u32 %v2921, 8388607
        %v2923 = vor.u32 %v2922, 8388608
        %v2924 = vsub.s32 0, %v2923
        %v2925 = vadd.s32 %v2920, 1
        %vm2926 = vcmp.gt.s32.totalorder %v2925, 0
        %v2927 = vsel %vm2926, %v2925, 0
        %v2928 = vshrl.u32 %v2927, 5
        %v2929 = vand.u32 %v2927, 31
        %v2930 = vsub.s32 32, %v2929
        %v2931 = vshrl.u32 683565275, %v2930
        %v2932 = vshll.u32 683565275, %v2929
        %v2933 = vshrl.u32 2475754826, %v2930
        %v2934 = vor.u32 %v2932, %v2933
        %v2935 = vshll.u32 2475754826, %v2929
        %v2936 = vshrl.u32 2131351028, %v2930
        %v2937 = vor.u32 %v2935, %v2936
        %v2938 = vshll.u32 2131351028, %v2929
        %v2939 = vshrl.u32 2102212464, %v2930
        %v2940 = vor.u32 %v2938, %v2939
        %v2941 = vshll.u32 2102212464, %v2929
        %v2942 = vshrl.u32 920167782, %v2930
        %v2943 = vor.u32 %v2941, %v2942
        %v2944 = vshll.u32 920167782, %v2929
        %v2945 = vshrl.u32 1326507024, %v2930
        %v2946 = vor.u32 %v2944, %v2945
        %vm2947 = vcmp.lt.s32.totalorder %v2928, 1
        %vm2948 = vcmp.lt.s32.totalorder %v2928, 2
        %vm2949 = vcmp.lt.s32.totalorder %v2928, 3
        %vm2950 = vcmp.lt.s32.totalorder %v2928, 4
        %v2951 = vsel %vm2947, %v2931, %v2934
        %v2952 = vsel %vm2950, %v2940, 2102212464
        %v2953 = vsel %vm2949, %v2937, %v2952
        %v2954 = vsel %vm2948, %v2951, %v2953
        %v2955 = vsel %vm2947, %v2934, %v2937
        %v2956 = vsel %vm2950, %v2943, 920167782
        %v2957 = vsel %vm2949, %v2940, %v2956
        %v2958 = vsel %vm2948, %v2955, %v2957
        %v2959 = vsel %vm2947, %v2937, %v2940
        %v2960 = vsel %vm2950, %v2946, 1326507024
        %v2961 = vsel %vm2949, %v2943, %v2960
        %v2962 = vsel %vm2948, %v2959, %v2961
        %v2963 = vshll.u32 %v2923, 8
        %v2964 = vmul.u32.u64.compose %v2963, %v2962
        %v2965 = vextract.low.u32 %v2964
        %v2966 = vextract.high.u32 %v2964
        %v2967 = vmul.u32.u64.compose %v2963, %v2958
        %v2968 = vextract.low.u32 %v2967
        %v2969 = vextract.high.u32 %v2967
        %v2970 = vmul.u32 %v2963, %v2954
        %v2971 = vadd.s32 %v2966, %v2968
        %vm2972 = vc.u32 %v2966, %v2968
        %v2973 = vadd.s32 %v2969, 1
        %v2974 = vsel %vm2972, %v2973, %v2969
        %v2975 = vadd.s32 %v2970, %v2974
        %v2976 = vadd.s32 %v2975, 536870912
        %v2977 = vshrl.u32 %v2976, 30
        %v2978 = vshll.u32 %v2977, 30
        %v2979 = vsub.s32 %v2975, %v2978
        %vm2980 = vcmp.lt.s32.totalorder %v2979, 0
        %v2981 = vsub.s32 0, %v2979
        %v2982 = vsel %vm2980, %v2981, %v2979
        %v2983 = vclz %v2982
        %v2984 = vsub.s32 %v2983, 2
        %vm2985 = vcmp.gt.s32.totalorder 0, %v2984
        %v2986 = vsel %vm2985, 0, %v2984
        %v2987 = vsub.s32 32, %v2986
        %v2988 = vshll.u32 %v2979, %v2986
        %v2989 = vshrl.u32 %v2971, %v2987
        %v2990 = vor.u32 %v2988, %v2989
        %v2991 = vsub.s32 4294967266, %v2986
        %v2992 = vadd.s32 %v2991, 127
        %v2993 = vshll.u32 %v2992, 23
        %v2994 = vor.u32 4788187, %v2993
        %v2995 = vand.u32 2147483647, %v2994
        %v2997 = vcvt.s32.f32 %v2990
        %v2998 = vmul.f32 %v2997, %v2995
        %v2999 = vxor.u32 %v2998, 2147483648
        %v3000 = vsel %vm2917, %v2999, %v2998
        %v3001 = vsub.s32 4, %v2977
        %v3002 = vsel %vm2917, %v3001, %v2977
        %v3003 = vsel %vm2916, %v2075, %v3000
        %v3004 = vsel %vm2916, 0, %v3002
        %v3005 = vcosq.f32.pop %v3003
        %v3006 = vsinq.f32.pop %v3003
        %vm3007 = vweird.f32 %v2075
        %v3008 = vadd.s32 %v3004, 3
        %v3009 = vand.u32 %v3008, 3
        %vm3010 = vcmp.lt.s32.totalorder %v3009, 2
        %vm3011 = vcmp.eq.s32.totalorder %v3009, 0
        %v3012 = vxor.u32 %v3006, 2147483648
        %v3013 = vsel %vm3011, %v3005, %v3012
        %vm3014 = vcmp.eq.s32.totalorder %v3009, 2
        %v3015 = vxor.u32 %v3005, 2147483648
        %v3016 = vsel %vm3014, %v3015, %v3006
        %v3017 = vsel %vm3010, %v3013, %v3016
        %v3018 = vsel %vm3007, nan, %v3017
        %v3019 = vand.u32 2147483647, %v2076
        %vm3020 = vcmp.le.f32.partialorder %v3019, 0.7853982
        %vm3021 = vcmp.lt.s32.totalorder %v2076, 0
        %v3022 = vand.u32 %v2076, 2139095040
        %v3023 = vshrl.u32 %v3022, 23
        %v3024 = vsub.s32 %v3023, 127
        %v3025 = vand.u32 2147483647, %v2076
        %v3026 = vand.u32 %v3025, 8388607
        %v3027 = vor.u32 %v3026, 8388608
        %v3028 = vsub.s32 0, %v3027
        %v3029 = vadd.s32 %v3024, 1
        %vm3030 = vcmp.gt.s32.totalorder %v3029, 0
        %v3031 = vsel %vm3030, %v3029, 0
        %v3032 = vshrl.u32 %v3031, 5
        %v3033 = vand.u32 %v3031, 31
        %v3034 = vsub.s32 32, %v3033
        %v3035 = vshrl.u32 683565275, %v3034
        %v3036 = vshll.u32 683565275, %v3033
        %v3037 = vshrl.u32 2475754826, %v3034
        %v3038 = vor.u32 %v3036, %v3037
        %v3039 = vshll.u32 2475754826, %v3033
        %v3040 = vshrl.u32 2131351028, %v3034
        %v3041 = vor.u32 %v3039, %v3040
        %v3042 = vshll.u32 2131351028, %v3033
        %v3043 = vshrl.u32 2102212464, %v3034
        %v3044 = vor.u32 %v3042, %v3043
        %v3045 = vshll.u32 2102212464, %v3033
        %v3046 = vshrl.u32 920167782, %v3034
        %v3047 = vor.u32 %v3045, %v3046
        %v3048 = vshll.u32 920167782, %v3033
        %v3049 = vshrl.u32 1326507024, %v3034
        %v3050 = vor.u32 %v3048, %v3049
        %vm3051 = vcmp.lt.s32.totalorder %v3032, 1
        %vm3052 = vcmp.lt.s32.totalorder %v3032, 2
        %vm3053 = vcmp.lt.s32.totalorder %v3032, 3
        %vm3054 = vcmp.lt.s32.totalorder %v3032, 4
        %v3055 = vsel %vm3051, %v3035, %v3038
        %v3056 = vsel %vm3054, %v3044, 2102212464
        %v3057 = vsel %vm3053, %v3041, %v3056
        %v3058 = vsel %vm3052, %v3055, %v3057
        %v3059 = vsel %vm3051, %v3038, %v3041
        %v3060 = vsel %vm3054, %v3047, 920167782
        %v3061 = vsel %vm3053, %v3044, %v3060
        %v3062 = vsel %vm3052, %v3059, %v3061
        %v3063 = vsel %vm3051, %v3041, %v3044
        %v3064 = vsel %vm3054, %v3050, 1326507024
        %v3065 = vsel %vm3053, %v3047, %v3064
        %v3066 = vsel %vm3052, %v3063, %v3065
        %v3067 = vshll.u32 %v3027, 8
        %v3068 = vmul.u32.u64.compose %v3067, %v3066
        %v3069 = vextract.low.u32 %v3068
        %v3070 = vextract.high.u32 %v3068
        %v3071 = vmul.u32.u64.compose %v3067, %v3062
        %v3072 = vextract.low.u32 %v3071
        %v3073 = vextract.high.u32 %v3071
        %v3074 = vmul.u32 %v3067, %v3058
        %v3075 = vadd.s32 %v3070, %v3072
        %vm3076 = vc.u32 %v3070, %v3072
        %v3077 = vadd.s32 %v3073, 1
        %v3078 = vsel %vm3076, %v3077, %v3073
        %v3079 = vadd.s32 %v3074, %v3078
        %v3080 = vadd.s32 %v3079, 536870912
        %v3081 = vshrl.u32 %v3080, 30
        %v3082 = vshll.u32 %v3081, 30
        %v3083 = vsub.s32 %v3079, %v3082
        %vm3084 = vcmp.lt.s32.totalorder %v3083, 0
        %v3085 = vsub.s32 0, %v3083
        %v3086 = vsel %vm3084, %v3085, %v3083
        %v3087 = vclz %v3086
        %v3088 = vsub.s32 %v3087, 2
        %vm3089 = vcmp.gt.s32.totalorder 0, %v3088
        %v3090 = vsel %vm3089, 0, %v3088
        %v3091 = vsub.s32 32, %v3090
        %v3092 = vshll.u32 %v3083, %v3090
        %v3093 = vshrl.u32 %v3075, %v3091
        %v3094 = vor.u32 %v3092, %v3093
        %v3095 = vsub.s32 4294967266, %v3090
        %v3096 = vadd.s32 %v3095, 127
        %v3097 = vshll.u32 %v3096, 23
        %v3098 = vor.u32 4788187, %v3097
        %v3099 = vand.u32 2147483647, %v3098
        %v3101 = vcvt.s32.f32 %v3094
        %v3102 = vmul.f32 %v3101, %v3099
        %v3103 = vxor.u32 %v3102, 2147483648
        %v3104 = vsel %vm3021, %v3103, %v3102
        %v3105 = vsub.s32 4, %v3081
        %v3106 = vsel %vm3021, %v3105, %v3081
        %v3107 = vsel %vm3020, %v2076, %v3104
        %v3108 = vsel %vm3020, 0, %v3106
        %v3109 = vcosq.f32.pop %v3107
        %v3110 = vsinq.f32.pop %v3107
        %vm3111 = vweird.f32 %v2076
        %v3112 = vadd.s32 %v3108, 3
        %v3113 = vand.u32 %v3112, 3
        %vm3114 = vcmp.lt.s32.totalorder %v3113, 2
        %vm3115 = vcmp.eq.s32.totalorder %v3113, 0
        %v3116 = vxor.u32 %v3110, 2147483648
        %v3117 = vsel %vm3115, %v3109, %v3116
        %vm3118 = vcmp.eq.s32.totalorder %v3113, 2
        %v3119 = vxor.u32 %v3109, 2147483648
        %v3120 = vsel %vm3118, %v3119, %v3110
        %v3121 = vsel %vm3114, %v3117, %v3120
        %v3122 = vsel %vm3111, nan, %v3121
        %v3123 = vand.u32 2147483647, %v2077
        %vm3124 = vcmp.le.f32.partialorder %v3123, 0.7853982
        %vm3125 = vcmp.lt.s32.totalorder %v2077, 0
        %v3126 = vand.u32 %v2077, 2139095040
        %v3127 = vshrl.u32 %v3126, 23
        %v3128 = vsub.s32 %v3127, 127
        %v3129 = vand.u32 2147483647, %v2077
        %v3130 = vand.u32 %v3129, 8388607
        %v3131 = vor.u32 %v3130, 8388608
        %v3132 = vsub.s32 0, %v3131
        %v3133 = vadd.s32 %v3128, 1
        %vm3134 = vcmp.gt.s32.totalorder %v3133, 0
        %v3135 = vsel %vm3134, %v3133, 0
        %v3136 = vshrl.u32 %v3135, 5
        %v3137 = vand.u32 %v3135, 31
        %v3138 = vsub.s32 32, %v3137
        %v3139 = vshrl.u32 683565275, %v3138
        %v3140 = vshll.u32 683565275, %v3137
        %v3141 = vshrl.u32 2475754826, %v3138
        %v3142 = vor.u32 %v3140, %v3141
        %v3143 = vshll.u32 2475754826, %v3137
        %v3144 = vshrl.u32 2131351028, %v3138
        %v3145 = vor.u32 %v3143, %v3144
        %v3146 = vshll.u32 2131351028, %v3137
        %v3147 = vshrl.u32 2102212464, %v3138
        %v3148 = vor.u32 %v3146, %v3147
        %v3149 = vshll.u32 2102212464, %v3137
        %v3150 = vshrl.u32 920167782, %v3138
        %v3151 = vor.u32 %v3149, %v3150
        %v3152 = vshll.u32 920167782, %v3137
        %v3153 = vshrl.u32 1326507024, %v3138
        %v3154 = vor.u32 %v3152, %v3153
        %vm3155 = vcmp.lt.s32.totalorder %v3136, 1
        %vm3156 = vcmp.lt.s32.totalorder %v3136, 2
        %vm3157 = vcmp.lt.s32.totalorder %v3136, 3
        %vm3158 = vcmp.lt.s32.totalorder %v3136, 4
        %v3159 = vsel %vm3155, %v3139, %v3142
        %v3160 = vsel %vm3158, %v3148, 2102212464
        %v3161 = vsel %vm3157, %v3145, %v3160
        %v3162 = vsel %vm3156, %v3159, %v3161
        %v3163 = vsel %vm3155, %v3142, %v3145
        %v3164 = vsel %vm3158, %v3151, 920167782
        %v3165 = vsel %vm3157, %v3148, %v3164
        %v3166 = vsel %vm3156, %v3163, %v3165
        %v3167 = vsel %vm3155, %v3145, %v3148
        %v3168 = vsel %vm3158, %v3154, 1326507024
        %v3169 = vsel %vm3157, %v3151, %v3168
        %v3170 = vsel %vm3156, %v3167, %v3169
        %v3171 = vshll.u32 %v3131, 8
        %v3172 = vmul.u32.u64.compose %v3171, %v3170
        %v3173 = vextract.low.u32 %v3172
        %v3174 = vextract.high.u32 %v3172
        %v3175 = vmul.u32.u64.compose %v3171, %v3166
        %v3176 = vextract.low.u32 %v3175
        %v3177 = vextract.high.u32 %v3175
        %v3178 = vmul.u32 %v3171, %v3162
        %v3179 = vadd.s32 %v3174, %v3176
        %vm3180 = vc.u32 %v3174, %v3176
        %v3181 = vadd.s32 %v3177, 1
        %v3182 = vsel %vm3180, %v3181, %v3177
        %v3183 = vadd.s32 %v3178, %v3182
        %v3184 = vadd.s32 %v3183, 536870912
        %v3185 = vshrl.u32 %v3184, 30
        %v3186 = vshll.u32 %v3185, 30
        %v3187 = vsub.s32 %v3183, %v3186
        %vm3188 = vcmp.lt.s32.totalorder %v3187, 0
        %v3189 = vsub.s32 0, %v3187
        %v3190 = vsel %vm3188, %v3189, %v3187
        %v3191 = vclz %v3190
        %v3192 = vsub.s32 %v3191, 2
        %vm3193 = vcmp.gt.s32.totalorder 0, %v3192
        %v3194 = vsel %vm3193, 0, %v3192
        %v3195 = vsub.s32 32, %v3194
        %v3196 = vshll.u32 %v3187, %v3194
        %v3197 = vshrl.u32 %v3179, %v3195
        %v3198 = vor.u32 %v3196, %v3197
        %v3199 = vsub.s32 4294967266, %v3194
        %v3200 = vadd.s32 %v3199, 127
        %v3201 = vshll.u32 %v3200, 23
        %v3202 = vor.u32 4788187, %v3201
        %v3203 = vand.u32 2147483647, %v3202
        %v3205 = vcvt.s32.f32 %v3198
        %v3206 = vmul.f32 %v3205, %v3203
        %v3207 = vxor.u32 %v3206, 2147483648
        %v3208 = vsel %vm3125, %v3207, %v3206
        %v3209 = vsub.s32 4, %v3185
        %v3210 = vsel %vm3125, %v3209, %v3185
        %v3211 = vsel %vm3124, %v2077, %v3208
        %v3212 = vsel %vm3124, 0, %v3210
        %v3213 = vcosq.f32.pop %v3211
        %v3214 = vsinq.f32.pop %v3211
        %vm3215 = vweird.f32 %v2077
        %v3216 = vadd.s32 %v3212, 3
        %v3217 = vand.u32 %v3216, 3
        %vm3218 = vcmp.lt.s32.totalorder %v3217, 2
        %vm3219 = vcmp.eq.s32.totalorder %v3217, 0
        %v3220 = vxor.u32 %v3214, 2147483648
        %v3221 = vsel %vm3219, %v3213, %v3220
        %vm3222 = vcmp.eq.s32.totalorder %v3217, 2
        %v3223 = vxor.u32 %v3213, 2147483648
        %v3224 = vsel %vm3222, %v3223, %v3214
        %v3225 = vsel %vm3218, %v3221, %v3224
        %v3226 = vsel %vm3215, nan, %v3225
        %v3227 = vand.u32 2147483647, %v2078
        %vm3228 = vcmp.le.f32.partialorder %v3227, 0.7853982
        %vm3229 = vcmp.lt.s32.totalorder %v2078, 0
        %v3230 = vand.u32 %v2078, 2139095040
        %v3231 = vshrl.u32 %v3230, 23
        %v3232 = vsub.s32 %v3231, 127
        %v3233 = vand.u32 2147483647, %v2078
        %v3234 = vand.u32 %v3233, 8388607
        %v3235 = vor.u32 %v3234, 8388608
        %v3236 = vsub.s32 0, %v3235
        %v3237 = vadd.s32 %v3232, 1
        %vm3238 = vcmp.gt.s32.totalorder %v3237, 0
        %v3239 = vsel %vm3238, %v3237, 0
        %v3240 = vshrl.u32 %v3239, 5
        %v3241 = vand.u32 %v3239, 31
        %v3242 = vsub.s32 32, %v3241
        %v3243 = vshrl.u32 683565275, %v3242
        %v3244 = vshll.u32 683565275, %v3241
        %v3245 = vshrl.u32 2475754826, %v3242
        %v3246 = vor.u32 %v3244, %v3245
        %v3247 = vshll.u32 2475754826, %v3241
        %v3248 = vshrl.u32 2131351028, %v3242
        %v3249 = vor.u32 %v3247, %v3248
        %v3250 = vshll.u32 2131351028, %v3241
        %v3251 = vshrl.u32 2102212464, %v3242
        %v3252 = vor.u32 %v3250, %v3251
        %v3253 = vshll.u32 2102212464, %v3241
        %v3254 = vshrl.u32 920167782, %v3242
        %v3255 = vor.u32 %v3253, %v3254
        %v3256 = vshll.u32 920167782, %v3241
        %v3257 = vshrl.u32 1326507024, %v3242
        %v3258 = vor.u32 %v3256, %v3257
        %vm3259 = vcmp.lt.s32.totalorder %v3240, 1
        %vm3260 = vcmp.lt.s32.totalorder %v3240, 2
        %vm3261 = vcmp.lt.s32.totalorder %v3240, 3
        %vm3262 = vcmp.lt.s32.totalorder %v3240, 4
        %v3263 = vsel %vm3259, %v3243, %v3246
        %v3264 = vsel %vm3262, %v3252, 2102212464
        %v3265 = vsel %vm3261, %v3249, %v3264
        %v3266 = vsel %vm3260, %v3263, %v3265
        %v3267 = vsel %vm3259, %v3246, %v3249
        %v3268 = vsel %vm3262, %v3255, 920167782
        %v3269 = vsel %vm3261, %v3252, %v3268
        %v3270 = vsel %vm3260, %v3267, %v3269
        %v3271 = vsel %vm3259, %v3249, %v3252
        %v3272 = vsel %vm3262, %v3258, 1326507024
        %v3273 = vsel %vm3261, %v3255, %v3272
        %v3274 = vsel %vm3260, %v3271, %v3273
        %v3275 = vshll.u32 %v3235, 8
        %v3276 = vmul.u32.u64.compose %v3275, %v3274
        %v3277 = vextract.low.u32 %v3276
        %v3278 = vextract.high.u32 %v3276
        %v3279 = vmul.u32.u64.compose %v3275, %v3270
        %v3280 = vextract.low.u32 %v3279
        %v3281 = vextract.high.u32 %v3279
        %v3282 = vmul.u32 %v3275, %v3266
        %v3283 = vadd.s32 %v3278, %v3280
        %vm3284 = vc.u32 %v3278, %v3280
        %v3285 = vadd.s32 %v3281, 1
        %v3286 = vsel %vm3284, %v3285, %v3281
        %v3287 = vadd.s32 %v3282, %v3286
        %v3288 = vadd.s32 %v3287, 536870912
        %v3289 = vshrl.u32 %v3288, 30
        %v3290 = vshll.u32 %v3289, 30
        %v3291 = vsub.s32 %v3287, %v3290
        %vm3292 = vcmp.lt.s32.totalorder %v3291, 0
        %v3293 = vsub.s32 0, %v3291
        %v3294 = vsel %vm3292, %v3293, %v3291
        %v3295 = vclz %v3294
        %v3296 = vsub.s32 %v3295, 2
        %vm3297 = vcmp.gt.s32.totalorder 0, %v3296
        %v3298 = vsel %vm3297, 0, %v3296
        %v3299 = vsub.s32 32, %v3298
        %v3300 = vshll.u32 %v3291, %v3298
        %v3301 = vshrl.u32 %v3283, %v3299
        %v3302 = vor.u32 %v3300, %v3301
        %v3303 = vsub.s32 4294967266, %v3298
        %v3304 = vadd.s32 %v3303, 127
        %v3305 = vshll.u32 %v3304, 23
        %v3306 = vor.u32 4788187, %v3305
        %v3307 = vand.u32 2147483647, %v3306
        %v3309 = vcvt.s32.f32 %v3302
        %v3310 = vmul.f32 %v3309, %v3307
        %v3311 = vxor.u32 %v3310, 2147483648
        %v3312 = vsel %vm3229, %v3311, %v3310
        %v3313 = vsub.s32 4, %v3289
        %v3314 = vsel %vm3229, %v3313, %v3289
        %v3315 = vsel %vm3228, %v2078, %v3312
        %v3316 = vsel %vm3228, 0, %v3314
        %v3317 = vcosq.f32.pop %v3315
        %v3318 = vsinq.f32.pop %v3315
        %vm3319 = vweird.f32 %v2078
        %v3320 = vadd.s32 %v3316, 3
        %v3321 = vand.u32 %v3320, 3
        %vm3322 = vcmp.lt.s32.totalorder %v3321, 2
        %vm3323 = vcmp.eq.s32.totalorder %v3321, 0
        %v3324 = vxor.u32 %v3318, 2147483648
        %v3325 = vsel %vm3323, %v3317, %v3324
        %vm3326 = vcmp.eq.s32.totalorder %v3321, 2
        %v3327 = vxor.u32 %v3317, 2147483648
        %v3328 = vsel %vm3326, %v3327, %v3318
        %v3329 = vsel %vm3322, %v3325, %v3328
        %v3330 = vsel %vm3319, nan, %v3329
        %v3331 = vand.u32 2147483647, %v2079
        %vm3332 = vcmp.le.f32.partialorder %v3331, 0.7853982
        %vm3333 = vcmp.lt.s32.totalorder %v2079, 0
        %v3334 = vand.u32 %v2079, 2139095040
        %v3335 = vshrl.u32 %v3334, 23
        %v3336 = vsub.s32 %v3335, 127
        %v3337 = vand.u32 2147483647, %v2079
        %v3338 = vand.u32 %v3337, 8388607
        %v3339 = vor.u32 %v3338, 8388608
        %v3340 = vsub.s32 0, %v3339
        %v3341 = vadd.s32 %v3336, 1
        %vm3342 = vcmp.gt.s32.totalorder %v3341, 0
        %v3343 = vsel %vm3342, %v3341, 0
        %v3344 = vshrl.u32 %v3343, 5
        %v3345 = vand.u32 %v3343, 31
        %v3346 = vsub.s32 32, %v3345
        %v3347 = vshrl.u32 683565275, %v3346
        %v3348 = vshll.u32 683565275, %v3345
        %v3349 = vshrl.u32 2475754826, %v3346
        %v3350 = vor.u32 %v3348, %v3349
        %v3351 = vshll.u32 2475754826, %v3345
        %v3352 = vshrl.u32 2131351028, %v3346
        %v3353 = vor.u32 %v3351, %v3352
        %v3354 = vshll.u32 2131351028, %v3345
        %v3355 = vshrl.u32 2102212464, %v3346
        %v3356 = vor.u32 %v3354, %v3355
        %v3357 = vshll.u32 2102212464, %v3345
        %v3358 = vshrl.u32 920167782, %v3346
        %v3359 = vor.u32 %v3357, %v3358
        %v3360 = vshll.u32 920167782, %v3345
        %v3361 = vshrl.u32 1326507024, %v3346
        %v3362 = vor.u32 %v3360, %v3361
        %vm3363 = vcmp.lt.s32.totalorder %v3344, 1
        %vm3364 = vcmp.lt.s32.totalorder %v3344, 2
        %vm3365 = vcmp.lt.s32.totalorder %v3344, 3
        %vm3366 = vcmp.lt.s32.totalorder %v3344, 4
        %v3367 = vsel %vm3363, %v3347, %v3350
        %v3368 = vsel %vm3366, %v3356, 2102212464
        %v3369 = vsel %vm3365, %v3353, %v3368
        %v3370 = vsel %vm3364, %v3367, %v3369
        %v3371 = vsel %vm3363, %v3350, %v3353
        %v3372 = vsel %vm3366, %v3359, 920167782
        %v3373 = vsel %vm3365, %v3356, %v3372
        %v3374 = vsel %vm3364, %v3371, %v3373
        %v3375 = vsel %vm3363, %v3353, %v3356
        %v3376 = vsel %vm3366, %v3362, 1326507024
        %v3377 = vsel %vm3365, %v3359, %v3376
        %v3378 = vsel %vm3364, %v3375, %v3377
        %v3379 = vshll.u32 %v3339, 8
        %v3380 = vmul.u32.u64.compose %v3379, %v3378
        %v3381 = vextract.low.u32 %v3380
        %v3382 = vextract.high.u32 %v3380
        %v3383 = vmul.u32.u64.compose %v3379, %v3374
        %v3384 = vextract.low.u32 %v3383
        %v3385 = vextract.high.u32 %v3383
        %v3386 = vmul.u32 %v3379, %v3370
        %v3387 = vadd.s32 %v3382, %v3384
        %vm3388 = vc.u32 %v3382, %v3384
        %v3389 = vadd.s32 %v3385, 1
        %v3390 = vsel %vm3388, %v3389, %v3385
        %v3391 = vadd.s32 %v3386, %v3390
        %v3392 = vadd.s32 %v3391, 536870912
        %v3393 = vshrl.u32 %v3392, 30
        %v3394 = vshll.u32 %v3393, 30
        %v3395 = vsub.s32 %v3391, %v3394
        %vm3396 = vcmp.lt.s32.totalorder %v3395, 0
        %v3397 = vsub.s32 0, %v3395
        %v3398 = vsel %vm3396, %v3397, %v3395
        %v3399 = vclz %v3398
        %v3400 = vsub.s32 %v3399, 2
        %vm3401 = vcmp.gt.s32.totalorder 0, %v3400
        %v3402 = vsel %vm3401, 0, %v3400
        %v3403 = vsub.s32 32, %v3402
        %v3404 = vshll.u32 %v3395, %v3402
        %v3405 = vshrl.u32 %v3387, %v3403
        %v3406 = vor.u32 %v3404, %v3405
        %v3407 = vsub.s32 4294967266, %v3402
        %v3408 = vadd.s32 %v3407, 127
        %v3409 = vshll.u32 %v3408, 23
        %v3410 = vor.u32 4788187, %v3409
        %v3411 = vand.u32 2147483647, %v3410
        %v3413 = vcvt.s32.f32 %v3406
        %v3414 = vmul.f32 %v3413, %v3411
        %v3415 = vxor.u32 %v3414, 2147483648
        %v3416 = vsel %vm3333, %v3415, %v3414
        %v3417 = vsub.s32 4, %v3393
        %v3418 = vsel %vm3333, %v3417, %v3393
        %v3419 = vsel %vm3332, %v2079, %v3416
        %v3420 = vsel %vm3332, 0, %v3418
        %v3421 = vcosq.f32.pop %v3419
        %v3422 = vsinq.f32.pop %v3419
        %vm3423 = vweird.f32 %v2079
        %v3424 = vadd.s32 %v3420, 3
        %v3425 = vand.u32 %v3424, 3
        %vm3426 = vcmp.lt.s32.totalorder %v3425, 2
        %vm3427 = vcmp.eq.s32.totalorder %v3425, 0
        %v3428 = vxor.u32 %v3422, 2147483648
        %v3429 = vsel %vm3427, %v3421, %v3428
        %vm3430 = vcmp.eq.s32.totalorder %v3425, 2
        %v3431 = vxor.u32 %v3421, 2147483648
        %v3432 = vsel %vm3430, %v3431, %v3422
        %v3433 = vsel %vm3426, %v3429, %v3432
        %v3434 = vsel %vm3423, nan, %v3433
        %v3435 = vand.u32 2147483647, %v2080
        %vm3436 = vcmp.le.f32.partialorder %v3435, 0.7853982
        %vm3437 = vcmp.lt.s32.totalorder %v2080, 0
        %v3438 = vand.u32 %v2080, 2139095040
        %v3439 = vshrl.u32 %v3438, 23
        %v3440 = vsub.s32 %v3439, 127
        %v3441 = vand.u32 2147483647, %v2080
        %v3442 = vand.u32 %v3441, 8388607
        %v3443 = vor.u32 %v3442, 8388608
        %v3444 = vsub.s32 0, %v3443
        %v3445 = vadd.s32 %v3440, 1
        %vm3446 = vcmp.gt.s32.totalorder %v3445, 0
        %v3447 = vsel %vm3446, %v3445, 0
        %v3448 = vshrl.u32 %v3447, 5
        %v3449 = vand.u32 %v3447, 31
        %v3450 = vsub.s32 32, %v3449
        %v3451 = vshrl.u32 683565275, %v3450
        %v3452 = vshll.u32 683565275, %v3449
        %v3453 = vshrl.u32 2475754826, %v3450
        %v3454 = vor.u32 %v3452, %v3453
        %v3455 = vshll.u32 2475754826, %v3449
        %v3456 = vshrl.u32 2131351028, %v3450
        %v3457 = vor.u32 %v3455, %v3456
        %v3458 = vshll.u32 2131351028, %v3449
        %v3459 = vshrl.u32 2102212464, %v3450
        %v3460 = vor.u32 %v3458, %v3459
        %v3461 = vshll.u32 2102212464, %v3449
        %v3462 = vshrl.u32 920167782, %v3450
        %v3463 = vor.u32 %v3461, %v3462
        %v3464 = vshll.u32 920167782, %v3449
        %v3465 = vshrl.u32 1326507024, %v3450
        %v3466 = vor.u32 %v3464, %v3465
        %vm3467 = vcmp.lt.s32.totalorder %v3448, 1
        %vm3468 = vcmp.lt.s32.totalorder %v3448, 2
        %vm3469 = vcmp.lt.s32.totalorder %v3448, 3
        %vm3470 = vcmp.lt.s32.totalorder %v3448, 4
        %v3471 = vsel %vm3467, %v3451, %v3454
        %v3472 = vsel %vm3470, %v3460, 2102212464
        %v3473 = vsel %vm3469, %v3457, %v3472
        %v3474 = vsel %vm3468, %v3471, %v3473
        %v3475 = vsel %vm3467, %v3454, %v3457
        %v3476 = vsel %vm3470, %v3463, 920167782
        %v3477 = vsel %vm3469, %v3460, %v3476
        %v3478 = vsel %vm3468, %v3475, %v3477
        %v3479 = vsel %vm3467, %v3457, %v3460
        %v3480 = vsel %vm3470, %v3466, 1326507024
        %v3481 = vsel %vm3469, %v3463, %v3480
        %v3482 = vsel %vm3468, %v3479, %v3481
        %v3483 = vshll.u32 %v3443, 8
        %v3484 = vmul.u32.u64.compose %v3483, %v3482
        %v3485 = vextract.low.u32 %v3484
        %v3486 = vextract.high.u32 %v3484
        %v3487 = vmul.u32.u64.compose %v3483, %v3478
        %v3488 = vextract.low.u32 %v3487
        %v3489 = vextract.high.u32 %v3487
        %v3490 = vmul.u32 %v3483, %v3474
        %v3491 = vadd.s32 %v3486, %v3488
        %vm3492 = vc.u32 %v3486, %v3488
        %v3493 = vadd.s32 %v3489, 1
        %v3494 = vsel %vm3492, %v3493, %v3489
        %v3495 = vadd.s32 %v3490, %v3494
        %v3496 = vadd.s32 %v3495, 536870912
        %v3497 = vshrl.u32 %v3496, 30
        %v3498 = vshll.u32 %v3497, 30
        %v3499 = vsub.s32 %v3495, %v3498
        %vm3500 = vcmp.lt.s32.totalorder %v3499, 0
        %v3501 = vsub.s32 0, %v3499
        %v3502 = vsel %vm3500, %v3501, %v3499
        %v3503 = vclz %v3502
        %v3504 = vsub.s32 %v3503, 2
        %vm3505 = vcmp.gt.s32.totalorder 0, %v3504
        %v3506 = vsel %vm3505, 0, %v3504
        %v3507 = vsub.s32 32, %v3506
        %v3508 = vshll.u32 %v3499, %v3506
        %v3509 = vshrl.u32 %v3491, %v3507
        %v3510 = vor.u32 %v3508, %v3509
        %v3511 = vsub.s32 4294967266, %v3506
        %v3512 = vadd.s32 %v3511, 127
        %v3513 = vshll.u32 %v3512, 23
        %v3514 = vor.u32 4788187, %v3513
        %v3515 = vand.u32 2147483647, %v3514
        %v3517 = vcvt.s32.f32 %v3510
        %v3518 = vmul.f32 %v3517, %v3515
        %v3519 = vxor.u32 %v3518, 2147483648
        %v3520 = vsel %vm3437, %v3519, %v3518
        %v3521 = vsub.s32 4, %v3497
        %v3522 = vsel %vm3437, %v3521, %v3497
        %v3523 = vsel %vm3436, %v2080, %v3520
        %v3524 = vsel %vm3436, 0, %v3522
        %v3525 = vcosq.f32.pop %v3523
        %v3526 = vsinq.f32.pop %v3523
        %vm3527 = vweird.f32 %v2080
        %v3528 = vadd.s32 %v3524, 3
        %v3529 = vand.u32 %v3528, 3
        %vm3530 = vcmp.lt.s32.totalorder %v3529, 2
        %vm3531 = vcmp.eq.s32.totalorder %v3529, 0
        %v3532 = vxor.u32 %v3526, 2147483648
        %v3533 = vsel %vm3531, %v3525, %v3532
        %vm3534 = vcmp.eq.s32.totalorder %v3529, 2
        %v3535 = vxor.u32 %v3525, 2147483648
        %v3536 = vsel %vm3534, %v3535, %v3526
        %v3537 = vsel %vm3530, %v3533, %v3536
        %v3538 = vsel %vm3527, nan, %v3537
        %v3539 = vand.u32 2147483647, %v2081
        %vm3540 = vcmp.le.f32.partialorder %v3539, 0.7853982
        %vm3541 = vcmp.lt.s32.totalorder %v2081, 0
        %v3542 = vand.u32 %v2081, 2139095040
        %v3543 = vshrl.u32 %v3542, 23
        %v3544 = vsub.s32 %v3543, 127
        %v3545 = vand.u32 2147483647, %v2081
        %v3546 = vand.u32 %v3545, 8388607
        %v3547 = vor.u32 %v3546, 8388608
        %v3548 = vsub.s32 0, %v3547
        %v3549 = vadd.s32 %v3544, 1
        %vm3550 = vcmp.gt.s32.totalorder %v3549, 0
        %v3551 = vsel %vm3550, %v3549, 0
        %v3552 = vshrl.u32 %v3551, 5
        %v3553 = vand.u32 %v3551, 31
        %v3554 = vsub.s32 32, %v3553
        %v3555 = vshrl.u32 683565275, %v3554
        %v3556 = vshll.u32 683565275, %v3553
        %v3557 = vshrl.u32 2475754826, %v3554
        %v3558 = vor.u32 %v3556, %v3557
        %v3559 = vshll.u32 2475754826, %v3553
        %v3560 = vshrl.u32 2131351028, %v3554
        %v3561 = vor.u32 %v3559, %v3560
        %v3562 = vshll.u32 2131351028, %v3553
        %v3563 = vshrl.u32 2102212464, %v3554
        %v3564 = vor.u32 %v3562, %v3563
        %v3565 = vshll.u32 2102212464, %v3553
        %v3566 = vshrl.u32 920167782, %v3554
        %v3567 = vor.u32 %v3565, %v3566
        %v3568 = vshll.u32 920167782, %v3553
        %v3569 = vshrl.u32 1326507024, %v3554
        %v3570 = vor.u32 %v3568, %v3569
        %vm3571 = vcmp.lt.s32.totalorder %v3552, 1
        %vm3572 = vcmp.lt.s32.totalorder %v3552, 2
        %vm3573 = vcmp.lt.s32.totalorder %v3552, 3
        %vm3574 = vcmp.lt.s32.totalorder %v3552, 4
        %v3575 = vsel %vm3571, %v3555, %v3558
        %v3576 = vsel %vm3574, %v3564, 2102212464
        %v3577 = vsel %vm3573, %v3561, %v3576
        %v3578 = vsel %vm3572, %v3575, %v3577
        %v3579 = vsel %vm3571, %v3558, %v3561
        %v3580 = vsel %vm3574, %v3567, 920167782
        %v3581 = vsel %vm3573, %v3564, %v3580
        %v3582 = vsel %vm3572, %v3579, %v3581
        %v3583 = vsel %vm3571, %v3561, %v3564
        %v3584 = vsel %vm3574, %v3570, 1326507024
        %v3585 = vsel %vm3573, %v3567, %v3584
        %v3586 = vsel %vm3572, %v3583, %v3585
        %v3587 = vshll.u32 %v3547, 8
        %v3588 = vmul.u32.u64.compose %v3587, %v3586
        %v3589 = vextract.low.u32 %v3588
        %v3590 = vextract.high.u32 %v3588
        %v3591 = vmul.u32.u64.compose %v3587, %v3582
        %v3592 = vextract.low.u32 %v3591
        %v3593 = vextract.high.u32 %v3591
        %v3594 = vmul.u32 %v3587, %v3578
        %v3595 = vadd.s32 %v3590, %v3592
        %vm3596 = vc.u32 %v3590, %v3592
        %v3597 = vadd.s32 %v3593, 1
        %v3598 = vsel %vm3596, %v3597, %v3593
        %v3599 = vadd.s32 %v3594, %v3598
        %v3600 = vadd.s32 %v3599, 536870912
        %v3601 = vshrl.u32 %v3600, 30
        %v3602 = vshll.u32 %v3601, 30
        %v3603 = vsub.s32 %v3599, %v3602
        %vm3604 = vcmp.lt.s32.totalorder %v3603, 0
        %v3605 = vsub.s32 0, %v3603
        %v3606 = vsel %vm3604, %v3605, %v3603
        %v3607 = vclz %v3606
        %v3608 = vsub.s32 %v3607, 2
        %vm3609 = vcmp.gt.s32.totalorder 0, %v3608
        %v3610 = vsel %vm3609, 0, %v3608
        %v3611 = vsub.s32 32, %v3610
        %v3612 = vshll.u32 %v3603, %v3610
        %v3613 = vshrl.u32 %v3595, %v3611
        %v3614 = vor.u32 %v3612, %v3613
        %v3615 = vsub.s32 4294967266, %v3610
        %v3616 = vadd.s32 %v3615, 127
        %v3617 = vshll.u32 %v3616, 23
        %v3618 = vor.u32 4788187, %v3617
        %v3619 = vand.u32 2147483647, %v3618
        %v3621 = vcvt.s32.f32 %v3614
        %v3622 = vmul.f32 %v3621, %v3619
        %v3623 = vxor.u32 %v3622, 2147483648
        %v3624 = vsel %vm3541, %v3623, %v3622
        %v3625 = vsub.s32 4, %v3601
        %v3626 = vsel %vm3541, %v3625, %v3601
        %v3627 = vsel %vm3540, %v2081, %v3624
        %v3628 = vsel %vm3540, 0, %v3626
        %v3629 = vcosq.f32.pop %v3627
        %v3630 = vsinq.f32.pop %v3627
        %vm3631 = vweird.f32 %v2081
        %v3632 = vadd.s32 %v3628, 3
        %v3633 = vand.u32 %v3632, 3
        %vm3634 = vcmp.lt.s32.totalorder %v3633, 2
        %vm3635 = vcmp.eq.s32.totalorder %v3633, 0
        %v3636 = vxor.u32 %v3630, 2147483648
        %v3637 = vsel %vm3635, %v3629, %v3636
        %vm3638 = vcmp.eq.s32.totalorder %v3633, 2
        %v3639 = vxor.u32 %v3629, 2147483648
        %v3640 = vsel %vm3638, %v3639, %v3630
        %v3641 = vsel %vm3634, %v3637, %v3640
        %v3642 = vsel %vm3631, nan, %v3641
        %v3643 = vand.u32 2147483647, %v2082
        %vm3644 = vcmp.le.f32.partialorder %v3643, 0.7853982
        %vm3645 = vcmp.lt.s32.totalorder %v2082, 0
        %v3646 = vand.u32 %v2082, 2139095040
        %v3647 = vshrl.u32 %v3646, 23
        %v3648 = vsub.s32 %v3647, 127
        %v3649 = vand.u32 2147483647, %v2082
        %v3650 = vand.u32 %v3649, 8388607
        %v3651 = vor.u32 %v3650, 8388608
        %v3652 = vsub.s32 0, %v3651
        %v3653 = vadd.s32 %v3648, 1
        %vm3654 = vcmp.gt.s32.totalorder %v3653, 0
        %v3655 = vsel %vm3654, %v3653, 0
        %v3656 = vshrl.u32 %v3655, 5
        %v3657 = vand.u32 %v3655, 31
        %v3658 = vsub.s32 32, %v3657
        %v3659 = vshrl.u32 683565275, %v3658
        %v3660 = vshll.u32 683565275, %v3657
        %v3661 = vshrl.u32 2475754826, %v3658
        %v3662 = vor.u32 %v3660, %v3661
        %v3663 = vshll.u32 2475754826, %v3657
        %v3664 = vshrl.u32 2131351028, %v3658
        %v3665 = vor.u32 %v3663, %v3664
        %v3666 = vshll.u32 2131351028, %v3657
        %v3667 = vshrl.u32 2102212464, %v3658
        %v3668 = vor.u32 %v3666, %v3667
        %v3669 = vshll.u32 2102212464, %v3657
        %v3670 = vshrl.u32 920167782, %v3658
        %v3671 = vor.u32 %v3669, %v3670
        %v3672 = vshll.u32 920167782, %v3657
        %v3673 = vshrl.u32 1326507024, %v3658
        %v3674 = vor.u32 %v3672, %v3673
        %vm3675 = vcmp.lt.s32.totalorder %v3656, 1
        %vm3676 = vcmp.lt.s32.totalorder %v3656, 2
        %vm3677 = vcmp.lt.s32.totalorder %v3656, 3
        %vm3678 = vcmp.lt.s32.totalorder %v3656, 4
        %v3679 = vsel %vm3675, %v3659, %v3662
        %v3680 = vsel %vm3678, %v3668, 2102212464
        %v3681 = vsel %vm3677, %v3665, %v3680
        %v3682 = vsel %vm3676, %v3679, %v3681
        %v3683 = vsel %vm3675, %v3662, %v3665
        %v3684 = vsel %vm3678, %v3671, 920167782
        %v3685 = vsel %vm3677, %v3668, %v3684
        %v3686 = vsel %vm3676, %v3683, %v3685
        %v3687 = vsel %vm3675, %v3665, %v3668
        %v3688 = vsel %vm3678, %v3674, 1326507024
        %v3689 = vsel %vm3677, %v3671, %v3688
        %v3690 = vsel %vm3676, %v3687, %v3689
        %v3691 = vshll.u32 %v3651, 8
        %v3692 = vmul.u32.u64.compose %v3691, %v3690
        %v3693 = vextract.low.u32 %v3692
        %v3694 = vextract.high.u32 %v3692
        %v3695 = vmul.u32.u64.compose %v3691, %v3686
        %v3696 = vextract.low.u32 %v3695
        %v3697 = vextract.high.u32 %v3695
        %v3698 = vmul.u32 %v3691, %v3682
        %v3699 = vadd.s32 %v3694, %v3696
        %vm3700 = vc.u32 %v3694, %v3696
        %v3701 = vadd.s32 %v3697, 1
        %v3702 = vsel %vm3700, %v3701, %v3697
        %v3703 = vadd.s32 %v3698, %v3702
        %v3704 = vadd.s32 %v3703, 536870912
        %v3705 = vshrl.u32 %v3704, 30
        %v3706 = vshll.u32 %v3705, 30
        %v3707 = vsub.s32 %v3703, %v3706
        %vm3708 = vcmp.lt.s32.totalorder %v3707, 0
        %v3709 = vsub.s32 0, %v3707
        %v3710 = vsel %vm3708, %v3709, %v3707
        %v3711 = vclz %v3710
        %v3712 = vsub.s32 %v3711, 2
        %vm3713 = vcmp.gt.s32.totalorder 0, %v3712
        %v3714 = vsel %vm3713, 0, %v3712
        %v3715 = vsub.s32 32, %v3714
        %v3716 = vshll.u32 %v3707, %v3714
        %v3717 = vshrl.u32 %v3699, %v3715
        %v3718 = vor.u32 %v3716, %v3717
        %v3719 = vsub.s32 4294967266, %v3714
        %v3720 = vadd.s32 %v3719, 127
        %v3721 = vshll.u32 %v3720, 23
        %v3722 = vor.u32 4788187, %v3721
        %v3723 = vand.u32 2147483647, %v3722
        %v3725 = vcvt.s32.f32 %v3718
        %v3726 = vmul.f32 %v3725, %v3723
        %v3727 = vxor.u32 %v3726, 2147483648
        %v3728 = vsel %vm3645, %v3727, %v3726
        %v3729 = vsub.s32 4, %v3705
        %v3730 = vsel %vm3645, %v3729, %v3705
        %v3731 = vsel %vm3644, %v2082, %v3728
        %v3732 = vsel %vm3644, 0, %v3730
        %v3733 = vcosq.f32.pop %v3731
        %v3734 = vsinq.f32.pop %v3731
        %vm3735 = vweird.f32 %v2082
        %v3736 = vadd.s32 %v3732, 3
        %v3737 = vand.u32 %v3736, 3
        %vm3738 = vcmp.lt.s32.totalorder %v3737, 2
        %vm3739 = vcmp.eq.s32.totalorder %v3737, 0
        %v3740 = vxor.u32 %v3734, 2147483648
        %v3741 = vsel %vm3739, %v3733, %v3740
        %vm3742 = vcmp.eq.s32.totalorder %v3737, 2
        %v3743 = vxor.u32 %v3733, 2147483648
        %v3744 = vsel %vm3742, %v3743, %v3734
        %v3745 = vsel %vm3738, %v3741, %v3744
        %v3746 = vsel %vm3735, nan, %v3745
        %v3747 = vand.u32 2147483647, %v2067
        %vm3748 = vcmp.le.f32.partialorder %v3747, 0.7853982
        %vm3749 = vcmp.lt.s32.totalorder %v2067, 0
        %v3750 = vand.u32 %v2067, 2139095040
        %v3751 = vshrl.u32 %v3750, 23
        %v3752 = vsub.s32 %v3751, 127
        %v3753 = vand.u32 2147483647, %v2067
        %v3754 = vand.u32 %v3753, 8388607
        %v3755 = vor.u32 %v3754, 8388608
        %v3756 = vsub.s32 0, %v3755
        %v3757 = vadd.s32 %v3752, 1
        %vm3758 = vcmp.gt.s32.totalorder %v3757, 0
        %v3759 = vsel %vm3758, %v3757, 0
        %v3760 = vshrl.u32 %v3759, 5
        %v3761 = vand.u32 %v3759, 31
        %v3762 = vsub.s32 32, %v3761
        %v3763 = vshrl.u32 683565275, %v3762
        %v3764 = vshll.u32 683565275, %v3761
        %v3765 = vshrl.u32 2475754826, %v3762
        %v3766 = vor.u32 %v3764, %v3765
        %v3767 = vshll.u32 2475754826, %v3761
        %v3768 = vshrl.u32 2131351028, %v3762
        %v3769 = vor.u32 %v3767, %v3768
        %v3770 = vshll.u32 2131351028, %v3761
        %v3771 = vshrl.u32 2102212464, %v3762
        %v3772 = vor.u32 %v3770, %v3771
        %v3773 = vshll.u32 2102212464, %v3761
        %v3774 = vshrl.u32 920167782, %v3762
        %v3775 = vor.u32 %v3773, %v3774
        %v3776 = vshll.u32 920167782, %v3761
        %v3777 = vshrl.u32 1326507024, %v3762
        %v3778 = vor.u32 %v3776, %v3777
        %vm3779 = vcmp.lt.s32.totalorder %v3760, 1
        %vm3780 = vcmp.lt.s32.totalorder %v3760, 2
        %vm3781 = vcmp.lt.s32.totalorder %v3760, 3
        %vm3782 = vcmp.lt.s32.totalorder %v3760, 4
        %v3783 = vsel %vm3779, %v3763, %v3766
        %v3784 = vsel %vm3782, %v3772, 2102212464
        %v3785 = vsel %vm3781, %v3769, %v3784
        %v3786 = vsel %vm3780, %v3783, %v3785
        %v3787 = vsel %vm3779, %v3766, %v3769
        %v3788 = vsel %vm3782, %v3775, 920167782
        %v3789 = vsel %vm3781, %v3772, %v3788
        %v3790 = vsel %vm3780, %v3787, %v3789
        %v3791 = vsel %vm3779, %v3769, %v3772
        %v3792 = vsel %vm3782, %v3778, 1326507024
        %v3793 = vsel %vm3781, %v3775, %v3792
        %v3794 = vsel %vm3780, %v3791, %v3793
        %v3795 = vshll.u32 %v3755, 8
        %v3796 = vmul.u32.u64.compose %v3795, %v3794
        %v3797 = vextract.low.u32 %v3796
        %v3798 = vextract.high.u32 %v3796
        %v3799 = vmul.u32.u64.compose %v3795, %v3790
        %v3800 = vextract.low.u32 %v3799
        %v3801 = vextract.high.u32 %v3799
        %v3802 = vmul.u32 %v3795, %v3786
        %v3803 = vadd.s32 %v3798, %v3800
        %vm3804 = vc.u32 %v3798, %v3800
        %v3805 = vadd.s32 %v3801, 1
        %v3806 = vsel %vm3804, %v3805, %v3801
        %v3807 = vadd.s32 %v3802, %v3806
        %v3808 = vadd.s32 %v3807, 536870912
        %v3809 = vshrl.u32 %v3808, 30
        %v3810 = vshll.u32 %v3809, 30
        %v3811 = vsub.s32 %v3807, %v3810
        %vm3812 = vcmp.lt.s32.totalorder %v3811, 0
        %v3813 = vsub.s32 0, %v3811
        %v3814 = vsel %vm3812, %v3813, %v3811
        %v3815 = vclz %v3814
        %v3816 = vsub.s32 %v3815, 2
        %vm3817 = vcmp.gt.s32.totalorder 0, %v3816
        %v3818 = vsel %vm3817, 0, %v3816
        %v3819 = vsub.s32 32, %v3818
        %v3820 = vshll.u32 %v3811, %v3818
        %v3821 = vshrl.u32 %v3803, %v3819
        %v3822 = vor.u32 %v3820, %v3821
        %v3823 = vsub.s32 4294967266, %v3818
        %v3824 = vadd.s32 %v3823, 127
        %v3825 = vshll.u32 %v3824, 23
        %v3826 = vor.u32 4788187, %v3825
        %v3827 = vand.u32 2147483647, %v3826
        %v3829 = vcvt.s32.f32 %v3822
        %v3830 = vmul.f32 %v3829, %v3827
        %v3831 = vxor.u32 %v3830, 2147483648
        %v3832 = vsel %vm3749, %v3831, %v3830
        %v3833 = vsub.s32 4, %v3809
        %v3834 = vsel %vm3749, %v3833, %v3809
        %v3835 = vsel %vm3748, %v2067, %v3832
        %v3836 = vsel %vm3748, 0, %v3834
        %v3837 = vcosq.f32.pop %v3835
        %v3838 = vsinq.f32.pop %v3835
        %vm3839 = vweird.f32 %v2067
        %v3840 = vand.u32 %v3836, 3
        %vm3841 = vcmp.lt.s32.totalorder %v3840, 2
        %vm3842 = vcmp.eq.s32.totalorder %v3840, 0
        %v3843 = vxor.u32 %v3838, 2147483648
        %v3844 = vsel %vm3842, %v3837, %v3843
        %vm3845 = vcmp.eq.s32.totalorder %v3840, 2
        %v3846 = vxor.u32 %v3837, 2147483648
        %v3847 = vsel %vm3845, %v3846, %v3838
        %v3848 = vsel %vm3841, %v3844, %v3847
        %v3849 = vsel %vm3839, nan, %v3848
        %v3850 = vand.u32 2147483647, %v2068
        %vm3851 = vcmp.le.f32.partialorder %v3850, 0.7853982
        %vm3852 = vcmp.lt.s32.totalorder %v2068, 0
        %v3853 = vand.u32 %v2068, 2139095040
        %v3854 = vshrl.u32 %v3853, 23
        %v3855 = vsub.s32 %v3854, 127
        %v3856 = vand.u32 2147483647, %v2068
        %v3857 = vand.u32 %v3856, 8388607
        %v3858 = vor.u32 %v3857, 8388608
        %v3859 = vsub.s32 0, %v3858
        %v3860 = vadd.s32 %v3855, 1
        %vm3861 = vcmp.gt.s32.totalorder %v3860, 0
        %v3862 = vsel %vm3861, %v3860, 0
        %v3863 = vshrl.u32 %v3862, 5
        %v3864 = vand.u32 %v3862, 31
        %v3865 = vsub.s32 32, %v3864
        %v3866 = vshrl.u32 683565275, %v3865
        %v3867 = vshll.u32 683565275, %v3864
        %v3868 = vshrl.u32 2475754826, %v3865
        %v3869 = vor.u32 %v3867, %v3868
        %v3870 = vshll.u32 2475754826, %v3864
        %v3871 = vshrl.u32 2131351028, %v3865
        %v3872 = vor.u32 %v3870, %v3871
        %v3873 = vshll.u32 2131351028, %v3864
        %v3874 = vshrl.u32 2102212464, %v3865
        %v3875 = vor.u32 %v3873, %v3874
        %v3876 = vshll.u32 2102212464, %v3864
        %v3877 = vshrl.u32 920167782, %v3865
        %v3878 = vor.u32 %v3876, %v3877
        %v3879 = vshll.u32 920167782, %v3864
        %v3880 = vshrl.u32 1326507024, %v3865
        %v3881 = vor.u32 %v3879, %v3880
        %vm3882 = vcmp.lt.s32.totalorder %v3863, 1
        %vm3883 = vcmp.lt.s32.totalorder %v3863, 2
        %vm3884 = vcmp.lt.s32.totalorder %v3863, 3
        %vm3885 = vcmp.lt.s32.totalorder %v3863, 4
        %v3886 = vsel %vm3882, %v3866, %v3869
        %v3887 = vsel %vm3885, %v3875, 2102212464
        %v3888 = vsel %vm3884, %v3872, %v3887
        %v3889 = vsel %vm3883, %v3886, %v3888
        %v3890 = vsel %vm3882, %v3869, %v3872
        %v3891 = vsel %vm3885, %v3878, 920167782
        %v3892 = vsel %vm3884, %v3875, %v3891
        %v3893 = vsel %vm3883, %v3890, %v3892
        %v3894 = vsel %vm3882, %v3872, %v3875
        %v3895 = vsel %vm3885, %v3881, 1326507024
        %v3896 = vsel %vm3884, %v3878, %v3895
        %v3897 = vsel %vm3883, %v3894, %v3896
        %v3898 = vshll.u32 %v3858, 8
        %v3899 = vmul.u32.u64.compose %v3898, %v3897
        %v3900 = vextract.low.u32 %v3899
        %v3901 = vextract.high.u32 %v3899
        %v3902 = vmul.u32.u64.compose %v3898, %v3893
        %v3903 = vextract.low.u32 %v3902
        %v3904 = vextract.high.u32 %v3902
        %v3905 = vmul.u32 %v3898, %v3889
        %v3906 = vadd.s32 %v3901, %v3903
        %vm3907 = vc.u32 %v3901, %v3903
        %v3908 = vadd.s32 %v3904, 1
        %v3909 = vsel %vm3907, %v3908, %v3904
        %v3910 = vadd.s32 %v3905, %v3909
        %v3911 = vadd.s32 %v3910, 536870912
        %v3912 = vshrl.u32 %v3911, 30
        %v3913 = vshll.u32 %v3912, 30
        %v3914 = vsub.s32 %v3910, %v3913
        %vm3915 = vcmp.lt.s32.totalorder %v3914, 0
        %v3916 = vsub.s32 0, %v3914
        %v3917 = vsel %vm3915, %v3916, %v3914
        %v3918 = vclz %v3917
        %v3919 = vsub.s32 %v3918, 2
        %vm3920 = vcmp.gt.s32.totalorder 0, %v3919
        %v3921 = vsel %vm3920, 0, %v3919
        %v3922 = vsub.s32 32, %v3921
        %v3923 = vshll.u32 %v3914, %v3921
        %v3924 = vshrl.u32 %v3906, %v3922
        %v3925 = vor.u32 %v3923, %v3924
        %v3926 = vsub.s32 4294967266, %v3921
        %v3927 = vadd.s32 %v3926, 127
        %v3928 = vshll.u32 %v3927, 23
        %v3929 = vor.u32 4788187, %v3928
        %v3930 = vand.u32 2147483647, %v3929
        %v3932 = vcvt.s32.f32 %v3925
        %v3933 = vmul.f32 %v3932, %v3930
        %v3934 = vxor.u32 %v3933, 2147483648
        %v3935 = vsel %vm3852, %v3934, %v3933
        %v3936 = vsub.s32 4, %v3912
        %v3937 = vsel %vm3852, %v3936, %v3912
        %v3938 = vsel %vm3851, %v2068, %v3935
        %v3939 = vsel %vm3851, 0, %v3937
        %v3940 = vcosq.f32.pop %v3938
        %v3941 = vsinq.f32.pop %v3938
        %vm3942 = vweird.f32 %v2068
        %v3943 = vand.u32 %v3939, 3
        %vm3944 = vcmp.lt.s32.totalorder %v3943, 2
        %vm3945 = vcmp.eq.s32.totalorder %v3943, 0
        %v3946 = vxor.u32 %v3941, 2147483648
        %v3947 = vsel %vm3945, %v3940, %v3946
        %vm3948 = vcmp.eq.s32.totalorder %v3943, 2
        %v3949 = vxor.u32 %v3940, 2147483648
        %v3950 = vsel %vm3948, %v3949, %v3941
        %v3951 = vsel %vm3944, %v3947, %v3950
        %v3952 = vsel %vm3942, nan, %v3951
        %v3953 = vand.u32 2147483647, %v2069
        %vm3954 = vcmp.le.f32.partialorder %v3953, 0.7853982
        %vm3955 = vcmp.lt.s32.totalorder %v2069, 0
        %v3956 = vand.u32 %v2069, 2139095040
        %v3957 = vshrl.u32 %v3956, 23
        %v3958 = vsub.s32 %v3957, 127
        %v3959 = vand.u32 2147483647, %v2069
        %v3960 = vand.u32 %v3959, 8388607
        %v3961 = vor.u32 %v3960, 8388608
        %v3962 = vsub.s32 0, %v3961
        %v3963 = vadd.s32 %v3958, 1
        %vm3964 = vcmp.gt.s32.totalorder %v3963, 0
        %v3965 = vsel %vm3964, %v3963, 0
        %v3966 = vshrl.u32 %v3965, 5
        %v3967 = vand.u32 %v3965, 31
        %v3968 = vsub.s32 32, %v3967
        %v3969 = vshrl.u32 683565275, %v3968
        %v3970 = vshll.u32 683565275, %v3967
        %v3971 = vshrl.u32 2475754826, %v3968
        %v3972 = vor.u32 %v3970, %v3971
        %v3973 = vshll.u32 2475754826, %v3967
        %v3974 = vshrl.u32 2131351028, %v3968
        %v3975 = vor.u32 %v3973, %v3974
        %v3976 = vshll.u32 2131351028, %v3967
        %v3977 = vshrl.u32 2102212464, %v3968
        %v3978 = vor.u32 %v3976, %v3977
        %v3979 = vshll.u32 2102212464, %v3967
        %v3980 = vshrl.u32 920167782, %v3968
        %v3981 = vor.u32 %v3979, %v3980
        %v3982 = vshll.u32 920167782, %v3967
        %v3983 = vshrl.u32 1326507024, %v3968
        %v3984 = vor.u32 %v3982, %v3983
        %vm3985 = vcmp.lt.s32.totalorder %v3966, 1
        %vm3986 = vcmp.lt.s32.totalorder %v3966, 2
        %vm3987 = vcmp.lt.s32.totalorder %v3966, 3
        %vm3988 = vcmp.lt.s32.totalorder %v3966, 4
        %v3989 = vsel %vm3985, %v3969, %v3972
        %v3990 = vsel %vm3988, %v3978, 2102212464
        %v3991 = vsel %vm3987, %v3975, %v3990
        %v3992 = vsel %vm3986, %v3989, %v3991
        %v3993 = vsel %vm3985, %v3972, %v3975
        %v3994 = vsel %vm3988, %v3981, 920167782
        %v3995 = vsel %vm3987, %v3978, %v3994
        %v3996 = vsel %vm3986, %v3993, %v3995
        %v3997 = vsel %vm3985, %v3975, %v3978
        %v3998 = vsel %vm3988, %v3984, 1326507024
        %v3999 = vsel %vm3987, %v3981, %v3998
        %v4000 = vsel %vm3986, %v3997, %v3999
        %v4001 = vshll.u32 %v3961, 8
        %v4002 = vmul.u32.u64.compose %v4001, %v4000
        %v4003 = vextract.low.u32 %v4002
        %v4004 = vextract.high.u32 %v4002
        %v4005 = vmul.u32.u64.compose %v4001, %v3996
        %v4006 = vextract.low.u32 %v4005
        %v4007 = vextract.high.u32 %v4005
        %v4008 = vmul.u32 %v4001, %v3992
        %v4009 = vadd.s32 %v4004, %v4006
        %vm4010 = vc.u32 %v4004, %v4006
        %v4011 = vadd.s32 %v4007, 1
        %v4012 = vsel %vm4010, %v4011, %v4007
        %v4013 = vadd.s32 %v4008, %v4012
        %v4014 = vadd.s32 %v4013, 536870912
        %v4015 = vshrl.u32 %v4014, 30
        %v4016 = vshll.u32 %v4015, 30
        %v4017 = vsub.s32 %v4013, %v4016
        %vm4018 = vcmp.lt.s32.totalorder %v4017, 0
        %v4019 = vsub.s32 0, %v4017
        %v4020 = vsel %vm4018, %v4019, %v4017
        %v4021 = vclz %v4020
        %v4022 = vsub.s32 %v4021, 2
        %vm4023 = vcmp.gt.s32.totalorder 0, %v4022
        %v4024 = vsel %vm4023, 0, %v4022
        %v4025 = vsub.s32 32, %v4024
        %v4026 = vshll.u32 %v4017, %v4024
        %v4027 = vshrl.u32 %v4009, %v4025
        %v4028 = vor.u32 %v4026, %v4027
        %v4029 = vsub.s32 4294967266, %v4024
        %v4030 = vadd.s32 %v4029, 127
        %v4031 = vshll.u32 %v4030, 23
        %v4032 = vor.u32 4788187, %v4031
        %v4033 = vand.u32 2147483647, %v4032
        %v4035 = vcvt.s32.f32 %v4028
        %v4036 = vmul.f32 %v4035, %v4033
        %v4037 = vxor.u32 %v4036, 2147483648
        %v4038 = vsel %vm3955, %v4037, %v4036
        %v4039 = vsub.s32 4, %v4015
        %v4040 = vsel %vm3955, %v4039, %v4015
        %v4041 = vsel %vm3954, %v2069, %v4038
        %v4042 = vsel %vm3954, 0, %v4040
        %v4043 = vcosq.f32.pop %v4041
        %v4044 = vsinq.f32.pop %v4041
        %vm4045 = vweird.f32 %v2069
        %v4046 = vand.u32 %v4042, 3
        %vm4047 = vcmp.lt.s32.totalorder %v4046, 2
        %vm4048 = vcmp.eq.s32.totalorder %v4046, 0
        %v4049 = vxor.u32 %v4044, 2147483648
        %v4050 = vsel %vm4048, %v4043, %v4049
        %vm4051 = vcmp.eq.s32.totalorder %v4046, 2
        %v4052 = vxor.u32 %v4043, 2147483648
        %v4053 = vsel %vm4051, %v4052, %v4044
        %v4054 = vsel %vm4047, %v4050, %v4053
        %v4055 = vsel %vm4045, nan, %v4054
        %v4056 = vand.u32 2147483647, %v2070
        %vm4057 = vcmp.le.f32.partialorder %v4056, 0.7853982
        %vm4058 = vcmp.lt.s32.totalorder %v2070, 0
        %v4059 = vand.u32 %v2070, 2139095040
        %v4060 = vshrl.u32 %v4059, 23
        %v4061 = vsub.s32 %v4060, 127
        %v4062 = vand.u32 2147483647, %v2070
        %v4063 = vand.u32 %v4062, 8388607
        %v4064 = vor.u32 %v4063, 8388608
        %v4065 = vsub.s32 0, %v4064
        %v4066 = vadd.s32 %v4061, 1
        %vm4067 = vcmp.gt.s32.totalorder %v4066, 0
        %v4068 = vsel %vm4067, %v4066, 0
        %v4069 = vshrl.u32 %v4068, 5
        %v4070 = vand.u32 %v4068, 31
        %v4071 = vsub.s32 32, %v4070
        %v4072 = vshrl.u32 683565275, %v4071
        %v4073 = vshll.u32 683565275, %v4070
        %v4074 = vshrl.u32 2475754826, %v4071
        %v4075 = vor.u32 %v4073, %v4074
        %v4076 = vshll.u32 2475754826, %v4070
        %v4077 = vshrl.u32 2131351028, %v4071
        %v4078 = vor.u32 %v4076, %v4077
        %v4079 = vshll.u32 2131351028, %v4070
        %v4080 = vshrl.u32 2102212464, %v4071
        %v4081 = vor.u32 %v4079, %v4080
        %v4082 = vshll.u32 2102212464, %v4070
        %v4083 = vshrl.u32 920167782, %v4071
        %v4084 = vor.u32 %v4082, %v4083
        %v4085 = vshll.u32 920167782, %v4070
        %v4086 = vshrl.u32 1326507024, %v4071
        %v4087 = vor.u32 %v4085, %v4086
        %vm4088 = vcmp.lt.s32.totalorder %v4069, 1
        %vm4089 = vcmp.lt.s32.totalorder %v4069, 2
        %vm4090 = vcmp.lt.s32.totalorder %v4069, 3
        %vm4091 = vcmp.lt.s32.totalorder %v4069, 4
        %v4092 = vsel %vm4088, %v4072, %v4075
        %v4093 = vsel %vm4091, %v4081, 2102212464
        %v4094 = vsel %vm4090, %v4078, %v4093
        %v4095 = vsel %vm4089, %v4092, %v4094
        %v4096 = vsel %vm4088, %v4075, %v4078
        %v4097 = vsel %vm4091, %v4084, 920167782
        %v4098 = vsel %vm4090, %v4081, %v4097
        %v4099 = vsel %vm4089, %v4096, %v4098
        %v4100 = vsel %vm4088, %v4078, %v4081
        %v4101 = vsel %vm4091, %v4087, 1326507024
        %v4102 = vsel %vm4090, %v4084, %v4101
        %v4103 = vsel %vm4089, %v4100, %v4102
        %v4104 = vshll.u32 %v4064, 8
        %v4105 = vmul.u32.u64.compose %v4104, %v4103
        %v4106 = vextract.low.u32 %v4105
        %v4107 = vextract.high.u32 %v4105
        %v4108 = vmul.u32.u64.compose %v4104, %v4099
        %v4109 = vextract.low.u32 %v4108
        %v4110 = vextract.high.u32 %v4108
        %v4111 = vmul.u32 %v4104, %v4095
        %v4112 = vadd.s32 %v4107, %v4109
        %vm4113 = vc.u32 %v4107, %v4109
        %v4114 = vadd.s32 %v4110, 1
        %v4115 = vsel %vm4113, %v4114, %v4110
        %v4116 = vadd.s32 %v4111, %v4115
        %v4117 = vadd.s32 %v4116, 536870912
        %v4118 = vshrl.u32 %v4117, 30
        %v4119 = vshll.u32 %v4118, 30
        %v4120 = vsub.s32 %v4116, %v4119
        %vm4121 = vcmp.lt.s32.totalorder %v4120, 0
        %v4122 = vsub.s32 0, %v4120
        %v4123 = vsel %vm4121, %v4122, %v4120
        %v4124 = vclz %v4123
        %v4125 = vsub.s32 %v4124, 2
        %vm4126 = vcmp.gt.s32.totalorder 0, %v4125
        %v4127 = vsel %vm4126, 0, %v4125
        %v4128 = vsub.s32 32, %v4127
        %v4129 = vshll.u32 %v4120, %v4127
        %v4130 = vshrl.u32 %v4112, %v4128
        %v4131 = vor.u32 %v4129, %v4130
        %v4132 = vsub.s32 4294967266, %v4127
        %v4133 = vadd.s32 %v4132, 127
        %v4134 = vshll.u32 %v4133, 23
        %v4135 = vor.u32 4788187, %v4134
        %v4136 = vand.u32 2147483647, %v4135
        %v4138 = vcvt.s32.f32 %v4131
        %v4139 = vmul.f32 %v4138, %v4136
        %v4140 = vxor.u32 %v4139, 2147483648
        %v4141 = vsel %vm4058, %v4140, %v4139
        %v4142 = vsub.s32 4, %v4118
        %v4143 = vsel %vm4058, %v4142, %v4118
        %v4144 = vsel %vm4057, %v2070, %v4141
        %v4145 = vsel %vm4057, 0, %v4143
        %v4146 = vcosq.f32.pop %v4144
        %v4147 = vsinq.f32.pop %v4144
        %vm4148 = vweird.f32 %v2070
        %v4149 = vand.u32 %v4145, 3
        %vm4150 = vcmp.lt.s32.totalorder %v4149, 2
        %vm4151 = vcmp.eq.s32.totalorder %v4149, 0
        %v4152 = vxor.u32 %v4147, 2147483648
        %v4153 = vsel %vm4151, %v4146, %v4152
        %vm4154 = vcmp.eq.s32.totalorder %v4149, 2
        %v4155 = vxor.u32 %v4146, 2147483648
        %v4156 = vsel %vm4154, %v4155, %v4147
        %v4157 = vsel %vm4150, %v4153, %v4156
        %v4158 = vsel %vm4148, nan, %v4157
        %v4159 = vand.u32 2147483647, %v2071
        %vm4160 = vcmp.le.f32.partialorder %v4159, 0.7853982
        %vm4161 = vcmp.lt.s32.totalorder %v2071, 0
        %v4162 = vand.u32 %v2071, 2139095040
        %v4163 = vshrl.u32 %v4162, 23
        %v4164 = vsub.s32 %v4163, 127
        %v4165 = vand.u32 2147483647, %v2071
        %v4166 = vand.u32 %v4165, 8388607
        %v4167 = vor.u32 %v4166, 8388608
        %v4168 = vsub.s32 0, %v4167
        %v4169 = vadd.s32 %v4164, 1
        %vm4170 = vcmp.gt.s32.totalorder %v4169, 0
        %v4171 = vsel %vm4170, %v4169, 0
        %v4172 = vshrl.u32 %v4171, 5
        %v4173 = vand.u32 %v4171, 31
        %v4174 = vsub.s32 32, %v4173
        %v4175 = vshrl.u32 683565275, %v4174
        %v4176 = vshll.u32 683565275, %v4173
        %v4177 = vshrl.u32 2475754826, %v4174
        %v4178 = vor.u32 %v4176, %v4177
        %v4179 = vshll.u32 2475754826, %v4173
        %v4180 = vshrl.u32 2131351028, %v4174
        %v4181 = vor.u32 %v4179, %v4180
        %v4182 = vshll.u32 2131351028, %v4173
        %v4183 = vshrl.u32 2102212464, %v4174
        %v4184 = vor.u32 %v4182, %v4183
        %v4185 = vshll.u32 2102212464, %v4173
        %v4186 = vshrl.u32 920167782, %v4174
        %v4187 = vor.u32 %v4185, %v4186
        %v4188 = vshll.u32 920167782, %v4173
        %v4189 = vshrl.u32 1326507024, %v4174
        %v4190 = vor.u32 %v4188, %v4189
        %vm4191 = vcmp.lt.s32.totalorder %v4172, 1
        %vm4192 = vcmp.lt.s32.totalorder %v4172, 2
        %vm4193 = vcmp.lt.s32.totalorder %v4172, 3
        %vm4194 = vcmp.lt.s32.totalorder %v4172, 4
        %v4195 = vsel %vm4191, %v4175, %v4178
        %v4196 = vsel %vm4194, %v4184, 2102212464
        %v4197 = vsel %vm4193, %v4181, %v4196
        %v4198 = vsel %vm4192, %v4195, %v4197
        %v4199 = vsel %vm4191, %v4178, %v4181
        %v4200 = vsel %vm4194, %v4187, 920167782
        %v4201 = vsel %vm4193, %v4184, %v4200
        %v4202 = vsel %vm4192, %v4199, %v4201
        %v4203 = vsel %vm4191, %v4181, %v4184
        %v4204 = vsel %vm4194, %v4190, 1326507024
        %v4205 = vsel %vm4193, %v4187, %v4204
        %v4206 = vsel %vm4192, %v4203, %v4205
        %v4207 = vshll.u32 %v4167, 8
        %v4208 = vmul.u32.u64.compose %v4207, %v4206
        %v4209 = vextract.low.u32 %v4208
        %v4210 = vextract.high.u32 %v4208
        %v4211 = vmul.u32.u64.compose %v4207, %v4202
        %v4212 = vextract.low.u32 %v4211
        %v4213 = vextract.high.u32 %v4211
        %v4214 = vmul.u32 %v4207, %v4198
        %v4215 = vadd.s32 %v4210, %v4212
        %vm4216 = vc.u32 %v4210, %v4212
        %v4217 = vadd.s32 %v4213, 1
        %v4218 = vsel %vm4216, %v4217, %v4213
        %v4219 = vadd.s32 %v4214, %v4218
        %v4220 = vadd.s32 %v4219, 536870912
        %v4221 = vshrl.u32 %v4220, 30
        %v4222 = vshll.u32 %v4221, 30
        %v4223 = vsub.s32 %v4219, %v4222
        %vm4224 = vcmp.lt.s32.totalorder %v4223, 0
        %v4225 = vsub.s32 0, %v4223
        %v4226 = vsel %vm4224, %v4225, %v4223
        %v4227 = vclz %v4226
        %v4228 = vsub.s32 %v4227, 2
        %vm4229 = vcmp.gt.s32.totalorder 0, %v4228
        %v4230 = vsel %vm4229, 0, %v4228
        %v4231 = vsub.s32 32, %v4230
        %v4232 = vshll.u32 %v4223, %v4230
        %v4233 = vshrl.u32 %v4215, %v4231
        %v4234 = vor.u32 %v4232, %v4233
        %v4235 = vsub.s32 4294967266, %v4230
        %v4236 = vadd.s32 %v4235, 127
        %v4237 = vshll.u32 %v4236, 23
        %v4238 = vor.u32 4788187, %v4237
        %v4239 = vand.u32 2147483647, %v4238
        %v4241 = vcvt.s32.f32 %v4234
        %v4242 = vmul.f32 %v4241, %v4239
        %v4243 = vxor.u32 %v4242, 2147483648
        %v4244 = vsel %vm4161, %v4243, %v4242
        %v4245 = vsub.s32 4, %v4221
        %v4246 = vsel %vm4161, %v4245, %v4221
        %v4247 = vsel %vm4160, %v2071, %v4244
        %v4248 = vsel %vm4160, 0, %v4246
        %v4249 = vcosq.f32.pop %v4247
        %v4250 = vsinq.f32.pop %v4247
        %vm4251 = vweird.f32 %v2071
        %v4252 = vand.u32 %v4248, 3
        %vm4253 = vcmp.lt.s32.totalorder %v4252, 2
        %vm4254 = vcmp.eq.s32.totalorder %v4252, 0
        %v4255 = vxor.u32 %v4250, 2147483648
        %v4256 = vsel %vm4254, %v4249, %v4255
        %vm4257 = vcmp.eq.s32.totalorder %v4252, 2
        %v4258 = vxor.u32 %v4249, 2147483648
        %v4259 = vsel %vm4257, %v4258, %v4250
        %v4260 = vsel %vm4253, %v4256, %v4259
        %v4261 = vsel %vm4251, nan, %v4260
        %v4262 = vand.u32 2147483647, %v2072
        %vm4263 = vcmp.le.f32.partialorder %v4262, 0.7853982
        %vm4264 = vcmp.lt.s32.totalorder %v2072, 0
        %v4265 = vand.u32 %v2072, 2139095040
        %v4266 = vshrl.u32 %v4265, 23
        %v4267 = vsub.s32 %v4266, 127
        %v4268 = vand.u32 2147483647, %v2072
        %v4269 = vand.u32 %v4268, 8388607
        %v4270 = vor.u32 %v4269, 8388608
        %v4271 = vsub.s32 0, %v4270
        %v4272 = vadd.s32 %v4267, 1
        %vm4273 = vcmp.gt.s32.totalorder %v4272, 0
        %v4274 = vsel %vm4273, %v4272, 0
        %v4275 = vshrl.u32 %v4274, 5
        %v4276 = vand.u32 %v4274, 31
        %v4277 = vsub.s32 32, %v4276
        %v4278 = vshrl.u32 683565275, %v4277
        %v4279 = vshll.u32 683565275, %v4276
        %v4280 = vshrl.u32 2475754826, %v4277
        %v4281 = vor.u32 %v4279, %v4280
        %v4282 = vshll.u32 2475754826, %v4276
        %v4283 = vshrl.u32 2131351028, %v4277
        %v4284 = vor.u32 %v4282, %v4283
        %v4285 = vshll.u32 2131351028, %v4276
        %v4286 = vshrl.u32 2102212464, %v4277
        %v4287 = vor.u32 %v4285, %v4286
        %v4288 = vshll.u32 2102212464, %v4276
        %v4289 = vshrl.u32 920167782, %v4277
        %v4290 = vor.u32 %v4288, %v4289
        %v4291 = vshll.u32 920167782, %v4276
        %v4292 = vshrl.u32 1326507024, %v4277
        %v4293 = vor.u32 %v4291, %v4292
        %vm4294 = vcmp.lt.s32.totalorder %v4275, 1
        %vm4295 = vcmp.lt.s32.totalorder %v4275, 2
        %vm4296 = vcmp.lt.s32.totalorder %v4275, 3
        %vm4297 = vcmp.lt.s32.totalorder %v4275, 4
        %v4298 = vsel %vm4294, %v4278, %v4281
        %v4299 = vsel %vm4297, %v4287, 2102212464
        %v4300 = vsel %vm4296, %v4284, %v4299
        %v4301 = vsel %vm4295, %v4298, %v4300
        %v4302 = vsel %vm4294, %v4281, %v4284
        %v4303 = vsel %vm4297, %v4290, 920167782
        %v4304 = vsel %vm4296, %v4287, %v4303
        %v4305 = vsel %vm4295, %v4302, %v4304
        %v4306 = vsel %vm4294, %v4284, %v4287
        %v4307 = vsel %vm4297, %v4293, 1326507024
        %v4308 = vsel %vm4296, %v4290, %v4307
        %v4309 = vsel %vm4295, %v4306, %v4308
        %v4310 = vshll.u32 %v4270, 8
        %v4311 = vmul.u32.u64.compose %v4310, %v4309
        %v4312 = vextract.low.u32 %v4311
        %v4313 = vextract.high.u32 %v4311
        %v4314 = vmul.u32.u64.compose %v4310, %v4305
        %v4315 = vextract.low.u32 %v4314
        %v4316 = vextract.high.u32 %v4314
        %v4317 = vmul.u32 %v4310, %v4301
        %v4318 = vadd.s32 %v4313, %v4315
        %vm4319 = vc.u32 %v4313, %v4315
        %v4320 = vadd.s32 %v4316, 1
        %v4321 = vsel %vm4319, %v4320, %v4316
        %v4322 = vadd.s32 %v4317, %v4321
        %v4323 = vadd.s32 %v4322, 536870912
        %v4324 = vshrl.u32 %v4323, 30
        %v4325 = vshll.u32 %v4324, 30
        %v4326 = vsub.s32 %v4322, %v4325
        %vm4327 = vcmp.lt.s32.totalorder %v4326, 0
        %v4328 = vsub.s32 0, %v4326
        %v4329 = vsel %vm4327, %v4328, %v4326
        %v4330 = vclz %v4329
        %v4331 = vsub.s32 %v4330, 2
        %vm4332 = vcmp.gt.s32.totalorder 0, %v4331
        %v4333 = vsel %vm4332, 0, %v4331
        %v4334 = vsub.s32 32, %v4333
        %v4335 = vshll.u32 %v4326, %v4333
        %v4336 = vshrl.u32 %v4318, %v4334
        %v4337 = vor.u32 %v4335, %v4336
        %v4338 = vsub.s32 4294967266, %v4333
        %v4339 = vadd.s32 %v4338, 127
        %v4340 = vshll.u32 %v4339, 23
        %v4341 = vor.u32 4788187, %v4340
        %v4342 = vand.u32 2147483647, %v4341
        %v4344 = vcvt.s32.f32 %v4337
        %v4345 = vmul.f32 %v4344, %v4342
        %v4346 = vxor.u32 %v4345, 2147483648
        %v4347 = vsel %vm4264, %v4346, %v4345
        %v4348 = vsub.s32 4, %v4324
        %v4349 = vsel %vm4264, %v4348, %v4324
        %v4350 = vsel %vm4263, %v2072, %v4347
        %v4351 = vsel %vm4263, 0, %v4349
        %v4352 = vcosq.f32.pop %v4350
        %v4353 = vsinq.f32.pop %v4350
        %vm4354 = vweird.f32 %v2072
        %v4355 = vand.u32 %v4351, 3
        %vm4356 = vcmp.lt.s32.totalorder %v4355, 2
        %vm4357 = vcmp.eq.s32.totalorder %v4355, 0
        %v4358 = vxor.u32 %v4353, 2147483648
        %v4359 = vsel %vm4357, %v4352, %v4358
        %vm4360 = vcmp.eq.s32.totalorder %v4355, 2
        %v4361 = vxor.u32 %v4352, 2147483648
        %v4362 = vsel %vm4360, %v4361, %v4353
        %v4363 = vsel %vm4356, %v4359, %v4362
        %v4364 = vsel %vm4354, nan, %v4363
        %v4365 = vand.u32 2147483647, %v2073
        %vm4366 = vcmp.le.f32.partialorder %v4365, 0.7853982
        %vm4367 = vcmp.lt.s32.totalorder %v2073, 0
        %v4368 = vand.u32 %v2073, 2139095040
        %v4369 = vshrl.u32 %v4368, 23
        %v4370 = vsub.s32 %v4369, 127
        %v4371 = vand.u32 2147483647, %v2073
        %v4372 = vand.u32 %v4371, 8388607
        %v4373 = vor.u32 %v4372, 8388608
        %v4374 = vsub.s32 0, %v4373
        %v4375 = vadd.s32 %v4370, 1
        %vm4376 = vcmp.gt.s32.totalorder %v4375, 0
        %v4377 = vsel %vm4376, %v4375, 0
        %v4378 = vshrl.u32 %v4377, 5
        %v4379 = vand.u32 %v4377, 31
        %v4380 = vsub.s32 32, %v4379
        %v4381 = vshrl.u32 683565275, %v4380
        %v4382 = vshll.u32 683565275, %v4379
        %v4383 = vshrl.u32 2475754826, %v4380
        %v4384 = vor.u32 %v4382, %v4383
        %v4385 = vshll.u32 2475754826, %v4379
        %v4386 = vshrl.u32 2131351028, %v4380
        %v4387 = vor.u32 %v4385, %v4386
        %v4388 = vshll.u32 2131351028, %v4379
        %v4389 = vshrl.u32 2102212464, %v4380
        %v4390 = vor.u32 %v4388, %v4389
        %v4391 = vshll.u32 2102212464, %v4379
        %v4392 = vshrl.u32 920167782, %v4380
        %v4393 = vor.u32 %v4391, %v4392
        %v4394 = vshll.u32 920167782, %v4379
        %v4395 = vshrl.u32 1326507024, %v4380
        %v4396 = vor.u32 %v4394, %v4395
        %vm4397 = vcmp.lt.s32.totalorder %v4378, 1
        %vm4398 = vcmp.lt.s32.totalorder %v4378, 2
        %vm4399 = vcmp.lt.s32.totalorder %v4378, 3
        %vm4400 = vcmp.lt.s32.totalorder %v4378, 4
        %v4401 = vsel %vm4397, %v4381, %v4384
        %v4402 = vsel %vm4400, %v4390, 2102212464
        %v4403 = vsel %vm4399, %v4387, %v4402
        %v4404 = vsel %vm4398, %v4401, %v4403
        %v4405 = vsel %vm4397, %v4384, %v4387
        %v4406 = vsel %vm4400, %v4393, 920167782
        %v4407 = vsel %vm4399, %v4390, %v4406
        %v4408 = vsel %vm4398, %v4405, %v4407
        %v4409 = vsel %vm4397, %v4387, %v4390
        %v4410 = vsel %vm4400, %v4396, 1326507024
        %v4411 = vsel %vm4399, %v4393, %v4410
        %v4412 = vsel %vm4398, %v4409, %v4411
        %v4413 = vshll.u32 %v4373, 8
        %v4414 = vmul.u32.u64.compose %v4413, %v4412
        %v4415 = vextract.low.u32 %v4414
        %v4416 = vextract.high.u32 %v4414
        %v4417 = vmul.u32.u64.compose %v4413, %v4408
        %v4418 = vextract.low.u32 %v4417
        %v4419 = vextract.high.u32 %v4417
        %v4420 = vmul.u32 %v4413, %v4404
        %v4421 = vadd.s32 %v4416, %v4418
        %vm4422 = vc.u32 %v4416, %v4418
        %v4423 = vadd.s32 %v4419, 1
        %v4424 = vsel %vm4422, %v4423, %v4419
        %v4425 = vadd.s32 %v4420, %v4424
        %v4426 = vadd.s32 %v4425, 536870912
        %v4427 = vshrl.u32 %v4426, 30
        %v4428 = vshll.u32 %v4427, 30
        %v4429 = vsub.s32 %v4425, %v4428
        %vm4430 = vcmp.lt.s32.totalorder %v4429, 0
        %v4431 = vsub.s32 0, %v4429
        %v4432 = vsel %vm4430, %v4431, %v4429
        %v4433 = vclz %v4432
        %v4434 = vsub.s32 %v4433, 2
        %vm4435 = vcmp.gt.s32.totalorder 0, %v4434
        %v4436 = vsel %vm4435, 0, %v4434
        %v4437 = vsub.s32 32, %v4436
        %v4438 = vshll.u32 %v4429, %v4436
        %v4439 = vshrl.u32 %v4421, %v4437
        %v4440 = vor.u32 %v4438, %v4439
        %v4441 = vsub.s32 4294967266, %v4436
        %v4442 = vadd.s32 %v4441, 127
        %v4443 = vshll.u32 %v4442, 23
        %v4444 = vor.u32 4788187, %v4443
        %v4445 = vand.u32 2147483647, %v4444
        %v4447 = vcvt.s32.f32 %v4440
        %v4448 = vmul.f32 %v4447, %v4445
        %v4449 = vxor.u32 %v4448, 2147483648
        %v4450 = vsel %vm4367, %v4449, %v4448
        %v4451 = vsub.s32 4, %v4427
        %v4452 = vsel %vm4367, %v4451, %v4427
        %v4453 = vsel %vm4366, %v2073, %v4450
        %v4454 = vsel %vm4366, 0, %v4452
        %v4455 = vcosq.f32.pop %v4453
        %v4456 = vsinq.f32.pop %v4453
        %vm4457 = vweird.f32 %v2073
        %v4458 = vand.u32 %v4454, 3
        %vm4459 = vcmp.lt.s32.totalorder %v4458, 2
        %vm4460 = vcmp.eq.s32.totalorder %v4458, 0
        %v4461 = vxor.u32 %v4456, 2147483648
        %v4462 = vsel %vm4460, %v4455, %v4461
        %vm4463 = vcmp.eq.s32.totalorder %v4458, 2
        %v4464 = vxor.u32 %v4455, 2147483648
        %v4465 = vsel %vm4463, %v4464, %v4456
        %v4466 = vsel %vm4459, %v4462, %v4465
        %v4467 = vsel %vm4457, nan, %v4466
        %v4468 = vand.u32 2147483647, %v2074
        %vm4469 = vcmp.le.f32.partialorder %v4468, 0.7853982
        %vm4470 = vcmp.lt.s32.totalorder %v2074, 0
        %v4471 = vand.u32 %v2074, 2139095040
        %v4472 = vshrl.u32 %v4471, 23
        %v4473 = vsub.s32 %v4472, 127
        %v4474 = vand.u32 2147483647, %v2074
        %v4475 = vand.u32 %v4474, 8388607
        %v4476 = vor.u32 %v4475, 8388608
        %v4477 = vsub.s32 0, %v4476
        %v4478 = vadd.s32 %v4473, 1
        %vm4479 = vcmp.gt.s32.totalorder %v4478, 0
        %v4480 = vsel %vm4479, %v4478, 0
        %v4481 = vshrl.u32 %v4480, 5
        %v4482 = vand.u32 %v4480, 31
        %v4483 = vsub.s32 32, %v4482
        %v4484 = vshrl.u32 683565275, %v4483
        %v4485 = vshll.u32 683565275, %v4482
        %v4486 = vshrl.u32 2475754826, %v4483
        %v4487 = vor.u32 %v4485, %v4486
        %v4488 = vshll.u32 2475754826, %v4482
        %v4489 = vshrl.u32 2131351028, %v4483
        %v4490 = vor.u32 %v4488, %v4489
        %v4491 = vshll.u32 2131351028, %v4482
        %v4492 = vshrl.u32 2102212464, %v4483
        %v4493 = vor.u32 %v4491, %v4492
        %v4494 = vshll.u32 2102212464, %v4482
        %v4495 = vshrl.u32 920167782, %v4483
        %v4496 = vor.u32 %v4494, %v4495
        %v4497 = vshll.u32 920167782, %v4482
        %v4498 = vshrl.u32 1326507024, %v4483
        %v4499 = vor.u32 %v4497, %v4498
        %vm4500 = vcmp.lt.s32.totalorder %v4481, 1
        %vm4501 = vcmp.lt.s32.totalorder %v4481, 2
        %vm4502 = vcmp.lt.s32.totalorder %v4481, 3
        %vm4503 = vcmp.lt.s32.totalorder %v4481, 4
        %v4504 = vsel %vm4500, %v4484, %v4487
        %v4505 = vsel %vm4503, %v4493, 2102212464
        %v4506 = vsel %vm4502, %v4490, %v4505
        %v4507 = vsel %vm4501, %v4504, %v4506
        %v4508 = vsel %vm4500, %v4487, %v4490
        %v4509 = vsel %vm4503, %v4496, 920167782
        %v4510 = vsel %vm4502, %v4493, %v4509
        %v4511 = vsel %vm4501, %v4508, %v4510
        %v4512 = vsel %vm4500, %v4490, %v4493
        %v4513 = vsel %vm4503, %v4499, 1326507024
        %v4514 = vsel %vm4502, %v4496, %v4513
        %v4515 = vsel %vm4501, %v4512, %v4514
        %v4516 = vshll.u32 %v4476, 8
        %v4517 = vmul.u32.u64.compose %v4516, %v4515
        %v4518 = vextract.low.u32 %v4517
        %v4519 = vextract.high.u32 %v4517
        %v4520 = vmul.u32.u64.compose %v4516, %v4511
        %v4521 = vextract.low.u32 %v4520
        %v4522 = vextract.high.u32 %v4520
        %v4523 = vmul.u32 %v4516, %v4507
        %v4524 = vadd.s32 %v4519, %v4521
        %vm4525 = vc.u32 %v4519, %v4521
        %v4526 = vadd.s32 %v4522, 1
        %v4527 = vsel %vm4525, %v4526, %v4522
        %v4528 = vadd.s32 %v4523, %v4527
        %v4529 = vadd.s32 %v4528, 536870912
        %v4530 = vshrl.u32 %v4529, 30
        %v4531 = vshll.u32 %v4530, 30
        %v4532 = vsub.s32 %v4528, %v4531
        %vm4533 = vcmp.lt.s32.totalorder %v4532, 0
        %v4534 = vsub.s32 0, %v4532
        %v4535 = vsel %vm4533, %v4534, %v4532
        %v4536 = vclz %v4535
        %v4537 = vsub.s32 %v4536, 2
        %vm4538 = vcmp.gt.s32.totalorder 0, %v4537
        %v4539 = vsel %vm4538, 0, %v4537
        %v4540 = vsub.s32 32, %v4539
        %v4541 = vshll.u32 %v4532, %v4539
        %v4542 = vshrl.u32 %v4524, %v4540
        %v4543 = vor.u32 %v4541, %v4542
        %v4544 = vsub.s32 4294967266, %v4539
        %v4545 = vadd.s32 %v4544, 127
        %v4546 = vshll.u32 %v4545, 23
        %v4547 = vor.u32 4788187, %v4546
        %v4548 = vand.u32 2147483647, %v4547
        %v4550 = vcvt.s32.f32 %v4543
        %v4551 = vmul.f32 %v4550, %v4548
        %v4552 = vxor.u32 %v4551, 2147483648
        %v4553 = vsel %vm4470, %v4552, %v4551
        %v4554 = vsub.s32 4, %v4530
        %v4555 = vsel %vm4470, %v4554, %v4530
        %v4556 = vsel %vm4469, %v2074, %v4553
        %v4557 = vsel %vm4469, 0, %v4555
        %v4558 = vcosq.f32.pop %v4556
        %v4559 = vsinq.f32.pop %v4556
        %vm4560 = vweird.f32 %v2074
        %v4561 = vand.u32 %v4557, 3
        %vm4562 = vcmp.lt.s32.totalorder %v4561, 2
        %vm4563 = vcmp.eq.s32.totalorder %v4561, 0
        %v4564 = vxor.u32 %v4559, 2147483648
        %v4565 = vsel %vm4563, %v4558, %v4564
        %vm4566 = vcmp.eq.s32.totalorder %v4561, 2
        %v4567 = vxor.u32 %v4558, 2147483648
        %v4568 = vsel %vm4566, %v4567, %v4559
        %v4569 = vsel %vm4562, %v4565, %v4568
        %v4570 = vsel %vm4560, nan, %v4569
        %v4571 = vand.u32 2147483647, %v2075
        %vm4572 = vcmp.le.f32.partialorder %v4571, 0.7853982
        %vm4573 = vcmp.lt.s32.totalorder %v2075, 0
        %v4574 = vand.u32 %v2075, 2139095040
        %v4575 = vshrl.u32 %v4574, 23
        %v4576 = vsub.s32 %v4575, 127
        %v4577 = vand.u32 2147483647, %v2075
        %v4578 = vand.u32 %v4577, 8388607
        %v4579 = vor.u32 %v4578, 8388608
        %v4580 = vsub.s32 0, %v4579
        %v4581 = vadd.s32 %v4576, 1
        %vm4582 = vcmp.gt.s32.totalorder %v4581, 0
        %v4583 = vsel %vm4582, %v4581, 0
        %v4584 = vshrl.u32 %v4583, 5
        %v4585 = vand.u32 %v4583, 31
        %v4586 = vsub.s32 32, %v4585
        %v4587 = vshrl.u32 683565275, %v4586
        %v4588 = vshll.u32 683565275, %v4585
        %v4589 = vshrl.u32 2475754826, %v4586
        %v4590 = vor.u32 %v4588, %v4589
        %v4591 = vshll.u32 2475754826, %v4585
        %v4592 = vshrl.u32 2131351028, %v4586
        %v4593 = vor.u32 %v4591, %v4592
        %v4594 = vshll.u32 2131351028, %v4585
        %v4595 = vshrl.u32 2102212464, %v4586
        %v4596 = vor.u32 %v4594, %v4595
        %v4597 = vshll.u32 2102212464, %v4585
        %v4598 = vshrl.u32 920167782, %v4586
        %v4599 = vor.u32 %v4597, %v4598
        %v4600 = vshll.u32 920167782, %v4585
        %v4601 = vshrl.u32 1326507024, %v4586
        %v4602 = vor.u32 %v4600, %v4601
        %vm4603 = vcmp.lt.s32.totalorder %v4584, 1
        %vm4604 = vcmp.lt.s32.totalorder %v4584, 2
        %vm4605 = vcmp.lt.s32.totalorder %v4584, 3
        %vm4606 = vcmp.lt.s32.totalorder %v4584, 4
        %v4607 = vsel %vm4603, %v4587, %v4590
        %v4608 = vsel %vm4606, %v4596, 2102212464
        %v4609 = vsel %vm4605, %v4593, %v4608
        %v4610 = vsel %vm4604, %v4607, %v4609
        %v4611 = vsel %vm4603, %v4590, %v4593
        %v4612 = vsel %vm4606, %v4599, 920167782
        %v4613 = vsel %vm4605, %v4596, %v4612
        %v4614 = vsel %vm4604, %v4611, %v4613
        %v4615 = vsel %vm4603, %v4593, %v4596
        %v4616 = vsel %vm4606, %v4602, 1326507024
        %v4617 = vsel %vm4605, %v4599, %v4616
        %v4618 = vsel %vm4604, %v4615, %v4617
        %v4619 = vshll.u32 %v4579, 8
        %v4620 = vmul.u32.u64.compose %v4619, %v4618
        %v4621 = vextract.low.u32 %v4620
        %v4622 = vextract.high.u32 %v4620
        %v4623 = vmul.u32.u64.compose %v4619, %v4614
        %v4624 = vextract.low.u32 %v4623
        %v4625 = vextract.high.u32 %v4623
        %v4626 = vmul.u32 %v4619, %v4610
        %v4627 = vadd.s32 %v4622, %v4624
        %vm4628 = vc.u32 %v4622, %v4624
        %v4629 = vadd.s32 %v4625, 1
        %v4630 = vsel %vm4628, %v4629, %v4625
        %v4631 = vadd.s32 %v4626, %v4630
        %v4632 = vadd.s32 %v4631, 536870912
        %v4633 = vshrl.u32 %v4632, 30
        %v4634 = vshll.u32 %v4633, 30
        %v4635 = vsub.s32 %v4631, %v4634
        %vm4636 = vcmp.lt.s32.totalorder %v4635, 0
        %v4637 = vsub.s32 0, %v4635
        %v4638 = vsel %vm4636, %v4637, %v4635
        %v4639 = vclz %v4638
        %v4640 = vsub.s32 %v4639, 2
        %vm4641 = vcmp.gt.s32.totalorder 0, %v4640
        %v4642 = vsel %vm4641, 0, %v4640
        %v4643 = vsub.s32 32, %v4642
        %v4644 = vshll.u32 %v4635, %v4642
        %v4645 = vshrl.u32 %v4627, %v4643
        %v4646 = vor.u32 %v4644, %v4645
        %v4647 = vsub.s32 4294967266, %v4642
        %v4648 = vadd.s32 %v4647, 127
        %v4649 = vshll.u32 %v4648, 23
        %v4650 = vor.u32 4788187, %v4649
        %v4651 = vand.u32 2147483647, %v4650
        %v4653 = vcvt.s32.f32 %v4646
        %v4654 = vmul.f32 %v4653, %v4651
        %v4655 = vxor.u32 %v4654, 2147483648
        %v4656 = vsel %vm4573, %v4655, %v4654
        %v4657 = vsub.s32 4, %v4633
        %v4658 = vsel %vm4573, %v4657, %v4633
        %v4659 = vsel %vm4572, %v2075, %v4656
        %v4660 = vsel %vm4572, 0, %v4658
        %v4661 = vcosq.f32.pop %v4659
        %v4662 = vsinq.f32.pop %v4659
        %vm4663 = vweird.f32 %v2075
        %v4664 = vand.u32 %v4660, 3
        %vm4665 = vcmp.lt.s32.totalorder %v4664, 2
        %vm4666 = vcmp.eq.s32.totalorder %v4664, 0
        %v4667 = vxor.u32 %v4662, 2147483648
        %v4668 = vsel %vm4666, %v4661, %v4667
        %vm4669 = vcmp.eq.s32.totalorder %v4664, 2
        %v4670 = vxor.u32 %v4661, 2147483648
        %v4671 = vsel %vm4669, %v4670, %v4662
        %v4672 = vsel %vm4665, %v4668, %v4671
        %v4673 = vsel %vm4663, nan, %v4672
        %v4674 = vand.u32 2147483647, %v2076
        %vm4675 = vcmp.le.f32.partialorder %v4674, 0.7853982
        %vm4676 = vcmp.lt.s32.totalorder %v2076, 0
        %v4677 = vand.u32 %v2076, 2139095040
        %v4678 = vshrl.u32 %v4677, 23
        %v4679 = vsub.s32 %v4678, 127
        %v4680 = vand.u32 2147483647, %v2076
        %v4681 = vand.u32 %v4680, 8388607
        %v4682 = vor.u32 %v4681, 8388608
        %v4683 = vsub.s32 0, %v4682
        %v4684 = vadd.s32 %v4679, 1
        %vm4685 = vcmp.gt.s32.totalorder %v4684, 0
        %v4686 = vsel %vm4685, %v4684, 0
        %v4687 = vshrl.u32 %v4686, 5
        %v4688 = vand.u32 %v4686, 31
        %v4689 = vsub.s32 32, %v4688
        %v4690 = vshrl.u32 683565275, %v4689
        %v4691 = vshll.u32 683565275, %v4688
        %v4692 = vshrl.u32 2475754826, %v4689
        %v4693 = vor.u32 %v4691, %v4692
        %v4694 = vshll.u32 2475754826, %v4688
        %v4695 = vshrl.u32 2131351028, %v4689
        %v4696 = vor.u32 %v4694, %v4695
        %v4697 = vshll.u32 2131351028, %v4688
        %v4698 = vshrl.u32 2102212464, %v4689
        %v4699 = vor.u32 %v4697, %v4698
        %v4700 = vshll.u32 2102212464, %v4688
        %v4701 = vshrl.u32 920167782, %v4689
        %v4702 = vor.u32 %v4700, %v4701
        %v4703 = vshll.u32 920167782, %v4688
        %v4704 = vshrl.u32 1326507024, %v4689
        %v4705 = vor.u32 %v4703, %v4704
        %vm4706 = vcmp.lt.s32.totalorder %v4687, 1
        %vm4707 = vcmp.lt.s32.totalorder %v4687, 2
        %vm4708 = vcmp.lt.s32.totalorder %v4687, 3
        %vm4709 = vcmp.lt.s32.totalorder %v4687, 4
        %v4710 = vsel %vm4706, %v4690, %v4693
        %v4711 = vsel %vm4709, %v4699, 2102212464
        %v4712 = vsel %vm4708, %v4696, %v4711
        %v4713 = vsel %vm4707, %v4710, %v4712
        %v4714 = vsel %vm4706, %v4693, %v4696
        %v4715 = vsel %vm4709, %v4702, 920167782
        %v4716 = vsel %vm4708, %v4699, %v4715
        %v4717 = vsel %vm4707, %v4714, %v4716
        %v4718 = vsel %vm4706, %v4696, %v4699
        %v4719 = vsel %vm4709, %v4705, 1326507024
        %v4720 = vsel %vm4708, %v4702, %v4719
        %v4721 = vsel %vm4707, %v4718, %v4720
        %v4722 = vshll.u32 %v4682, 8
        %v4723 = vmul.u32.u64.compose %v4722, %v4721
        %v4724 = vextract.low.u32 %v4723
        %v4725 = vextract.high.u32 %v4723
        %v4726 = vmul.u32.u64.compose %v4722, %v4717
        %v4727 = vextract.low.u32 %v4726
        %v4728 = vextract.high.u32 %v4726
        %v4729 = vmul.u32 %v4722, %v4713
        %v4730 = vadd.s32 %v4725, %v4727
        %vm4731 = vc.u32 %v4725, %v4727
        %v4732 = vadd.s32 %v4728, 1
        %v4733 = vsel %vm4731, %v4732, %v4728
        %v4734 = vadd.s32 %v4729, %v4733
        %v4735 = vadd.s32 %v4734, 536870912
        %v4736 = vshrl.u32 %v4735, 30
        %v4737 = vshll.u32 %v4736, 30
        %v4738 = vsub.s32 %v4734, %v4737
        %vm4739 = vcmp.lt.s32.totalorder %v4738, 0
        %v4740 = vsub.s32 0, %v4738
        %v4741 = vsel %vm4739, %v4740, %v4738
        %v4742 = vclz %v4741
        %v4743 = vsub.s32 %v4742, 2
        %vm4744 = vcmp.gt.s32.totalorder 0, %v4743
        %v4745 = vsel %vm4744, 0, %v4743
        %v4746 = vsub.s32 32, %v4745
        %v4747 = vshll.u32 %v4738, %v4745
        %v4748 = vshrl.u32 %v4730, %v4746
        %v4749 = vor.u32 %v4747, %v4748
        %v4750 = vsub.s32 4294967266, %v4745
        %v4751 = vadd.s32 %v4750, 127
        %v4752 = vshll.u32 %v4751, 23
        %v4753 = vor.u32 4788187, %v4752
        %v4754 = vand.u32 2147483647, %v4753
        %v4756 = vcvt.s32.f32 %v4749
        %v4757 = vmul.f32 %v4756, %v4754
        %v4758 = vxor.u32 %v4757, 2147483648
        %v4759 = vsel %vm4676, %v4758, %v4757
        %v4760 = vsub.s32 4, %v4736
        %v4761 = vsel %vm4676, %v4760, %v4736
        %v4762 = vsel %vm4675, %v2076, %v4759
        %v4763 = vsel %vm4675, 0, %v4761
        %v4764 = vcosq.f32.pop %v4762
        %v4765 = vsinq.f32.pop %v4762
        %vm4766 = vweird.f32 %v2076
        %v4767 = vand.u32 %v4763, 3
        %vm4768 = vcmp.lt.s32.totalorder %v4767, 2
        %vm4769 = vcmp.eq.s32.totalorder %v4767, 0
        %v4770 = vxor.u32 %v4765, 2147483648
        %v4771 = vsel %vm4769, %v4764, %v4770
        %vm4772 = vcmp.eq.s32.totalorder %v4767, 2
        %v4773 = vxor.u32 %v4764, 2147483648
        %v4774 = vsel %vm4772, %v4773, %v4765
        %v4775 = vsel %vm4768, %v4771, %v4774
        %v4776 = vsel %vm4766, nan, %v4775
        %v4777 = vand.u32 2147483647, %v2077
        %vm4778 = vcmp.le.f32.partialorder %v4777, 0.7853982
        %vm4779 = vcmp.lt.s32.totalorder %v2077, 0
        %v4780 = vand.u32 %v2077, 2139095040
        %v4781 = vshrl.u32 %v4780, 23
        %v4782 = vsub.s32 %v4781, 127
        %v4783 = vand.u32 2147483647, %v2077
        %v4784 = vand.u32 %v4783, 8388607
        %v4785 = vor.u32 %v4784, 8388608
        %v4786 = vsub.s32 0, %v4785
        %v4787 = vadd.s32 %v4782, 1
        %vm4788 = vcmp.gt.s32.totalorder %v4787, 0
        %v4789 = vsel %vm4788, %v4787, 0
        %v4790 = vshrl.u32 %v4789, 5
        %v4791 = vand.u32 %v4789, 31
        %v4792 = vsub.s32 32, %v4791
        %v4793 = vshrl.u32 683565275, %v4792
        %v4794 = vshll.u32 683565275, %v4791
        %v4795 = vshrl.u32 2475754826, %v4792
        %v4796 = vor.u32 %v4794, %v4795
        %v4797 = vshll.u32 2475754826, %v4791
        %v4798 = vshrl.u32 2131351028, %v4792
        %v4799 = vor.u32 %v4797, %v4798
        %v4800 = vshll.u32 2131351028, %v4791
        %v4801 = vshrl.u32 2102212464, %v4792
        %v4802 = vor.u32 %v4800, %v4801
        %v4803 = vshll.u32 2102212464, %v4791
        %v4804 = vshrl.u32 920167782, %v4792
        %v4805 = vor.u32 %v4803, %v4804
        %v4806 = vshll.u32 920167782, %v4791
        %v4807 = vshrl.u32 1326507024, %v4792
        %v4808 = vor.u32 %v4806, %v4807
        %vm4809 = vcmp.lt.s32.totalorder %v4790, 1
        %vm4810 = vcmp.lt.s32.totalorder %v4790, 2
        %vm4811 = vcmp.lt.s32.totalorder %v4790, 3
        %vm4812 = vcmp.lt.s32.totalorder %v4790, 4
        %v4813 = vsel %vm4809, %v4793, %v4796
        %v4814 = vsel %vm4812, %v4802, 2102212464
        %v4815 = vsel %vm4811, %v4799, %v4814
        %v4816 = vsel %vm4810, %v4813, %v4815
        %v4817 = vsel %vm4809, %v4796, %v4799
        %v4818 = vsel %vm4812, %v4805, 920167782
        %v4819 = vsel %vm4811, %v4802, %v4818
        %v4820 = vsel %vm4810, %v4817, %v4819
        %v4821 = vsel %vm4809, %v4799, %v4802
        %v4822 = vsel %vm4812, %v4808, 1326507024
        %v4823 = vsel %vm4811, %v4805, %v4822
        %v4824 = vsel %vm4810, %v4821, %v4823
        %v4825 = vshll.u32 %v4785, 8
        %v4826 = vmul.u32.u64.compose %v4825, %v4824
        %v4827 = vextract.low.u32 %v4826
        %v4828 = vextract.high.u32 %v4826
        %v4829 = vmul.u32.u64.compose %v4825, %v4820
        %v4830 = vextract.low.u32 %v4829
        %v4831 = vextract.high.u32 %v4829
        %v4832 = vmul.u32 %v4825, %v4816
        %v4833 = vadd.s32 %v4828, %v4830
        %vm4834 = vc.u32 %v4828, %v4830
        %v4835 = vadd.s32 %v4831, 1
        %v4836 = vsel %vm4834, %v4835, %v4831
        %v4837 = vadd.s32 %v4832, %v4836
        %v4838 = vadd.s32 %v4837, 536870912
        %v4839 = vshrl.u32 %v4838, 30
        %v4840 = vshll.u32 %v4839, 30
        %v4841 = vsub.s32 %v4837, %v4840
        %vm4842 = vcmp.lt.s32.totalorder %v4841, 0
        %v4843 = vsub.s32 0, %v4841
        %v4844 = vsel %vm4842, %v4843, %v4841
        %v4845 = vclz %v4844
        %v4846 = vsub.s32 %v4845, 2
        %vm4847 = vcmp.gt.s32.totalorder 0, %v4846
        %v4848 = vsel %vm4847, 0, %v4846
        %v4849 = vsub.s32 32, %v4848
        %v4850 = vshll.u32 %v4841, %v4848
        %v4851 = vshrl.u32 %v4833, %v4849
        %v4852 = vor.u32 %v4850, %v4851
        %v4853 = vsub.s32 4294967266, %v4848
        %v4854 = vadd.s32 %v4853, 127
        %v4855 = vshll.u32 %v4854, 23
        %v4856 = vor.u32 4788187, %v4855
        %v4857 = vand.u32 2147483647, %v4856
        %v4859 = vcvt.s32.f32 %v4852
        %v4860 = vmul.f32 %v4859, %v4857
        %v4861 = vxor.u32 %v4860, 2147483648
        %v4862 = vsel %vm4779, %v4861, %v4860
        %v4863 = vsub.s32 4, %v4839
        %v4864 = vsel %vm4779, %v4863, %v4839
        %v4865 = vsel %vm4778, %v2077, %v4862
        %v4866 = vsel %vm4778, 0, %v4864
        %v4867 = vcosq.f32.pop %v4865
        %v4868 = vsinq.f32.pop %v4865
        %vm4869 = vweird.f32 %v2077
        %v4870 = vand.u32 %v4866, 3
        %vm4871 = vcmp.lt.s32.totalorder %v4870, 2
        %vm4872 = vcmp.eq.s32.totalorder %v4870, 0
        %v4873 = vxor.u32 %v4868, 2147483648
        %v4874 = vsel %vm4872, %v4867, %v4873
        %vm4875 = vcmp.eq.s32.totalorder %v4870, 2
        %v4876 = vxor.u32 %v4867, 2147483648
        %v4877 = vsel %vm4875, %v4876, %v4868
        %v4878 = vsel %vm4871, %v4874, %v4877
        %v4879 = vsel %vm4869, nan, %v4878
        %v4880 = vand.u32 2147483647, %v2078
        %vm4881 = vcmp.le.f32.partialorder %v4880, 0.7853982
        %vm4882 = vcmp.lt.s32.totalorder %v2078, 0
        %v4883 = vand.u32 %v2078, 2139095040
        %v4884 = vshrl.u32 %v4883, 23
        %v4885 = vsub.s32 %v4884, 127
        %v4886 = vand.u32 2147483647, %v2078
        %v4887 = vand.u32 %v4886, 8388607
        %v4888 = vor.u32 %v4887, 8388608
        %v4889 = vsub.s32 0, %v4888
        %v4890 = vadd.s32 %v4885, 1
        %vm4891 = vcmp.gt.s32.totalorder %v4890, 0
        %v4892 = vsel %vm4891, %v4890, 0
        %v4893 = vshrl.u32 %v4892, 5
        %v4894 = vand.u32 %v4892, 31
        %v4895 = vsub.s32 32, %v4894
        %v4896 = vshrl.u32 683565275, %v4895
        %v4897 = vshll.u32 683565275, %v4894
        %v4898 = vshrl.u32 2475754826, %v4895
        %v4899 = vor.u32 %v4897, %v4898
        %v4900 = vshll.u32 2475754826, %v4894
        %v4901 = vshrl.u32 2131351028, %v4895
        %v4902 = vor.u32 %v4900, %v4901
        %v4903 = vshll.u32 2131351028, %v4894
        %v4904 = vshrl.u32 2102212464, %v4895
        %v4905 = vor.u32 %v4903, %v4904
        %v4906 = vshll.u32 2102212464, %v4894
        %v4907 = vshrl.u32 920167782, %v4895
        %v4908 = vor.u32 %v4906, %v4907
        %v4909 = vshll.u32 920167782, %v4894
        %v4910 = vshrl.u32 1326507024, %v4895
        %v4911 = vor.u32 %v4909, %v4910
        %vm4912 = vcmp.lt.s32.totalorder %v4893, 1
        %vm4913 = vcmp.lt.s32.totalorder %v4893, 2
        %vm4914 = vcmp.lt.s32.totalorder %v4893, 3
        %vm4915 = vcmp.lt.s32.totalorder %v4893, 4
        %v4916 = vsel %vm4912, %v4896, %v4899
        %v4917 = vsel %vm4915, %v4905, 2102212464
        %v4918 = vsel %vm4914, %v4902, %v4917
        %v4919 = vsel %vm4913, %v4916, %v4918
        %v4920 = vsel %vm4912, %v4899, %v4902
        %v4921 = vsel %vm4915, %v4908, 920167782
        %v4922 = vsel %vm4914, %v4905, %v4921
        %v4923 = vsel %vm4913, %v4920, %v4922
        %v4924 = vsel %vm4912, %v4902, %v4905
        %v4925 = vsel %vm4915, %v4911, 1326507024
        %v4926 = vsel %vm4914, %v4908, %v4925
        %v4927 = vsel %vm4913, %v4924, %v4926
        %v4928 = vshll.u32 %v4888, 8
        %v4929 = vmul.u32.u64.compose %v4928, %v4927
        %v4930 = vextract.low.u32 %v4929
        %v4931 = vextract.high.u32 %v4929
        %v4932 = vmul.u32.u64.compose %v4928, %v4923
        %v4933 = vextract.low.u32 %v4932
        %v4934 = vextract.high.u32 %v4932
        %v4935 = vmul.u32 %v4928, %v4919
        %v4936 = vadd.s32 %v4931, %v4933
        %vm4937 = vc.u32 %v4931, %v4933
        %v4938 = vadd.s32 %v4934, 1
        %v4939 = vsel %vm4937, %v4938, %v4934
        %v4940 = vadd.s32 %v4935, %v4939
        %v4941 = vadd.s32 %v4940, 536870912
        %v4942 = vshrl.u32 %v4941, 30
        %v4943 = vshll.u32 %v4942, 30
        %v4944 = vsub.s32 %v4940, %v4943
        %vm4945 = vcmp.lt.s32.totalorder %v4944, 0
        %v4946 = vsub.s32 0, %v4944
        %v4947 = vsel %vm4945, %v4946, %v4944
        %v4948 = vclz %v4947
        %v4949 = vsub.s32 %v4948, 2
        %vm4950 = vcmp.gt.s32.totalorder 0, %v4949
        %v4951 = vsel %vm4950, 0, %v4949
        %v4952 = vsub.s32 32, %v4951
        %v4953 = vshll.u32 %v4944, %v4951
        %v4954 = vshrl.u32 %v4936, %v4952
        %v4955 = vor.u32 %v4953, %v4954
        %v4956 = vsub.s32 4294967266, %v4951
        %v4957 = vadd.s32 %v4956, 127
        %v4958 = vshll.u32 %v4957, 23
        %v4959 = vor.u32 4788187, %v4958
        %v4960 = vand.u32 2147483647, %v4959
        %v4962 = vcvt.s32.f32 %v4955
        %v4963 = vmul.f32 %v4962, %v4960
        %v4964 = vxor.u32 %v4963, 2147483648
        %v4965 = vsel %vm4882, %v4964, %v4963
        %v4966 = vsub.s32 4, %v4942
        %v4967 = vsel %vm4882, %v4966, %v4942
        %v4968 = vsel %vm4881, %v2078, %v4965
        %v4969 = vsel %vm4881, 0, %v4967
        %v4970 = vcosq.f32.pop %v4968
        %v4971 = vsinq.f32.pop %v4968
        %vm4972 = vweird.f32 %v2078
        %v4973 = vand.u32 %v4969, 3
        %vm4974 = vcmp.lt.s32.totalorder %v4973, 2
        %vm4975 = vcmp.eq.s32.totalorder %v4973, 0
        %v4976 = vxor.u32 %v4971, 2147483648
        %v4977 = vsel %vm4975, %v4970, %v4976
        %vm4978 = vcmp.eq.s32.totalorder %v4973, 2
        %v4979 = vxor.u32 %v4970, 2147483648
        %v4980 = vsel %vm4978, %v4979, %v4971
        %v4981 = vsel %vm4974, %v4977, %v4980
        %v4982 = vsel %vm4972, nan, %v4981
        %v4983 = vand.u32 2147483647, %v2079
        %vm4984 = vcmp.le.f32.partialorder %v4983, 0.7853982
        %vm4985 = vcmp.lt.s32.totalorder %v2079, 0
        %v4986 = vand.u32 %v2079, 2139095040
        %v4987 = vshrl.u32 %v4986, 23
        %v4988 = vsub.s32 %v4987, 127
        %v4989 = vand.u32 2147483647, %v2079
        %v4990 = vand.u32 %v4989, 8388607
        %v4991 = vor.u32 %v4990, 8388608
        %v4992 = vsub.s32 0, %v4991
        %v4993 = vadd.s32 %v4988, 1
        %vm4994 = vcmp.gt.s32.totalorder %v4993, 0
        %v4995 = vsel %vm4994, %v4993, 0
        %v4996 = vshrl.u32 %v4995, 5
        %v4997 = vand.u32 %v4995, 31
        %v4998 = vsub.s32 32, %v4997
        %v4999 = vshrl.u32 683565275, %v4998
        %v5000 = vshll.u32 683565275, %v4997
        %v5001 = vshrl.u32 2475754826, %v4998
        %v5002 = vor.u32 %v5000, %v5001
        %v5003 = vshll.u32 2475754826, %v4997
        %v5004 = vshrl.u32 2131351028, %v4998
        %v5005 = vor.u32 %v5003, %v5004
        %v5006 = vshll.u32 2131351028, %v4997
        %v5007 = vshrl.u32 2102212464, %v4998
        %v5008 = vor.u32 %v5006, %v5007
        %v5009 = vshll.u32 2102212464, %v4997
        %v5010 = vshrl.u32 920167782, %v4998
        %v5011 = vor.u32 %v5009, %v5010
        %v5012 = vshll.u32 920167782, %v4997
        %v5013 = vshrl.u32 1326507024, %v4998
        %v5014 = vor.u32 %v5012, %v5013
        %vm5015 = vcmp.lt.s32.totalorder %v4996, 1
        %vm5016 = vcmp.lt.s32.totalorder %v4996, 2
        %vm5017 = vcmp.lt.s32.totalorder %v4996, 3
        %vm5018 = vcmp.lt.s32.totalorder %v4996, 4
        %v5019 = vsel %vm5015, %v4999, %v5002
        %v5020 = vsel %vm5018, %v5008, 2102212464
        %v5021 = vsel %vm5017, %v5005, %v5020
        %v5022 = vsel %vm5016, %v5019, %v5021
        %v5023 = vsel %vm5015, %v5002, %v5005
        %v5024 = vsel %vm5018, %v5011, 920167782
        %v5025 = vsel %vm5017, %v5008, %v5024
        %v5026 = vsel %vm5016, %v5023, %v5025
        %v5027 = vsel %vm5015, %v5005, %v5008
        %v5028 = vsel %vm5018, %v5014, 1326507024
        %v5029 = vsel %vm5017, %v5011, %v5028
        %v5030 = vsel %vm5016, %v5027, %v5029
        %v5031 = vshll.u32 %v4991, 8
        %v5032 = vmul.u32.u64.compose %v5031, %v5030
        %v5033 = vextract.low.u32 %v5032
        %v5034 = vextract.high.u32 %v5032
        %v5035 = vmul.u32.u64.compose %v5031, %v5026
        %v5036 = vextract.low.u32 %v5035
        %v5037 = vextract.high.u32 %v5035
        %v5038 = vmul.u32 %v5031, %v5022
        %v5039 = vadd.s32 %v5034, %v5036
        %vm5040 = vc.u32 %v5034, %v5036
        %v5041 = vadd.s32 %v5037, 1
        %v5042 = vsel %vm5040, %v5041, %v5037
        %v5043 = vadd.s32 %v5038, %v5042
        %v5044 = vadd.s32 %v5043, 536870912
        %v5045 = vshrl.u32 %v5044, 30
        %v5046 = vshll.u32 %v5045, 30
        %v5047 = vsub.s32 %v5043, %v5046
        %vm5048 = vcmp.lt.s32.totalorder %v5047, 0
        %v5049 = vsub.s32 0, %v5047
        %v5050 = vsel %vm5048, %v5049, %v5047
        %v5051 = vclz %v5050
        %v5052 = vsub.s32 %v5051, 2
        %vm5053 = vcmp.gt.s32.totalorder 0, %v5052
        %v5054 = vsel %vm5053, 0, %v5052
        %v5055 = vsub.s32 32, %v5054
        %v5056 = vshll.u32 %v5047, %v5054
        %v5057 = vshrl.u32 %v5039, %v5055
        %v5058 = vor.u32 %v5056, %v5057
        %v5059 = vsub.s32 4294967266, %v5054
        %v5060 = vadd.s32 %v5059, 127
        %v5061 = vshll.u32 %v5060, 23
        %v5062 = vor.u32 4788187, %v5061
        %v5063 = vand.u32 2147483647, %v5062
        %v5065 = vcvt.s32.f32 %v5058
        %v5066 = vmul.f32 %v5065, %v5063
        %v5067 = vxor.u32 %v5066, 2147483648
        %v5068 = vsel %vm4985, %v5067, %v5066
        %v5069 = vsub.s32 4, %v5045
        %v5070 = vsel %vm4985, %v5069, %v5045
        %v5071 = vsel %vm4984, %v2079, %v5068
        %v5072 = vsel %vm4984, 0, %v5070
        %v5073 = vcosq.f32.pop %v5071
        %v5074 = vsinq.f32.pop %v5071
        %vm5075 = vweird.f32 %v2079
        %v5076 = vand.u32 %v5072, 3
        %vm5077 = vcmp.lt.s32.totalorder %v5076, 2
        %vm5078 = vcmp.eq.s32.totalorder %v5076, 0
        %v5079 = vxor.u32 %v5074, 2147483648
        %v5080 = vsel %vm5078, %v5073, %v5079
        %vm5081 = vcmp.eq.s32.totalorder %v5076, 2
        %v5082 = vxor.u32 %v5073, 2147483648
        %v5083 = vsel %vm5081, %v5082, %v5074
        %v5084 = vsel %vm5077, %v5080, %v5083
        %v5085 = vsel %vm5075, nan, %v5084
        %v5086 = vand.u32 2147483647, %v2080
        %vm5087 = vcmp.le.f32.partialorder %v5086, 0.7853982
        %vm5088 = vcmp.lt.s32.totalorder %v2080, 0
        %v5089 = vand.u32 %v2080, 2139095040
        %v5090 = vshrl.u32 %v5089, 23
        %v5091 = vsub.s32 %v5090, 127
        %v5092 = vand.u32 2147483647, %v2080
        %v5093 = vand.u32 %v5092, 8388607
        %v5094 = vor.u32 %v5093, 8388608
        %v5095 = vsub.s32 0, %v5094
        %v5096 = vadd.s32 %v5091, 1
        %vm5097 = vcmp.gt.s32.totalorder %v5096, 0
        %v5098 = vsel %vm5097, %v5096, 0
        %v5099 = vshrl.u32 %v5098, 5
        %v5100 = vand.u32 %v5098, 31
        %v5101 = vsub.s32 32, %v5100
        %v5102 = vshrl.u32 683565275, %v5101
        %v5103 = vshll.u32 683565275, %v5100
        %v5104 = vshrl.u32 2475754826, %v5101
        %v5105 = vor.u32 %v5103, %v5104
        %v5106 = vshll.u32 2475754826, %v5100
        %v5107 = vshrl.u32 2131351028, %v5101
        %v5108 = vor.u32 %v5106, %v5107
        %v5109 = vshll.u32 2131351028, %v5100
        %v5110 = vshrl.u32 2102212464, %v5101
        %v5111 = vor.u32 %v5109, %v5110
        %v5112 = vshll.u32 2102212464, %v5100
        %v5113 = vshrl.u32 920167782, %v5101
        %v5114 = vor.u32 %v5112, %v5113
        %v5115 = vshll.u32 920167782, %v5100
        %v5116 = vshrl.u32 1326507024, %v5101
        %v5117 = vor.u32 %v5115, %v5116
        %vm5118 = vcmp.lt.s32.totalorder %v5099, 1
        %vm5119 = vcmp.lt.s32.totalorder %v5099, 2
        %vm5120 = vcmp.lt.s32.totalorder %v5099, 3
        %vm5121 = vcmp.lt.s32.totalorder %v5099, 4
        %v5122 = vsel %vm5118, %v5102, %v5105
        %v5123 = vsel %vm5121, %v5111, 2102212464
        %v5124 = vsel %vm5120, %v5108, %v5123
        %v5125 = vsel %vm5119, %v5122, %v5124
        %v5126 = vsel %vm5118, %v5105, %v5108
        %v5127 = vsel %vm5121, %v5114, 920167782
        %v5128 = vsel %vm5120, %v5111, %v5127
        %v5129 = vsel %vm5119, %v5126, %v5128
        %v5130 = vsel %vm5118, %v5108, %v5111
        %v5131 = vsel %vm5121, %v5117, 1326507024
        %v5132 = vsel %vm5120, %v5114, %v5131
        %v5133 = vsel %vm5119, %v5130, %v5132
        %v5134 = vshll.u32 %v5094, 8
        %v5135 = vmul.u32.u64.compose %v5134, %v5133
        %v5136 = vextract.low.u32 %v5135
        %v5137 = vextract.high.u32 %v5135
        %v5138 = vmul.u32.u64.compose %v5134, %v5129
        %v5139 = vextract.low.u32 %v5138
        %v5140 = vextract.high.u32 %v5138
        %v5141 = vmul.u32 %v5134, %v5125
        %v5142 = vadd.s32 %v5137, %v5139
        %vm5143 = vc.u32 %v5137, %v5139
        %v5144 = vadd.s32 %v5140, 1
        %v5145 = vsel %vm5143, %v5144, %v5140
        %v5146 = vadd.s32 %v5141, %v5145
        %v5147 = vadd.s32 %v5146, 536870912
        %v5148 = vshrl.u32 %v5147, 30
        %v5149 = vshll.u32 %v5148, 30
        %v5150 = vsub.s32 %v5146, %v5149
        %vm5151 = vcmp.lt.s32.totalorder %v5150, 0
        %v5152 = vsub.s32 0, %v5150
        %v5153 = vsel %vm5151, %v5152, %v5150
        %v5154 = vclz %v5153
        %v5155 = vsub.s32 %v5154, 2
        %vm5156 = vcmp.gt.s32.totalorder 0, %v5155
        %v5157 = vsel %vm5156, 0, %v5155
        %v5158 = vsub.s32 32, %v5157
        %v5159 = vshll.u32 %v5150, %v5157
        %v5160 = vshrl.u32 %v5142, %v5158
        %v5161 = vor.u32 %v5159, %v5160
        %v5162 = vsub.s32 4294967266, %v5157
        %v5163 = vadd.s32 %v5162, 127
        %v5164 = vshll.u32 %v5163, 23
        %v5165 = vor.u32 4788187, %v5164
        %v5166 = vand.u32 2147483647, %v5165
        %v5168 = vcvt.s32.f32 %v5161
        %v5169 = vmul.f32 %v5168, %v5166
        %v5170 = vxor.u32 %v5169, 2147483648
        %v5171 = vsel %vm5088, %v5170, %v5169
        %v5172 = vsub.s32 4, %v5148
        %v5173 = vsel %vm5088, %v5172, %v5148
        %v5174 = vsel %vm5087, %v2080, %v5171
        %v5175 = vsel %vm5087, 0, %v5173
        %v5176 = vcosq.f32.pop %v5174
        %v5177 = vsinq.f32.pop %v5174
        %vm5178 = vweird.f32 %v2080
        %v5179 = vand.u32 %v5175, 3
        %vm5180 = vcmp.lt.s32.totalorder %v5179, 2
        %vm5181 = vcmp.eq.s32.totalorder %v5179, 0
        %v5182 = vxor.u32 %v5177, 2147483648
        %v5183 = vsel %vm5181, %v5176, %v5182
        %vm5184 = vcmp.eq.s32.totalorder %v5179, 2
        %v5185 = vxor.u32 %v5176, 2147483648
        %v5186 = vsel %vm5184, %v5185, %v5177
        %v5187 = vsel %vm5180, %v5183, %v5186
        %v5188 = vsel %vm5178, nan, %v5187
        %v5189 = vand.u32 2147483647, %v2081
        %vm5190 = vcmp.le.f32.partialorder %v5189, 0.7853982
        %vm5191 = vcmp.lt.s32.totalorder %v2081, 0
        %v5192 = vand.u32 %v2081, 2139095040
        %v5193 = vshrl.u32 %v5192, 23
        %v5194 = vsub.s32 %v5193, 127
        %v5195 = vand.u32 2147483647, %v2081
        %v5196 = vand.u32 %v5195, 8388607
        %v5197 = vor.u32 %v5196, 8388608
        %v5198 = vsub.s32 0, %v5197
        %v5199 = vadd.s32 %v5194, 1
        %vm5200 = vcmp.gt.s32.totalorder %v5199, 0
        %v5201 = vsel %vm5200, %v5199, 0
        %v5202 = vshrl.u32 %v5201, 5
        %v5203 = vand.u32 %v5201, 31
        %v5204 = vsub.s32 32, %v5203
        %v5205 = vshrl.u32 683565275, %v5204
        %v5206 = vshll.u32 683565275, %v5203
        %v5207 = vshrl.u32 2475754826, %v5204
        %v5208 = vor.u32 %v5206, %v5207
        %v5209 = vshll.u32 2475754826, %v5203
        %v5210 = vshrl.u32 2131351028, %v5204
        %v5211 = vor.u32 %v5209, %v5210
        %v5212 = vshll.u32 2131351028, %v5203
        %v5213 = vshrl.u32 2102212464, %v5204
        %v5214 = vor.u32 %v5212, %v5213
        %v5215 = vshll.u32 2102212464, %v5203
        %v5216 = vshrl.u32 920167782, %v5204
        %v5217 = vor.u32 %v5215, %v5216
        %v5218 = vshll.u32 920167782, %v5203
        %v5219 = vshrl.u32 1326507024, %v5204
        %v5220 = vor.u32 %v5218, %v5219
        %vm5221 = vcmp.lt.s32.totalorder %v5202, 1
        %vm5222 = vcmp.lt.s32.totalorder %v5202, 2
        %vm5223 = vcmp.lt.s32.totalorder %v5202, 3
        %vm5224 = vcmp.lt.s32.totalorder %v5202, 4
        %v5225 = vsel %vm5221, %v5205, %v5208
        %v5226 = vsel %vm5224, %v5214, 2102212464
        %v5227 = vsel %vm5223, %v5211, %v5226
        %v5228 = vsel %vm5222, %v5225, %v5227
        %v5229 = vsel %vm5221, %v5208, %v5211
        %v5230 = vsel %vm5224, %v5217, 920167782
        %v5231 = vsel %vm5223, %v5214, %v5230
        %v5232 = vsel %vm5222, %v5229, %v5231
        %v5233 = vsel %vm5221, %v5211, %v5214
        %v5234 = vsel %vm5224, %v5220, 1326507024
        %v5235 = vsel %vm5223, %v5217, %v5234
        %v5236 = vsel %vm5222, %v5233, %v5235
        %v5237 = vshll.u32 %v5197, 8
        %v5238 = vmul.u32.u64.compose %v5237, %v5236
        %v5239 = vextract.low.u32 %v5238
        %v5240 = vextract.high.u32 %v5238
        %v5241 = vmul.u32.u64.compose %v5237, %v5232
        %v5242 = vextract.low.u32 %v5241
        %v5243 = vextract.high.u32 %v5241
        %v5244 = vmul.u32 %v5237, %v5228
        %v5245 = vadd.s32 %v5240, %v5242
        %vm5246 = vc.u32 %v5240, %v5242
        %v5247 = vadd.s32 %v5243, 1
        %v5248 = vsel %vm5246, %v5247, %v5243
        %v5249 = vadd.s32 %v5244, %v5248
        %v5250 = vadd.s32 %v5249, 536870912
        %v5251 = vshrl.u32 %v5250, 30
        %v5252 = vshll.u32 %v5251, 30
        %v5253 = vsub.s32 %v5249, %v5252
        %vm5254 = vcmp.lt.s32.totalorder %v5253, 0
        %v5255 = vsub.s32 0, %v5253
        %v5256 = vsel %vm5254, %v5255, %v5253
        %v5257 = vclz %v5256
        %v5258 = vsub.s32 %v5257, 2
        %vm5259 = vcmp.gt.s32.totalorder 0, %v5258
        %v5260 = vsel %vm5259, 0, %v5258
        %v5261 = vsub.s32 32, %v5260
        %v5262 = vshll.u32 %v5253, %v5260
        %v5263 = vshrl.u32 %v5245, %v5261
        %v5264 = vor.u32 %v5262, %v5263
        %v5265 = vsub.s32 4294967266, %v5260
        %v5266 = vadd.s32 %v5265, 127
        %v5267 = vshll.u32 %v5266, 23
        %v5268 = vor.u32 4788187, %v5267
        %v5269 = vand.u32 2147483647, %v5268
        %v5271 = vcvt.s32.f32 %v5264
        %v5272 = vmul.f32 %v5271, %v5269
        %v5273 = vxor.u32 %v5272, 2147483648
        %v5274 = vsel %vm5191, %v5273, %v5272
        %v5275 = vsub.s32 4, %v5251
        %v5276 = vsel %vm5191, %v5275, %v5251
        %v5277 = vsel %vm5190, %v2081, %v5274
        %v5278 = vsel %vm5190, 0, %v5276
        %v5279 = vcosq.f32.pop %v5277
        %v5280 = vsinq.f32.pop %v5277
        %vm5281 = vweird.f32 %v2081
        %v5282 = vand.u32 %v5278, 3
        %vm5283 = vcmp.lt.s32.totalorder %v5282, 2
        %vm5284 = vcmp.eq.s32.totalorder %v5282, 0
        %v5285 = vxor.u32 %v5280, 2147483648
        %v5286 = vsel %vm5284, %v5279, %v5285
        %vm5287 = vcmp.eq.s32.totalorder %v5282, 2
        %v5288 = vxor.u32 %v5279, 2147483648
        %v5289 = vsel %vm5287, %v5288, %v5280
        %v5290 = vsel %vm5283, %v5286, %v5289
        %v5291 = vsel %vm5281, nan, %v5290
        %v5292 = vand.u32 2147483647, %v2082
        %vm5293 = vcmp.le.f32.partialorder %v5292, 0.7853982
        %vm5294 = vcmp.lt.s32.totalorder %v2082, 0
        %v5295 = vand.u32 %v2082, 2139095040
        %v5296 = vshrl.u32 %v5295, 23
        %v5297 = vsub.s32 %v5296, 127
        %v5298 = vand.u32 2147483647, %v2082
        %v5299 = vand.u32 %v5298, 8388607
        %v5300 = vor.u32 %v5299, 8388608
        %v5301 = vsub.s32 0, %v5300
        %v5302 = vadd.s32 %v5297, 1
        %vm5303 = vcmp.gt.s32.totalorder %v5302, 0
        %v5304 = vsel %vm5303, %v5302, 0
        %v5305 = vshrl.u32 %v5304, 5
        %v5306 = vand.u32 %v5304, 31
        %v5307 = vsub.s32 32, %v5306
        %v5308 = vshrl.u32 683565275, %v5307
        %v5309 = vshll.u32 683565275, %v5306
        %v5310 = vshrl.u32 2475754826, %v5307
        %v5311 = vor.u32 %v5309, %v5310
        %v5312 = vshll.u32 2475754826, %v5306
        %v5313 = vshrl.u32 2131351028, %v5307
        %v5314 = vor.u32 %v5312, %v5313
        %v5315 = vshll.u32 2131351028, %v5306
        %v5316 = vshrl.u32 2102212464, %v5307
        %v5317 = vor.u32 %v5315, %v5316
        %v5318 = vshll.u32 2102212464, %v5306
        %v5319 = vshrl.u32 920167782, %v5307
        %v5320 = vor.u32 %v5318, %v5319
        %v5321 = vshll.u32 920167782, %v5306
        %v5322 = vshrl.u32 1326507024, %v5307
        %v5323 = vor.u32 %v5321, %v5322
        %vm5324 = vcmp.lt.s32.totalorder %v5305, 1
        %vm5325 = vcmp.lt.s32.totalorder %v5305, 2
        %vm5326 = vcmp.lt.s32.totalorder %v5305, 3
        %vm5327 = vcmp.lt.s32.totalorder %v5305, 4
        %v5328 = vsel %vm5324, %v5308, %v5311
        %v5329 = vsel %vm5327, %v5317, 2102212464
        %v5330 = vsel %vm5326, %v5314, %v5329
        %v5331 = vsel %vm5325, %v5328, %v5330
        %v5332 = vsel %vm5324, %v5311, %v5314
        %v5333 = vsel %vm5327, %v5320, 920167782
        %v5334 = vsel %vm5326, %v5317, %v5333
        %v5335 = vsel %vm5325, %v5332, %v5334
        %v5336 = vsel %vm5324, %v5314, %v5317
        %v5337 = vsel %vm5327, %v5323, 1326507024
        %v5338 = vsel %vm5326, %v5320, %v5337
        %v5339 = vsel %vm5325, %v5336, %v5338
        %v5340 = vshll.u32 %v5300, 8
        %v5341 = vmul.u32.u64.compose %v5340, %v5339
        %v5342 = vextract.low.u32 %v5341
        %v5343 = vextract.high.u32 %v5341
        %v5344 = vmul.u32.u64.compose %v5340, %v5335
        %v5345 = vextract.low.u32 %v5344
        %v5346 = vextract.high.u32 %v5344
        %v5347 = vmul.u32 %v5340, %v5331
        %v5348 = vadd.s32 %v5343, %v5345
        %vm5349 = vc.u32 %v5343, %v5345
        %v5350 = vadd.s32 %v5346, 1
        %v5351 = vsel %vm5349, %v5350, %v5346
        %v5352 = vadd.s32 %v5347, %v5351
        %v5353 = vadd.s32 %v5352, 536870912
        %v5354 = vshrl.u32 %v5353, 30
        %v5355 = vshll.u32 %v5354, 30
        %v5356 = vsub.s32 %v5352, %v5355
        %vm5357 = vcmp.lt.s32.totalorder %v5356, 0
        %v5358 = vsub.s32 0, %v5356
        %v5359 = vsel %vm5357, %v5358, %v5356
        %v5360 = vclz %v5359
        %v5361 = vsub.s32 %v5360, 2
        %vm5362 = vcmp.gt.s32.totalorder 0, %v5361
        %v5363 = vsel %vm5362, 0, %v5361
        %v5364 = vsub.s32 32, %v5363
        %v5365 = vshll.u32 %v5356, %v5363
        %v5366 = vshrl.u32 %v5348, %v5364
        %v5367 = vor.u32 %v5365, %v5366
        %v5368 = vsub.s32 4294967266, %v5363
        %v5369 = vadd.s32 %v5368, 127
        %v5370 = vshll.u32 %v5369, 23
        %v5371 = vor.u32 4788187, %v5370
        %v5372 = vand.u32 2147483647, %v5371
        %v5374 = vcvt.s32.f32 %v5367
        %v5375 = vmul.f32 %v5374, %v5372
        %v5376 = vxor.u32 %v5375, 2147483648
        %v5377 = vsel %vm5294, %v5376, %v5375
        %v5378 = vsub.s32 4, %v5354
        %v5379 = vsel %vm5294, %v5378, %v5354
        %v5380 = vsel %vm5293, %v2082, %v5377
        %v5381 = vsel %vm5293, 0, %v5379
        %v5382 = vcosq.f32.pop %v5380
        %v5383 = vsinq.f32.pop %v5380
        %vm5384 = vweird.f32 %v2082
        %v5385 = vand.u32 %v5381, 3
        %vm5386 = vcmp.lt.s32.totalorder %v5385, 2
        %vm5387 = vcmp.eq.s32.totalorder %v5385, 0
        %v5388 = vxor.u32 %v5383, 2147483648
        %v5389 = vsel %vm5387, %v5382, %v5388
        %vm5390 = vcmp.eq.s32.totalorder %v5385, 2
        %v5391 = vxor.u32 %v5382, 2147483648
        %v5392 = vsel %vm5390, %v5391, %v5383
        %v5393 = vsel %vm5386, %v5389, %v5392
        %v5394 = vsel %vm5384, nan, %v5393
        %v5395 = vmul.f32 %v2186, 2.0
        %v5396 = vmul.f32 %v2290, 2.0
        %v5397 = vmul.f32 %v2394, 2.0
        %v5398 = vmul.f32 %v2498, 2.0
        %v5399 = vmul.f32 %v2602, 2.0
        %v5400 = vmul.f32 %v2706, 2.0
        %v5401 = vmul.f32 %v2810, 2.0
        %v5402 = vmul.f32 %v2914, 2.0
        %v5403 = vmul.f32 %v3018, 2.0
        %v5404 = vmul.f32 %v3122, 2.0
        %v5405 = vmul.f32 %v3226, 2.0
        %v5406 = vmul.f32 %v3330, 2.0
        %v5407 = vmul.f32 %v3434, 2.0
        %v5408 = vmul.f32 %v3538, 2.0
        %v5409 = vmul.f32 %v3642, 2.0
        %v5410 = vmul.f32 %v3746, 2.0
        %v5411 = vmul.f32 %v5395, %v3849
        %v5412 = vmul.f32 %v5396, %v3952
        %v5413 = vmul.f32 %v5397, %v4055
        %v5414 = vmul.f32 %v5398, %v4158
        %v5415 = vmul.f32 %v5399, %v4261
        %v5416 = vmul.f32 %v5400, %v4364
        %v5417 = vmul.f32 %v5401, %v4467
        %v5418 = vmul.f32 %v5402, %v4570
        %v5419 = vmul.f32 %v5403, %v4673
        %v5420 = vmul.f32 %v5404, %v4776
        %v5421 = vmul.f32 %v5405, %v4879
        %v5422 = vmul.f32 %v5406, %v4982
        %v5423 = vmul.f32 %v5407, %v5085
        %v5424 = vmul.f32 %v5408, %v5188
        %v5425 = vmul.f32 %v5409, %v5291
        %v5426 = vmul.f32 %v5410, %v5394
        %v5427 = vmul.f32 %v5395, %v2186
        %v5428 = vmul.f32 %v5396, %v2290
        %v5429 = vmul.f32 %v5397, %v2394
        %v5430 = vmul.f32 %v5398, %v2498
        %v5431 = vmul.f32 %v5399, %v2602
        %v5432 = vmul.f32 %v5400, %v2706
        %v5433 = vmul.f32 %v5401, %v2810
        %v5434 = vmul.f32 %v5402, %v2914
        %v5435 = vmul.f32 %v5403, %v3018
        %v5436 = vmul.f32 %v5404, %v3122
        %v5437 = vmul.f32 %v5405, %v3226
        %v5438 = vmul.f32 %v5406, %v3330
        %v5439 = vmul.f32 %v5407, %v3434
        %v5440 = vmul.f32 %v5408, %v3538
        %v5441 = vmul.f32 %v5409, %v3642
        %v5442 = vmul.f32 %v5410, %v3746
        %v5443 = vsub.f32 1.0, %v5427
        %v5444 = vsub.f32 1.0, %v5428
        %v5445 = vsub.f32 1.0, %v5429
        %v5446 = vsub.f32 1.0, %v5430
        %v5447 = vsub.f32 1.0, %v5431
        %v5448 = vsub.f32 1.0, %v5432
        %v5449 = vsub.f32 1.0, %v5433
        %v5450 = vsub.f32 1.0, %v5434
        %v5451 = vsub.f32 1.0, %v5435
        %v5452 = vsub.f32 1.0, %v5436
        %v5453 = vsub.f32 1.0, %v5437
        %v5454 = vsub.f32 1.0, %v5438
        %v5455 = vsub.f32 1.0, %v5439
        %v5456 = vsub.f32 1.0, %v5440
        %v5457 = vsub.f32 1.0, %v5441
        %v5458 = vsub.f32 1.0, %v5442
        %vm5475 = vcmask 1042432
        %v5476 = vrot.slane %v3849, 5
        %v5477 = vrot.slane %v3952, 5
        %v5478 = vrot.slane %v4055, 5
        %v5479 = vrot.slane %v4158, 5
        %v5480 = vrot.slane %v4261, 5
        %v5481 = vsel %vm5475, %v5476, %v5480
        %v5482 = vrot.slane %v4364, 5
        %v5483 = vsel %vm5475, %v5477, %v5482
        %v5484 = vrot.slane %v4467, 5
        %v5485 = vsel %vm5475, %v5478, %v5484
        %v5486 = vrot.slane %v4570, 5
        %v5487 = vsel %vm5475, %v5479, %v5486
        %v5488 = vrot.slane %v4673, 5
        %v5489 = vsel %vm5475, %v5480, %v5488
        %v5490 = vrot.slane %v4776, 5
        %v5491 = vsel %vm5475, %v5482, %v5490
        %v5492 = vrot.slane %v4879, 5
        %v5493 = vsel %vm5475, %v5484, %v5492
        %v5494 = vrot.slane %v4982, 5
        %v5495 = vsel %vm5475, %v5486, %v5494
        %v5496 = vrot.slane %v5085, 5
        %v5497 = vsel %vm5475, %v5488, %v5496
        %v5498 = vrot.slane %v5188, 5
        %v5499 = vsel %vm5475, %v5490, %v5498
        %v5500 = vrot.slane %v5291, 5
        %v5501 = vsel %vm5475, %v5492, %v5500
        %v5502 = vrot.slane %v5394, 5
        %v5503 = vsel %vm5475, %v5494, %v5502
        %vm5536 = vcmask 1045504
        %v5537 = vrot.slane %v5411, 2
        %v5538 = vrot.slane %v5412, 2
        %v5539 = vrot.slane %v5413, 2
        %v5540 = vrot.slane %v5414, 2
        %v5541 = vrot.slane %v5415, 2
        %v5542 = vsel %vm5536, %v5537, %v5541
        %v5543 = vrot.slane %v5416, 2
        %v5544 = vsel %vm5536, %v5538, %v5543
        %v5545 = vrot.slane %v5417, 2
        %v5546 = vsel %vm5536, %v5539, %v5545
        %v5547 = vrot.slane %v5418, 2
        %v5548 = vsel %vm5536, %v5540, %v5547
        %v5549 = vrot.slane %v5419, 2
        %v5550 = vsel %vm5536, %v5541, %v5549
        %v5551 = vrot.slane %v5420, 2
        %v5552 = vsel %vm5536, %v5543, %v5551
        %v5553 = vrot.slane %v5421, 2
        %v5554 = vsel %vm5536, %v5545, %v5553
        %v5555 = vrot.slane %v5422, 2
        %v5556 = vsel %vm5536, %v5547, %v5555
        %v5557 = vrot.slane %v5423, 2
        %v5558 = vsel %vm5536, %v5549, %v5557
        %v5559 = vrot.slane %v5424, 2
        %v5560 = vsel %vm5536, %v5551, %v5559
        %v5561 = vrot.slane %v5425, 2
        %v5562 = vsel %vm5536, %v5553, %v5561
        %v5563 = vrot.slane %v5426, 2
        %v5564 = vsel %vm5536, %v5555, %v5563
        %vm5601 = vcmask 1040384
        %v5602 = vrot.slane %v5443, 7
        %v5603 = vrot.slane %v5444, 7
        %v5604 = vrot.slane %v5445, 7
        %v5605 = vrot.slane %v5446, 7
        %v5606 = vrot.slane %v5447, 7
        %v5607 = vsel %vm5601, %v5602, %v5606
        %v5608 = vrot.slane %v5448, 7
        %v5609 = vsel %vm5601, %v5603, %v5608
        %v5610 = vrot.slane %v5449, 7
        %v5611 = vsel %vm5601, %v5604, %v5610
        %v5612 = vrot.slane %v5450, 7
        %v5613 = vsel %vm5601, %v5605, %v5612
        %v5614 = vrot.slane %v5451, 7
        %v5615 = vsel %vm5601, %v5606, %v5614
        %v5616 = vrot.slane %v5452, 7
        %v5617 = vsel %vm5601, %v5608, %v5616
        %v5618 = vrot.slane %v5453, 7
        %v5619 = vsel %vm5601, %v5610, %v5618
        %v5620 = vrot.slane %v5454, 7
        %v5621 = vsel %vm5601, %v5612, %v5620
        %v5622 = vrot.slane %v5455, 7
        %v5623 = vsel %vm5601, %v5614, %v5622
        %v5624 = vrot.slane %v5456, 7
        %v5625 = vsel %vm5601, %v5616, %v5624
        %v5626 = vrot.slane %v5457, 7
        %v5627 = vsel %vm5601, %v5618, %v5626
        %v5628 = vrot.slane %v5458, 7
        %v5629 = vsel %vm5601, %v5620, %v5628
        %v5646 = vsel %vm5475, %v3434, %v5476
        %v5647 = vsel %vm5475, %v3538, %v5477
        %v5648 = vsel %vm5475, %v3642, %v5478
        %v5649 = vsel %vm5475, %v3746, %v5479
        %v5650 = vsel %vm5536, %v5497, %v5537
        %v5651 = vsel %vm5536, %v5499, %v5538
        %v5652 = vsel %vm5536, %v5501, %v5539
        %v5653 = vsel %vm5536, %v5503, %v5540
        %v5654 = vsel %vm5601, %v5557, %v5602
        %v5655 = vsel %vm5601, %v5559, %v5603
        %v5656 = vsel %vm5601, %v5561, %v5604
        %v5657 = vsel %vm5601, %v5563, %v5605
        %v5658 = vpack.c.bf16 %v2602, %v2186
        %v5659 = vpack.c.bf16 %v2706, %v2290
        %v5660 = vpack.c.bf16 %v2810, %v2394
        %v5661 = vpack.c.bf16 %v2914, %v2498
        %v5662 = vpack.c.bf16 %v5646, %v3018
        %v5663 = vpack.c.bf16 %v5647, %v3122
        %v5664 = vpack.c.bf16 %v5648, %v3226
        %v5665 = vpack.c.bf16 %v5649, %v3330
        %v5666 = vpack.c.bf16 %v5489, %v5481
        %v5667 = vpack.c.bf16 %v5491, %v5483
        %v5668 = vpack.c.bf16 %v5493, %v5485
        %v5669 = vpack.c.bf16 %v5495, %v5487
        %v5670 = vpack.c.bf16 %v5542, %v5650
        %v5671 = vpack.c.bf16 %v5544, %v5651
        %v5672 = vpack.c.bf16 %v5546, %v5652
        %v5673 = vpack.c.bf16 %v5548, %v5653
        %v5674 = vpack.c.bf16 %v5558, %v5550
        %v5675 = vpack.c.bf16 %v5560, %v5552
        %v5676 = vpack.c.bf16 %v5562, %v5554
        %v5677 = vpack.c.bf16 %v5564, %v5556
        %v5678 = vpack.c.bf16 %v5607, %v5654
        %v5679 = vpack.c.bf16 %v5609, %v5655
        %v5680 = vpack.c.bf16 %v5611, %v5656
        %v5681 = vpack.c.bf16 %v5613, %v5657
        %v5682 = vpack.c.bf16 %v5623, %v5615
        %v5683 = vpack.c.bf16 %v5625, %v5617
        %v5684 = vpack.c.bf16 %v5627, %v5619
        %v5685 = vpack.c.bf16 %v5629, %v5621
        %v5686 = vld [vmem:[%s499] sm:$0x77]
        %v5687 = vld [vmem:[%s499 + $0x8] sm:$0x77]
        %v5688 = vmul.f32 %v5686, 3.1415927
        %v5689 = vmul.f32 %v5687, 3.1415927
        %v5690 = vand.u32 2147483647, %v5688
        %vm5691 = vcmp.le.f32.partialorder %v5690, 0.7853982
        %vm5692 = vcmp.lt.s32.totalorder %v5688, 0
        %v5693 = vand.u32 %v5688, 2139095040
        %v5694 = vshrl.u32 %v5693, 23
        %v5695 = vsub.s32 %v5694, 127
        %v5696 = vand.u32 2147483647, %v5688
        %v5697 = vand.u32 %v5696, 8388607
        %v5698 = vor.u32 %v5697, 8388608
        %v5699 = vsub.s32 0, %v5698
        %v5700 = vadd.s32 %v5695, 1
        %vm5701 = vcmp.gt.s32.totalorder %v5700, 0
        %v5702 = vsel %vm5701, %v5700, 0
        %v5703 = vshrl.u32 %v5702, 5
        %v5704 = vand.u32 %v5702, 31
        %v5705 = vsub.s32 32, %v5704
        %v5706 = vshrl.u32 683565275, %v5705
        %v5707 = vshll.u32 683565275, %v5704
        %v5708 = vshrl.u32 2475754826, %v5705
        %v5709 = vor.u32 %v5707, %v5708
        %v5710 = vshll.u32 2475754826, %v5704
        %v5711 = vshrl.u32 2131351028, %v5705
        %v5712 = vor.u32 %v5710, %v5711
        %v5713 = vshll.u32 2131351028, %v5704
        %v5714 = vshrl.u32 2102212464, %v5705
        %v5715 = vor.u32 %v5713, %v5714
        %v5716 = vshll.u32 2102212464, %v5704
        %v5717 = vshrl.u32 920167782, %v5705
        %v5718 = vor.u32 %v5716, %v5717
        %v5719 = vshll.u32 920167782, %v5704
        %v5720 = vshrl.u32 1326507024, %v5705
        %v5721 = vor.u32 %v5719, %v5720
        %vm5722 = vcmp.lt.s32.totalorder %v5703, 1
        %vm5723 = vcmp.lt.s32.totalorder %v5703, 2
        %vm5724 = vcmp.lt.s32.totalorder %v5703, 3
        %vm5725 = vcmp.lt.s32.totalorder %v5703, 4
        %v5726 = vsel %vm5722, %v5706, %v5709
        %v5727 = vsel %vm5725, %v5715, 2102212464
        %v5728 = vsel %vm5724, %v5712, %v5727
        %v5729 = vsel %vm5723, %v5726, %v5728
        %v5730 = vsel %vm5722, %v5709, %v5712
        %v5731 = vsel %vm5725, %v5718, 920167782
        %v5732 = vsel %vm5724, %v5715, %v5731
        %v5733 = vsel %vm5723, %v5730, %v5732
        %v5734 = vsel %vm5722, %v5712, %v5715
        %v5735 = vsel %vm5725, %v5721, 1326507024
        %v5736 = vsel %vm5724, %v5718, %v5735
        %v5737 = vsel %vm5723, %v5734, %v5736
        %v5738 = vshll.u32 %v5698, 8
        %v5739 = vmul.u32.u64.compose %v5738, %v5737
        %v5740 = vextract.low.u32 %v5739
        %v5741 = vextract.high.u32 %v5739
        %v5742 = vmul.u32.u64.compose %v5738, %v5733
        %v5743 = vextract.low.u32 %v5742
        %v5744 = vextract.high.u32 %v5742
        %v5745 = vmul.u32 %v5738, %v5729
        %v5746 = vadd.s32 %v5741, %v5743
        %vm5747 = vc.u32 %v5741, %v5743
        %v5748 = vadd.s32 %v5744, 1
        %v5749 = vsel %vm5747, %v5748, %v5744
        %v5750 = vadd.s32 %v5745, %v5749
        %v5751 = vadd.s32 %v5750, 536870912
        %v5752 = vshrl.u32 %v5751, 30
        %v5753 = vshll.u32 %v5752, 30
        %v5754 = vsub.s32 %v5750, %v5753
        %vm5755 = vcmp.lt.s32.totalorder %v5754, 0
        %v5756 = vsub.s32 0, %v5754
        %v5757 = vsel %vm5755, %v5756, %v5754
        %v5758 = vclz %v5757
        %v5759 = vsub.s32 %v5758, 2
        %vm5760 = vcmp.gt.s32.totalorder 0, %v5759
        %v5761 = vsel %vm5760, 0, %v5759
        %v5762 = vsub.s32 32, %v5761
        %v5763 = vshll.u32 %v5754, %v5761
        %v5764 = vshrl.u32 %v5746, %v5762
        %v5765 = vor.u32 %v5763, %v5764
        %v5766 = vsub.s32 4294967266, %v5761
        %v5767 = vadd.s32 %v5766, 127
        %v5768 = vshll.u32 %v5767, 23
        %v5769 = vor.u32 4788187, %v5768
        %v5770 = vand.u32 2147483647, %v5769
        %v5772 = vcvt.s32.f32 %v5765
        %v5773 = vmul.f32 %v5772, %v5770
        %v5774 = vxor.u32 %v5773, 2147483648
        %v5775 = vsel %vm5692, %v5774, %v5773
        %v5776 = vsub.s32 4, %v5752
        %v5777 = vsel %vm5692, %v5776, %v5752
        %v5778 = vsel %vm5691, %v5688, %v5775
        %v5779 = vsel %vm5691, 0, %v5777
        %v5780 = vcosq.f32.pop %v5778
        %v5781 = vsinq.f32.pop %v5778
        %vm5782 = vweird.f32 %v5688
        %v5783 = vadd.s32 %v5779, 3
        %v5784 = vand.u32 %v5783, 3
        %vm5785 = vcmp.lt.s32.totalorder %v5784, 2
        %vm5786 = vcmp.eq.s32.totalorder %v5784, 0
        %v5787 = vxor.u32 %v5781, 2147483648
        %v5788 = vsel %vm5786, %v5780, %v5787
        %vm5789 = vcmp.eq.s32.totalorder %v5784, 2
        %v5790 = vxor.u32 %v5780, 2147483648
        %v5791 = vsel %vm5789, %v5790, %v5781
        %v5792 = vsel %vm5785, %v5788, %v5791
        %v5793 = vsel %vm5782, nan, %v5792
        %v5794 = vand.u32 2147483647, %v5689
        %vm5795 = vcmp.le.f32.partialorder %v5794, 0.7853982
        %vm5796 = vcmp.lt.s32.totalorder %v5689, 0
        %v5797 = vand.u32 %v5689, 2139095040
        %v5798 = vshrl.u32 %v5797, 23
        %v5799 = vsub.s32 %v5798, 127
        %v5800 = vand.u32 2147483647, %v5689
        %v5801 = vand.u32 %v5800, 8388607
        %v5802 = vor.u32 %v5801, 8388608
        %v5803 = vsub.s32 0, %v5802
        %v5804 = vadd.s32 %v5799, 1
        %vm5805 = vcmp.gt.s32.totalorder %v5804, 0
        %v5806 = vsel %vm5805, %v5804, 0
        %v5807 = vshrl.u32 %v5806, 5
        %v5808 = vand.u32 %v5806, 31
        %v5809 = vsub.s32 32, %v5808
        %v5810 = vshrl.u32 683565275, %v5809
        %v5811 = vshll.u32 683565275, %v5808
        %v5812 = vshrl.u32 2475754826, %v5809
        %v5813 = vor.u32 %v5811, %v5812
        %v5814 = vshll.u32 2475754826, %v5808
        %v5815 = vshrl.u32 2131351028, %v5809
        %v5816 = vor.u32 %v5814, %v5815
        %v5817 = vshll.u32 2131351028, %v5808
        %v5818 = vshrl.u32 2102212464, %v5809
        %v5819 = vor.u32 %v5817, %v5818
        %v5820 = vshll.u32 2102212464, %v5808
        %v5821 = vshrl.u32 920167782, %v5809
        %v5822 = vor.u32 %v5820, %v5821
        %v5823 = vshll.u32 920167782, %v5808
        %v5824 = vshrl.u32 1326507024, %v5809
        %v5825 = vor.u32 %v5823, %v5824
        %vm5826 = vcmp.lt.s32.totalorder %v5807, 1
        %vm5827 = vcmp.lt.s32.totalorder %v5807, 2
        %vm5828 = vcmp.lt.s32.totalorder %v5807, 3
        %vm5829 = vcmp.lt.s32.totalorder %v5807, 4
        %v5830 = vsel %vm5826, %v5810, %v5813
        %v5831 = vsel %vm5829, %v5819, 2102212464
        %v5832 = vsel %vm5828, %v5816, %v5831
        %v5833 = vsel %vm5827, %v5830, %v5832
        %v5834 = vsel %vm5826, %v5813, %v5816
        %v5835 = vsel %vm5829, %v5822, 920167782
        %v5836 = vsel %vm5828, %v5819, %v5835
        %v5837 = vsel %vm5827, %v5834, %v5836
        %v5838 = vsel %vm5826, %v5816, %v5819
        %v5839 = vsel %vm5829, %v5825, 1326507024
        %v5840 = vsel %vm5828, %v5822, %v5839
        %v5841 = vsel %vm5827, %v5838, %v5840
        %v5842 = vshll.u32 %v5802, 8
        %v5843 = vmul.u32.u64.compose %v5842, %v5841
        %v5844 = vextract.low.u32 %v5843
        %v5845 = vextract.high.u32 %v5843
        %v5846 = vmul.u32.u64.compose %v5842, %v5837
        %v5847 = vextract.low.u32 %v5846
        %v5848 = vextract.high.u32 %v5846
        %v5849 = vmul.u32 %v5842, %v5833
        %v5850 = vadd.s32 %v5845, %v5847
        %vm5851 = vc.u32 %v5845, %v5847
        %v5852 = vadd.s32 %v5848, 1
        %v5853 = vsel %vm5851, %v5852, %v5848
        %v5854 = vadd.s32 %v5849, %v5853
        %v5855 = vadd.s32 %v5854, 536870912
        %v5856 = vshrl.u32 %v5855, 30
        %v5857 = vshll.u32 %v5856, 30
        %v5858 = vsub.s32 %v5854, %v5857
        %vm5859 = vcmp.lt.s32.totalorder %v5858, 0
        %v5860 = vsub.s32 0, %v5858
        %v5861 = vsel %vm5859, %v5860, %v5858
        %v5862 = vclz %v5861
        %v5863 = vsub.s32 %v5862, 2
        %vm5864 = vcmp.gt.s32.totalorder 0, %v5863
        %v5865 = vsel %vm5864, 0, %v5863
        %v5866 = vsub.s32 32, %v5865
        %v5867 = vshll.u32 %v5858, %v5865
        %v5868 = vshrl.u32 %v5850, %v5866
        %v5869 = vor.u32 %v5867, %v5868
        %v5870 = vsub.s32 4294967266, %v5865
        %v5871 = vadd.s32 %v5870, 127
        %v5872 = vshll.u32 %v5871, 23
        %v5873 = vor.u32 4788187, %v5872
        %v5874 = vand.u32 2147483647, %v5873
        %v5876 = vcvt.s32.f32 %v5869
        %v5877 = vmul.f32 %v5876, %v5874
        %v5878 = vxor.u32 %v5877, 2147483648
        %v5879 = vsel %vm5796, %v5878, %v5877
        %v5880 = vsub.s32 4, %v5856
        %v5881 = vsel %vm5796, %v5880, %v5856
        %v5882 = vsel %vm5795, %v5689, %v5879
        %v5883 = vsel %vm5795, 0, %v5881
        %v5884 = vcosq.f32.pop %v5882
        %v5885 = vsinq.f32.pop %v5882
        %vm5886 = vweird.f32 %v5689
        %v5887 = vadd.s32 %v5883, 3
        %v5888 = vand.u32 %v5887, 3
        %vm5889 = vcmp.lt.s32.totalorder %v5888, 2
        %vm5890 = vcmp.eq.s32.totalorder %v5888, 0
        %v5891 = vxor.u32 %v5885, 2147483648
        %v5892 = vsel %vm5890, %v5884, %v5891
        %vm5893 = vcmp.eq.s32.totalorder %v5888, 2
        %v5894 = vxor.u32 %v5884, 2147483648
        %v5895 = vsel %vm5893, %v5894, %v5885
        %v5896 = vsel %vm5889, %v5892, %v5895
        %v5897 = vsel %vm5886, nan, %v5896
        %v5898 = vand.u32 2147483647, %v5688
        %vm5899 = vcmp.le.f32.partialorder %v5898, 0.7853982
        %vm5900 = vcmp.lt.s32.totalorder %v5688, 0
        %v5901 = vand.u32 %v5688, 2139095040
        %v5902 = vshrl.u32 %v5901, 23
        %v5903 = vsub.s32 %v5902, 127
        %v5904 = vand.u32 2147483647, %v5688
        %v5905 = vand.u32 %v5904, 8388607
        %v5906 = vor.u32 %v5905, 8388608
        %v5907 = vsub.s32 0, %v5906
        %v5908 = vadd.s32 %v5903, 1
        %vm5909 = vcmp.gt.s32.totalorder %v5908, 0
        %v5910 = vsel %vm5909, %v5908, 0
        %v5911 = vshrl.u32 %v5910, 5
        %v5912 = vand.u32 %v5910, 31
        %v5913 = vsub.s32 32, %v5912
        %v5914 = vshrl.u32 683565275, %v5913
        %v5915 = vshll.u32 683565275, %v5912
        %v5916 = vshrl.u32 2475754826, %v5913
        %v5917 = vor.u32 %v5915, %v5916
        %v5918 = vshll.u32 2475754826, %v5912
        %v5919 = vshrl.u32 2131351028, %v5913
        %v5920 = vor.u32 %v5918, %v5919
        %v5921 = vshll.u32 2131351028, %v5912
        %v5922 = vshrl.u32 2102212464, %v5913
        %v5923 = vor.u32 %v5921, %v5922
        %v5924 = vshll.u32 2102212464, %v5912
        %v5925 = vshrl.u32 920167782, %v5913
        %v5926 = vor.u32 %v5924, %v5925
        %v5927 = vshll.u32 920167782, %v5912
        %v5928 = vshrl.u32 1326507024, %v5913
        %v5929 = vor.u32 %v5927, %v5928
        %vm5930 = vcmp.lt.s32.totalorder %v5911, 1
        %vm5931 = vcmp.lt.s32.totalorder %v5911, 2
        %vm5932 = vcmp.lt.s32.totalorder %v5911, 3
        %vm5933 = vcmp.lt.s32.totalorder %v5911, 4
        %v5934 = vsel %vm5930, %v5914, %v5917
        %v5935 = vsel %vm5933, %v5923, 2102212464
        %v5936 = vsel %vm5932, %v5920, %v5935
        %v5937 = vsel %vm5931, %v5934, %v5936
        %v5938 = vsel %vm5930, %v5917, %v5920
        %v5939 = vsel %vm5933, %v5926, 920167782
        %v5940 = vsel %vm5932, %v5923, %v5939
        %v5941 = vsel %vm5931, %v5938, %v5940
        %v5942 = vsel %vm5930, %v5920, %v5923
        %v5943 = vsel %vm5933, %v5929, 1326507024
        %v5944 = vsel %vm5932, %v5926, %v5943
        %v5945 = vsel %vm5931, %v5942, %v5944
        %v5946 = vshll.u32 %v5906, 8
        %v5947 = vmul.u32.u64.compose %v5946, %v5945
        %v5948 = vextract.low.u32 %v5947
        %v5949 = vextract.high.u32 %v5947
        %v5950 = vmul.u32.u64.compose %v5946, %v5941
        %v5951 = vextract.low.u32 %v5950
        %v5952 = vextract.high.u32 %v5950
        %v5953 = vmul.u32 %v5946, %v5937
        %v5954 = vadd.s32 %v5949, %v5951
        %vm5955 = vc.u32 %v5949, %v5951
        %v5956 = vadd.s32 %v5952, 1
        %v5957 = vsel %vm5955, %v5956, %v5952
        %v5958 = vadd.s32 %v5953, %v5957
        %v5959 = vadd.s32 %v5958, 536870912
        %v5960 = vshrl.u32 %v5959, 30
        %v5961 = vshll.u32 %v5960, 30
        %v5962 = vsub.s32 %v5958, %v5961
        %vm5963 = vcmp.lt.s32.totalorder %v5962, 0
        %v5964 = vsub.s32 0, %v5962
        %v5965 = vsel %vm5963, %v5964, %v5962
        %v5966 = vclz %v5965
        %v5967 = vsub.s32 %v5966, 2
        %vm5968 = vcmp.gt.s32.totalorder 0, %v5967
        %v5969 = vsel %vm5968, 0, %v5967
        %v5970 = vsub.s32 32, %v5969
        %v5971 = vshll.u32 %v5962, %v5969
        %v5972 = vshrl.u32 %v5954, %v5970
        %v5973 = vor.u32 %v5971, %v5972
        %v5974 = vsub.s32 4294967266, %v5969
        %v5975 = vadd.s32 %v5974, 127
        %v5976 = vshll.u32 %v5975, 23
        %v5977 = vor.u32 4788187, %v5976
        %v5978 = vand.u32 2147483647, %v5977
        %v5980 = vcvt.s32.f32 %v5973
        %v5981 = vmul.f32 %v5980, %v5978
        %v5982 = vxor.u32 %v5981, 2147483648
        %v5983 = vsel %vm5900, %v5982, %v5981
        %v5984 = vsub.s32 4, %v5960
        %v5985 = vsel %vm5900, %v5984, %v5960
        %v5986 = vsel %vm5899, %v5688, %v5983
        %v5987 = vsel %vm5899, 0, %v5985
        %v5988 = vcosq.f32.pop %v5986
        %v5989 = vsinq.f32.pop %v5986
        %vm5990 = vweird.f32 %v5688
        %v5991 = vand.u32 %v5987, 3
        %vm5992 = vcmp.lt.s32.totalorder %v5991, 2
        %vm5993 = vcmp.eq.s32.totalorder %v5991, 0
        %v5994 = vxor.u32 %v5989, 2147483648
        %v5995 = vsel %vm5993, %v5988, %v5994
        %vm5996 = vcmp.eq.s32.totalorder %v5991, 2
        %v5997 = vxor.u32 %v5988, 2147483648
        %v5998 = vsel %vm5996, %v5997, %v5989
        %v5999 = vsel %vm5992, %v5995, %v5998
        %v6000 = vsel %vm5990, nan, %v5999
        %v6001 = vand.u32 2147483647, %v5689
        %vm6002 = vcmp.le.f32.partialorder %v6001, 0.7853982
        %vm6003 = vcmp.lt.s32.totalorder %v5689, 0
        %v6004 = vand.u32 %v5689, 2139095040
        %v6005 = vshrl.u32 %v6004, 23
        %v6006 = vsub.s32 %v6005, 127
        %v6007 = vand.u32 2147483647, %v5689
        %v6008 = vand.u32 %v6007, 8388607
        %v6009 = vor.u32 %v6008, 8388608
        %v6010 = vsub.s32 0, %v6009
        %v6011 = vadd.s32 %v6006, 1
        %vm6012 = vcmp.gt.s32.totalorder %v6011, 0
        %v6013 = vsel %vm6012, %v6011, 0
        %v6014 = vshrl.u32 %v6013, 5
        %v6015 = vand.u32 %v6013, 31
        %v6016 = vsub.s32 32, %v6015
        %v6017 = vshrl.u32 683565275, %v6016
        %v6018 = vshll.u32 683565275, %v6015
        %v6019 = vshrl.u32 2475754826, %v6016
        %v6020 = vor.u32 %v6018, %v6019
        %v6021 = vshll.u32 2475754826, %v6015
        %v6022 = vshrl.u32 2131351028, %v6016
        %v6023 = vor.u32 %v6021, %v6022
        %v6024 = vshll.u32 2131351028, %v6015
        %v6025 = vshrl.u32 2102212464, %v6016
        %v6026 = vor.u32 %v6024, %v6025
        %v6027 = vshll.u32 2102212464, %v6015
        %v6028 = vshrl.u32 920167782, %v6016
        %v6029 = vor.u32 %v6027, %v6028
        %v6030 = vshll.u32 920167782, %v6015
        %v6031 = vshrl.u32 1326507024, %v6016
        %v6032 = vor.u32 %v6030, %v6031
        %vm6033 = vcmp.lt.s32.totalorder %v6014, 1
        %vm6034 = vcmp.lt.s32.totalorder %v6014, 2
        %vm6035 = vcmp.lt.s32.totalorder %v6014, 3
        %vm6036 = vcmp.lt.s32.totalorder %v6014, 4
        %v6037 = vsel %vm6033, %v6017, %v6020
        %v6038 = vsel %vm6036, %v6026, 2102212464
        %v6039 = vsel %vm6035, %v6023, %v6038
        %v6040 = vsel %vm6034, %v6037, %v6039
        %v6041 = vsel %vm6033, %v6020, %v6023
        %v6042 = vsel %vm6036, %v6029, 920167782
        %v6043 = vsel %vm6035, %v6026, %v6042
        %v6044 = vsel %vm6034, %v6041, %v6043
        %v6045 = vsel %vm6033, %v6023, %v6026
        %v6046 = vsel %vm6036, %v6032, 1326507024
        %v6047 = vsel %vm6035, %v6029, %v6046
        %v6048 = vsel %vm6034, %v6045, %v6047
        %v6049 = vshll.u32 %v6009, 8
        %v6050 = vmul.u32.u64.compose %v6049, %v6048
        %v6051 = vextract.low.u32 %v6050
        %v6052 = vextract.high.u32 %v6050
        %v6053 = vmul.u32.u64.compose %v6049, %v6044
        %v6054 = vextract.low.u32 %v6053
        %v6055 = vextract.high.u32 %v6053
        %v6056 = vmul.u32 %v6049, %v6040
        %v6057 = vadd.s32 %v6052, %v6054
        %vm6058 = vc.u32 %v6052, %v6054
        %v6059 = vadd.s32 %v6055, 1
        %v6060 = vsel %vm6058, %v6059, %v6055
        %v6061 = vadd.s32 %v6056, %v6060
        %v6062 = vadd.s32 %v6061, 536870912
        %v6063 = vshrl.u32 %v6062, 30
        %v6064 = vshll.u32 %v6063, 30
        %v6065 = vsub.s32 %v6061, %v6064
        %vm6066 = vcmp.lt.s32.totalorder %v6065, 0
        %v6067 = vsub.s32 0, %v6065
        %v6068 = vsel %vm6066, %v6067, %v6065
        %v6069 = vclz %v6068
        %v6070 = vsub.s32 %v6069, 2
        %vm6071 = vcmp.gt.s32.totalorder 0, %v6070
        %v6072 = vsel %vm6071, 0, %v6070
        %v6073 = vsub.s32 32, %v6072
        %v6074 = vshll.u32 %v6065, %v6072
        %v6075 = vshrl.u32 %v6057, %v6073
        %v6076 = vor.u32 %v6074, %v6075
        %v6077 = vsub.s32 4294967266, %v6072
        %v6078 = vadd.s32 %v6077, 127
        %v6079 = vshll.u32 %v6078, 23
        %v6080 = vor.u32 4788187, %v6079
        %v6081 = vand.u32 2147483647, %v6080
        %v6083 = vcvt.s32.f32 %v6076
        %v6084 = vmul.f32 %v6083, %v6081
        %v6085 = vxor.u32 %v6084, 2147483648
        %v6086 = vsel %vm6003, %v6085, %v6084
        %v6087 = vsub.s32 4, %v6063
        %v6088 = vsel %vm6003, %v6087, %v6063
        %v6089 = vsel %vm6002, %v5689, %v6086
        %v6090 = vsel %vm6002, 0, %v6088
        %v6091 = vcosq.f32.pop %v6089
        %v6092 = vsinq.f32.pop %v6089
        %vm6093 = vweird.f32 %v5689
        %v6094 = vand.u32 %v6090, 3
        %vm6095 = vcmp.lt.s32.totalorder %v6094, 2
        %vm6096 = vcmp.eq.s32.totalorder %v6094, 0
        %v6097 = vxor.u32 %v6092, 2147483648
        %v6098 = vsel %vm6096, %v6091, %v6097
        %vm6099 = vcmp.eq.s32.totalorder %v6094, 2
        %v6100 = vxor.u32 %v6091, 2147483648
        %v6101 = vsel %vm6099, %v6100, %v6092
        %v6102 = vsel %vm6095, %v6098, %v6101
        %v6103 = vsel %vm6093, nan, %v6102
        %v6104 = vmul.f32 %v5793, 2.0
        %v6105 = vmul.f32 %v5897, 2.0
        %v6106 = vmul.f32 %v6104, %v6000
        %v6107 = vmul.f32 %v6105, %v6103
        %v6108 = vmul.f32 %v6104, %v5793
        %v6109 = vmul.f32 %v6105, %v5897
        %v6110 = vsub.f32 1.0, %v6108
        %v6111 = vsub.f32 1.0, %v6109
        %v6114 = vcombine.high %v5793, %v5793
        %v6115 = vcombine.high %v5897, %v5897
        %v6120 = vcombine.high %v6000, %v6000
        %v6121 = vcombine.high %v6103, %v6103
        %v6122 = vrot.slane %v6000, 5
        %v6123 = vrot.slane %v6120, 5
        %v6124 = vrot.slane %v6103, 5
        %v6125 = vrot.slane %v6121, 5
        %v6132 = vcombine.high %v6106, %v6106
        %v6133 = vcombine.high %v6107, %v6107
        %v6134 = vrot.slane %v6106, 2
        %v6135 = vrot.slane %v6132, 2
        %v6136 = vrot.slane %v6107, 2
        %v6137 = vrot.slane %v6133, 2
        %v6144 = vcombine.high %v6110, %v6110
        %v6145 = vcombine.high %v6111, %v6111
        %v6146 = vrot.slane %v6110, 7
        %v6147 = vrot.slane %v6144, 7
        %v6148 = vrot.slane %v6111, 7
        %v6149 = vrot.slane %v6145, 7
        %v6154 = vsel %vm5475, %v5793, %v6122
        %v6155 = vsel %vm5475, %v6114, %v6123
        %v6156 = vsel %vm5475, %v5897, %v6124
        %v6157 = vsel %vm5475, %v6115, %v6125
        %v6158 = vsel %vm5536, %v6154, %v6134
        %v6159 = vsel %vm5536, %v6155, %v6135
        %v6160 = vsel %vm5536, %v6156, %v6136
        %v6161 = vsel %vm5536, %v6157, %v6137
        %v6162 = vsel %vm5601, %v6134, %v6146
        %v6163 = vsel %vm5601, %v6135, %v6147
        %v6164 = vsel %vm5601, %v6136, %v6148
        %v6165 = vsel %vm5601, %v6137, %v6149
        %v6166 = vpack.c.bf16 %v6162, %v6158
        %v6167 = vpack.c.bf16 %v6163, %v6159
        %v6168 = vpack.c.bf16 %v6164, %v6160
        %v6169 = vpack.c.bf16 %v6165, %v6161
        %v6170 = vld [vmem:[%s5] sm:$0xf]
        %v6171 = vld [vmem:[%s5 + $0x4] sm:$0xf]
        %v6172 = vld [vmem:[%s5 + $0x8] sm:$0xf]
        %v6173 = vld [vmem:[%s5 + $0xc] sm:$0xf]
        %v6174 = vld [vmem:[#allocation9] sm:$0xf]
        %v6175 = vld [vmem:[#allocation9 + $0x4] sm:$0xf]
        %v6176 = vld [vmem:[#allocation9 + $0x8] sm:$0xf]
        %v6177 = vld [vmem:[#allocation9 + $0xc] sm:$0xf]
        %v6182 = vunpack.c.l.b16 %v6174
        %v6183 = vunpack.c.l.b16 %v6175
        %v6184 = vunpack.c.l.b16 %v6176
        %v6185 = vunpack.c.l.b16 %v6177
        %v6186 = vpack.c.b16 %v6183, %v6182
        %v6187 = vpack.c.b16 %v6185, %v6184
        %vm6188 = vcmask 97280
        %v6190 = vsel %vm6188, %v6186, 0
        %v6193 = vsel %vm6188, %v6187, 0
        %v6196 = vsel %vm5536, %v6166, 0
        %v6199 = vsel %vm5536, %v6167, 0
        %v6202 = vsel %vm5536, %v6168, 0
        %v6205 = vsel %vm5536, %v6169, 0
        %6207 = vmatprep.subr.bf16.mxu0 %v6199
        %6208 = vmatpush1.bf16.msra.mxu0 %v6196
        %6209 = vmatprep.subr.bf16.mxu0 0
        %6210 = vmatpush1.bf16.msra.mxu0 0
        %6211 = vmatprep.subr.bf16.mxu0 0
        %6212 = vmatpush1.bf16.msra.mxu0 0
        %6213 = vmatprep.subr.bf16.mxu0 0
        %6214 = vmatpush1.bf16.msra.mxu0 0
        %6215 = vmatprep.subr.bf16.mxu0 0
        %6216 = vmatpush1.bf16.msra.mxu0 0
        %6217 = vmatprep.subr.bf16.mxu0 0
        %6218 = vmatpush1.bf16.msra.mxu0 0
        %6219 = vmatprep.subr.bf16.mxu0 0
        %6220 = vmatpush1.bf16.msra.mxu0 0
        %6221 = vmatprep.subr.bf16.mxu0 0
        %6222 = vmatpush1.bf16.msra.mxu0 0
        %6223 = vmatprep.subr.bf16.mxu0 0
        %6224 = vmatpush1.bf16.msra.mxu0 0
        %6225 = vmatprep.subr.bf16.mxu0 0
        %6226 = vmatpush1.bf16.msra.mxu0 0
        %6227 = vmatprep.subr.bf16.mxu0 0
        %6228 = vmatpush1.bf16.msra.mxu0 0
        %6229 = vmatprep.subr.bf16.mxu0 0
        %6230 = vmatpush1.bf16.msra.mxu0 0
        %6231 = vmatprep.subr.bf16.mxu0 0
        %6232 = vmatpush1.bf16.msra.mxu0 0
        %6233 = vmatprep.subr.bf16.mxu0 0
        %6234 = vmatpush1.bf16.msra.mxu0 0
        %6235 = vmatprep.subr.bf16.mxu0 0
        %6236 = vmatpush1.bf16.msra.mxu0 0
        %6237 = vmatprep.subr.bf16.mxu0 0
        %6238 = vmatpush1.bf16.msra.mxu0 0
        %6239 = vmatprep.mubr.bf16.mxu0 0
        %6240 = vmatmul.mubr.bf16.gmra.mrb[0].mxu0 %v6190
        %v6241 = vpop.f32.mrb[0].mxu0
        %v6242 = vadd.f32 0.0, %v6241
        %v6243 = vpop.f32.mrb[0].mxu0
        %v6244 = vadd.f32 0.0, %v6243
        %v6245 = vpop.f32.mrb[0].mxu0
        %v6246 = vadd.f32 0.0, %v6245
        %v6247 = vpop.f32.mrb[0].mxu0
        %v6248 = vadd.f32 0.0, %v6247
        %6249 = vmatprep.mubr.bf16.mxu0 0
        %6250 = vmatmul.mubr.bf16.gmra.mrb[0].mxu0 %v6193
        %v6251 = vpop.f32.mrb[0].mxu0
        %v6252 = vadd.f32 0.0, %v6251
        %v6253 = vpop.f32.mrb[0].mxu0
        %v6254 = vadd.f32 0.0, %v6253
        %v6255 = vpop.f32.mrb[0].mxu0
        %v6256 = vadd.f32 0.0, %v6255
        %v6257 = vpop.f32.mrb[0].mxu0
        %v6258 = vadd.f32 0.0, %v6257
        %6259 = vdwg.mxu0
        %6260 = vmatprep.subr.bf16.mxu0 %v6205
        %6261 = vmatpush1.bf16.msra.mxu0 %v6202
        %6262 = vmatprep.subr.bf16.mxu0 0
        %6263 = vmatpush1.bf16.msra.mxu0 0
        %6264 = vmatprep.subr.bf16.mxu0 0
        %6265 = vmatpush1.bf16.msra.mxu0 0
        %6266 = vmatprep.subr.bf16.mxu0 0
        %6267 = vmatpush1.bf16.msra.mxu0 0
        %6268 = vmatprep.subr.bf16.mxu0 0
        %6269 = vmatpush1.bf16.msra.mxu0 0
        %6270 = vmatprep.subr.bf16.mxu0 0
        %6271 = vmatpush1.bf16.msra.mxu0 0
        %6272 = vmatprep.subr.bf16.mxu0 0
        %6273 = vmatpush1.bf16.msra.mxu0 0
        %6274 = vmatprep.subr.bf16.mxu0 0
        %6275 = vmatpush1.bf16.msra.mxu0 0
        %6276 = vmatprep.subr.bf16.mxu0 0
        %6277 = vmatpush1.bf16.msra.mxu0 0
        %6278 = vmatprep.subr.bf16.mxu0 0
        %6279 = vmatpush1.bf16.msra.mxu0 0
        %6280 = vmatprep.subr.bf16.mxu0 0
        %6281 = vmatpush1.bf16.msra.mxu0 0
        %6282 = vmatprep.subr.bf16.mxu0 0
        %6283 = vmatpush1.bf16.msra.mxu0 0
        %6284 = vmatprep.subr.bf16.mxu0 0
        %6285 = vmatpush1.bf16.msra.mxu0 0
        %6286 = vmatprep.subr.bf16.mxu0 0
        %6287 = vmatpush1.bf16.msra.mxu0 0
        %6288 = vmatprep.subr.bf16.mxu0 0
        %6289 = vmatpush1.bf16.msra.mxu0 0
        %6290 = vmatprep.subr.bf16.mxu0 0
        %6291 = vmatpush1.bf16.msra.mxu0 0
        %6292 = vmatprep.mubr.bf16.mxu0 0
        %6293 = vmatmul.mubr.bf16.gmra.mrb[0].mxu0 %v6190
        %v6294 = vpop.f32.mrb[0].mxu0
        %v6295 = vadd.f32 0.0, %v6294
        %v6296 = vpop.f32.mrb[0].mxu0
        %v6297 = vadd.f32 0.0, %v6296
        %v6298 = vpop.f32.mrb[0].mxu0
        %v6299 = vadd.f32 0.0, %v6298
        %v6300 = vpop.f32.mrb[0].mxu0
        %v6301 = vadd.f32 0.0, %v6300
        %6302 = vmatprep.mubr.bf16.mxu0 0
        %6303 = vmatmul.mubr.bf16.gmra.mrb[0].mxu0 %v6193
        %v6304 = vpop.f32.mrb[0].mxu0
        %v6305 = vadd.f32 0.0, %v6304
        %v6306 = vpop.f32.mrb[0].mxu0
        %v6307 = vadd.f32 0.0, %v6306
        %v6308 = vpop.f32.mrb[0].mxu0
        %v6309 = vadd.f32 0.0, %v6308
        %v6310 = vpop.f32.mrb[0].mxu0
        %v6311 = vadd.f32 0.0, %v6310
        %6312 = vdwg.mxu0
        %v6317 = vunpack.c.l.b16 %v6170
        %v6318 = vunpack.c.l.b16 %v6171
        %v6319 = vunpack.c.l.b16 %v6172
        %v6320 = vunpack.c.l.b16 %v6173
        %v6321 = vpack.c.b16 %v6318, %v6317
        %v6322 = vpack.c.b16 %v6320, %v6319
        %vm6323 = vcmask 883712
        %v6325 = vsel %vm6323, %v6321, 0
        %v6328 = vsel %vm6323, %v6322, 0
        %v6331 = vsel %vm5536, %v5682, 0
        %v6334 = vsel %vm5536, %v5683, 0
        %v6337 = vsel %vm5536, %v5684, 0
        %v6340 = vsel %vm5536, %v5685, 0
        %6342 = vmatprep.subr.bf16.mxu0 %v5659
        %6343 = vmatpush1.bf16.msra.mxu0 %v5658
        %6344 = vmatprep.subr.bf16.mxu0 %v5663
        %6345 = vmatpush1.bf16.msra.mxu0 %v5662
        %6346 = vmatprep.subr.bf16.mxu0 %v5667
        %6347 = vmatpush1.bf16.msra.mxu0 %v5666
        %6348 = vmatprep.subr.bf16.mxu0 %v5671
        %6349 = vmatpush1.bf16.msra.mxu0 %v5670
        %6350 = vmatprep.subr.bf16.mxu0 %v5675
        %6351 = vmatpush1.bf16.msra.mxu0 %v5674
        %6352 = vmatprep.subr.bf16.mxu0 %v5679
        %6353 = vmatpush1.bf16.msra.mxu0 %v5678
        %6354 = vmatprep.subr.bf16.mxu0 %v6334
        %6355 = vmatpush1.bf16.msra.mxu0 %v6331
        %6356 = vmatprep.subr.bf16.mxu0 0
        %6357 = vmatpush1.bf16.msra.mxu0 0
        %6358 = vmatprep.subr.bf16.mxu0 0
        %6359 = vmatpush1.bf16.msra.mxu0 0
        %6360 = vmatprep.subr.bf16.mxu0 0
        %6361 = vmatpush1.bf16.msra.mxu0 0
        %6362 = vmatprep.subr.bf16.mxu0 0
        %6363 = vmatpush1.bf16.msra.mxu0 0
        %6364 = vmatprep.subr.bf16.mxu0 0
        %6365 = vmatpush1.bf16.msra.mxu0 0
        %6366 = vmatprep.subr.bf16.mxu0 0
        %6367 = vmatpush1.bf16.msra.mxu0 0
        %6368 = vmatprep.subr.bf16.mxu0 0
        %6369 = vmatpush1.bf16.msra.mxu0 0
        %6370 = vmatprep.subr.bf16.mxu0 0
        %6371 = vmatpush1.bf16.msra.mxu0 0
        %6372 = vmatprep.subr.bf16.mxu0 0
        %6373 = vmatpush1.bf16.msra.mxu0 0
        %6374 = vmatprep.mubr.bf16.mxu0 0
        %6375 = vmatmul.mubr.bf16.gmra.mrb[0].mxu0 %v6325
        %v6376 = vpop.f32.mrb[0].mxu0
        %v6377 = vadd.f32 %v6242, %v6376
        %v6378 = vpop.f32.mrb[0].mxu0
        %v6379 = vadd.f32 %v6244, %v6378
        %v6380 = vpop.f32.mrb[0].mxu0
        %v6381 = vadd.f32 %v6246, %v6380
        %v6382 = vpop.f32.mrb[0].mxu0
        %v6383 = vadd.f32 %v6248, %v6382
        %6384 = vmatprep.mubr.bf16.mxu0 0
        %6385 = vmatmul.mubr.bf16.gmra.mrb[0].mxu0 %v6328
        %v6386 = vpop.f32.mrb[0].mxu0
        %v6387 = vadd.f32 %v6252, %v6386
        %v6388 = vpop.f32.mrb[0].mxu0
        %v6389 = vadd.f32 %v6254, %v6388
        %v6390 = vpop.f32.mrb[0].mxu0
        %v6391 = vadd.f32 %v6256, %v6390
        %v6392 = vpop.f32.mrb[0].mxu0
        %v6393 = vadd.f32 %v6258, %v6392
        %6394 = vdwg.mxu0
        %6395 = vmatprep.subr.bf16.mxu0 %v5661
        %6396 = vmatpush1.bf16.msra.mxu0 %v5660
        %6397 = vmatprep.subr.bf16.mxu0 %v5665
        %6398 = vmatpush1.bf16.msra.mxu0 %v5664
        %6399 = vmatprep.subr.bf16.mxu0 %v5669
        %6400 = vmatpush1.bf16.msra.mxu0 %v5668
        %6401 = vmatprep.subr.bf16.mxu0 %v5673
        %6402 = vmatpush1.bf16.msra.mxu0 %v5672
        %6403 = vmatprep.subr.bf16.mxu0 %v5677
        %6404 = vmatpush1.bf16.msra.mxu0 %v5676
        %6405 = vmatprep.subr.bf16.mxu0 %v5681
        %6406 = vmatpush1.bf16.msra.mxu0 %v5680
        %6407 = vmatprep.subr.bf16.mxu0 %v6340
        %6408 = vmatpush1.bf16.msra.mxu0 %v6337
        %6409 = vmatprep.subr.bf16.mxu0 0
        %6410 = vmatpush1.bf16.msra.mxu0 0
        %6411 = vmatprep.subr.bf16.mxu0 0
        %6412 = vmatpush1.bf16.msra.mxu0 0
        %6413 = vmatprep.subr.bf16.mxu0 0
        %6414 = vmatpush1.bf16.msra.mxu0 0
        %6415 = vmatprep.subr.bf16.mxu0 0
        %6416 = vmatpush1.bf16.msra.mxu0 0
        %6417 = vmatprep.subr.bf16.mxu0 0
        %6418 = vmatpush1.bf16.msra.mxu0 0
        %6419 = vmatprep.subr.bf16.mxu0 0
        %6420 = vmatpush1.bf16.msra.mxu0 0
        %6421 = vmatprep.subr.bf16.mxu0 0
        %6422 = vmatpush1.bf16.msra.mxu0 0
        %6423 = vmatprep.subr.bf16.mxu0 0
        %6424 = vmatpush1.bf16.msra.mxu0 0
        %6425 = vmatprep.subr.bf16.mxu0 0
        %6426 = vmatpush1.bf16.msra.mxu0 0
        %6427 = vmatprep.mubr.bf16.mxu0 0
        %6428 = vmatmul.mubr.bf16.gmra.mrb[0].mxu0 %v6325
        %v6429 = vpop.f32.mrb[0].mxu0
        %v6430 = vadd.f32 %v6295, %v6429
        %v6431 = vpop.f32.mrb[0].mxu0
        %v6432 = vadd.f32 %v6297, %v6431
        %v6433 = vpop.f32.mrb[0].mxu0
        %v6434 = vadd.f32 %v6299, %v6433
        %v6435 = vpop.f32.mrb[0].mxu0
        %v6436 = vadd.f32 %v6301, %v6435
        %6437 = vmatprep.mubr.bf16.mxu0 0
        %6438 = vmatmul.mubr.bf16.gmra.mrb[0].mxu0 %v6328
        %v6439 = vpop.f32.mrb[0].mxu0
        %v6440 = vadd.f32 %v6305, %v6439
        %v6441 = vpop.f32.mrb[0].mxu0
        %v6442 = vadd.f32 %v6307, %v6441
        %v6443 = vpop.f32.mrb[0].mxu0
        %v6444 = vadd.f32 %v6309, %v6443
        %v6445 = vpop.f32.mrb[0].mxu0
        %v6446 = vadd.f32 %v6311, %v6445
        %6447 = vdwg.mxu0
        %v6448 = vld [vmem:[#allocation10] sm:$0xff]
        %v6449 = vld [vmem:[#allocation10 + $0x8] sm:$0xff]
        %v6450 = vld [vmem:[#allocation10 + $0x10] sm:$0xff]
        %v6451 = vld [vmem:[#allocation10 + $0x18] sm:$0xff]
        %6453 = vset.pattern.permute.xlu0 0
        %6454 = vperm.xlu0 %6453, %v6448
        %v6455 = vpop.permute.xlu0 %6454
        %6458 = vset.pattern.permute.xlu0 0
        %6459 = vperm.xlu0 %6458, %v6449
        %v6460 = vpop.permute.xlu0 %6459
        %6463 = vset.pattern.permute.xlu0 0
        %6464 = vperm.xlu0 %6463, %v6450
        %v6465 = vpop.permute.xlu0 %6464
        %6468 = vset.pattern.permute.xlu0 0
        %6469 = vperm.xlu0 %6468, %v6451
        %v6470 = vpop.permute.xlu0 %6469
        %v6472 = vadd.f32 %v6377, %v6455
        %v6473 = vadd.f32 %v6379, %v6455
        %v6474 = vadd.f32 %v6430, %v6455
        %v6475 = vadd.f32 %v6432, %v6455
        %v6476 = vadd.f32 %v6381, %v6460
        %v6477 = vadd.f32 %v6383, %v6460
        %v6478 = vadd.f32 %v6434, %v6460
        %v6479 = vadd.f32 %v6436, %v6460
        %v6480 = vadd.f32 %v6387, %v6465
        %v6481 = vadd.f32 %v6389, %v6465
        %v6482 = vadd.f32 %v6440, %v6465
        %v6483 = vadd.f32 %v6442, %v6465
        %v6484 = vadd.f32 %v6391, %v6470
        %v6485 = vadd.f32 %v6393, %v6470
        %v6486 = vadd.f32 %v6444, %v6470
        %v6487 = vadd.f32 %v6446, %v6470
        %vm6488 = vcmp.ge.f32.partialorder %v6472, 0.0
        %vm6489 = vcmp.ge.f32.partialorder %v6473, 0.0
        %vm6490 = vcmp.ge.f32.partialorder %v6474, 0.0
        %vm6491 = vcmp.ge.f32.partialorder %v6475, 0.0
        %vm6492 = vcmp.ge.f32.partialorder %v6476, 0.0
        %vm6493 = vcmp.ge.f32.partialorder %v6477, 0.0
        %vm6494 = vcmp.ge.f32.partialorder %v6478, 0.0
        %vm6495 = vcmp.ge.f32.partialorder %v6479, 0.0
        %vm6496 = vcmp.ge.f32.partialorder %v6480, 0.0
        %vm6497 = vcmp.ge.f32.partialorder %v6481, 0.0
        %vm6498 = vcmp.ge.f32.partialorder %v6482, 0.0
        %vm6499 = vcmp.ge.f32.partialorder %v6483, 0.0
        %vm6500 = vcmp.ge.f32.partialorder %v6484, 0.0
        %vm6501 = vcmp.ge.f32.partialorder %v6485, 0.0
        %vm6502 = vcmp.ge.f32.partialorder %v6486, 0.0
        %vm6503 = vcmp.ge.f32.partialorder %v6487, 0.0
        %v6504 = vmul.f32 %v6472, 0.01
        %v6505 = vmul.f32 %v6473, 0.01
        %v6506 = vmul.f32 %v6474, 0.01
        %v6507 = vmul.f32 %v6475, 0.01
        %v6508 = vmul.f32 %v6476, 0.01
        %v6509 = vmul.f32 %v6477, 0.01
        %v6510 = vmul.f32 %v6478, 0.01
        %v6511 = vmul.f32 %v6479, 0.01
        %v6512 = vmul.f32 %v6480, 0.01
        %v6513 = vmul.f32 %v6481, 0.01
        %v6514 = vmul.f32 %v6482, 0.01
        %v6515 = vmul.f32 %v6483, 0.01
        %v6516 = vmul.f32 %v6484, 0.01
        %v6517 = vmul.f32 %v6485, 0.01
        %v6518 = vmul.f32 %v6486, 0.01
        %v6519 = vmul.f32 %v6487, 0.01
        %v6520 = vsel %vm6488, %v6472, %v6504
        %v6521 = vsel %vm6489, %v6473, %v6505
        %v6522 = vsel %vm6490, %v6474, %v6506
        %v6523 = vsel %vm6491, %v6475, %v6507
        %v6524 = vsel %vm6492, %v6476, %v6508
        %v6525 = vsel %vm6493, %v6477, %v6509
        %v6526 = vsel %vm6494, %v6478, %v6510
        %v6527 = vsel %vm6495, %v6479, %v6511
        %v6528 = vsel %vm6496, %v6480, %v6512
        %v6529 = vsel %vm6497, %v6481, %v6513
        %v6530 = vsel %vm6498, %v6482, %v6514
        %v6531 = vsel %vm6499, %v6483, %v6515
        %v6532 = vsel %vm6500, %v6484, %v6516
        %v6533 = vsel %vm6501, %v6485, %v6517
        %v6534 = vsel %vm6502, %v6486, %v6518
        %v6535 = vsel %vm6503, %v6487, %v6519
        %v6536 = vld [vmem:[#allocation12] sm:$0xf]
        %v6537 = vld [vmem:[#allocation12 + $0x4] sm:$0xf]
        %v6538 = vld [vmem:[#allocation12 + $0x8] sm:$0xf]
        %v6539 = vld [vmem:[#allocation12 + $0xc] sm:$0xf]
        %v6540 = vpack.c.bf16 %v6524, %v6520
        %v6541 = vpack.c.bf16 %v6525, %v6521
        %v6542 = vpack.c.bf16 %v6526, %v6522
        %v6543 = vpack.c.bf16 %v6527, %v6523
        %v6544 = vpack.c.bf16 %v6532, %v6528
        %v6545 = vpack.c.bf16 %v6533, %v6529
        %v6546 = vpack.c.bf16 %v6534, %v6530
        %v6547 = vpack.c.bf16 %v6535, %v6531
        %v6548 = vld [vmem:[#allocation13] sm:$0xff]
        %v6549 = vld [vmem:[#allocation13 + $0x8] sm:$0xff]
        %v6550 = vld [vmem:[#allocation13 + $0x10] sm:$0xff]
        %v6551 = vld [vmem:[#allocation13 + $0x18] sm:$0xff]
        %6553 = vset.pattern.permute.xlu0 0
        %6554 = vperm.xlu0 %6553, %v6548
        %v6555 = vpop.permute.xlu0 %6554
        %6558 = vset.pattern.permute.xlu0 0
        %6559 = vperm.xlu0 %6558, %v6549
        %v6560 = vpop.permute.xlu0 %6559
        %6563 = vset.pattern.permute.xlu0 0
        %6564 = vperm.xlu0 %6563, %v6550
        %v6565 = vpop.permute.xlu0 %6564
        %6568 = vset.pattern.permute.xlu0 0
        %6569 = vperm.xlu0 %6568, %v6551
        %v6570 = vpop.permute.xlu0 %6569
        %v6576 = vunpack.c.l.b16 %v6536
        %v6577 = vunpack.c.l.b16 %v6537
        %v6578 = vunpack.c.l.b16 %v6538
        %v6579 = vunpack.c.l.b16 %v6539
        %v6580 = vpack.c.b16 %v6577, %v6576
        %v6581 = vpack.c.b16 %v6579, %v6578
        %v6583 = vsel %vm710, %v6580, 0
        %v6586 = vsel %vm710, %v6581, 0
        %6588 = vmatprep.subr.bf16.mxu0 %v6541
        %6589 = vmatpush1.bf16.msra.mxu0 %v6540
        %6590 = vmatprep.subr.bf16.mxu0 %v6545
        %6591 = vmatpush1.bf16.msra.mxu0 %v6544
        %6592 = vmatprep.subr.bf16.mxu0 0
        %6593 = vmatpush1.bf16.msra.mxu0 0
        %6594 = vmatprep.subr.bf16.mxu0 0
        %6595 = vmatpush1.bf16.msra.mxu0 0
        %6596 = vmatprep.subr.bf16.mxu0 0
        %6597 = vmatpush1.bf16.msra.mxu0 0
        %6598 = vmatprep.subr.bf16.mxu0 0
        %6599 = vmatpush1.bf16.msra.mxu0 0
        %6600 = vmatprep.subr.bf16.mxu0 0
        %6601 = vmatpush1.bf16.msra.mxu0 0
        %6602 = vmatprep.subr.bf16.mxu0 0
        %6603 = vmatpush1.bf16.msra.mxu0 0
        %6604 = vmatprep.subr.bf16.mxu0 0
        %6605 = vmatpush1.bf16.msra.mxu0 0
        %6606 = vmatprep.subr.bf16.mxu0 0
        %6607 = vmatpush1.bf16.msra.mxu0 0
        %6608 = vmatprep.subr.bf16.mxu0 0
        %6609 = vmatpush1.bf16.msra.mxu0 0
        %6610 = vmatprep.subr.bf16.mxu0 0
        %6611 = vmatpush1.bf16.msra.mxu0 0
        %6612 = vmatprep.subr.bf16.mxu0 0
        %6613 = vmatpush1.bf16.msra.mxu0 0
        %6614 = vmatprep.subr.bf16.mxu0 0
        %6615 = vmatpush1.bf16.msra.mxu0 0
        %6616 = vmatprep.subr.bf16.mxu0 0
        %6617 = vmatpush1.bf16.msra.mxu0 0
        %6618 = vmatprep.subr.bf16.mxu0 0
        %6619 = vmatpush1.bf16.msra.mxu0 0
        %6620 = vmatprep.mubr.bf16.mxu0 0
        %6621 = vmatmul.mubr.bf16.gmra.mrb[0].mxu0 %v6583
        %v6622 = vpop.f32.mrb[0].mxu0
        %v6623 = vadd.f32 %v6555, %v6622
        %v6624 = vpop.f32.mrb[0].mxu0
        %v6625 = vadd.f32 %v6555, %v6624
        %v6626 = vpop.f32.mrb[0].mxu0
        %v6627 = vadd.f32 %v6560, %v6626
        %v6628 = vpop.f32.mrb[0].mxu0
        %v6629 = vadd.f32 %v6560, %v6628
        %6630 = vmatprep.mubr.bf16.mxu0 0
        %6631 = vmatmul.mubr.bf16.gmra.mrb[0].mxu0 %v6586
        %v6632 = vpop.f32.mrb[0].mxu0
        %v6633 = vadd.f32 %v6565, %v6632
        %v6634 = vpop.f32.mrb[0].mxu0
        %v6635 = vadd.f32 %v6565, %v6634
        %v6636 = vpop.f32.mrb[0].mxu0
        %v6637 = vadd.f32 %v6570, %v6636
        %v6638 = vpop.f32.mrb[0].mxu0
        %v6639 = vadd.f32 %v6570, %v6638
        %6640 = vdwg.mxu0
        %6641 = vmatprep.subr.bf16.mxu0 %v6543
        %6642 = vmatpush1.bf16.msra.mxu0 %v6542
        %6643 = vmatprep.subr.bf16.mxu0 %v6547
        %6644 = vmatpush1.bf16.msra.mxu0 %v6546
        %6645 = vmatprep.subr.bf16.mxu0 0
        %6646 = vmatpush1.bf16.msra.mxu0 0
        %6647 = vmatprep.subr.bf16.mxu0 0
        %6648 = vmatpush1.bf16.msra.mxu0 0
        %6649 = vmatprep.subr.bf16.mxu0 0
        %6650 = vmatpush1.bf16.msra.mxu0 0
        %6651 = vmatprep.subr.bf16.mxu0 0
        %6652 = vmatpush1.bf16.msra.mxu0 0
        %6653 = vmatprep.subr.bf16.mxu0 0
        %6654 = vmatpush1.bf16.msra.mxu0 0
        %6655 = vmatprep.subr.bf16.mxu0 0
        %6656 = vmatpush1.bf16.msra.mxu0 0
        %6657 = vmatprep.subr.bf16.mxu0 0
        %6658 = vmatpush1.bf16.msra.mxu0 0
        %6659 = vmatprep.subr.bf16.mxu0 0
        %6660 = vmatpush1.bf16.msra.mxu0 0
        %6661 = vmatprep.subr.bf16.mxu0 0
        %6662 = vmatpush1.bf16.msra.mxu0 0
        %6663 = vmatprep.subr.bf16.mxu0 0
        %6664 = vmatpush1.bf16.msra.mxu0 0
        %6665 = vmatprep.subr.bf16.mxu0 0
        %6666 = vmatpush1.bf16.msra.mxu0 0
        %6667 = vmatprep.subr.bf16.mxu0 0
        %6668 = vmatpush1.bf16.msra.mxu0 0
        %6669 = vmatprep.subr.bf16.mxu0 0
        %6670 = vmatpush1.bf16.msra.mxu0 0
        %6671 = vmatprep.subr.bf16.mxu0 0
        %6672 = vmatpush1.bf16.msra.mxu0 0
        %6673 = vmatprep.mubr.bf16.mxu0 0
        %6674 = vmatmul.mubr.bf16.gmra.mrb[0].mxu0 %v6583
        %v6675 = vpop.f32.mrb[0].mxu0
        %v6676 = vadd.f32 %v6555, %v6675
        %v6677 = vpop.f32.mrb[0].mxu0
        %v6678 = vadd.f32 %v6555, %v6677
        %v6679 = vpop.f32.mrb[0].mxu0
        %v6680 = vadd.f32 %v6560, %v6679
        %v6681 = vpop.f32.mrb[0].mxu0
        %v6682 = vadd.f32 %v6560, %v6681
        %6683 = vmatprep.mubr.bf16.mxu0 0
        %6684 = vmatmul.mubr.bf16.gmra.mrb[0].mxu0 %v6586
        %v6685 = vpop.f32.mrb[0].mxu0
        %v6686 = vadd.f32 %v6565, %v6685
        %v6687 = vpop.f32.mrb[0].mxu0
        %v6688 = vadd.f32 %v6565, %v6687
        %v6689 = vpop.f32.mrb[0].mxu0
        %v6690 = vadd.f32 %v6570, %v6689
        %v6691 = vpop.f32.mrb[0].mxu0
        %v6692 = vadd.f32 %v6570, %v6691
        %6693 = vdwg.mxu0
        %vm6694 = vcmp.ge.f32.partialorder %v6623, 0.0
        %vm6695 = vcmp.ge.f32.partialorder %v6625, 0.0
        %vm6696 = vcmp.ge.f32.partialorder %v6676, 0.0
        %vm6697 = vcmp.ge.f32.partialorder %v6678, 0.0
        %vm6698 = vcmp.ge.f32.partialorder %v6627, 0.0
        %vm6699 = vcmp.ge.f32.partialorder %v6629, 0.0
        %vm6700 = vcmp.ge.f32.partialorder %v6680, 0.0
        %vm6701 = vcmp.ge.f32.partialorder %v6682, 0.0
        %vm6702 = vcmp.ge.f32.partialorder %v6633, 0.0
        %vm6703 = vcmp.ge.f32.partialorder %v6635, 0.0
        %vm6704 = vcmp.ge.f32.partialorder %v6686, 0.0
        %vm6705 = vcmp.ge.f32.partialorder %v6688, 0.0
        %vm6706 = vcmp.ge.f32.partialorder %v6637, 0.0
        %vm6707 = vcmp.ge.f32.partialorder %v6639, 0.0
        %vm6708 = vcmp.ge.f32.partialorder %v6690, 0.0
        %vm6709 = vcmp.ge.f32.partialorder %v6692, 0.0
        %v6710 = vmul.f32 %v6623, 0.01
        %v6711 = vmul.f32 %v6625, 0.01
        %v6712 = vmul.f32 %v6676, 0.01
        %v6713 = vmul.f32 %v6678, 0.01
        %v6714 = vmul.f32 %v6627, 0.01
        %v6715 = vmul.f32 %v6629, 0.01
        %v6716 = vmul.f32 %v6680, 0.01
        %v6717 = vmul.f32 %v6682, 0.01
        %v6718 = vmul.f32 %v6633, 0.01
        %v6719 = vmul.f32 %v6635, 0.01
        %v6720 = vmul.f32 %v6686, 0.01
        %v6721 = vmul.f32 %v6688, 0.01
        %v6722 = vmul.f32 %v6637, 0.01
        %v6723 = vmul.f32 %v6639, 0.01
        %v6724 = vmul.f32 %v6690, 0.01
        %v6725 = vmul.f32 %v6692, 0.01
        %v6726 = vsel %vm6694, %v6623, %v6710
        %v6727 = vsel %vm6695, %v6625, %v6711
        %v6728 = vsel %vm6696, %v6676, %v6712
        %v6729 = vsel %vm6697, %v6678, %v6713
        %v6730 = vsel %vm6698, %v6627, %v6714
        %v6731 = vsel %vm6699, %v6629, %v6715
        %v6732 = vsel %vm6700, %v6680, %v6716
        %v6733 = vsel %vm6701, %v6682, %v6717
        %v6734 = vsel %vm6702, %v6633, %v6718
        %v6735 = vsel %vm6703, %v6635, %v6719
        %v6736 = vsel %vm6704, %v6686, %v6720
        %v6737 = vsel %vm6705, %v6688, %v6721
        %v6738 = vsel %vm6706, %v6637, %v6722
        %v6739 = vsel %vm6707, %v6639, %v6723
        %v6740 = vsel %vm6708, %v6690, %v6724
        %v6741 = vsel %vm6709, %v6692, %v6725
        %v6742 = vld [vmem:[#allocation15] sm:$0x3]
        %v6743 = vpack.c.bf16 %v6730, %v6726
        %v6744 = vpack.c.bf16 %v6731, %v6727
        %v6745 = vpack.c.bf16 %v6732, %v6728
        %v6746 = vpack.c.bf16 %v6733, %v6729
        %v6747 = vpack.c.bf16 %v6738, %v6734
        %v6748 = vpack.c.bf16 %v6739, %v6735
        %v6749 = vpack.c.bf16 %v6740, %v6736
        %v6750 = vpack.c.bf16 %v6741, %v6737
        %v6751 = vld [vmem:[#allocation16] sm:$0x7]
        %6753 = vset.pattern.permute.xlu0 0
        %6754 = vperm.xlu0 %6753, %v6751
        %v6755 = vpop.permute.xlu0 %6754
        %v6758 = vsel %vm710, %v6742, 0
        %6760 = vmatprep.subr.bf16.mxu0 %v6744
        %6761 = vmatpush1.bf16.msra.mxu0 %v6743
        %6762 = vmatprep.subr.bf16.mxu0 %v6748
        %6763 = vmatpush1.bf16.msra.mxu0 %v6747
        %6764 = vmatprep.subr.bf16.mxu0 0
        %6765 = vmatpush1.bf16.msra.mxu0 0
        %6766 = vmatprep.subr.bf16.mxu0 0
        %6767 = vmatpush1.bf16.msra.mxu0 0
        %6768 = vmatprep.subr.bf16.mxu0 0
        %6769 = vmatpush1.bf16.msra.mxu0 0
        %6770 = vmatprep.subr.bf16.mxu0 0
        %6771 = vmatpush1.bf16.msra.mxu0 0
        %6772 = vmatprep.subr.bf16.mxu0 0
        %6773 = vmatpush1.bf16.msra.mxu0 0
        %6774 = vmatprep.subr.bf16.mxu0 0
        %6775 = vmatpush1.bf16.msra.mxu0 0
        %6776 = vmatprep.subr.bf16.mxu0 0
        %6777 = vmatpush1.bf16.msra.mxu0 0
        %6778 = vmatprep.subr.bf16.mxu0 0
        %6779 = vmatpush1.bf16.msra.mxu0 0
        %6780 = vmatprep.subr.bf16.mxu0 0
        %6781 = vmatpush1.bf16.msra.mxu0 0
        %6782 = vmatprep.subr.bf16.mxu0 0
        %6783 = vmatpush1.bf16.msra.mxu0 0
        %6784 = vmatprep.subr.bf16.mxu0 0
        %6785 = vmatpush1.bf16.msra.mxu0 0
        %6786 = vmatprep.subr.bf16.mxu0 0
        %6787 = vmatpush1.bf16.msra.mxu0 0
        %6788 = vmatprep.subr.bf16.mxu0 0
        %6789 = vmatpush1.bf16.msra.mxu0 0
        %6790 = vmatprep.subr.bf16.mxu0 0
        %6791 = vmatpush1.bf16.msra.mxu0 0
        %6792 = vmatprep.mubr.bf16.mxu0 0
        %6793 = vmatmul.mubr.bf16.gmra.mrb[0].mxu0 %v6758
        %v6794 = vpop.f32.mrb[0].mxu0
        %v6795 = vadd.f32 %v6755, %v6794
        %v6796 = vpop.f32.mrb[0].mxu0
        %v6797 = vadd.f32 %v6755, %v6796
        %v6798 = vpop.f32.mrb[0].mxu0
        %v6799 = vpop.f32.mrb[0].mxu0
        %6800 = vdwg.mxu0
        %6801 = vmatprep.subr.bf16.mxu0 %v6746
        %6802 = vmatpush1.bf16.msra.mxu0 %v6745
        %6803 = vmatprep.subr.bf16.mxu0 %v6750
        %6804 = vmatpush1.bf16.msra.mxu0 %v6749
        %6805 = vmatprep.subr.bf16.mxu0 0
        %6806 = vmatpush1.bf16.msra.mxu0 0
        %6807 = vmatprep.subr.bf16.mxu0 0
        %6808 = vmatpush1.bf16.msra.mxu0 0
        %6809 = vmatprep.subr.bf16.mxu0 0
        %6810 = vmatpush1.bf16.msra.mxu0 0
        %6811 = vmatprep.subr.bf16.mxu0 0
        %6812 = vmatpush1.bf16.msra.mxu0 0
        %6813 = vmatprep.subr.bf16.mxu0 0
        %6814 = vmatpush1.bf16.msra.mxu0 0
        %6815 = vmatprep.subr.bf16.mxu0 0
        %6816 = vmatpush1.bf16.msra.mxu0 0
        %6817 = vmatprep.subr.bf16.mxu0 0
        %6818 = vmatpush1.bf16.msra.mxu0 0
        %6819 = vmatprep.subr.bf16.mxu0 0
        %6820 = vmatpush1.bf16.msra.mxu0 0
        %6821 = vmatprep.subr.bf16.mxu0 0
        %6822 = vmatpush1.bf16.msra.mxu0 0
        %6823 = vmatprep.subr.bf16.mxu0 0
        %6824 = vmatpush1.bf16.msra.mxu0 0
        %6825 = vmatprep.subr.bf16.mxu0 0
        %6826 = vmatpush1.bf16.msra.mxu0 0
        %6827 = vmatprep.subr.bf16.mxu0 0
        %6828 = vmatpush1.bf16.msra.mxu0 0
        %6829 = vmatprep.subr.bf16.mxu0 0
        %6830 = vmatpush1.bf16.msra.mxu0 0
        %6831 = vmatprep.subr.bf16.mxu0 0
        %6832 = vmatpush1.bf16.msra.mxu0 0
        %6833 = vmatprep.mubr.bf16.mxu0 0
        %6834 = vmatmul.mubr.bf16.gmra.mrb[0].mxu0 %v6758
        %v6835 = vpop.f32.mrb[0].mxu0
        %v6836 = vadd.f32 %v6755, %v6835
        %v6837 = vpop.f32.mrb[0].mxu0
        %v6838 = vadd.f32 %v6755, %v6837
        %v6839 = vpop.f32.mrb[0].mxu0
        %v6840 = vpop.f32.mrb[0].mxu0
        %6841 = vdwg.mxu0
        %v6842 = vxor.u32 %v6795, 2147483648
        %v6843 = vxor.u32 %v6797, 2147483648
        %v6844 = vxor.u32 %v6836, 2147483648
        %v6845 = vxor.u32 %v6838, 2147483648
        %v6846 = vmul.f32 %v6842, 1.442695
        %v6847 = vpow.pop %v6846
        %v6848 = vmul.f32 %v6843, 1.442695
        %v6849 = vpow.pop %v6848
        %v6850 = vmul.f32 %v6844, 1.442695
        %v6851 = vpow.pop %v6850
        %v6852 = vmul.f32 %v6845, 1.442695
        %v6853 = vpow.pop %v6852
        %v6854 = vadd.f32 %v6847, 1.0
        %v6855 = vadd.f32 %v6849, 1.0
        %v6856 = vadd.f32 %v6851, 1.0
        %v6857 = vadd.f32 %v6853, 1.0
        %v6858 = vrcp.pop %v6854
        %v6859 = vmul.f32 1.0, %v6858
        %v6860 = vrcp.pop %v6855
        %v6861 = vmul.f32 1.0, %v6860
        %v6862 = vrcp.pop %v6856
        %v6863 = vmul.f32 1.0, %v6862
        %v6864 = vrcp.pop %v6857
        %v6865 = vmul.f32 1.0, %v6864
        %v6870 = vrot.slane %v6859, 7
        %v6871 = vrot.slane %v6861, 7
        %v6872 = vrot.slane %v6863, 7
        %v6873 = vrot.slane %v6865, 7
        %v6878 = vsel %vm5601, %v1932, %v6870
        %v6879 = vsel %vm5601, %v1933, %v6871
        %v6880 = vsel %vm5601, %v1934, %v6872
        %v6881 = vsel %vm5601, %v1935, %v6873
        %v6886 = vcombine.low %v6878, %v6879
        %v6887 = vcombine.low %v6880, %v6881
        %6890 = vst [vmem:[%s583] sm:$0xff] %v6886
        %6891 = vst [vmem:[%s583 + $0x8] sm:$0xff] %v6887
        %s6892 = smul.u32 4, %s33
        %p6893 = scmp.lt.s32.totalorder %s6892, 15
        %s6894 = scalar_select %p6893, %s6892, 15
        %s6895 = smul.addr %s6894, 4
        %s6896 = scalar_lea.vmem %s12, %s6895
        // Predicated region
        $region109: #{tensorf_forward.1} parent=67 // pred_check
          %p6897 = pneg %p313
        $region110: #{tensorf_forward.1} parent=67 // pred_check_branch
          %6899 = sbr.rel (%p6897) target = $region112
        $region111: #{tensorf_forward.1} parent=67 // pred_region
          %s6900 = smul.u32 4, %s33
        $region112: #{tensorf_forward.1} parent=67 // pred_fallthru
          _
      $region68: #{tensorf_forward.1} parent=5 // pred_fallthru
        _
      %p6901 = scmp.le.s32.totalorder 2, %s28
      // Predicated region
      $region113: #{tensorf_forward.1} parent=5 // pred_check
        %p6902 = pneg %p6901
      $region114: #{tensorf_forward.1} parent=5 // pred_check_branch
        %6904 = sbr.rel (%p6902) target = $region116
      $region115: #{tensorf_forward.1} parent=5 // pred_region
        %s6905 = ssub.s32 %s28, 2
        // Predicated region
        $region117: #{tensorf_forward.1} parent=115 // pred_check
          %p6906 = pneg %p319
        $region118: #{tensorf_forward.1} parent=115 // pred_check_branch
          %6908 = sbr.rel (%p6906) target = $region120
        $region119: #{tensorf_forward.1} parent=115 // pred_region
          %s6909 = smul.u32 4, %s34
          %p6910 = scmp.lt.s32.totalorder %s6909, 15
          %s6911 = scalar_select %p6910, %s6909, 15
          %s6912 = smul.addr %s6911, 4
          %s6913 = scalar_lea.vmem %s12, %s6912
        $region120: #{tensorf_forward.1} parent=115 // pred_fallthru
          _
      $region116: #{tensorf_forward.1} parent=5 // pred_fallthru
        _
    $region6: #{tensorf_forward.1} parent=1 // loop_footer
      %s32 = sadd.s32 1, %s28
    $region7: #{tensorf_forward.1} parent=1 // loop_footer_branch
      %27 = sbr.rel target = $region3
    $region8: #{tensorf_forward.1} parent=1 // loop_exit
      _
    %6914 = vsyncpa [#allocation3], 1
    %s6915 = scalar_lea.sflag [#allocation3], 1
    %6916 = vsyncpa %s6915, 1
    %6917 = vsyncpa [#allocation5], 1
    %s6918 = scalar_lea.sflag [#allocation5], 1
    %6919 = vsyncpa %s6918, 1
    %6920 = vsyncpa [#allocation8], 1
    %6921 = vsyncpa [#allocation11], 1
    %6922 = vsyncpa [#allocation14], 1
    %6923 = vsyncpa [#allocation17], 1

</llo_original>
